<compile_context>
chip_gen: v6e
topology: v6e:2x2x1
jax: 0.10.0
libtpu: 0.0.40
codegen_flags: <defaults>
</compile_context>

<pallas_src>
import functools
import math
import sys

import jax
import jax.numpy as jnp
import numpy as np
from jax import lax
from jax.experimental import pallas as pl
from jax.experimental.pallas import tpu as pltpu


def _erf(x):
    # Abramowitz & Stegun 7.1.26 rational approximation, |err| <= 1.5e-7.
    a1, a2, a3, a4, a5 = 0.254829592, -0.284496736, 1.421413741, -1.453152027, 1.061405429
    p = 0.3275911
    sign = jnp.where(x >= 0.0, 1.0, -1.0)
    ax = jnp.abs(x)
    t = 1.0 / (1.0 + p * ax)
    poly = ((((a5 * t + a4) * t + a3) * t + a2) * t + a1) * t
    return sign * (1.0 - poly * jnp.exp(-ax * ax))


def _gelu(x, approx):
    if approx:
        # tanh-GELU: fewer VALU ops, work lands mostly on the EUP slot.
        c = 0.7978845608028654  # sqrt(2/pi)
        return 0.5 * x * (1.0 + jnp.tanh(c * (x + 0.044715 * x * x * x)))
    # exact erf-GELU (parity with torch.nn.GELU default)
    return 0.5 * x * (1.0 + _erf(x * (1.0 / math.sqrt(2.0))))


def _layernorm(x, gamma, beta, eps=1e-5):
    mu = jnp.mean(x, axis=-1, keepdims=True)
    var = jnp.mean((x - mu) ** 2, axis=-1, keepdims=True)
    return (x - mu) * lax.rsqrt(var + eps) * gamma + beta


def _f32_key(x):
    """Order-preserving map from f32 values to int32 keys (NaNs excluded)."""
    bits = pltpu.bitcast(x, jnp.int32)
    int_min = jnp.int32(-(2 ** 31))
    # negative floats: key = INT_MIN - bits (monotone, no overflow for finite
    # values); non-negative floats: key = bits (already monotone >= 0).
    return jnp.where(bits < 0, int_min - bits, bits)


def _prob_sparse_mask(scores, u, iters):
    """Boolean mask of entries >= the u-th largest value of each row.

    scores: (R, S) f32, one stacked row per (batch, head, query) triple.
    Count-based bisection on order-preserving int32 keys: `iters`=32 pins the
    exact u-th largest key (tie-robust: rows with ties at the threshold keep
    all tied entries, matching a >=-kth-value rule).  `iters` can be lowered
    (~16-20) for an approximate mode.  The body is a single vectorized compare
    + int32 lane reduction over the whole slab per iteration, carried through
    a rolled lax.fori_loop (no per-head unrolled trace).
    """
    key = _f32_key(scores)                                        # (R, S) int32
    # invariant: count(key >= lo) >= u ; count(key >= hi) < u  (needs 1<=u<=S)
    lo = _f32_key(jnp.min(scores, axis=-1, keepdims=True))        # (R, 1)
    hi = _f32_key(jnp.max(scores, axis=-1, keepdims=True)) + 1    # (R, 1)
    u_i = jnp.int32(u)                                            # hoisted

    def body(_, carry):
        lo, hi = carry
        # overflow-free floor((lo + hi) / 2) for signed int32
        mid = (lo & hi) + ((lo ^ hi) >> 1)
        cnt = jnp.sum((key >= mid).astype(jnp.int32), axis=-1, keepdims=True)
        take_hi = cnt >= u_i
        return jnp.where(take_hi, mid, lo), jnp.where(take_hi, hi, mid)

    lo, hi = lax.fori_loop(0, iters, body, (lo, hi))
    return key >= lo


def _encoder_layer_kernel(x_ref, wqkv_ref, bqkv_ref, w1_ref, b1_ref,
                          w2_ref, b2_ref, g1_ref, be1_ref, g2_ref, be2_ref,
                          o_ref, attn_scratch, *, n_heads, top_u, q_chunk,
                          bisect_iters, approx_gelu):
    bt, L, D = x_ref.shape
    H = n_heads
    d = D // H

    x = x_ref[...].reshape(bt * L, D)                    # (Bt*L, D) f32 slab

    # Fused QKV projection: one MXU launch (bf16 operands, f32 accumulation).
    qkv = jnp.dot(x.astype(jnp.bfloat16), wqkv_ref[...],
                  preferred_element_type=jnp.float32) + bqkv_ref[...]
    qkv_bf = qkv.astype(jnp.bfloat16)
    q = qkv_bf[:, :D]
    k = qkv_bf[:, D:2 * D]
    v = qkv_bf[:, 2 * D:]
    kT = k.T                                             # (D, Bt*L): one transpose shared by all heads

    n_chunks = L // q_chunk
    for c in range(n_chunks):                            # static query-row tiling
        q0 = c * q_chunk

        # 1) scores for every (batch, head) pair of this query chunk, stacked
        #    along sublanes into ONE slab for selection + softmax.
        blocks = []
        for b in range(bt):
            for h in range(H):
                qh = q[b * L + q0: b * L + q0 + q_chunk, h * d:(h + 1) * d]
                khT = kT[h * d:(h + 1) * d, b * L:(b + 1) * L]
                # scores[l, s] = sum_d qh[l, d] * khT[d, s] (no 1/sqrt(d),
                # matching the reference module)
                blocks.append(jnp.dot(qh, khT, preferred_element_type=jnp.float32))
        scores = blocks[0] if len(blocks) == 1 else jnp.concatenate(blocks, axis=0)
        # scores: (bt*H*q_chunk, L) f32

        # 2) ProbSparse: keep the U largest scores per query row, zero the rest
        #    (torch.topk + scatter-into-zeros semantics); softmax over the full
        #    row including the zeros, as in the reference module.
        if top_u < L:
            keep = _prob_sparse_mask(scores, top_u, bisect_iters)
            sparse = jnp.where(keep, scores, 0.0)
        else:
            sparse = scores
        m = jnp.max(sparse, axis=-1, keepdims=True)
        e = jnp.exp(sparse - m)
        attn = (e * (1.0 / jnp.sum(e, axis=-1, keepdims=True))).astype(jnp.bfloat16)
        # TODO(synk): dropout on attention weights omitted (identity in eval mode).

        # 3) attn @ V per (batch, head), written into the (Bt*L, D) scratch via
        #    column-slice stores (no lane-relayout concatenate).
        for b in range(bt):
            for h in range(H):
                i = b * H + h
                a = attn[i * q_chunk:(i + 1) * q_chunk, :]
                vh = v[b * L:(b + 1) * L, h * d:(h + 1) * d]
                attn_scratch[b * L + q0: b * L + q0 + q_chunk, h * d:(h + 1) * d] = (
                    jnp.dot(a, vh, preferred_element_type=jnp.float32))

    attn_out = attn_scratch[...]                         # (Bt*L, D) f32

    y = _layernorm(x + attn_out, g1_ref[...], be1_ref[...])      # LN1
    h1 = jnp.dot(y.astype(jnp.bfloat16), w1_ref[...],
                 preferred_element_type=jnp.float32) + b1_ref[...]
    h1 = _gelu(h1, approx_gelu)
    ff = jnp.dot(h1.astype(jnp.bfloat16), w2_ref[...],
                 preferred_element_type=jnp.float32) + b2_ref[...]
    o_ref[...] = _layernorm(y + ff, g2_ref[...], be2_ref[...]).reshape(bt, L, D)


def _tpu_config():
    """Generation-aware knobs.  v7x is uniquely identifiable by its 64 MiB
    per-TensorCore VMEM (and has 2 TCs -> megacore grid sharding wants >=2
    blocks); v5e/v6e have 128 MiB and a single TC."""
    vmem_bytes = 64 << 20                     # conservative fallback
    try:
        vmem_bytes = int(pltpu.get_tpu_info().vmem_capacity_bytes)
    except Exception:
        pass
    small_vmem = vmem_bytes <= (64 << 20)
    return dict(
        two_cores=small_vmem,                              # v7x: 2 TCs per chip
        vmem_cap=int(vmem_bytes * 7 // 8),                 # ~56 MiB v7x / ~112 MiB v5e,v6e
        max_rows=512 if small_vmem else 1024,
        score_budget=(8 << 20) if small_vmem else (24 << 20),
    )


def _pick_block_batch(B, L, *, max_rows, need_two_blocks):
    """Largest Bt dividing B s.t. the activation slab stays VMEM-friendly;
    on 2-TensorCore chips (v7x) keep >= 2 grid blocks so both cores get work,
    on single-TC chips (v5e/v6e) allow a single big block."""
    best = 1
    for bt in range(1, B + 1):
        if B % bt:
            continue
        if need_two_blocks and B >= 2 and B // bt < 2:
            continue
        if bt * L > max_rows:
            continue
        best = bt
    return best


def _pick_q_chunk(L, n_heads, bt, budget_bytes):
    """Largest query-chunk divisor of L whose stacked score/key/keep/exp
    temporaries (~4 f32-sized copies of (bt*H*Tq, L)) fit the budget."""
    best = 1
    for c in range(1, L + 1):
        if L % c:
            continue
        if 16 * bt * n_heads * c * L <= budget_bytes:
            best = c
    return best


def informer_encoder_layer(x, params, *, n_heads, factor=5, block_batch=None,
                           q_chunk=None, weight_buffers=1, bisect_iters=32,
                           approx_gelu=False):
    B, L, D = x.shape
    assert D % n_heads == 0
    top_u = int(factor * math.log(L))
    assert 1 <= top_u <= L, "factor*log(L) must satisfy 1 <= U <= L (torch.topk)"

    cfg = _tpu_config()
    bt = (_pick_block_batch(B, L, max_rows=cfg["max_rows"],
                            need_two_blocks=cfg["two_cores"])
          if block_batch is None else block_batch)
    assert B % bt == 0
    if q_chunk is None:
        q_chunk = _pick_q_chunk(L, n_heads, bt, cfg["score_budget"])
    assert L % q_chunk == 0

    # Fuse Q/K/V projection weights/biases outside the kernel (one-time cost)
    # and convert the matmul weights to bf16 (MXU-native, halves weight VMEM).
    wqkv = jnp.concatenate([params["wq"], params["wk"], params["wv"]],
                           axis=1).astype(jnp.bfloat16)
    bqkv = jnp.concatenate([params["bq"], params["bk"], params["bv"]], axis=1)
    w1 = params["w1"].astype(jnp.bfloat16)
    w2 = params["w2"].astype(jnp.bfloat16)

    kernel = functools.partial(_encoder_layer_kernel, n_heads=n_heads,
                               top_u=top_u, q_chunk=q_chunk,
                               bisect_iters=bisect_iters, approx_gelu=approx_gelu)

    def build(wb):
        def wspec(shape):
            # Grid-invariant weights: single-buffer when supported.
            if wb is None:
                return pl.BlockSpec(shape, lambda i: (0, 0))
            return pl.BlockSpec(shape, lambda i: (0, 0),
                                pipeline_mode=pl.Buffered(wb))

        in_specs = [
            pl.BlockSpec((bt, L, D), lambda i: (i, 0, 0)),   # x
            wspec((D, 3 * D)), wspec((1, 3 * D)),            # Wqkv (bf16), bqkv
            wspec((D, 4 * D)), wspec((1, 4 * D)),            # W1 (bf16), b1
            wspec((4 * D, D)), wspec((1, D)),                # W2 (bf16), b2
            wspec((1, D)), wspec((1, D)),                    # gamma1, beta1
            wspec((1, D)), wspec((1, D)),                    # gamma2, beta2
        ]

        n_buf = 2 if wb is None else max(int(wb), 1)
        # bf16 matmul weights + f32 biases / LN rows, per pipeline buffer
        weight_bytes = n_buf * (2 * 11 * D * D + 4 * 12 * D)
        # double-buffered f32 x / out blocks
        io_bytes = 2 * 2 * bt * L * D * 4
        # simultaneously-live activation slabs: x, qkv (f32 + bf16), attn
        # scratch, y, h1 (f32 + bf16), ff  ~= bt*L*D*(11*4 + 8*2) bytes
        slab_bytes = bt * L * D * (11 * 4 + 8 * 2)
        # per-query-chunk score / int32-key / keep / exp temporaries
        chunk_bytes = 16 * bt * n_heads * q_chunk * L
        vmem_limit = int(min(max(weight_bytes + io_bytes + slab_bytes +
                                 chunk_bytes + (16 << 20), 32 << 20),
                             cfg["vmem_cap"]))

        return pl.pallas_call(
            kernel,
            out_shape=jax.ShapeDtypeStruct((B, L, D), jnp.float32),
            grid_spec=pltpu.PrefetchScalarGridSpec(
                num_scalar_prefetch=0,
                grid=(B // bt,),
                in_specs=in_specs,
                out_specs=pl.BlockSpec((bt, L, D), lambda i: (i, 0, 0)),
                scratch_shapes=[pltpu.VMEM((bt * L, D), jnp.float32)],
            ),
            compiler_params=pltpu.CompilerParams(
                dimension_semantics=("parallel",),
                vmem_limit_bytes=vmem_limit),
        )(x, wqkv, bqkv, w1, params["b1"], w2, params["b2"],
          params["g1"], params["be1"], params["g2"], params["be2"])

    if weight_buffers is not None:
        try:
            return jax.block_until_ready(build(weight_buffers))
        except Exception as e:  # noqa: BLE001
            # pl.Buffered single-buffering unavailable/rejected in this build:
            # log it (doubling weight VMEM matters most on v7x) and rebuild
            # with default double buffering + recomputed VMEM limit.
            print(f"informer_encoder_layer: pl.Buffered({weight_buffers}) weights "
                  f"rejected ({type(e).__name__}); falling back to default "
                  f"double-buffered weights.", file=sys.stderr)
    return build(None)


def reference_jax(x, params, *, n_heads, factor=5, mxu_dtype=jnp.float32):
    """Pure-JAX reference with identical (threshold-based top-U) semantics.

    `mxu_dtype=jnp.bfloat16` mirrors the kernel's matmul arithmetic (bf16
    operands, f32 accumulation) so the comparison tolerance can stay tight;
    `jnp.float32` gives the exact f32 module semantics.
    """
    B, L, D = x.shape
    d = D // n_heads
    U = int(factor * math.log(L))
    c = lambda a: a.astype(mxu_dtype)

    def lin(a, w, b):
        return jnp.einsum("bld,de->ble", c(a), c(w),
                          preferred_element_type=jnp.float32) + b

    q = lin(x, params["wq"], params["bq"]).reshape(B, L, n_heads, d)
    k = lin(x, params["wk"], params["bk"]).reshape(B, L, n_heads, d)
    v = lin(x, params["wv"], params["bv"]).reshape(B, L, n_heads, d)
    scores = jnp.einsum("blhd,bshd->bhls", c(q), c(k),
                        preferred_element_type=jnp.float32)
    kth = jnp.sort(scores, axis=-1)[..., L - U]              # U-th largest per row
    sparse = jnp.where(scores >= kth[..., None], scores, 0.0)
    attn = jax.nn.softmax(sparse, axis=-1)
    out = jnp.einsum("bhls,bshd->blhd", c(attn), c(v),
                     preferred_element_type=jnp.float32).reshape(B, L, D)
    y = _layernorm(x + out, params["g1"], params["be1"])
    h1 = jax.nn.gelu(lin(y, params["w1"], params["b1"]), approximate=False)
    ff = lin(h1, params["w2"], params["b2"])
    return _layernorm(y + ff, params["g2"], params["be2"])


if __name__ == "__main__":
    B, L, D, H = 4, 16, 32, 4          # batch, seq, d_model, heads (U = int(5*ln 16) = 13)
    key = jax.random.PRNGKey(0)
    keys = jax.random.split(key, 12)

    def init(k, shape, scale=0.05):
        return (scale * jax.random.normal(k, shape)).astype(jnp.float32)

    params = dict(
        wq=init(keys[0], (D, D)), bq=init(keys[1], (1, D)),
        wk=init(keys[2], (D, D)), bk=init(keys[3], (1, D)),
        wv=init(keys[4], (D, D)), bv=init(keys[5], (1, D)),
        w1=init(keys[6], (D, 4 * D)), b1=init(keys[7], (1, 4 * D)),
        w2=init(keys[8], (4 * D, D)), b2=init(keys[9], (1, D)),
        g1=jnp.ones((1, D), jnp.float32), be1=jnp.zeros((1, D), jnp.float32),
        g2=jnp.ones((1, D), jnp.float32), be2=jnp.zeros((1, D), jnp.float32),
    )
    x = jax.random.normal(keys[10], (B, L, D), dtype=jnp.float32)

    # Reference with matching bf16-MXU arithmetic (f32 accumulation); residual
    # differences are only accumulation order + the erf polynomial (~1e-7).
    ref = reference_jax(x, params, n_heads=H, factor=5, mxu_dtype=jnp.bfloat16)

    # 1) default heuristics (block batch / query chunk auto-selected)
    out = informer_encoder_layer(x, params, n_heads=H, factor=5)
    out = jax.block_until_ready(out)
    assert out.shape == (B, L, D)
    np.testing.assert_allclose(np.asarray(out), np.asarray(ref), rtol=3e-3, atol=3e-3)

    # 2) exercise the multi-block grid + query-row-chunked attention path
    out2 = informer_encoder_layer(x, params, n_heads=H, factor=5,
                                  block_batch=2, q_chunk=8)
    out2 = jax.block_until_ready(out2)
    np.testing.assert_allclose(np.asarray(out2), np.asarray(ref), rtol=3e-3, atol=3e-3)

    print("KERNEL_OK")
</pallas_src>

<mosaic_0001>
module attributes {stable_mosaic.version = 11 : i64} {
  func.func @_encoder_layer_kernel(%arg0: i32, %arg1: memref<2x16x32xf32, #tpu.memory_space<vmem>>, %arg2: memref<32x96xbf16, #tpu.memory_space<vmem>>, %arg3: memref<1x96xf32, #tpu.memory_space<vmem>>, %arg4: memref<32x128xbf16, #tpu.memory_space<vmem>>, %arg5: memref<1x128xf32, #tpu.memory_space<vmem>>, %arg6: memref<128x32xbf16, #tpu.memory_space<vmem>>, %arg7: memref<1x32xf32, #tpu.memory_space<vmem>>, %arg8: memref<1x32xf32, #tpu.memory_space<vmem>>, %arg9: memref<1x32xf32, #tpu.memory_space<vmem>>, %arg10: memref<1x32xf32, #tpu.memory_space<vmem>>, %arg11: memref<1x32xf32, #tpu.memory_space<vmem>>, %arg12: memref<2x16x32xf32, #tpu.memory_space<vmem>>, %arg13: memref<32x32xf32, #tpu.memory_space<vmem>>) attributes {dimension_semantics = [#tpu.dimension_semantics<parallel>], iteration_bounds = array<i64: 2>, scalar_prefetch = 0 : i64, scratch_operands = 1 : i64, tpu.core_type = #tpu.core_type<tc>, window_params = [{transform_indices = @transform_0, window_bounds = array<i64: 2, 16, 32>}, {pipeline_mode = #tpu.pipeline_mode<synchronous>, transform_indices = @transform_1, window_bounds = array<i64: 32, 96>}, {pipeline_mode = #tpu.pipeline_mode<synchronous>, transform_indices = @transform_2, window_bounds = array<i64: 1, 96>}, {pipeline_mode = #tpu.pipeline_mode<synchronous>, transform_indices = @transform_3, window_bounds = array<i64: 32, 128>}, {pipeline_mode = #tpu.pipeline_mode<synchronous>, transform_indices = @transform_4, window_bounds = array<i64: 1, 128>}, {pipeline_mode = #tpu.pipeline_mode<synchronous>, transform_indices = @transform_5, window_bounds = array<i64: 128, 32>}, {pipeline_mode = #tpu.pipeline_mode<synchronous>, transform_indices = @transform_6, window_bounds = array<i64: 1, 32>}, {pipeline_mode = #tpu.pipeline_mode<synchronous>, transform_indices = @transform_7, window_bounds = array<i64: 1, 32>}, {pipeline_mode = #tpu.pipeline_mode<synchronous>, transform_indices = @transform_8, window_bounds = array<i64: 1, 32>}, {pipeline_mode = #tpu.pipeline_mode<synchronous>, transform_indices = @transform_9, window_bounds = array<i64: 1, 32>}, {pipeline_mode = #tpu.pipeline_mode<synchronous>, transform_indices = @transform_10, window_bounds = array<i64: 1, 32>}, {transform_indices = @transform_11, window_bounds = array<i64: 2, 16, 32>}]} {
    %c0 = arith.constant 0 : index
    %c0_0 = arith.constant 0 : index
    %c0_1 = arith.constant 0 : index
    %0 = vector.load %arg1[%c0, %c0_0, %c0_1] : memref<2x16x32xf32, #tpu.memory_space<vmem>>, vector<2x16x32xf32>
    %1 = vector.shape_cast %0 : vector<2x16x32xf32> to vector<32x32xf32>
    %2 = arith.truncf %1 : vector<32x32xf32> to vector<32x32xbf16>
    %c0_2 = arith.constant 0 : index
    %c0_3 = arith.constant 0 : index
    %3 = vector.load %arg2[%c0_2, %c0_3] : memref<32x96xbf16, #tpu.memory_space<vmem>>, vector<32x96xbf16>
    %cst = arith.constant dense<0.000000e+00> : vector<32x96xf32>
    %4 = tpu.matmul %2, %3, %cst {dimension_numbers = #tpu.dot_dimension_numbers<[1], [0], [0], [1], [0, 0, 1, 1], [], []>} : vector<32x32xbf16>, vector<32x96xbf16>, vector<32x96xf32> -> vector<32x96xf32>
    %c0_4 = arith.constant 0 : index
    %c0_5 = arith.constant 0 : index
    %5 = vector.load %arg3[%c0_4, %c0_5] : memref<1x96xf32, #tpu.memory_space<vmem>>, vector<1x96xf32>
    %6 = vector.broadcast %5 : vector<1x96xf32> to vector<32x96xf32>
    %7 = arith.addf %4, %6 : vector<32x96xf32>
    %8 = arith.truncf %7 : vector<32x96xf32> to vector<32x96xbf16>
    %9 = vector.extract_strided_slice %8 {offsets = [0, 0], sizes = [32, 32], strides = [1, 1]} : vector<32x96xbf16> to vector<32x32xbf16>
    %10 = vector.extract_strided_slice %8 {offsets = [0, 32], sizes = [32, 32], strides = [1, 1]} : vector<32x96xbf16> to vector<32x32xbf16>
    %11 = vector.extract_strided_slice %8 {offsets = [0, 64], sizes = [32, 32], strides = [1, 1]} : vector<32x96xbf16> to vector<32x32xbf16>
    %12 = tpu.transpose %10, [1, 0] : vector<32x32xbf16> -> vector<32x32xbf16>
    %13 = vector.extract_strided_slice %9 {offsets = [0, 0], sizes = [16, 8], strides = [1, 1]} : vector<32x32xbf16> to vector<16x8xbf16>
    %14 = vector.extract_strided_slice %12 {offsets = [0, 0], sizes = [8, 16], strides = [1, 1]} : vector<32x32xbf16> to vector<8x16xbf16>
    %cst_6 = arith.constant dense<0.000000e+00> : vector<16x16xf32>
    %15 = tpu.matmul %13, %14, %cst_6 {dimension_numbers = #tpu.dot_dimension_numbers<[1], [0], [0], [1], [0, 0, 1, 1], [], []>} : vector<16x8xbf16>, vector<8x16xbf16>, vector<16x16xf32> -> vector<16x16xf32>
    %16 = vector.extract_strided_slice %9 {offsets = [0, 8], sizes = [16, 8], strides = [1, 1]} : vector<32x32xbf16> to vector<16x8xbf16>
    %17 = vector.extract_strided_slice %12 {offsets = [8, 0], sizes = [8, 16], strides = [1, 1]} : vector<32x32xbf16> to vector<8x16xbf16>
    %cst_7 = arith.constant dense<0.000000e+00> : vector<16x16xf32>
    %18 = tpu.matmul %16, %17, %cst_7 {dimension_numbers = #tpu.dot_dimension_numbers<[1], [0], [0], [1], [0, 0, 1, 1], [], []>} : vector<16x8xbf16>, vector<8x16xbf16>, vector<16x16xf32> -> vector<16x16xf32>
    %19 = vector.extract_strided_slice %9 {offsets = [0, 16], sizes = [16, 8], strides = [1, 1]} : vector<32x32xbf16> to vector<16x8xbf16>
    %20 = vector.extract_strided_slice %12 {offsets = [16, 0], sizes = [8, 16], strides = [1, 1]} : vector<32x32xbf16> to vector<8x16xbf16>
    %cst_8 = arith.constant dense<0.000000e+00> : vector<16x16xf32>
    %21 = tpu.matmul %19, %20, %cst_8 {dimension_numbers = #tpu.dot_dimension_numbers<[1], [0], [0], [1], [0, 0, 1, 1], [], []>} : vector<16x8xbf16>, vector<8x16xbf16>, vector<16x16xf32> -> vector<16x16xf32>
    %22 = vector.extract_strided_slice %9 {offsets = [0, 24], sizes = [16, 8], strides = [1, 1]} : vector<32x32xbf16> to vector<16x8xbf16>
    %23 = vector.extract_strided_slice %12 {offsets = [24, 0], sizes = [8, 16], strides = [1, 1]} : vector<32x32xbf16> to vector<8x16xbf16>
    %cst_9 = arith.constant dense<0.000000e+00> : vector<16x16xf32>
    %24 = tpu.matmul %22, %23, %cst_9 {dimension_numbers = #tpu.dot_dimension_numbers<[1], [0], [0], [1], [0, 0, 1, 1], [], []>} : vector<16x8xbf16>, vector<8x16xbf16>, vector<16x16xf32> -> vector<16x16xf32>
    %25 = vector.extract_strided_slice %9 {offsets = [16, 0], sizes = [16, 8], strides = [1, 1]} : vector<32x32xbf16> to vector<16x8xbf16>
    %26 = vector.extract_strided_slice %12 {offsets = [0, 16], sizes = [8, 16], strides = [1, 1]} : vector<32x32xbf16> to vector<8x16xbf16>
    %cst_10 = arith.constant dense<0.000000e+00> : vector<16x16xf32>
    %27 = tpu.matmul %25, %26, %cst_10 {dimension_numbers = #tpu.dot_dimension_numbers<[1], [0], [0], [1], [0, 0, 1, 1], [], []>} : vector<16x8xbf16>, vector<8x16xbf16>, vector<16x16xf32> -> vector<16x16xf32>
    %28 = vector.extract_strided_slice %9 {offsets = [16, 8], sizes = [16, 8], strides = [1, 1]} : vector<32x32xbf16> to vector<16x8xbf16>
    %29 = vector.extract_strided_slice %12 {offsets = [8, 16], sizes = [8, 16], strides = [1, 1]} : vector<32x32xbf16> to vector<8x16xbf16>
    %cst_11 = arith.constant dense<0.000000e+00> : vector<16x16xf32>
    %30 = tpu.matmul %28, %29, %cst_11 {dimension_numbers = #tpu.dot_dimension_numbers<[1], [0], [0], [1], [0, 0, 1, 1], [], []>} : vector<16x8xbf16>, vector<8x16xbf16>, vector<16x16xf32> -> vector<16x16xf32>
    %31 = vector.extract_strided_slice %9 {offsets = [16, 16], sizes = [16, 8], strides = [1, 1]} : vector<32x32xbf16> to vector<16x8xbf16>
    %32 = vector.extract_strided_slice %12 {offsets = [16, 16], sizes = [8, 16], strides = [1, 1]} : vector<32x32xbf16> to vector<8x16xbf16>
    %cst_12 = arith.constant dense<0.000000e+00> : vector<16x16xf32>
    %33 = tpu.matmul %31, %32, %cst_12 {dimension_numbers = #tpu.dot_dimension_numbers<[1], [0], [0], [1], [0, 0, 1, 1], [], []>} : vector<16x8xbf16>, vector<8x16xbf16>, vector<16x16xf32> -> vector<16x16xf32>
    %34 = vector.extract_strided_slice %9 {offsets = [16, 24], sizes = [16, 8], strides = [1, 1]} : vector<32x32xbf16> to vector<16x8xbf16>
    %35 = vector.extract_strided_slice %12 {offsets = [24, 16], sizes = [8, 16], strides = [1, 1]} : vector<32x32xbf16> to vector<8x16xbf16>
    %cst_13 = arith.constant dense<0.000000e+00> : vector<16x16xf32>
    %36 = tpu.matmul %34, %35, %cst_13 {dimension_numbers = #tpu.dot_dimension_numbers<[1], [0], [0], [1], [0, 0, 1, 1], [], []>} : vector<16x8xbf16>, vector<8x16xbf16>, vector<16x16xf32> -> vector<16x16xf32>
    %37 = tpu.concatenate %15, %18, %21, %24, %27, %30, %33, %36 in 0 : vector<16x16xf32>, vector<16x16xf32>, vector<16x16xf32>, vector<16x16xf32>, vector<16x16xf32>, vector<16x16xf32>, vector<16x16xf32>, vector<16x16xf32> -> vector<128x16xf32>
    %38 = tpu.bitcast %37 : vector<128x16xf32> -> vector<128x16xi32>
    %c0_i32 = arith.constant 0 : i32
    %39 = vector.broadcast %c0_i32 : i32 to vector<128x16xi32>
    %40 = arith.cmpi slt, %38, %39 : vector<128x16xi32>
    %c-2147483648_i32 = arith.constant -2147483648 : i32
    %41 = vector.broadcast %c-2147483648_i32 : i32 to vector<128x16xi32>
    %42 = arith.subi %41, %38 : vector<128x16xi32>
    %43 = arith.select %40, %42, %38 : vector<128x16xi1>, vector<128x16xi32>
    %cst_14 = arith.constant dense<0x7F800000> : vector<128xf32>
    %44 = vector.multi_reduction <minimumf>, %37, %cst_14 [1] : vector<128x16xf32> to vector<128xf32>
    %45 = vector.shape_cast %44 : vector<128xf32> to vector<128x1xf32>
    %46 = tpu.bitcast %45 : vector<128x1xf32> -> vector<128x1xi32>
    %c0_i32_15 = arith.constant 0 : i32
    %47 = vector.broadcast %c0_i32_15 : i32 to vector<128x1xi32>
    %48 = arith.cmpi slt, %46, %47 : vector<128x1xi32>
    %c-2147483648_i32_16 = arith.constant -2147483648 : i32
    %49 = vector.broadcast %c-2147483648_i32_16 : i32 to vector<128x1xi32>
    %50 = arith.subi %49, %46 : vector<128x1xi32>
    %51 = arith.select %48, %50, %46 : vector<128x1xi1>, vector<128x1xi32>
    %cst_17 = arith.constant dense<0xFF800000> : vector<128xf32>
    %52 = vector.multi_reduction <maximumf>, %37, %cst_17 [1] : vector<128x16xf32> to vector<128xf32>
    %53 = vector.shape_cast %52 : vector<128xf32> to vector<128x1xf32>
    %54 = tpu.bitcast %53 : vector<128x1xf32> -> vector<128x1xi32>
    %c0_i32_18 = arith.constant 0 : i32
    %55 = vector.broadcast %c0_i32_18 : i32 to vector<128x1xi32>
    %56 = arith.cmpi slt, %54, %55 : vector<128x1xi32>
    %c-2147483648_i32_19 = arith.constant -2147483648 : i32
    %57 = vector.broadcast %c-2147483648_i32_19 : i32 to vector<128x1xi32>
    %58 = arith.subi %57, %54 : vector<128x1xi32>
    %59 = arith.select %56, %58, %54 : vector<128x1xi1>, vector<128x1xi32>
    %c1_i32 = arith.constant 1 : i32
    %60 = vector.broadcast %c1_i32 : i32 to vector<128x1xi32>
    %61 = arith.addi %59, %60 : vector<128x1xi32>
    %c13_i32 = arith.constant 13 : i32
    %c0_i32_20 = arith.constant 0 : i32
    %c32_i32 = arith.constant 32 : i32
    %62 = arith.addi %c0_i32_20, %c32_i32 : i32
    %c1_i32_21 = arith.constant 1 : i32
    %63:2 = scf.for %arg14 = %c0_i32_20 to %62 step %c1_i32_21 iter_args(%arg15 = %51, %arg16 = %61) -> (vector<128x1xi32>, vector<128x1xi32>)  : i32 {
      %218 = arith.andi %arg15, %arg16 : vector<128x1xi32>
      %219 = arith.xori %arg15, %arg16 : vector<128x1xi32>
      %c1_i32_96 = arith.constant 1 : i32
      %220 = vector.broadcast %c1_i32_96 : i32 to vector<128x1xi32>
      %221 = arith.shrsi %219, %220 : vector<128x1xi32>
      %222 = arith.addi %218, %221 : vector<128x1xi32>
      %223 = vector.broadcast %222 : vector<128x1xi32> to vector<128x16xi32>
      %224 = arith.cmpi sge, %43, %223 : vector<128x16xi32>
      %225 = arith.extui %224 : vector<128x16xi1> to vector<128x16xi32>
      %cst_97 = arith.constant dense<0> : vector<128xi32>
      %226 = vector.multi_reduction <add>, %225, %cst_97 [1] : vector<128x16xi32> to vector<128xi32>
      %227 = vector.shape_cast %226 : vector<128xi32> to vector<128x1xi32>
      %228 = vector.broadcast %c13_i32 : i32 to vector<128x1xi32>
      %229 = arith.cmpi sge, %227, %228 : vector<128x1xi32>
      %230 = arith.select %229, %222, %arg15 : vector<128x1xi1>, vector<128x1xi32>
      %231 = arith.select %229, %arg16, %222 : vector<128x1xi1>, vector<128x1xi32>
      scf.yield %230, %231 : vector<128x1xi32>, vector<128x1xi32>
    }
    %64 = vector.broadcast %63#0 : vector<128x1xi32> to vector<128x16xi32>
    %65 = arith.cmpi sge, %43, %64 : vector<128x16xi32>
    %cst_22 = arith.constant 0.000000e+00 : f32
    %66 = vector.broadcast %cst_22 : f32 to vector<128x16xf32>
    %67 = arith.select %65, %37, %66 : vector<128x16xi1>, vector<128x16xf32>
    %cst_23 = arith.constant dense<0xFF800000> : vector<128xf32>
    %68 = vector.multi_reduction <maximumf>, %67, %cst_23 [1] : vector<128x16xf32> to vector<128xf32>
    %69 = vector.shape_cast %68 : vector<128xf32> to vector<128x1xf32>
    %70 = vector.broadcast %69 : vector<128x1xf32> to vector<128x16xf32>
    %71 = arith.subf %67, %70 : vector<128x16xf32>
    %72 = math.exp %71 : vector<128x16xf32>
    %cst_24 = arith.constant dense<0.000000e+00> : vector<128xf32>
    %73 = vector.multi_reduction <add>, %72, %cst_24 [1] : vector<128x16xf32> to vector<128xf32>
    %74 = vector.shape_cast %73 : vector<128xf32> to vector<128x1xf32>
    %cst_25 = arith.constant 1.000000e+00 : f32
    %75 = vector.broadcast %cst_25 : f32 to vector<128x1xf32>
    %76 = arith.divf %75, %74 : vector<128x1xf32>
    %77 = vector.broadcast %76 : vector<128x1xf32> to vector<128x16xf32>
    %78 = arith.mulf %72, %77 : vector<128x16xf32>
    %79 = arith.truncf %78 : vector<128x16xf32> to vector<128x16xbf16>
    %80 = vector.extract_strided_slice %79 {offsets = [0, 0], sizes = [16, 16], strides = [1, 1]} : vector<128x16xbf16> to vector<16x16xbf16>
    %81 = vector.extract_strided_slice %11 {offsets = [0, 0], sizes = [16, 8], strides = [1, 1]} : vector<32x32xbf16> to vector<16x8xbf16>
    %cst_26 = arith.constant dense<0.000000e+00> : vector<16x8xf32>
    %82 = tpu.matmul %80, %81, %cst_26 {dimension_numbers = #tpu.dot_dimension_numbers<[1], [0], [0], [1], [0, 0, 1, 1], [], []>} : vector<16x16xbf16>, vector<16x8xbf16>, vector<16x8xf32> -> vector<16x8xf32>
    %c0_27 = arith.constant 0 : index
    %c0_28 = arith.constant 0 : index
    %83 = vector.load %arg13[%c0_27, %c0_28] : memref<32x32xf32, #tpu.memory_space<vmem>>, vector<16x8xf32>
    tpu.vector_store %arg13[%c0_27, %c0_28], %82 {strides = array<i32>} : memref<32x32xf32, #tpu.memory_space<vmem>>, vector<16x8xf32>,
    %84 = vector.extract_strided_slice %79 {offsets = [16, 0], sizes = [16, 16], strides = [1, 1]} : vector<128x16xbf16> to vector<16x16xbf16>
    %85 = vector.extract_strided_slice %11 {offsets = [0, 8], sizes = [16, 8], strides = [1, 1]} : vector<32x32xbf16> to vector<16x8xbf16>
    %cst_29 = arith.constant dense<0.000000e+00> : vector<16x8xf32>
    %86 = tpu.matmul %84, %85, %cst_29 {dimension_numbers = #tpu.dot_dimension_numbers<[1], [0], [0], [1], [0, 0, 1, 1], [], []>} : vector<16x16xbf16>, vector<16x8xbf16>, vector<16x8xf32> -> vector<16x8xf32>
    %c0_30 = arith.constant 0 : index
    %c8 = arith.constant 8 : index
    %87 = vector.load %arg13[%c0_30, %c8] : memref<32x32xf32, #tpu.memory_space<vmem>>, vector<16x8xf32>
    tpu.vector_store %arg13[%c0_30, %c8], %86 {strides = array<i32>} : memref<32x32xf32, #tpu.memory_space<vmem>>, vector<16x8xf32>,
    %88 = vector.extract_strided_slice %79 {offsets = [32, 0], sizes = [16, 16], strides = [1, 1]} : vector<128x16xbf16> to vector<16x16xbf16>
    %89 = vector.extract_strided_slice %11 {offsets = [0, 16], sizes = [16, 8], strides = [1, 1]} : vector<32x32xbf16> to vector<16x8xbf16>
    %cst_31 = arith.constant dense<0.000000e+00> : vector<16x8xf32>
    %90 = tpu.matmul %88, %89, %cst_31 {dimension_numbers = #tpu.dot_dimension_numbers<[1], [0], [0], [1], [0, 0, 1, 1], [], []>} : vector<16x16xbf16>, vector<16x8xbf16>, vector<16x8xf32> -> vector<16x8xf32>
    %c0_32 = arith.constant 0 : index
    %c16 = arith.constant 16 : index
    %91 = vector.load %arg13[%c0_32, %c16] : memref<32x32xf32, #tpu.memory_space<vmem>>, vector<16x8xf32>
    tpu.vector_store %arg13[%c0_32, %c16], %90 {strides = array<i32>} : memref<32x32xf32, #tpu.memory_space<vmem>>, vector<16x8xf32>,
    %92 = vector.extract_strided_slice %79 {offsets = [48, 0], sizes = [16, 16], strides = [1, 1]} : vector<128x16xbf16> to vector<16x16xbf16>
    %93 = vector.extract_strided_slice %11 {offsets = [0, 24], sizes = [16, 8], strides = [1, 1]} : vector<32x32xbf16> to vector<16x8xbf16>
    %cst_33 = arith.constant dense<0.000000e+00> : vector<16x8xf32>
    %94 = tpu.matmul %92, %93, %cst_33 {dimension_numbers = #tpu.dot_dimension_numbers<[1], [0], [0], [1], [0, 0, 1, 1], [], []>} : vector<16x16xbf16>, vector<16x8xbf16>, vector<16x8xf32> -> vector<16x8xf32>
    %c0_34 = arith.constant 0 : index
    %c24 = arith.constant 24 : index
    %95 = vector.load %arg13[%c0_34, %c24] : memref<32x32xf32, #tpu.memory_space<vmem>>, vector<16x8xf32>
    tpu.vector_store %arg13[%c0_34, %c24], %94 {strides = array<i32>} : memref<32x32xf32, #tpu.memory_space<vmem>>, vector<16x8xf32>,
    %96 = vector.extract_strided_slice %79 {offsets = [64, 0], sizes = [16, 16], strides = [1, 1]} : vector<128x16xbf16> to vector<16x16xbf16>
    %97 = vector.extract_strided_slice %11 {offsets = [16, 0], sizes = [16, 8], strides = [1, 1]} : vector<32x32xbf16> to vector<16x8xbf16>
    %cst_35 = arith.constant dense<0.000000e+00> : vector<16x8xf32>
    %98 = tpu.matmul %96, %97, %cst_35 {dimension_numbers = #tpu.dot_dimension_numbers<[1], [0], [0], [1], [0, 0, 1, 1], [], []>} : vector<16x16xbf16>, vector<16x8xbf16>, vector<16x8xf32> -> vector<16x8xf32>
    %c16_36 = arith.constant 16 : index
    %c0_37 = arith.constant 0 : index
    %99 = vector.load %arg13[%c16_36, %c0_37] : memref<32x32xf32, #tpu.memory_space<vmem>>, vector<16x8xf32>
    tpu.vector_store %arg13[%c16_36, %c0_37], %98 {strides = array<i32>} : memref<32x32xf32, #tpu.memory_space<vmem>>, vector<16x8xf32>,
    %100 = vector.extract_strided_slice %79 {offsets = [80, 0], sizes = [16, 16], strides = [1, 1]} : vector<128x16xbf16> to vector<16x16xbf16>
    %101 = vector.extract_strided_slice %11 {offsets = [16, 8], sizes = [16, 8], strides = [1, 1]} : vector<32x32xbf16> to vector<16x8xbf16>
    %cst_38 = arith.constant dense<0.000000e+00> : vector<16x8xf32>
    %102 = tpu.matmul %100, %101, %cst_38 {dimension_numbers = #tpu.dot_dimension_numbers<[1], [0], [0], [1], [0, 0, 1, 1], [], []>} : vector<16x16xbf16>, vector<16x8xbf16>, vector<16x8xf32> -> vector<16x8xf32>
    %c16_39 = arith.constant 16 : index
    %c8_40 = arith.constant 8 : index
    %103 = vector.load %arg13[%c16_39, %c8_40] : memref<32x32xf32, #tpu.memory_space<vmem>>, vector<16x8xf32>
    tpu.vector_store %arg13[%c16_39, %c8_40], %102 {strides = array<i32>} : memref<32x32xf32, #tpu.memory_space<vmem>>, vector<16x8xf32>,
    %104 = vector.extract_strided_slice %79 {offsets = [96, 0], sizes = [16, 16], strides = [1, 1]} : vector<128x16xbf16> to vector<16x16xbf16>
    %105 = vector.extract_strided_slice %11 {offsets = [16, 16], sizes = [16, 8], strides = [1, 1]} : vector<32x32xbf16> to vector<16x8xbf16>
    %cst_41 = arith.constant dense<0.000000e+00> : vector<16x8xf32>
    %106 = tpu.matmul %104, %105, %cst_41 {dimension_numbers = #tpu.dot_dimension_numbers<[1], [0], [0], [1], [0, 0, 1, 1], [], []>} : vector<16x16xbf16>, vector<16x8xbf16>, vector<16x8xf32> -> vector<16x8xf32>
    %c16_42 = arith.constant 16 : index
    %c16_43 = arith.constant 16 : index
    %107 = vector.load %arg13[%c16_42, %c16_43] : memref<32x32xf32, #tpu.memory_space<vmem>>, vector<16x8xf32>
    tpu.vector_store %arg13[%c16_42, %c16_43], %106 {strides = array<i32>} : memref<32x32xf32, #tpu.memory_space<vmem>>, vector<16x8xf32>,
    %108 = vector.extract_strided_slice %79 {offsets = [112, 0], sizes = [16, 16], strides = [1, 1]} : vector<128x16xbf16> to vector<16x16xbf16>
    %109 = vector.extract_strided_slice %11 {offsets = [16, 24], sizes = [16, 8], strides = [1, 1]} : vector<32x32xbf16> to vector<16x8xbf16>
    %cst_44 = arith.constant dense<0.000000e+00> : vector<16x8xf32>
    %110 = tpu.matmul %108, %109, %cst_44 {dimension_numbers = #tpu.dot_dimension_numbers<[1], [0], [0], [1], [0, 0, 1, 1], [], []>} : vector<16x16xbf16>, vector<16x8xbf16>, vector<16x8xf32> -> vector<16x8xf32>
    %c16_45 = arith.constant 16 : index
    %c24_46 = arith.constant 24 : index
    %111 = vector.load %arg13[%c16_45, %c24_46] : memref<32x32xf32, #tpu.memory_space<vmem>>, vector<16x8xf32>
    tpu.vector_store %arg13[%c16_45, %c24_46], %110 {strides = array<i32>} : memref<32x32xf32, #tpu.memory_space<vmem>>, vector<16x8xf32>,
    %c0_47 = arith.constant 0 : index
    %c0_48 = arith.constant 0 : index
    %112 = vector.load %arg13[%c0_47, %c0_48] : memref<32x32xf32, #tpu.memory_space<vmem>>, vector<32x32xf32>
    %113 = arith.addf %1, %112 : vector<32x32xf32>
    %c0_49 = arith.constant 0 : index
    %c0_50 = arith.constant 0 : index
    %114 = vector.load %arg8[%c0_49, %c0_50] : memref<1x32xf32, #tpu.memory_space<vmem>>, vector<1x32xf32>
    %c0_51 = arith.constant 0 : index
    %c0_52 = arith.constant 0 : index
    %115 = vector.load %arg9[%c0_51, %c0_52] : memref<1x32xf32, #tpu.memory_space<vmem>>, vector<1x32xf32>
    %cst_53 = arith.constant dense<0.000000e+00> : vector<32xf32>
    %116 = vector.multi_reduction <add>, %113, %cst_53 [1] : vector<32x32xf32> to vector<32xf32>
    %117 = vector.shape_cast %116 : vector<32xf32> to vector<32x1xf32>
    %cst_54 = arith.constant 3.200000e+01 : f32
    %118 = vector.broadcast %cst_54 : f32 to vector<32x1xf32>
    %119 = arith.divf %117, %118 : vector<32x1xf32>
    %120 = vector.broadcast %119 : vector<32x1xf32> to vector<32x32xf32>
    %121 = arith.subf %113, %120 : vector<32x32xf32>
    %122 = arith.mulf %121, %121 : vector<32x32xf32>
    %cst_55 = arith.constant dense<0.000000e+00> : vector<32xf32>
    %123 = vector.multi_reduction <add>, %122, %cst_55 [1] : vector<32x32xf32> to vector<32xf32>
    %124 = vector.shape_cast %123 : vector<32xf32> to vector<32x1xf32>
    %cst_56 = arith.constant 3.200000e+01 : f32
    %125 = vector.broadcast %cst_56 : f32 to vector<32x1xf32>
    %126 = arith.divf %124, %125 : vector<32x1xf32>
    %127 = vector.broadcast %119 : vector<32x1xf32> to vector<32x32xf32>
    %128 = arith.subf %113, %127 : vector<32x32xf32>
    %cst_57 = arith.constant 9.99999974E-6 : f32
    %129 = vector.broadcast %cst_57 : f32 to vector<32x1xf32>
    %130 = arith.addf %126, %129 : vector<32x1xf32>
    %131 = math.rsqrt %130 : vector<32x1xf32>
    %132 = vector.broadcast %131 : vector<32x1xf32> to vector<32x32xf32>
    %133 = arith.mulf %128, %132 : vector<32x32xf32>
    %134 = vector.broadcast %114 : vector<1x32xf32> to vector<32x32xf32>
    %135 = arith.mulf %133, %134 : vector<32x32xf32>
    %136 = vector.broadcast %115 : vector<1x32xf32> to vector<32x32xf32>
    %137 = arith.addf %135, %136 : vector<32x32xf32>
    %138 = arith.truncf %137 : vector<32x32xf32> to vector<32x32xbf16>
    %c0_58 = arith.constant 0 : index
    %c0_59 = arith.constant 0 : index
    %139 = vector.load %arg4[%c0_58, %c0_59] : memref<32x128xbf16, #tpu.memory_space<vmem>>, vector<32x128xbf16>
    %cst_60 = arith.constant dense<0.000000e+00> : vector<32x128xf32>
    %140 = tpu.matmul %138, %139, %cst_60 {dimension_numbers = #tpu.dot_dimension_numbers<[1], [0], [0], [1], [0, 0, 1, 1], [], []>} : vector<32x32xbf16>, vector<32x128xbf16>, vector<32x128xf32> -> vector<32x128xf32>
    %c0_61 = arith.constant 0 : index
    %c0_62 = arith.constant 0 : index
    %141 = vector.load %arg5[%c0_61, %c0_62] : memref<1x128xf32, #tpu.memory_space<vmem>>, vector<1x128xf32>
    %142 = vector.broadcast %141 : vector<1x128xf32> to vector<32x128xf32>
    %143 = arith.addf %140, %142 : vector<32x128xf32>
    %cst_63 = arith.constant 5.000000e-01 : f32
    %144 = vector.broadcast %cst_63 : f32 to vector<32x128xf32>
    %145 = arith.mulf %144, %143 : vector<32x128xf32>
    %cst_64 = arith.constant 0.707106769 : f32
    %146 = vector.broadcast %cst_64 : f32 to vector<32x128xf32>
    %147 = arith.mulf %143, %146 : vector<32x128xf32>
    %cst_65 = arith.constant 0.000000e+00 : f32
    %148 = vector.broadcast %cst_65 : f32 to vector<32x128xf32>
    %149 = arith.cmpf oge, %147, %148 : vector<32x128xf32>
    %cst_66 = arith.constant 1.000000e+00 : f32
    %cst_67 = arith.constant -1.000000e+00 : f32
    %150 = vector.broadcast %cst_66 : f32 to vector<32x128xf32>
    %151 = vector.broadcast %cst_67 : f32 to vector<32x128xf32>
    %152 = arith.select %149, %150, %151 : vector<32x128xi1>, vector<32x128xf32>
    %153 = math.absf %147 : vector<32x128xf32>
    %cst_68 = arith.constant 0.327591091 : f32
    %154 = vector.broadcast %cst_68 : f32 to vector<32x128xf32>
    %155 = arith.mulf %154, %153 : vector<32x128xf32>
    %cst_69 = arith.constant 1.000000e+00 : f32
    %156 = vector.broadcast %cst_69 : f32 to vector<32x128xf32>
    %157 = arith.addf %156, %155 : vector<32x128xf32>
    %cst_70 = arith.constant 1.000000e+00 : f32
    %158 = vector.broadcast %cst_70 : f32 to vector<32x128xf32>
    %159 = arith.divf %158, %157 : vector<32x128xf32>
    %cst_71 = arith.constant 1.06140542 : f32
    %160 = vector.broadcast %cst_71 : f32 to vector<32x128xf32>
    %161 = arith.mulf %160, %159 : vector<32x128xf32>
    %cst_72 = arith.constant -1.45315206 : f32
    %162 = vector.broadcast %cst_72 : f32 to vector<32x128xf32>
    %163 = arith.addf %161, %162 : vector<32x128xf32>
    %164 = arith.mulf %163, %159 : vector<32x128xf32>
    %cst_73 = arith.constant 1.42141378 : f32
    %165 = vector.broadcast %cst_73 : f32 to vector<32x128xf32>
    %166 = arith.addf %164, %165 : vector<32x128xf32>
    %167 = arith.mulf %166, %159 : vector<32x128xf32>
    %cst_74 = arith.constant -0.284496725 : f32
    %168 = vector.broadcast %cst_74 : f32 to vector<32x128xf32>
    %169 = arith.addf %167, %168 : vector<32x128xf32>
    %170 = arith.mulf %169, %159 : vector<32x128xf32>
    %cst_75 = arith.constant 0.254829586 : f32
    %171 = vector.broadcast %cst_75 : f32 to vector<32x128xf32>
    %172 = arith.addf %170, %171 : vector<32x128xf32>
    %173 = arith.mulf %172, %159 : vector<32x128xf32>
    %cst_76 = arith.constant 0.000000e+00 : f32
    %174 = vector.broadcast %cst_76 : f32 to vector<32x128xf32>
    %175 = arith.subf %174, %153 : vector<32x128xf32>
    %176 = arith.mulf %175, %153 : vector<32x128xf32>
    %177 = math.exp %176 : vector<32x128xf32>
    %178 = arith.mulf %173, %177 : vector<32x128xf32>
    %cst_77 = arith.constant 1.000000e+00 : f32
    %179 = vector.broadcast %cst_77 : f32 to vector<32x128xf32>
    %180 = arith.subf %179, %178 : vector<32x128xf32>
    %181 = arith.mulf %152, %180 : vector<32x128xf32>
    %cst_78 = arith.constant 1.000000e+00 : f32
    %182 = vector.broadcast %cst_78 : f32 to vector<32x128xf32>
    %183 = arith.addf %182, %181 : vector<32x128xf32>
    %184 = arith.mulf %145, %183 : vector<32x128xf32>
    %185 = arith.truncf %184 : vector<32x128xf32> to vector<32x128xbf16>
    %c0_79 = arith.constant 0 : index
    %c0_80 = arith.constant 0 : index
    %186 = vector.load %arg6[%c0_79, %c0_80] : memref<128x32xbf16, #tpu.memory_space<vmem>>, vector<128x32xbf16>
    %cst_81 = arith.constant dense<0.000000e+00> : vector<32x32xf32>
    %187 = tpu.matmul %185, %186, %cst_81 {dimension_numbers = #tpu.dot_dimension_numbers<[1], [0], [0], [1], [0, 0, 1, 1], [], []>} : vector<32x128xbf16>, vector<128x32xbf16>, vector<32x32xf32> -> vector<32x32xf32>
    %c0_82 = arith.constant 0 : index
    %c0_83 = arith.constant 0 : index
    %188 = vector.load %arg7[%c0_82, %c0_83] : memref<1x32xf32, #tpu.memory_space<vmem>>, vector<1x32xf32>
    %189 = vector.broadcast %188 : vector<1x32xf32> to vector<32x32xf32>
    %190 = arith.addf %187, %189 : vector<32x32xf32>
    %191 = arith.addf %137, %190 : vector<32x32xf32>
    %c0_84 = arith.constant 0 : index
    %c0_85 = arith.constant 0 : index
    %192 = vector.load %arg10[%c0_84, %c0_85] : memref<1x32xf32, #tpu.memory_space<vmem>>, vector<1x32xf32>
    %c0_86 = arith.constant 0 : index
    %c0_87 = arith.constant 0 : index
    %193 = vector.load %arg11[%c0_86, %c0_87] : memref<1x32xf32, #tpu.memory_space<vmem>>, vector<1x32xf32>
    %cst_88 = arith.constant dense<0.000000e+00> : vector<32xf32>
    %194 = vector.multi_reduction <add>, %191, %cst_88 [1] : vector<32x32xf32> to vector<32xf32>
    %195 = vector.shape_cast %194 : vector<32xf32> to vector<32x1xf32>
    %cst_89 = arith.constant 3.200000e+01 : f32
    %196 = vector.broadcast %cst_89 : f32 to vector<32x1xf32>
    %197 = arith.divf %195, %196 : vector<32x1xf32>
    %198 = vector.broadcast %197 : vector<32x1xf32> to vector<32x32xf32>
    %199 = arith.subf %191, %198 : vector<32x32xf32>
    %200 = arith.mulf %199, %199 : vector<32x32xf32>
    %cst_90 = arith.constant dense<0.000000e+00> : vector<32xf32>
    %201 = vector.multi_reduction <add>, %200, %cst_90 [1] : vector<32x32xf32> to vector<32xf32>
    %202 = vector.shape_cast %201 : vector<32xf32> to vector<32x1xf32>
    %cst_91 = arith.constant 3.200000e+01 : f32
    %203 = vector.broadcast %cst_91 : f32 to vector<32x1xf32>
    %204 = arith.divf %202, %203 : vector<32x1xf32>
    %205 = vector.broadcast %197 : vector<32x1xf32> to vector<32x32xf32>
    %206 = arith.subf %191, %205 : vector<32x32xf32>
    %cst_92 = arith.constant 9.99999974E-6 : f32
    %207 = vector.broadcast %cst_92 : f32 to vector<32x1xf32>
    %208 = arith.addf %204, %207 : vector<32x1xf32>
    %209 = math.rsqrt %208 : vector<32x1xf32>
    %210 = vector.broadcast %209 : vector<32x1xf32> to vector<32x32xf32>
    %211 = arith.mulf %206, %210 : vector<32x32xf32>
    %212 = vector.broadcast %192 : vector<1x32xf32> to vector<32x32xf32>
    %213 = arith.mulf %211, %212 : vector<32x32xf32>
    %214 = vector.broadcast %193 : vector<1x32xf32> to vector<32x32xf32>
    %215 = arith.addf %213, %214 : vector<32x32xf32>
    %216 = vector.shape_cast %215 : vector<32x32xf32> to vector<2x16x32xf32>
    %c0_93 = arith.constant 0 : index
    %c0_94 = arith.constant 0 : index
    %c0_95 = arith.constant 0 : index
    %217 = vector.load %arg12[%c0_93, %c0_94, %c0_95] : memref<2x16x32xf32, #tpu.memory_space<vmem>>, vector<2x16x32xf32>
    tpu.vector_store %arg12[%c0_93, %c0_94, %c0_95], %216 {strides = array<i32>} : memref<2x16x32xf32, #tpu.memory_space<vmem>>, vector<2x16x32xf32>,
    return
  }
  func.func @transform_0(%arg0: i32) -> (i32, i32, i32) {
    %c0_i32 = arith.constant 0 : i32
    %c0_i32_0 = arith.constant 0 : i32
    %c0_i32_1 = arith.constant 0 : i32
    return %arg0, %c0_i32, %c0_i32_0 : i32, i32, i32
  }
  func.func @transform_1(%arg0: i32) -> (i32, i32) {
    %c0_i32 = arith.constant 0 : i32
    %c0_i32_0 = arith.constant 0 : i32
    %c0_i32_1 = arith.constant 0 : i32
    return %c0_i32, %c0_i32_0 : i32, i32
  }
  func.func @transform_2(%arg0: i32) -> (i32, i32) {
    %c0_i32 = arith.constant 0 : i32
    %c0_i32_0 = arith.constant 0 : i32
    %c0_i32_1 = arith.constant 0 : i32
    return %c0_i32, %c0_i32_0 : i32, i32
  }
  func.func @transform_3(%arg0: i32) -> (i32, i32) {
    %c0_i32 = arith.constant 0 : i32
    %c0_i32_0 = arith.constant 0 : i32
    %c0_i32_1 = arith.constant 0 : i32
    return %c0_i32, %c0_i32_0 : i32, i32
  }
  func.func @transform_4(%arg0: i32) -> (i32, i32) {
    %c0_i32 = arith.constant 0 : i32
    %c0_i32_0 = arith.constant 0 : i32
    %c0_i32_1 = arith.constant 0 : i32
    return %c0_i32, %c0_i32_0 : i32, i32
  }
  func.func @transform_5(%arg0: i32) -> (i32, i32) {
    %c0_i32 = arith.constant 0 : i32
    %c0_i32_0 = arith.constant 0 : i32
    %c0_i32_1 = arith.constant 0 : i32
    return %c0_i32, %c0_i32_0 : i32, i32
  }
  func.func @transform_6(%arg0: i32) -> (i32, i32) {
    %c0_i32 = arith.constant 0 : i32
    %c0_i32_0 = arith.constant 0 : i32
    %c0_i32_1 = arith.constant 0 : i32
    return %c0_i32, %c0_i32_0 : i32, i32
  }
  func.func @transform_7(%arg0: i32) -> (i32, i32) {
    %c0_i32 = arith.constant 0 : i32
    %c0_i32_0 = arith.constant 0 : i32
    %c0_i32_1 = arith.constant 0 : i32
    return %c0_i32, %c0_i32_0 : i32, i32
  }
  func.func @transform_8(%arg0: i32) -> (i32, i32) {
    %c0_i32 = arith.constant 0 : i32
    %c0_i32_0 = arith.constant 0 : i32
    %c0_i32_1 = arith.constant 0 : i32
    return %c0_i32, %c0_i32_0 : i32, i32
  }
  func.func @transform_9(%arg0: i32) -> (i32, i32) {
    %c0_i32 = arith.constant 0 : i32
    %c0_i32_0 = arith.constant 0 : i32
    %c0_i32_1 = arith.constant 0 : i32
    return %c0_i32, %c0_i32_0 : i32, i32
  }
  func.func @transform_10(%arg0: i32) -> (i32, i32) {
    %c0_i32 = arith.constant 0 : i32
    %c0_i32_0 = arith.constant 0 : i32
    %c0_i32_1 = arith.constant 0 : i32
    return %c0_i32, %c0_i32_0 : i32, i32
  }
  func.func @transform_11(%arg0: i32) -> (i32, i32, i32) {
    %c0_i32 = arith.constant 0 : i32
    %c0_i32_0 = arith.constant 0 : i32
    %c0_i32_1 = arith.constant 0 : i32
    return %arg0, %c0_i32, %c0_i32_0 : i32, i32, i32
  }
}

module attributes {stable_mosaic.version = 11 : i64} {
  func.func @_encoder_layer_kernel(%arg0: i32, %arg1: memref<2x16x32xf32, #tpu.memory_space<vmem>>, %arg2: memref<32x96xbf16, #tpu.memory_space<vmem>>, %arg3: memref<1x96xf32, #tpu.memory_space<vmem>>, %arg4: memref<32x128xbf16, #tpu.memory_space<vmem>>, %arg5: memref<1x128xf32, #tpu.memory_space<vmem>>, %arg6: memref<128x32xbf16, #tpu.memory_space<vmem>>, %arg7: memref<1x32xf32, #tpu.memory_space<vmem>>, %arg8: memref<1x32xf32, #tpu.memory_space<vmem>>, %arg9: memref<1x32xf32, #tpu.memory_space<vmem>>, %arg10: memref<1x32xf32, #tpu.memory_space<vmem>>, %arg11: memref<1x32xf32, #tpu.memory_space<vmem>>, %arg12: memref<2x16x32xf32, #tpu.memory_space<vmem>>, %arg13: memref<32x32xf32, #tpu.memory_space<vmem>>) attributes {dimension_semantics = [#tpu.dimension_semantics<parallel>], iteration_bounds = array<i64: 2>, scalar_prefetch = 0 : i64, scratch_operands = 1 : i64, tpu.core_type = #tpu.core_type<tc>, window_params = [{transform_indices = @transform_0, window_bounds = array<i64: 2, 16, 32>}, {pipeline_mode = #tpu.pipeline_mode<synchronous>, transform_indices = @transform_1, window_bounds = array<i64: 32, 96>}, {pipeline_mode = #tpu.pipeline_mode<synchronous>, transform_indices = @transform_2, window_bounds = array<i64: 1, 96>}, {pipeline_mode = #tpu.pipeline_mode<synchronous>, transform_indices = @transform_3, window_bounds = array<i64: 32, 128>}, {pipeline_mode = #tpu.pipeline_mode<synchronous>, transform_indices = @transform_4, window_bounds = array<i64: 1, 128>}, {pipeline_mode = #tpu.pipeline_mode<synchronous>, transform_indices = @transform_5, window_bounds = array<i64: 128, 32>}, {pipeline_mode = #tpu.pipeline_mode<synchronous>, transform_indices = @transform_6, window_bounds = array<i64: 1, 32>}, {pipeline_mode = #tpu.pipeline_mode<synchronous>, transform_indices = @transform_7, window_bounds = array<i64: 1, 32>}, {pipeline_mode = #tpu.pipeline_mode<synchronous>, transform_indices = @transform_8, window_bounds = array<i64: 1, 32>}, {pipeline_mode = #tpu.pipeline_mode<synchronous>, transform_indices = @transform_9, window_bounds = array<i64: 1, 32>}, {pipeline_mode = #tpu.pipeline_mode<synchronous>, transform_indices = @transform_10, window_bounds = array<i64: 1, 32>}, {transform_indices = @transform_11, window_bounds = array<i64: 2, 16, 32>}]} {
    %c0 = arith.constant 0 : index
    %c0_0 = arith.constant 0 : index
    %c0_1 = arith.constant 0 : index
    %0 = vector.load %arg1[%c0, %c0_0, %c0_1] : memref<2x16x32xf32, #tpu.memory_space<vmem>>, vector<2x16x32xf32>
    %1 = vector.shape_cast %0 : vector<2x16x32xf32> to vector<32x32xf32>
    %2 = arith.truncf %1 : vector<32x32xf32> to vector<32x32xbf16>
    %c0_2 = arith.constant 0 : index
    %c0_3 = arith.constant 0 : index
    %3 = vector.load %arg2[%c0_2, %c0_3] : memref<32x96xbf16, #tpu.memory_space<vmem>>, vector<32x96xbf16>
    %cst = arith.constant dense<0.000000e+00> : vector<32x96xf32>
    %4 = tpu.matmul %2, %3, %cst {dimension_numbers = #tpu.dot_dimension_numbers<[1], [0], [0], [1], [0, 0, 1, 1], [], []>} : vector<32x32xbf16>, vector<32x96xbf16>, vector<32x96xf32> -> vector<32x96xf32>
    %c0_4 = arith.constant 0 : index
    %c0_5 = arith.constant 0 : index
    %5 = vector.load %arg3[%c0_4, %c0_5] : memref<1x96xf32, #tpu.memory_space<vmem>>, vector<1x96xf32>
    %6 = vector.broadcast %5 : vector<1x96xf32> to vector<32x96xf32>
    %7 = arith.addf %4, %6 : vector<32x96xf32>
    %8 = arith.truncf %7 : vector<32x96xf32> to vector<32x96xbf16>
    %9 = vector.extract_strided_slice %8 {offsets = [0, 0], sizes = [32, 32], strides = [1, 1]} : vector<32x96xbf16> to vector<32x32xbf16>
    %10 = vector.extract_strided_slice %8 {offsets = [0, 32], sizes = [32, 32], strides = [1, 1]} : vector<32x96xbf16> to vector<32x32xbf16>
    %11 = vector.extract_strided_slice %8 {offsets = [0, 64], sizes = [32, 32], strides = [1, 1]} : vector<32x96xbf16> to vector<32x32xbf16>
    %12 = tpu.transpose %10, [1, 0] : vector<32x32xbf16> -> vector<32x32xbf16>
    %13 = vector.extract_strided_slice %9 {offsets = [0, 0], sizes = [16, 8], strides = [1, 1]} : vector<32x32xbf16> to vector<16x8xbf16>
    %14 = vector.extract_strided_slice %12 {offsets = [0, 0], sizes = [8, 16], strides = [1, 1]} : vector<32x32xbf16> to vector<8x16xbf16>
    %cst_6 = arith.constant dense<0.000000e+00> : vector<16x16xf32>
    %15 = tpu.matmul %13, %14, %cst_6 {dimension_numbers = #tpu.dot_dimension_numbers<[1], [0], [0], [1], [0, 0, 1, 1], [], []>} : vector<16x8xbf16>, vector<8x16xbf16>, vector<16x16xf32> -> vector<16x16xf32>
    %16 = vector.extract_strided_slice %9 {offsets = [0, 8], sizes = [16, 8], strides = [1, 1]} : vector<32x32xbf16> to vector<16x8xbf16>
    %17 = vector.extract_strided_slice %12 {offsets = [8, 0], sizes = [8, 16], strides = [1, 1]} : vector<32x32xbf16> to vector<8x16xbf16>
    %cst_7 = arith.constant dense<0.000000e+00> : vector<16x16xf32>
    %18 = tpu.matmul %16, %17, %cst_7 {dimension_numbers = #tpu.dot_dimension_numbers<[1], [0], [0], [1], [0, 0, 1, 1], [], []>} : vector<16x8xbf16>, vector<8x16xbf16>, vector<16x16xf32> -> vector<16x16xf32>
    %19 = vector.extract_strided_slice %9 {offsets = [0, 16], sizes = [16, 8], strides = [1, 1]} : vector<32x32xbf16> to vector<16x8xbf16>
    %20 = vector.extract_strided_slice %12 {offsets = [16, 0], sizes = [8, 16], strides = [1, 1]} : vector<32x32xbf16> to vector<8x16xbf16>
    %cst_8 = arith.constant dense<0.000000e+00> : vector<16x16xf32>
    %21 = tpu.matmul %19, %20, %cst_8 {dimension_numbers = #tpu.dot_dimension_numbers<[1], [0], [0], [1], [0, 0, 1, 1], [], []>} : vector<16x8xbf16>, vector<8x16xbf16>, vector<16x16xf32> -> vector<16x16xf32>
    %22 = vector.extract_strided_slice %9 {offsets = [0, 24], sizes = [16, 8], strides = [1, 1]} : vector<32x32xbf16> to vector<16x8xbf16>
    %23 = vector.extract_strided_slice %12 {offsets = [24, 0], sizes = [8, 16], strides = [1, 1]} : vector<32x32xbf16> to vector<8x16xbf16>
    %cst_9 = arith.constant dense<0.000000e+00> : vector<16x16xf32>
    %24 = tpu.matmul %22, %23, %cst_9 {dimension_numbers = #tpu.dot_dimension_numbers<[1], [0], [0], [1], [0, 0, 1, 1], [], []>} : vector<16x8xbf16>, vector<8x16xbf16>, vector<16x16xf32> -> vector<16x16xf32>
    %25 = vector.extract_strided_slice %9 {offsets = [16, 0], sizes = [16, 8], strides = [1, 1]} : vector<32x32xbf16> to vector<16x8xbf16>
    %26 = vector.extract_strided_slice %12 {offsets = [0, 16], sizes = [8, 16], strides = [1, 1]} : vector<32x32xbf16> to vector<8x16xbf16>
    %cst_10 = arith.constant dense<0.000000e+00> : vector<16x16xf32>
    %27 = tpu.matmul %25, %26, %cst_10 {dimension_numbers = #tpu.dot_dimension_numbers<[1], [0], [0], [1], [0, 0, 1, 1], [], []>} : vector<16x8xbf16>, vector<8x16xbf16>, vector<16x16xf32> -> vector<16x16xf32>
    %28 = vector.extract_strided_slice %9 {offsets = [16, 8], sizes = [16, 8], strides = [1, 1]} : vector<32x32xbf16> to vector<16x8xbf16>
    %29 = vector.extract_strided_slice %12 {offsets = [8, 16], sizes = [8, 16], strides = [1, 1]} : vector<32x32xbf16> to vector<8x16xbf16>
    %cst_11 = arith.constant dense<0.000000e+00> : vector<16x16xf32>
    %30 = tpu.matmul %28, %29, %cst_11 {dimension_numbers = #tpu.dot_dimension_numbers<[1], [0], [0], [1], [0, 0, 1, 1], [], []>} : vector<16x8xbf16>, vector<8x16xbf16>, vector<16x16xf32> -> vector<16x16xf32>
    %31 = vector.extract_strided_slice %9 {offsets = [16, 16], sizes = [16, 8], strides = [1, 1]} : vector<32x32xbf16> to vector<16x8xbf16>
    %32 = vector.extract_strided_slice %12 {offsets = [16, 16], sizes = [8, 16], strides = [1, 1]} : vector<32x32xbf16> to vector<8x16xbf16>
    %cst_12 = arith.constant dense<0.000000e+00> : vector<16x16xf32>
    %33 = tpu.matmul %31, %32, %cst_12 {dimension_numbers = #tpu.dot_dimension_numbers<[1], [0], [0], [1], [0, 0, 1, 1], [], []>} : vector<16x8xbf16>, vector<8x16xbf16>, vector<16x16xf32> -> vector<16x16xf32>
    %34 = vector.extract_strided_slice %9 {offsets = [16, 24], sizes = [16, 8], strides = [1, 1]} : vector<32x32xbf16> to vector<16x8xbf16>
    %35 = vector.extract_strided_slice %12 {offsets = [24, 16], sizes = [8, 16], strides = [1, 1]} : vector<32x32xbf16> to vector<8x16xbf16>
    %cst_13 = arith.constant dense<0.000000e+00> : vector<16x16xf32>
    %36 = tpu.matmul %34, %35, %cst_13 {dimension_numbers = #tpu.dot_dimension_numbers<[1], [0], [0], [1], [0, 0, 1, 1], [], []>} : vector<16x8xbf16>, vector<8x16xbf16>, vector<16x16xf32> -> vector<16x16xf32>
    %37 = tpu.concatenate %15, %18, %21, %24, %27, %30, %33, %36 in 0 : vector<16x16xf32>, vector<16x16xf32>, vector<16x16xf32>, vector<16x16xf32>, vector<16x16xf32>, vector<16x16xf32>, vector<16x16xf32>, vector<16x16xf32> -> vector<128x16xf32>
    %38 = tpu.bitcast %37 : vector<128x16xf32> -> vector<128x16xi32>
    %c0_i32 = arith.constant 0 : i32
    %39 = vector.broadcast %c0_i32 : i32 to vector<128x16xi32>
    %40 = arith.cmpi slt, %38, %39 : vector<128x16xi32>
    %c-2147483648_i32 = arith.constant -2147483648 : i32
    %41 = vector.broadcast %c-2147483648_i32 : i32 to vector<128x16xi32>
    %42 = arith.subi %41, %38 : vector<128x16xi32>
    %43 = arith.select %40, %42, %38 : vector<128x16xi1>, vector<128x16xi32>
    %cst_14 = arith.constant dense<0x7F800000> : vector<128xf32>
    %44 = vector.multi_reduction <minimumf>, %37, %cst_14 [1] : vector<128x16xf32> to vector<128xf32>
    %45 = vector.shape_cast %44 : vector<128xf32> to vector<128x1xf32>
    %46 = tpu.bitcast %45 : vector<128x1xf32> -> vector<128x1xi32>
    %c0_i32_15 = arith.constant 0 : i32
    %47 = vector.broadcast %c0_i32_15 : i32 to vector<128x1xi32>
    %48 = arith.cmpi slt, %46, %47 : vector<128x1xi32>
    %c-2147483648_i32_16 = arith.constant -2147483648 : i32
    %49 = vector.broadcast %c-2147483648_i32_16 : i32 to vector<128x1xi32>
    %50 = arith.subi %49, %46 : vector<128x1xi32>
    %51 = arith.select %48, %50, %46 : vector<128x1xi1>, vector<128x1xi32>
    %cst_17 = arith.constant dense<0xFF800000> : vector<128xf32>
    %52 = vector.multi_reduction <maximumf>, %37, %cst_17 [1] : vector<128x16xf32> to vector<128xf32>
    %53 = vector.shape_cast %52 : vector<128xf32> to vector<128x1xf32>
    %54 = tpu.bitcast %53 : vector<128x1xf32> -> vector<128x1xi32>
    %c0_i32_18 = arith.constant 0 : i32
    %55 = vector.broadcast %c0_i32_18 : i32 to vector<128x1xi32>
    %56 = arith.cmpi slt, %54, %55 : vector<128x1xi32>
    %c-2147483648_i32_19 = arith.constant -2147483648 : i32
    %57 = vector.broadcast %c-2147483648_i32_19 : i32 to vector<128x1xi32>
    %58 = arith.subi %57, %54 : vector<128x1xi32>
    %59 = arith.select %56, %58, %54 : vector<128x1xi1>, vector<128x1xi32>
    %c1_i32 = arith.constant 1 : i32
    %60 = vector.broadcast %c1_i32 : i32 to vector<128x1xi32>
    %61 = arith.addi %59, %60 : vector<128x1xi32>
    %c13_i32 = arith.constant 13 : i32
    %c0_i32_20 = arith.constant 0 : i32
    %c32_i32 = arith.constant 32 : i32
    %62 = arith.addi %c0_i32_20, %c32_i32 : i32
    %c1_i32_21 = arith.constant 1 : i32
    %63:2 = scf.for %arg14 = %c0_i32_20 to %62 step %c1_i32_21 iter_args(%arg15 = %51, %arg16 = %61) -> (vector<128x1xi32>, vector<128x1xi32>)  : i32 {
      %218 = arith.andi %arg15, %arg16 : vector<128x1xi32>
      %219 = arith.xori %arg15, %arg16 : vector<128x1xi32>
      %c1_i32_96 = arith.constant 1 : i32
      %220 = vector.broadcast %c1_i32_96 : i32 to vector<128x1xi32>
      %221 = arith.shrsi %219, %220 : vector<128x1xi32>
      %222 = arith.addi %218, %221 : vector<128x1xi32>
      %223 = vector.broadcast %222 : vector<128x1xi32> to vector<128x16xi32>
      %224 = arith.cmpi sge, %43, %223 : vector<128x16xi32>
      %225 = arith.extui %224 : vector<128x16xi1> to vector<128x16xi32>
      %cst_97 = arith.constant dense<0> : vector<128xi32>
      %226 = vector.multi_reduction <add>, %225, %cst_97 [1] : vector<128x16xi32> to vector<128xi32>
      %227 = vector.shape_cast %226 : vector<128xi32> to vector<128x1xi32>
      %228 = vector.broadcast %c13_i32 : i32 to vector<128x1xi32>
      %229 = arith.cmpi sge, %227, %228 : vector<128x1xi32>
      %230 = arith.select %229, %222, %arg15 : vector<128x1xi1>, vector<128x1xi32>
      %231 = arith.select %229, %arg16, %222 : vector<128x1xi1>, vector<128x1xi32>
      scf.yield %230, %231 : vector<128x1xi32>, vector<128x1xi32>
    }
    %64 = vector.broadcast %63#0 : vector<128x1xi32> to vector<128x16xi32>
    %65 = arith.cmpi sge, %43, %64 : vector<128x16xi32>
    %cst_22 = arith.constant 0.000000e+00 : f32
    %66 = vector.broadcast %cst_22 : f32 to vector<128x16xf32>
    %67 = arith.select %65, %37, %66 : vector<128x16xi1>, vector<128x16xf32>
    %cst_23 = arith.constant dense<0xFF800000> : vector<128xf32>
    %68 = vector.multi_reduction <maximumf>, %67, %cst_23 [1] : vector<128x16xf32> to vector<128xf32>
    %69 = vector.shape_cast %68 : vector<128xf32> to vector<128x1xf32>
    %70 = vector.broadcast %69 : vector<128x1xf32> to vector<128x16xf32>
    %71 = arith.subf %67, %70 : vector<128x16xf32>
    %72 = math.exp %71 : vector<128x16xf32>
    %cst_24 = arith.constant dense<0.000000e+00> : vector<128xf32>
    %73 = vector.multi_reduction <add>, %72, %cst_24 [1] : vector<128x16xf32> to vector<128xf32>
    %74 = vector.shape_cast %73 : vector<128xf32> to vector<128x1xf32>
    %cst_25 = arith.constant 1.000000e+00 : f32
    %75 = vector.broadcast %cst_25 : f32 to vector<128x1xf32>
    %76 = arith.divf %75, %74 : vector<128x1xf32>
    %77 = vector.broadcast %76 : vector<128x1xf32> to vector<128x16xf32>
    %78 = arith.mulf %72, %77 : vector<128x16xf32>
    %79 = arith.truncf %78 : vector<128x16xf32> to vector<128x16xbf16>
    %80 = vector.extract_strided_slice %79 {offsets = [0, 0], sizes = [16, 16], strides = [1, 1]} : vector<128x16xbf16> to vector<16x16xbf16>
    %81 = vector.extract_strided_slice %11 {offsets = [0, 0], sizes = [16, 8], strides = [1, 1]} : vector<32x32xbf16> to vector<16x8xbf16>
    %cst_26 = arith.constant dense<0.000000e+00> : vector<16x8xf32>
    %82 = tpu.matmul %80, %81, %cst_26 {dimension_numbers = #tpu.dot_dimension_numbers<[1], [0], [0], [1], [0, 0, 1, 1], [], []>} : vector<16x16xbf16>, vector<16x8xbf16>, vector<16x8xf32> -> vector<16x8xf32>
    %c0_27 = arith.constant 0 : index
    %c0_28 = arith.constant 0 : index
    %83 = vector.load %arg13[%c0_27, %c0_28] : memref<32x32xf32, #tpu.memory_space<vmem>>, vector<16x8xf32>
    tpu.vector_store %arg13[%c0_27, %c0_28], %82 {strides = array<i32>} : memref<32x32xf32, #tpu.memory_space<vmem>>, vector<16x8xf32>,
    %84 = vector.extract_strided_slice %79 {offsets = [16, 0], sizes = [16, 16], strides = [1, 1]} : vector<128x16xbf16> to vector<16x16xbf16>
    %85 = vector.extract_strided_slice %11 {offsets = [0, 8], sizes = [16, 8], strides = [1, 1]} : vector<32x32xbf16> to vector<16x8xbf16>
    %cst_29 = arith.constant dense<0.000000e+00> : vector<16x8xf32>
    %86 = tpu.matmul %84, %85, %cst_29 {dimension_numbers = #tpu.dot_dimension_numbers<[1], [0], [0], [1], [0, 0, 1, 1], [], []>} : vector<16x16xbf16>, vector<16x8xbf16>, vector<16x8xf32> -> vector<16x8xf32>
    %c0_30 = arith.constant 0 : index
    %c8 = arith.constant 8 : index
    %87 = vector.load %arg13[%c0_30, %c8] : memref<32x32xf32, #tpu.memory_space<vmem>>, vector<16x8xf32>
    tpu.vector_store %arg13[%c0_30, %c8], %86 {strides = array<i32>} : memref<32x32xf32, #tpu.memory_space<vmem>>, vector<16x8xf32>,
    %88 = vector.extract_strided_slice %79 {offsets = [32, 0], sizes = [16, 16], strides = [1, 1]} : vector<128x16xbf16> to vector<16x16xbf16>
    %89 = vector.extract_strided_slice %11 {offsets = [0, 16], sizes = [16, 8], strides = [1, 1]} : vector<32x32xbf16> to vector<16x8xbf16>
    %cst_31 = arith.constant dense<0.000000e+00> : vector<16x8xf32>
    %90 = tpu.matmul %88, %89, %cst_31 {dimension_numbers = #tpu.dot_dimension_numbers<[1], [0], [0], [1], [0, 0, 1, 1], [], []>} : vector<16x16xbf16>, vector<16x8xbf16>, vector<16x8xf32> -> vector<16x8xf32>
    %c0_32 = arith.constant 0 : index
    %c16 = arith.constant 16 : index
    %91 = vector.load %arg13[%c0_32, %c16] : memref<32x32xf32, #tpu.memory_space<vmem>>, vector<16x8xf32>
    tpu.vector_store %arg13[%c0_32, %c16], %90 {strides = array<i32>} : memref<32x32xf32, #tpu.memory_space<vmem>>, vector<16x8xf32>,
    %92 = vector.extract_strided_slice %79 {offsets = [48, 0], sizes = [16, 16], strides = [1, 1]} : vector<128x16xbf16> to vector<16x16xbf16>
    %93 = vector.extract_strided_slice %11 {offsets = [0, 24], sizes = [16, 8], strides = [1, 1]} : vector<32x32xbf16> to vector<16x8xbf16>
    %cst_33 = arith.constant dense<0.000000e+00> : vector<16x8xf32>
    %94 = tpu.matmul %92, %93, %cst_33 {dimension_numbers = #tpu.dot_dimension_numbers<[1], [0], [0], [1], [0, 0, 1, 1], [], []>} : vector<16x16xbf16>, vector<16x8xbf16>, vector<16x8xf32> -> vector<16x8xf32>
    %c0_34 = arith.constant 0 : index
    %c24 = arith.constant 24 : index
    %95 = vector.load %arg13[%c0_34, %c24] : memref<32x32xf32, #tpu.memory_space<vmem>>, vector<16x8xf32>
    tpu.vector_store %arg13[%c0_34, %c24], %94 {strides = array<i32>} : memref<32x32xf32, #tpu.memory_space<vmem>>, vector<16x8xf32>,
    %96 = vector.extract_strided_slice %79 {offsets = [64, 0], sizes = [16, 16], strides = [1, 1]} : vector<128x16xbf16> to vector<16x16xbf16>
    %97 = vector.extract_strided_slice %11 {offsets = [16, 0], sizes = [16, 8], strides = [1, 1]} : vector<32x32xbf16> to vector<16x8xbf16>
    %cst_35 = arith.constant dense<0.000000e+00> : vector<16x8xf32>
    %98 = tpu.matmul %96, %97, %cst_35 {dimension_numbers = #tpu.dot_dimension_numbers<[1], [0], [0], [1], [0, 0, 1, 1], [], []>} : vector<16x16xbf16>, vector<16x8xbf16>, vector<16x8xf32> -> vector<16x8xf32>
    %c16_36 = arith.constant 16 : index
    %c0_37 = arith.constant 0 : index
    %99 = vector.load %arg13[%c16_36, %c0_37] : memref<32x32xf32, #tpu.memory_space<vmem>>, vector<16x8xf32>
    tpu.vector_store %arg13[%c16_36, %c0_37], %98 {strides = array<i32>} : memref<32x32xf32, #tpu.memory_space<vmem>>, vector<16x8xf32>,
    %100 = vector.extract_strided_slice %79 {offsets = [80, 0], sizes = [16, 16], strides = [1, 1]} : vector<128x16xbf16> to vector<16x16xbf16>
    %101 = vector.extract_strided_slice %11 {offsets = [16, 8], sizes = [16, 8], strides = [1, 1]} : vector<32x32xbf16> to vector<16x8xbf16>
    %cst_38 = arith.constant dense<0.000000e+00> : vector<16x8xf32>
    %102 = tpu.matmul %100, %101, %cst_38 {dimension_numbers = #tpu.dot_dimension_numbers<[1], [0], [0], [1], [0, 0, 1, 1], [], []>} : vector<16x16xbf16>, vector<16x8xbf16>, vector<16x8xf32> -> vector<16x8xf32>
    %c16_39 = arith.constant 16 : index
    %c8_40 = arith.constant 8 : index
    %103 = vector.load %arg13[%c16_39, %c8_40] : memref<32x32xf32, #tpu.memory_space<vmem>>, vector<16x8xf32>
    tpu.vector_store %arg13[%c16_39, %c8_40], %102 {strides = array<i32>} : memref<32x32xf32, #tpu.memory_space<vmem>>, vector<16x8xf32>,
    %104 = vector.extract_strided_slice %79 {offsets = [96, 0], sizes = [16, 16], strides = [1, 1]} : vector<128x16xbf16> to vector<16x16xbf16>
    %105 = vector.extract_strided_slice %11 {offsets = [16, 16], sizes = [16, 8], strides = [1, 1]} : vector<32x32xbf16> to vector<16x8xbf16>
    %cst_41 = arith.constant dense<0.000000e+00> : vector<16x8xf32>
    %106 = tpu.matmul %104, %105, %cst_41 {dimension_numbers = #tpu.dot_dimension_numbers<[1], [0], [0], [1], [0, 0, 1, 1], [], []>} : vector<16x16xbf16>, vector<16x8xbf16>, vector<16x8xf32> -> vector<16x8xf32>
    %c16_42 = arith.constant 16 : index
    %c16_43 = arith.constant 16 : index
    %107 = vector.load %arg13[%c16_42, %c16_43] : memref<32x32xf32, #tpu.memory_space<vmem>>, vector<16x8xf32>
    tpu.vector_store %arg13[%c16_42, %c16_43], %106 {strides = array<i32>} : memref<32x32xf32, #tpu.memory_space<vmem>>, vector<16x8xf32>,
    %108 = vector.extract_strided_slice %79 {offsets = [112, 0], sizes = [16, 16], strides = [1, 1]} : vector<128x16xbf16> to vector<16x16xbf16>
    %109 = vector.extract_strided_slice %11 {offsets = [16, 24], sizes = [16, 8], strides = [1, 1]} : vector<32x32xbf16> to vector<16x8xbf16>
    %cst_44 = arith.constant dense<0.000000e+00> : vector<16x8xf32>
    %110 = tpu.matmul %108, %109, %cst_44 {dimension_numbers = #tpu.dot_dimension_numbers<[1], [0], [0], [1], [0, 0, 1, 1], [], []>} : vector<16x16xbf16>, vector<16x8xbf16>, vector<16x8xf32> -> vector<16x8xf32>
    %c16_45 = arith.constant 16 : index
    %c24_46 = arith.constant 24 : index
    %111 = vector.load %arg13[%c16_45, %c24_46] : memref<32x32xf32, #tpu.memory_space<vmem>>, vector<16x8xf32>
    tpu.vector_store %arg13[%c16_45, %c24_46], %110 {strides = array<i32>} : memref<32x32xf32, #tpu.memory_space<vmem>>, vector<16x8xf32>,
    %c0_47 = arith.constant 0 : index
    %c0_48 = arith.constant 0 : index
    %112 = vector.load %arg13[%c0_47, %c0_48] : memref<32x32xf32, #tpu.memory_space<vmem>>, vector<32x32xf32>
    %113 = arith.addf %1, %112 : vector<32x32xf32>
    %c0_49 = arith.constant 0 : index
    %c0_50 = arith.constant 0 : index
    %114 = vector.load %arg8[%c0_49, %c0_50] : memref<1x32xf32, #tpu.memory_space<vmem>>, vector<1x32xf32>
    %c0_51 = arith.constant 0 : index
    %c0_52 = arith.constant 0 : index
    %115 = vector.load %arg9[%c0_51, %c0_52] : memref<1x32xf32, #tpu.memory_space<vmem>>, vector<1x32xf32>
    %cst_53 = arith.constant dense<0.000000e+00> : vector<32xf32>
    %116 = vector.multi_reduction <add>, %113, %cst_53 [1] : vector<32x32xf32> to vector<32xf32>
    %117 = vector.shape_cast %116 : vector<32xf32> to vector<32x1xf32>
    %cst_54 = arith.constant 3.200000e+01 : f32
    %118 = vector.broadcast %cst_54 : f32 to vector<32x1xf32>
    %119 = arith.divf %117, %118 : vector<32x1xf32>
    %120 = vector.broadcast %119 : vector<32x1xf32> to vector<32x32xf32>
    %121 = arith.subf %113, %120 : vector<32x32xf32>
    %122 = arith.mulf %121, %121 : vector<32x32xf32>
    %cst_55 = arith.constant dense<0.000000e+00> : vector<32xf32>
    %123 = vector.multi_reduction <add>, %122, %cst_55 [1] : vector<32x32xf32> to vector<32xf32>
    %124 = vector.shape_cast %123 : vector<32xf32> to vector<32x1xf32>
    %cst_56 = arith.constant 3.200000e+01 : f32
    %125 = vector.broadcast %cst_56 : f32 to vector<32x1xf32>
    %126 = arith.divf %124, %125 : vector<32x1xf32>
    %127 = vector.broadcast %119 : vector<32x1xf32> to vector<32x32xf32>
    %128 = arith.subf %113, %127 : vector<32x32xf32>
    %cst_57 = arith.constant 9.99999974E-6 : f32
    %129 = vector.broadcast %cst_57 : f32 to vector<32x1xf32>
    %130 = arith.addf %126, %129 : vector<32x1xf32>
    %131 = math.rsqrt %130 : vector<32x1xf32>
    %132 = vector.broadcast %131 : vector<32x1xf32> to vector<32x32xf32>
    %133 = arith.mulf %128, %132 : vector<32x32xf32>
    %134 = vector.broadcast %114 : vector<1x32xf32> to vector<32x32xf32>
    %135 = arith.mulf %133, %134 : vector<32x32xf32>
    %136 = vector.broadcast %115 : vector<1x32xf32> to vector<32x32xf32>
    %137 = arith.addf %135, %136 : vector<32x32xf32>
    %138 = arith.truncf %137 : vector<32x32xf32> to vector<32x32xbf16>
    %c0_58 = arith.constant 0 : index
    %c0_59 = arith.constant 0 : index
    %139 = vector.load %arg4[%c0_58, %c0_59] : memref<32x128xbf16, #tpu.memory_space<vmem>>, vector<32x128xbf16>
    %cst_60 = arith.constant dense<0.000000e+00> : vector<32x128xf32>
    %140 = tpu.matmul %138, %139, %cst_60 {dimension_numbers = #tpu.dot_dimension_numbers<[1], [0], [0], [1], [0, 0, 1, 1], [], []>} : vector<32x32xbf16>, vector<32x128xbf16>, vector<32x128xf32> -> vector<32x128xf32>
    %c0_61 = arith.constant 0 : index
    %c0_62 = arith.constant 0 : index
    %141 = vector.load %arg5[%c0_61, %c0_62] : memref<1x128xf32, #tpu.memory_space<vmem>>, vector<1x128xf32>
    %142 = vector.broadcast %141 : vector<1x128xf32> to vector<32x128xf32>
    %143 = arith.addf %140, %142 : vector<32x128xf32>
    %cst_63 = arith.constant 5.000000e-01 : f32
    %144 = vector.broadcast %cst_63 : f32 to vector<32x128xf32>
    %145 = arith.mulf %144, %143 : vector<32x128xf32>
    %cst_64 = arith.constant 0.707106769 : f32
    %146 = vector.broadcast %cst_64 : f32 to vector<32x128xf32>
    %147 = arith.mulf %143, %146 : vector<32x128xf32>
    %cst_65 = arith.constant 0.000000e+00 : f32
    %148 = vector.broadcast %cst_65 : f32 to vector<32x128xf32>
    %149 = arith.cmpf oge, %147, %148 : vector<32x128xf32>
    %cst_66 = arith.constant 1.000000e+00 : f32
    %cst_67 = arith.constant -1.000000e+00 : f32
    %150 = vector.broadcast %cst_66 : f32 to vector<32x128xf32>
    %151 = vector.broadcast %cst_67 : f32 to vector<32x128xf32>
    %152 = arith.select %149, %150, %151 : vector<32x128xi1>, vector<32x128xf32>
    %153 = math.absf %147 : vector<32x128xf32>
    %cst_68 = arith.constant 0.327591091 : f32
    %154 = vector.broadcast %cst_68 : f32 to vector<32x128xf32>
    %155 = arith.mulf %154, %153 : vector<32x128xf32>
    %cst_69 = arith.constant 1.000000e+00 : f32
    %156 = vector.broadcast %cst_69 : f32 to vector<32x128xf32>
    %157 = arith.addf %156, %155 : vector<32x128xf32>
    %cst_70 = arith.constant 1.000000e+00 : f32
    %158 = vector.broadcast %cst_70 : f32 to vector<32x128xf32>
    %159 = arith.divf %158, %157 : vector<32x128xf32>
    %cst_71 = arith.constant 1.06140542 : f32
    %160 = vector.broadcast %cst_71 : f32 to vector<32x128xf32>
    %161 = arith.mulf %160, %159 : vector<32x128xf32>
    %cst_72 = arith.constant -1.45315206 : f32
    %162 = vector.broadcast %cst_72 : f32 to vector<32x128xf32>
    %163 = arith.addf %161, %162 : vector<32x128xf32>
    %164 = arith.mulf %163, %159 : vector<32x128xf32>
    %cst_73 = arith.constant 1.42141378 : f32
    %165 = vector.broadcast %cst_73 : f32 to vector<32x128xf32>
    %166 = arith.addf %164, %165 : vector<32x128xf32>
    %167 = arith.mulf %166, %159 : vector<32x128xf32>
    %cst_74 = arith.constant -0.284496725 : f32
    %168 = vector.broadcast %cst_74 : f32 to vector<32x128xf32>
    %169 = arith.addf %167, %168 : vector<32x128xf32>
    %170 = arith.mulf %169, %159 : vector<32x128xf32>
    %cst_75 = arith.constant 0.254829586 : f32
    %171 = vector.broadcast %cst_75 : f32 to vector<32x128xf32>
    %172 = arith.addf %170, %171 : vector<32x128xf32>
    %173 = arith.mulf %172, %159 : vector<32x128xf32>
    %cst_76 = arith.constant 0.000000e+00 : f32
    %174 = vector.broadcast %cst_76 : f32 to vector<32x128xf32>
    %175 = arith.subf %174, %153 : vector<32x128xf32>
    %176 = arith.mulf %175, %153 : vector<32x128xf32>
    %177 = math.exp %176 : vector<32x128xf32>
    %178 = arith.mulf %173, %177 : vector<32x128xf32>
    %cst_77 = arith.constant 1.000000e+00 : f32
    %179 = vector.broadcast %cst_77 : f32 to vector<32x128xf32>
    %180 = arith.subf %179, %178 : vector<32x128xf32>
    %181 = arith.mulf %152, %180 : vector<32x128xf32>
    %cst_78 = arith.constant 1.000000e+00 : f32
    %182 = vector.broadcast %cst_78 : f32 to vector<32x128xf32>
    %183 = arith.addf %182, %181 : vector<32x128xf32>
    %184 = arith.mulf %145, %183 : vector<32x128xf32>
    %185 = arith.truncf %184 : vector<32x128xf32> to vector<32x128xbf16>
    %c0_79 = arith.constant 0 : index
    %c0_80 = arith.constant 0 : index
    %186 = vector.load %arg6[%c0_79, %c0_80] : memref<128x32xbf16, #tpu.memory_space<vmem>>, vector<128x32xbf16>
    %cst_81 = arith.constant dense<0.000000e+00> : vector<32x32xf32>
    %187 = tpu.matmul %185, %186, %cst_81 {dimension_numbers = #tpu.dot_dimension_numbers<[1], [0], [0], [1], [0, 0, 1, 1], [], []>} : vector<32x128xbf16>, vector<128x32xbf16>, vector<32x32xf32> -> vector<32x32xf32>
    %c0_82 = arith.constant 0 : index
    %c0_83 = arith.constant 0 : index
    %188 = vector.load %arg7[%c0_82, %c0_83] : memref<1x32xf32, #tpu.memory_space<vmem>>, vector<1x32xf32>
    %189 = vector.broadcast %188 : vector<1x32xf32> to vector<32x32xf32>
    %190 = arith.addf %187, %189 : vector<32x32xf32>
    %191 = arith.addf %137, %190 : vector<32x32xf32>
    %c0_84 = arith.constant 0 : index
    %c0_85 = arith.constant 0 : index
    %192 = vector.load %arg10[%c0_84, %c0_85] : memref<1x32xf32, #tpu.memory_space<vmem>>, vector<1x32xf32>
    %c0_86 = arith.constant 0 : index
    %c0_87 = arith.constant 0 : index
    %193 = vector.load %arg11[%c0_86, %c0_87] : memref<1x32xf32, #tpu.memory_space<vmem>>, vector<1x32xf32>
    %cst_88 = arith.constant dense<0.000000e+00> : vector<32xf32>
    %194 = vector.multi_reduction <add>, %191, %cst_88 [1] : vector<32x32xf32> to vector<32xf32>
    %195 = vector.shape_cast %194 : vector<32xf32> to vector<32x1xf32>
    %cst_89 = arith.constant 3.200000e+01 : f32
    %196 = vector.broadcast %cst_89 : f32 to vector<32x1xf32>
    %197 = arith.divf %195, %196 : vector<32x1xf32>
    %198 = vector.broadcast %197 : vector<32x1xf32> to vector<32x32xf32>
    %199 = arith.subf %191, %198 : vector<32x32xf32>
    %200 = arith.mulf %199, %199 : vector<32x32xf32>
    %cst_90 = arith.constant dense<0.000000e+00> : vector<32xf32>
    %201 = vector.multi_reduction <add>, %200, %cst_90 [1] : vector<32x32xf32> to vector<32xf32>
    %202 = vector.shape_cast %201 : vector<32xf32> to vector<32x1xf32>
    %cst_91 = arith.constant 3.200000e+01 : f32
    %203 = vector.broadcast %cst_91 : f32 to vector<32x1xf32>
    %204 = arith.divf %202, %203 : vector<32x1xf32>
    %205 = vector.broadcast %197 : vector<32x1xf32> to vector<32x32xf32>
    %206 = arith.subf %191, %205 : vector<32x32xf32>
    %cst_92 = arith.constant 9.99999974E-6 : f32
    %207 = vector.broadcast %cst_92 : f32 to vector<32x1xf32>
    %208 = arith.addf %204, %207 : vector<32x1xf32>
    %209 = math.rsqrt %208 : vector<32x1xf32>
    %210 = vector.broadcast %209 : vector<32x1xf32> to vector<32x32xf32>
    %211 = arith.mulf %206, %210 : vector<32x32xf32>
    %212 = vector.broadcast %192 : vector<1x32xf32> to vector<32x32xf32>
    %213 = arith.mulf %211, %212 : vector<32x32xf32>
    %214 = vector.broadcast %193 : vector<1x32xf32> to vector<32x32xf32>
    %215 = arith.addf %213, %214 : vector<32x32xf32>
    %216 = vector.shape_cast %215 : vector<32x32xf32> to vector<2x16x32xf32>
    %c0_93 = arith.constant 0 : index
    %c0_94 = arith.constant 0 : index
    %c0_95 = arith.constant 0 : index
    %217 = vector.load %arg12[%c0_93, %c0_94, %c0_95] : memref<2x16x32xf32, #tpu.memory_space<vmem>>, vector<2x16x32xf32>
    tpu.vector_store %arg12[%c0_93, %c0_94, %c0_95], %216 {strides = array<i32>} : memref<2x16x32xf32, #tpu.memory_space<vmem>>, vector<2x16x32xf32>,
    return
  }
  func.func @transform_0(%arg0: i32) -> (i32, i32, i32) {
    %c0_i32 = arith.constant 0 : i32
    %c0_i32_0 = arith.constant 0 : i32
    %c0_i32_1 = arith.constant 0 : i32
    return %arg0, %c0_i32, %c0_i32_0 : i32, i32, i32
  }
  func.func @transform_1(%arg0: i32) -> (i32, i32) {
    %c0_i32 = arith.constant 0 : i32
    %c0_i32_0 = arith.constant 0 : i32
    %c0_i32_1 = arith.constant 0 : i32
    return %c0_i32, %c0_i32_0 : i32, i32
  }
  func.func @transform_2(%arg0: i32) -> (i32, i32) {
    %c0_i32 = arith.constant 0 : i32
    %c0_i32_0 = arith.constant 0 : i32
    %c0_i32_1 = arith.constant 0 : i32
    return %c0_i32, %c0_i32_0 : i32, i32
  }
  func.func @transform_3(%arg0: i32) -> (i32, i32) {
    %c0_i32 = arith.constant 0 : i32
    %c0_i32_0 = arith.constant 0 : i32
    %c0_i32_1 = arith.constant 0 : i32
    return %c0_i32, %c0_i32_0 : i32, i32
  }
  func.func @transform_4(%arg0: i32) -> (i32, i32) {
    %c0_i32 = arith.constant 0 : i32
    %c0_i32_0 = arith.constant 0 : i32
    %c0_i32_1 = arith.constant 0 : i32
    return %c0_i32, %c0_i32_0 : i32, i32
  }
  func.func @transform_5(%arg0: i32) -> (i32, i32) {
    %c0_i32 = arith.constant 0 : i32
    %c0_i32_0 = arith.constant 0 : i32
    %c0_i32_1 = arith.constant 0 : i32
    return %c0_i32, %c0_i32_0 : i32, i32
  }
  func.func @transform_6(%arg0: i32) -> (i32, i32) {
    %c0_i32 = arith.constant 0 : i32
    %c0_i32_0 = arith.constant 0 : i32
    %c0_i32_1 = arith.constant 0 : i32
    return %c0_i32, %c0_i32_0 : i32, i32
  }
  func.func @transform_7(%arg0: i32) -> (i32, i32) {
    %c0_i32 = arith.constant 0 : i32
    %c0_i32_0 = arith.constant 0 : i32
    %c0_i32_1 = arith.constant 0 : i32
    return %c0_i32, %c0_i32_0 : i32, i32
  }
  func.func @transform_8(%arg0: i32) -> (i32, i32) {
    %c0_i32 = arith.constant 0 : i32
    %c0_i32_0 = arith.constant 0 : i32
    %c0_i32_1 = arith.constant 0 : i32
    return %c0_i32, %c0_i32_0 : i32, i32
  }
  func.func @transform_9(%arg0: i32) -> (i32, i32) {
    %c0_i32 = arith.constant 0 : i32
    %c0_i32_0 = arith.constant 0 : i32
    %c0_i32_1 = arith.constant 0 : i32
    return %c0_i32, %c0_i32_0 : i32, i32
  }
  func.func @transform_10(%arg0: i32) -> (i32, i32) {
    %c0_i32 = arith.constant 0 : i32
    %c0_i32_0 = arith.constant 0 : i32
    %c0_i32_1 = arith.constant 0 : i32
    return %c0_i32, %c0_i32_0 : i32, i32
  }
  func.func @transform_11(%arg0: i32) -> (i32, i32, i32) {
    %c0_i32 = arith.constant 0 : i32
    %c0_i32_0 = arith.constant 0 : i32
    %c0_i32_1 = arith.constant 0 : i32
    return %arg0, %c0_i32, %c0_i32_0 : i32, i32, i32
  }
}

</mosaic_0001>

<llo_original>
// kernel: tpu_custom_call.1
$region0: #{tpu_custom_call.1}
  #allocation0 [shape = 'u32[]', space=smem, size = 0x4, offset = 0x4, fixed_abs, tag = 'smem constant byte address 0x4 - core index']
  #allocation1 [shape = 'u32[144,128]{1,0:T(1,128)}', space=vmem, size = 0x12000, scoped, tag = 'internal scratch']
  #allocation2 [shape = 'f32[32,32]{1,0:T(8,128)}', space=vmem, size = 0x4000, scoped, tag = 'scratch operand']
  %s0 = inlined_call_operand.vmem [shape: f32[4,16,32], index: 0, kind: input, shape index: {}]
  %s1 = inlined_call_operand.vmem [shape: bf16[32,96], index: 1, kind: input, shape index: {}]
  %s2 = inlined_call_operand.vmem [shape: f32[1,96], index: 2, kind: input, shape index: {}]
  %s3 = inlined_call_operand.hbm [shape: bf16[32,128], index: 3, kind: input, shape index: {}]
  %s4 = inlined_call_operand.vmem [shape: f32[1,128], index: 4, kind: input, shape index: {}]
  %s5 = inlined_call_operand.vmem [shape: bf16[128,32], index: 5, kind: input, shape index: {}]
  %s6 = inlined_call_operand.vmem [shape: f32[1,32], index: 6, kind: input, shape index: {}]
  %s7 = inlined_call_operand.vmem [shape: f32[1,32], index: 7, kind: input, shape index: {}]
  %s8 = inlined_call_operand.vmem [shape: f32[1,32], index: 8, kind: input, shape index: {}]
  %s9 = inlined_call_operand.vmem [shape: f32[1,32], index: 9, kind: input, shape index: {}]
  %s10 = inlined_call_operand.vmem [shape: f32[1,32], index: 10, kind: input, shape index: {}]
  %s11 = inlined_call_operand.hbm [shape: f32[4,16,32], index: 11, kind: output, shape index: {}]
  %s12 = sld [smem:[#allocation0]]
  $region88: #{tpu_custom_call.1} parent=0
    _
  %s14 = ssub.s32 1, %s12
  %s15 = scalar_select 0, %s14, %s12
  $region1: #{tpu_custom_call.1} parent=0
    #allocation3 [shape = 'u8[8192]{0}', space=vmem, size = 0x2000, scoped, tag = 'input window, operand 3, single buffered']
    #allocation4 [shape = 's32[2]{0}', space=sflag, size = 0x8, scoped, tag = 'scoped memory for tpu_custom_call.1']
    #allocation5 [shape = 's32[2]{0}', space=sflag, size = 0x8, scoped, tag = 'scoped memory for tpu_custom_call.1']
    #allocation6 [shape = 'u8[32768]{0}', space=vmem, size = 0x8000, scoped, tag = 'output window, operand 0']
    %16 = vsyncpa [#allocation4], 0
    %17 = vsyncpa [#allocation5], 0
    %s18 = scalar_lea.sflag [#allocation5], 1
    %19 = vsyncpa %s18, 0
    loop: start=0, step=1, limit=4
    $region2: #{tpu_custom_call.1} parent=1 // loop_pre_header
      _
    $region3: #{tpu_custom_call.1} parent=1 // loop_header
      %s21 = sphi 0, %s25
      %p22 = scmp.ge.s32.totalorder %s21, 4
      %s31 = sphi 0, %s33
      %s34 = sphi 0, %s31
      %s35 = sphi 0, %s34
      %s51 = sphi 0, %s35
      %s55 = sphi 0, %s55
      %s57 = sphi 0, %s55
      %s58 = sphi 0, %s57
      %s72 = sphi 0, %s58
      %s76 = sphi 0, %s76
      %s78 = sphi 0, %s76
      %s79 = sphi 0, %s78
      %s93 = sphi 0, %s79
      %s97 = sphi 0, %s97
      %s99 = sphi 0, %s97
      %s100 = sphi 0, %s99
      %s114 = sphi 0, %s100
      %s118 = sphi 0, %s118
      %s120 = sphi 0, %s118
      %s121 = sphi 0, %s120
      %s135 = sphi 0, %s121
      %s139 = sphi 0, %s139
      %s141 = sphi 0, %s139
      %s142 = sphi 0, %s141
      %s156 = sphi 0, %s142
      %s160 = sphi 0, %s160
      %s162 = sphi 0, %s160
      %s163 = sphi 0, %s162
      %s177 = sphi 0, %s163
      %s181 = sphi 0, %s181
      %s183 = sphi 0, %s181
      %s184 = sphi 0, %s183
      %s198 = sphi 0, %s184
      %s202 = sphi 0, %s202
      %s204 = sphi 0, %s202
      %s205 = sphi 0, %s204
      %s219 = sphi 0, %s205
      %s223 = sphi 0, %s223
      %s225 = sphi 0, %s223
      %s226 = sphi 0, %s225
      %s240 = sphi 0, %s226
      %s244 = sphi 0, %s244
      %s246 = sphi 0, %s244
      %s247 = sphi 0, %s246
      %s261 = sphi 0, %s247
      %s267 = sphi 0, %s269
      %s270 = sphi 0, %s267
      %s271 = sphi 0, %s270
      %s287 = sphi 0, %s271
    $region4: #{tpu_custom_call.1} parent=1 // loop_header_branch
      %24 = sbr.rel (%p22) target = $region8
    $region5: #{tpu_custom_call.1} parent=1 // loop_body
      %s26 = ssub.s32 %s21, 1
      %s27 = ssub.s32 %s21, 2
      %s28 = sadd.s32 %s21, 1
      %s29 = ssub.s32 %s21, %s28
      %p30 = scmp.eq.s32.totalorder %s29, 0
      %s32 = sadd.s32 %s31, 1
      %s33 = scalar_select %p30, %s31, %s32
      %p36 = pneg %p30
      %p37 = scmp.eq.s32.totalorder %s21, 1
      %p38 = por %p36, %p37
      %p39 = scmp.ne.s32.totalorder %s31, %s34
      %p40 = scmp.eq.s32.totalorder %s21, 0
      %p41 = por %p39, %p40
      %p42 = scmp.ne.s32.totalorder %s31, %s34
      %p43 = scmp.eq.s32.totalorder %s26, 1
      %p44 = por %p42, %p43
      %p45 = scmp.ne.s32.totalorder %s34, %s35
      %p46 = scmp.eq.s32.totalorder %s26, 0
      %p47 = por %p45, %p46
      %p48 = scmp.ne.s32.totalorder %s34, %s35
      %p49 = scmp.eq.s32.totalorder %s27, 1
      %p50 = por %p48, %p49
      %p52 = scmp.ne.s32.totalorder %s35, %s51
      %p53 = scmp.eq.s32.totalorder %s27, 0
      %p54 = por %p52, %p53
      %s56 = sadd.s32 %s55, 1
      %p59 = scmp.eq.s32.totalorder %s21, 1
      %p60 = scmp.ne.s32.totalorder %s55, %s57
      %p61 = scmp.eq.s32.totalorder %s21, 0
      %p62 = por %p60, %p61
      %p63 = scmp.ne.s32.totalorder %s55, %s57
      %p64 = scmp.eq.s32.totalorder %s26, 1
      %p65 = por %p63, %p64
      %p66 = scmp.ne.s32.totalorder %s57, %s58
      %p67 = scmp.eq.s32.totalorder %s26, 0
      %p68 = por %p66, %p67
      %p69 = scmp.ne.s32.totalorder %s57, %s58
      %p70 = scmp.eq.s32.totalorder %s27, 1
      %p71 = por %p69, %p70
      %p73 = scmp.ne.s32.totalorder %s58, %s72
      %p74 = scmp.eq.s32.totalorder %s27, 0
      %p75 = por %p73, %p74
      %s77 = sadd.s32 %s76, 1
      %p80 = scmp.eq.s32.totalorder %s21, 1
      %p81 = scmp.ne.s32.totalorder %s76, %s78
      %p82 = scmp.eq.s32.totalorder %s21, 0
      %p83 = por %p81, %p82
      %p84 = scmp.ne.s32.totalorder %s76, %s78
      %p85 = scmp.eq.s32.totalorder %s26, 1
      %p86 = por %p84, %p85
      %p87 = scmp.ne.s32.totalorder %s78, %s79
      %p88 = scmp.eq.s32.totalorder %s26, 0
      %p89 = por %p87, %p88
      %p90 = scmp.ne.s32.totalorder %s78, %s79
      %p91 = scmp.eq.s32.totalorder %s27, 1
      %p92 = por %p90, %p91
      %p94 = scmp.ne.s32.totalorder %s79, %s93
      %p95 = scmp.eq.s32.totalorder %s27, 0
      %p96 = por %p94, %p95
      %s98 = sadd.s32 %s97, 1
      %p101 = scmp.eq.s32.totalorder %s21, 1
      %p102 = scmp.ne.s32.totalorder %s97, %s99
      %p103 = scmp.eq.s32.totalorder %s21, 0
      %p104 = por %p102, %p103
      %p105 = scmp.ne.s32.totalorder %s97, %s99
      %p106 = scmp.eq.s32.totalorder %s26, 1
      %p107 = por %p105, %p106
      %p108 = scmp.ne.s32.totalorder %s99, %s100
      %p109 = scmp.eq.s32.totalorder %s26, 0
      %p110 = por %p108, %p109
      %p111 = scmp.ne.s32.totalorder %s99, %s100
      %p112 = scmp.eq.s32.totalorder %s27, 1
      %p113 = por %p111, %p112
      %p115 = scmp.ne.s32.totalorder %s100, %s114
      %p116 = scmp.eq.s32.totalorder %s27, 0
      %p117 = por %p115, %p116
      %s119 = sadd.s32 %s118, 1
      %p122 = scmp.eq.s32.totalorder %s21, 1
      %p123 = scmp.ne.s32.totalorder %s118, %s120
      %p124 = scmp.eq.s32.totalorder %s21, 0
      %p125 = por %p123, %p124
      %p126 = scmp.ne.s32.totalorder %s118, %s120
      %p127 = scmp.eq.s32.totalorder %s26, 1
      %p128 = por %p126, %p127
      %p129 = scmp.ne.s32.totalorder %s120, %s121
      %p130 = scmp.eq.s32.totalorder %s26, 0
      %p131 = por %p129, %p130
      %p132 = scmp.ne.s32.totalorder %s120, %s121
      %p133 = scmp.eq.s32.totalorder %s27, 1
      %p134 = por %p132, %p133
      %p136 = scmp.ne.s32.totalorder %s121, %s135
      %p137 = scmp.eq.s32.totalorder %s27, 0
      %p138 = por %p136, %p137
      %s140 = sadd.s32 %s139, 1
      %p143 = scmp.eq.s32.totalorder %s21, 1
      %p144 = scmp.ne.s32.totalorder %s139, %s141
      %p145 = scmp.eq.s32.totalorder %s21, 0
      %p146 = por %p144, %p145
      %p147 = scmp.ne.s32.totalorder %s139, %s141
      %p148 = scmp.eq.s32.totalorder %s26, 1
      %p149 = por %p147, %p148
      %p150 = scmp.ne.s32.totalorder %s141, %s142
      %p151 = scmp.eq.s32.totalorder %s26, 0
      %p152 = por %p150, %p151
      %p153 = scmp.ne.s32.totalorder %s141, %s142
      %p154 = scmp.eq.s32.totalorder %s27, 1
      %p155 = por %p153, %p154
      %p157 = scmp.ne.s32.totalorder %s142, %s156
      %p158 = scmp.eq.s32.totalorder %s27, 0
      %p159 = por %p157, %p158
      %s161 = sadd.s32 %s160, 1
      %p164 = scmp.eq.s32.totalorder %s21, 1
      %p165 = scmp.ne.s32.totalorder %s160, %s162
      %p166 = scmp.eq.s32.totalorder %s21, 0
      %p167 = por %p165, %p166
      %p168 = scmp.ne.s32.totalorder %s160, %s162
      %p169 = scmp.eq.s32.totalorder %s26, 1
      %p170 = por %p168, %p169
      %p171 = scmp.ne.s32.totalorder %s162, %s163
      %p172 = scmp.eq.s32.totalorder %s26, 0
      %p173 = por %p171, %p172
      %p174 = scmp.ne.s32.totalorder %s162, %s163
      %p175 = scmp.eq.s32.totalorder %s27, 1
      %p176 = por %p174, %p175
      %p178 = scmp.ne.s32.totalorder %s163, %s177
      %p179 = scmp.eq.s32.totalorder %s27, 0
      %p180 = por %p178, %p179
      %s182 = sadd.s32 %s181, 1
      %p185 = scmp.eq.s32.totalorder %s21, 1
      %p186 = scmp.ne.s32.totalorder %s181, %s183
      %p187 = scmp.eq.s32.totalorder %s21, 0
      %p188 = por %p186, %p187
      %p189 = scmp.ne.s32.totalorder %s181, %s183
      %p190 = scmp.eq.s32.totalorder %s26, 1
      %p191 = por %p189, %p190
      %p192 = scmp.ne.s32.totalorder %s183, %s184
      %p193 = scmp.eq.s32.totalorder %s26, 0
      %p194 = por %p192, %p193
      %p195 = scmp.ne.s32.totalorder %s183, %s184
      %p196 = scmp.eq.s32.totalorder %s27, 1
      %p197 = por %p195, %p196
      %p199 = scmp.ne.s32.totalorder %s184, %s198
      %p200 = scmp.eq.s32.totalorder %s27, 0
      %p201 = por %p199, %p200
      %s203 = sadd.s32 %s202, 1
      %p206 = scmp.eq.s32.totalorder %s21, 1
      %p207 = scmp.ne.s32.totalorder %s202, %s204
      %p208 = scmp.eq.s32.totalorder %s21, 0
      %p209 = por %p207, %p208
      %p210 = scmp.ne.s32.totalorder %s202, %s204
      %p211 = scmp.eq.s32.totalorder %s26, 1
      %p212 = por %p210, %p211
      %p213 = scmp.ne.s32.totalorder %s204, %s205
      %p214 = scmp.eq.s32.totalorder %s26, 0
      %p215 = por %p213, %p214
      %p216 = scmp.ne.s32.totalorder %s204, %s205
      %p217 = scmp.eq.s32.totalorder %s27, 1
      %p218 = por %p216, %p217
      %p220 = scmp.ne.s32.totalorder %s205, %s219
      %p221 = scmp.eq.s32.totalorder %s27, 0
      %p222 = por %p220, %p221
      %s224 = sadd.s32 %s223, 1
      %p227 = scmp.eq.s32.totalorder %s21, 1
      %p228 = scmp.ne.s32.totalorder %s223, %s225
      %p229 = scmp.eq.s32.totalorder %s21, 0
      %p230 = por %p228, %p229
      %p231 = scmp.ne.s32.totalorder %s223, %s225
      %p232 = scmp.eq.s32.totalorder %s26, 1
      %p233 = por %p231, %p232
      %p234 = scmp.ne.s32.totalorder %s225, %s226
      %p235 = scmp.eq.s32.totalorder %s26, 0
      %p236 = por %p234, %p235
      %p237 = scmp.ne.s32.totalorder %s225, %s226
      %p238 = scmp.eq.s32.totalorder %s27, 1
      %p239 = por %p237, %p238
      %p241 = scmp.ne.s32.totalorder %s226, %s240
      %p242 = scmp.eq.s32.totalorder %s27, 0
      %p243 = por %p241, %p242
      %s245 = sadd.s32 %s244, 1
      %p248 = scmp.eq.s32.totalorder %s21, 1
      %p249 = scmp.ne.s32.totalorder %s244, %s246
      %p250 = scmp.eq.s32.totalorder %s21, 0
      %p251 = por %p249, %p250
      %p252 = scmp.ne.s32.totalorder %s244, %s246
      %p253 = scmp.eq.s32.totalorder %s26, 1
      %p254 = por %p252, %p253
      %p255 = scmp.ne.s32.totalorder %s246, %s247
      %p256 = scmp.eq.s32.totalorder %s26, 0
      %p257 = por %p255, %p256
      %p258 = scmp.ne.s32.totalorder %s246, %s247
      %p259 = scmp.eq.s32.totalorder %s27, 1
      %p260 = por %p258, %p259
      %p262 = scmp.ne.s32.totalorder %s247, %s261
      %p263 = scmp.eq.s32.totalorder %s27, 0
      %p264 = por %p262, %p263
      %s265 = ssub.s32 %s21, %s28
      %p266 = scmp.eq.s32.totalorder %s265, 0
      %s268 = sadd.s32 %s267, 1
      %s269 = scalar_select %p266, %s267, %s268
      %p272 = pneg %p266
      %p273 = scmp.eq.s32.totalorder %s21, 1
      %p274 = por %p272, %p273
      %p275 = scmp.ne.s32.totalorder %s267, %s270
      %p276 = scmp.eq.s32.totalorder %s21, 0
      %p277 = por %p275, %p276
      %p278 = scmp.ne.s32.totalorder %s267, %s270
      %p279 = scmp.eq.s32.totalorder %s26, 1
      %p280 = por %p278, %p279
      %p281 = scmp.ne.s32.totalorder %s270, %s271
      %p282 = scmp.eq.s32.totalorder %s26, 0
      %p283 = por %p281, %p282
      %p284 = scmp.ne.s32.totalorder %s270, %s271
      %p285 = scmp.eq.s32.totalorder %s27, 1
      %p286 = por %p284, %p285
      %p288 = scmp.ne.s32.totalorder %s271, %s287
      %p289 = scmp.eq.s32.totalorder %s27, 0
      %p290 = por %p288, %p289
      %p291 = scmp.le.s32.totalorder 1, %s21
      %p292 = scmp.lt.s32.totalorder %s21, 3
      %p293 = pnand %p291, %p292
      %p294 = pneg %p293
      // Predicated region
      $region9: #{tpu_custom_call.1} parent=5 // pred_check
        _
      $region10: #{tpu_custom_call.1} parent=5 // pred_check_branch
        %296 = sbr.rel (%p293) target = $region12
      $region11: #{tpu_custom_call.1} parent=5 // pred_region
        %s297 = ssub.s32 %s21, 1
        // Predicated region
        $region13: #{tpu_custom_call.1} parent=11 // pred_check
          %p298 = pneg %p68
        $region14: #{tpu_custom_call.1} parent=11 // pred_check_branch
          %300 = sbr.rel (%p298) target = $region16
        $region15: #{tpu_custom_call.1} parent=11 // pred_region
          _
        $region16: #{tpu_custom_call.1} parent=11 // pred_fallthru
          _
        // Predicated region
        $region17: #{tpu_custom_call.1} parent=11 // pred_check
          %p301 = pneg %p89
        $region18: #{tpu_custom_call.1} parent=11 // pred_check_branch
          %303 = sbr.rel (%p301) target = $region20
        $region19: #{tpu_custom_call.1} parent=11 // pred_region
          _
        $region20: #{tpu_custom_call.1} parent=11 // pred_fallthru
          _
        // Predicated region
        $region21: #{tpu_custom_call.1} parent=11 // pred_check
          %p304 = pneg %p110
        $region22: #{tpu_custom_call.1} parent=11 // pred_check_branch
          %306 = sbr.rel (%p304) target = $region24
        $region23: #{tpu_custom_call.1} parent=11 // pred_region
          %s308 = ssub.s32 256, 256
          %309 = vsyncadd [#allocation4], %s308
          %s310 = sshll.u32 [#allocation3], 4
          %s311 = int_to_ptr.vmem [resolvable:$true] %s310
          %316 = dma.hbm_to_vmem [thread:$0]  %s3, 256, %s311, [#allocation4], 64, 64, 4
        $region24: #{tpu_custom_call.1} parent=11 // pred_fallthru
          _
        // Predicated region
        $region25: #{tpu_custom_call.1} parent=11 // pred_check
          %p317 = pneg %p131
        $region26: #{tpu_custom_call.1} parent=11 // pred_check_branch
          %319 = sbr.rel (%p317) target = $region28
        $region27: #{tpu_custom_call.1} parent=11 // pred_region
          _
        $region28: #{tpu_custom_call.1} parent=11 // pred_fallthru
          _
        // Predicated region
        $region29: #{tpu_custom_call.1} parent=11 // pred_check
          %p320 = pneg %p152
        $region30: #{tpu_custom_call.1} parent=11 // pred_check_branch
          %322 = sbr.rel (%p320) target = $region32
        $region31: #{tpu_custom_call.1} parent=11 // pred_region
          _
        $region32: #{tpu_custom_call.1} parent=11 // pred_fallthru
          _
        // Predicated region
        $region33: #{tpu_custom_call.1} parent=11 // pred_check
          %p323 = pneg %p173
        $region34: #{tpu_custom_call.1} parent=11 // pred_check_branch
          %325 = sbr.rel (%p323) target = $region36
        $region35: #{tpu_custom_call.1} parent=11 // pred_region
          _
        $region36: #{tpu_custom_call.1} parent=11 // pred_fallthru
          _
        // Predicated region
        $region37: #{tpu_custom_call.1} parent=11 // pred_check
          %p326 = pneg %p194
        $region38: #{tpu_custom_call.1} parent=11 // pred_check_branch
          %328 = sbr.rel (%p326) target = $region40
        $region39: #{tpu_custom_call.1} parent=11 // pred_region
          _
        $region40: #{tpu_custom_call.1} parent=11 // pred_fallthru
          _
        // Predicated region
        $region41: #{tpu_custom_call.1} parent=11 // pred_check
          %p329 = pneg %p215
        $region42: #{tpu_custom_call.1} parent=11 // pred_check_branch
          %331 = sbr.rel (%p329) target = $region44
        $region43: #{tpu_custom_call.1} parent=11 // pred_region
          _
        $region44: #{tpu_custom_call.1} parent=11 // pred_fallthru
          _
        // Predicated region
        $region45: #{tpu_custom_call.1} parent=11 // pred_check
          %p332 = pneg %p236
        $region46: #{tpu_custom_call.1} parent=11 // pred_check_branch
          %334 = sbr.rel (%p332) target = $region48
        $region47: #{tpu_custom_call.1} parent=11 // pred_region
          _
        $region48: #{tpu_custom_call.1} parent=11 // pred_fallthru
          _
        // Predicated region
        $region49: #{tpu_custom_call.1} parent=11 // pred_check
          %p335 = pneg %p257
        $region50: #{tpu_custom_call.1} parent=11 // pred_check_branch
          %337 = sbr.rel (%p335) target = $region52
        $region51: #{tpu_custom_call.1} parent=11 // pred_region
          _
        $region52: #{tpu_custom_call.1} parent=11 // pred_fallthru
          _
      $region12: #{tpu_custom_call.1} parent=5 // pred_fallthru
        _
      %p338 = scmp.lt.s32.totalorder %s21, 2
      // Predicated region
      $region53: #{tpu_custom_call.1} parent=5 // pred_check
        %p339 = pneg %p338
      $region54: #{tpu_custom_call.1} parent=5 // pred_check_branch
        %341 = sbr.rel (%p339) target = $region56
      $region55: #{tpu_custom_call.1} parent=5 // pred_region
        // Predicated region
        $region57: #{tpu_custom_call.1} parent=55 // pred_check
          %p342 = pneg %p41
        $region58: #{tpu_custom_call.1} parent=55 // pred_check_branch
          %344 = sbr.rel (%p342) target = $region60
        $region59: #{tpu_custom_call.1} parent=55 // pred_region
          %s345 = smul.u32 2, %s21
          %p346 = scmp.lt.s32.totalorder %s345, 3
          %s347 = scalar_select %p346, %s345, 3
          %s348 = smul.addr %s347, 2
          %s349 = smul.addr %s348, 8
          %s350 = scalar_lea.vmem %s0, %s349
          %s351 = smul.u32 2, %s21
        $region60: #{tpu_custom_call.1} parent=55 // pred_fallthru
          _
      $region56: #{tpu_custom_call.1} parent=5 // pred_fallthru
        _
      %p352 = scmp.le.s32.totalorder 1, %s21
      %p353 = scmp.lt.s32.totalorder %s21, 3
      %p354 = pnand %p352, %p353
      %p355 = pneg %p354
      // Predicated region
      $region61: #{tpu_custom_call.1} parent=5 // pred_check
        _
      $region62: #{tpu_custom_call.1} parent=5 // pred_check_branch
        %357 = sbr.rel (%p354) target = $region64
      $region63: #{tpu_custom_call.1} parent=5 // pred_region
        %s358 = ssub.s32 %s21, 1
        // Predicated region
        $region65: #{tpu_custom_call.1} parent=63 // pred_check
          %p359 = pneg %p110
        $region66: #{tpu_custom_call.1} parent=63 // pred_check_branch
          %361 = sbr.rel (%p359) target = $region68
        $region67: #{tpu_custom_call.1} parent=63 // pred_region
          %362 = dma.done [#allocation4], 256
        $region68: #{tpu_custom_call.1} parent=63 // pred_fallthru
          _
        %s363 = smul.u32 2, %s26
        %p364 = scmp.lt.s32.totalorder %s363, 3
        %s365 = scalar_select %p364, %s363, 3
        %s366 = smul.addr %s365, 2
        %s367 = smul.addr %s366, 8
        %s368 = scalar_lea.vmem %s0, %s367
        %p369 = pneg %p47
        %p370 = pneg %p44
        %p371 = pneg %p68
        %p372 = pneg %p65
        %p373 = pneg %p89
        %p374 = pneg %p86
        %p375 = pneg %p110
        %p376 = pneg %p107
        %p377 = pneg %p131
        %p378 = pneg %p128
        %p379 = pneg %p152
        %p380 = pneg %p149
        %p381 = pneg %p173
        %p382 = pneg %p170
        %p383 = pneg %p194
        %p384 = pneg %p191
        %p385 = pneg %p215
        %p386 = pneg %p212
        %p387 = pneg %p236
        %p388 = pneg %p233
        %p389 = pneg %p257
        %p390 = pneg %p254
        %p391 = pneg %p283
        %p392 = pneg %p280
        %s393 = sand.u32 %s270, 1
        %s394 = scalar_lea.sflag [#allocation5], %s393
        %s395 = sand.u32 %s270, 1
        %s396 = smul.addr %s395, 32
        %s397 = scalar_lea.vmem [#allocation6], %s396
        %s398 = smul.u32 2, %s26
        %p399 = scmp.lt.s32.totalorder %s398, 3
        %s400 = scalar_select %p399, %s398, 3
        %s401 = smul.addr %s400, 2
        %s402 = smul.addr %s401, 8
        %s403 = scalar_lea.vmem %s0, %s402
        %s404 = smul.u32 2, %s26
        %s405 = smul.u32 2, %s26
        %v407 = vld [vmem:[%s403] sm:$0xff]
        %v408 = vld [vmem:[%s403 + $0x8] sm:$0xff]
        %v409 = vld [vmem:[%s403 + $0x10] sm:$0xff]
        %v410 = vld [vmem:[%s403 + $0x18] sm:$0xff]
        %v411 = vpack.c.bf16 %v408, %v407
        %v412 = vpack.c.bf16 %v410, %v409
        %v413 = vld [vmem:[%s1] sm:$0xf]
        %v414 = vld [vmem:[%s1 + $0x4] sm:$0xf]
        %v415 = vld [vmem:[%s1 + $0x8] sm:$0xf]
        %v416 = vld [vmem:[%s1 + $0xc] sm:$0xf]
        %v417 = vld [vmem:[%s2] sm:$0x1]
        %v419 = vlaneseq
        %v420 = vshrl.u32 %v419, 7
        %v421 = vsub.s32 0, %v420
        %v422 = vrot.slane %v417, %v421
        %v428 = vunpack.c.l.b16 %v413
        %v429 = vunpack.c.l.b16 %v414
        %v430 = vunpack.c.l.b16 %v415
        %v431 = vunpack.c.l.b16 %v416
        %v432 = vpack.c.b16 %v429, %v428
        %v433 = vpack.c.b16 %v431, %v430
        %vm436 = vcmask 261120
        %v438 = vsel %vm436, %v411, 0
        %v441 = vsel %vm436, %v412, 0
        %443 = vmatprep.subr.bf16.mxu0 0
        %444 = vmatpush1.bf16.msra.mxu0 0
        %445 = vmatprep.subr.bf16.mxu0 0
        %446 = vmatpush1.bf16.msra.mxu0 0
        %447 = vmatprep.subr.bf16.mxu0 0
        %448 = vmatpush1.bf16.msra.mxu0 0
        %449 = vmatprep.subr.bf16.mxu0 0
        %450 = vmatpush1.bf16.msra.mxu0 0
        %451 = vmatprep.subr.bf16.mxu0 0
        %452 = vmatpush1.bf16.msra.mxu0 0
        %453 = vmatprep.subr.bf16.mxu0 0
        %454 = vmatpush1.bf16.msra.mxu0 0
        %455 = vmatprep.subr.bf16.mxu0 0
        %456 = vmatpush1.bf16.msra.mxu0 %v433
        %457 = vmatprep.subr.bf16.mxu0 0
        %458 = vmatpush1.bf16.msra.mxu0 %v432
        %459 = vmatprep.subr.bf16.mxu0 0
        %460 = vmatpush2.bf16.msra.mxu0 0
        %461 = vmatprep.subr.bf16.mxu0 0
        %462 = vmatpush2.bf16.msra.mxu0 0
        %463 = vmatprep.subr.bf16.mxu0 0
        %464 = vmatpush2.bf16.msra.mxu0 0
        %465 = vmatprep.subr.bf16.mxu0 0
        %466 = vmatpush2.bf16.msra.mxu0 0
        %467 = vmatprep.subr.bf16.mxu0 0
        %468 = vmatpush2.bf16.msra.mxu0 0
        %469 = vmatprep.subr.bf16.mxu0 0
        %470 = vmatpush2.bf16.msra.mxu0 0
        %471 = vmatprep.subr.bf16.mxu0 0
        %472 = vmatpush2.bf16.msra.mxu0 0
        %473 = vmatprep.subr.bf16.mxu0 0
        %474 = vmatpush2.bf16.msra.mxu0 0
        %475 = vmatprep.mubr.bf16.mxu0 0
        %476 = vmatmul.mubr.bf16.gmra.mxu0 %v438
        %v477 = vpop.f32.mrf.mxu0
        %v478 = vadd.f32 %v422, %v477
        %v479 = vpop.f32.mrf.mxu0
        %v480 = vpop.f32.mrf.mxu0
        %v481 = vadd.f32 %v422, %v480
        %v482 = vpop.f32.mrf.mxu0
        %483 = vmatprep.mubr.bf16.mxu0 0
        %484 = vmatmul.mubr.bf16.gmra.mxu0 %v441
        %v485 = vpop.f32.mrf.mxu0
        %v486 = vadd.f32 %v422, %v485
        %v487 = vpop.f32.mrf.mxu0
        %v488 = vpop.f32.mrf.mxu0
        %v489 = vadd.f32 %v422, %v488
        %v490 = vpop.f32.mrf.mxu0
        %491 = vdwg.mxu0
        %v492 = vpack.c.bf16 %v481, %v478
        %v493 = vpack.c.bf16 %v489, %v486
        %495 = vrot.lane.b32.xlu0 %v492, 96
        %v496 = vpop.permute.xlu0 %495
        %vm497 = vcmask 64512
        %v499 = vsel %vm497, %v492, 0
        %v502 = vsel %vm497, %v496, 0
        %504 = vmatprep.subr.bf16.mxu0 0
        %505 = vmatpush1.bf16.xpose.msra.mxu0 0
        %506 = vmatprep.subr.bf16.mxu0 0
        %507 = vmatpush1.bf16.xpose.msra.mxu0 0
        %508 = vmatprep.subr.bf16.mxu0 0
        %509 = vmatpush1.bf16.xpose.msra.mxu0 0
        %510 = vmatprep.subr.bf16.mxu0 0
        %511 = vmatpush1.bf16.xpose.msra.mxu0 0
        %512 = vmatprep.subr.bf16.mxu0 0
        %513 = vmatpush1.bf16.xpose.msra.mxu0 0
        %514 = vmatprep.subr.bf16.mxu0 0
        %515 = vmatpush1.bf16.xpose.msra.mxu0 0
        %516 = vmatprep.subr.bf16.mxu0 0
        %517 = vmatpush1.bf16.xpose.msra.mxu0 0
        %518 = vmatprep.subr.bf16.mxu0 0
        %519 = vmatpush1.bf16.xpose.msra.mxu0 %v502
        %520 = vmatprep.subr.bf16.mxu0 0
        %521 = vmatpush2.bf16.xpose.msra.mxu0 0
        %522 = vmatprep.subr.bf16.mxu0 0
        %523 = vmatpush2.bf16.xpose.msra.mxu0 0
        %524 = vmatprep.subr.bf16.mxu0 0
        %525 = vmatpush2.bf16.xpose.msra.mxu0 0
        %526 = vmatprep.subr.bf16.mxu0 0
        %527 = vmatpush2.bf16.xpose.msra.mxu0 0
        %528 = vmatprep.subr.bf16.mxu0 0
        %529 = vmatpush2.bf16.xpose.msra.mxu0 0
        %530 = vmatprep.subr.bf16.mxu0 0
        %531 = vmatpush2.bf16.xpose.msra.mxu0 0
        %532 = vmatprep.subr.bf16.mxu0 0
        %533 = vmatpush2.bf16.xpose.msra.mxu0 0
        %534 = vmatprep.subr.bf16.mxu0 0
        %535 = vmatpush2.bf16.xpose.msra.mxu0 0
        %536 = vmatprep.mubr.bf16.mxu0 0
        %537 = vmatmul.mubr.bf16.gmra.mxu0 %v499
        %v538 = vpop.f32.mrf.mxu0
        %v539 = vadd.f32 0.0, %v538
        %v540 = vpop.f32.mrf.mxu0
        %v541 = vpop.f32.mrf.mxu0
        %v542 = vadd.f32 0.0, %v541
        %v543 = vpop.f32.mrf.mxu0
        %544 = vdwg.mxu0
        %545 = vrot.lane.b32.xlu0 %v492, 120
        %v546 = vpop.permute.xlu0 %545
        %547 = vrot.lane.b32.xlu0 %v492, 88
        %v548 = vpop.permute.xlu0 %547
        %v550 = vsel %vm497, %v546, 0
        %v553 = vsel %vm497, %v548, 0
        %555 = vmatprep.subr.bf16.mxu0 0
        %556 = vmatpush1.bf16.xpose.msra.mxu0 0
        %557 = vmatprep.subr.bf16.mxu0 0
        %558 = vmatpush1.bf16.xpose.msra.mxu0 0
        %559 = vmatprep.subr.bf16.mxu0 0
        %560 = vmatpush1.bf16.xpose.msra.mxu0 0
        %561 = vmatprep.subr.bf16.mxu0 0
        %562 = vmatpush1.bf16.xpose.msra.mxu0 0
        %563 = vmatprep.subr.bf16.mxu0 0
        %564 = vmatpush1.bf16.xpose.msra.mxu0 0
        %565 = vmatprep.subr.bf16.mxu0 0
        %566 = vmatpush1.bf16.xpose.msra.mxu0 0
        %567 = vmatprep.subr.bf16.mxu0 0
        %568 = vmatpush1.bf16.xpose.msra.mxu0 0
        %569 = vmatprep.subr.bf16.mxu0 0
        %570 = vmatpush1.bf16.xpose.msra.mxu0 %v553
        %571 = vmatprep.subr.bf16.mxu0 0
        %572 = vmatpush2.bf16.xpose.msra.mxu0 0
        %573 = vmatprep.subr.bf16.mxu0 0
        %574 = vmatpush2.bf16.xpose.msra.mxu0 0
        %575 = vmatprep.subr.bf16.mxu0 0
        %576 = vmatpush2.bf16.xpose.msra.mxu0 0
        %577 = vmatprep.subr.bf16.mxu0 0
        %578 = vmatpush2.bf16.xpose.msra.mxu0 0
        %579 = vmatprep.subr.bf16.mxu0 0
        %580 = vmatpush2.bf16.xpose.msra.mxu0 0
        %581 = vmatprep.subr.bf16.mxu0 0
        %582 = vmatpush2.bf16.xpose.msra.mxu0 0
        %583 = vmatprep.subr.bf16.mxu0 0
        %584 = vmatpush2.bf16.xpose.msra.mxu0 0
        %585 = vmatprep.subr.bf16.mxu0 0
        %586 = vmatpush2.bf16.xpose.msra.mxu0 0
        %587 = vmatprep.mubr.bf16.mxu0 0
        %588 = vmatmul.mubr.bf16.gmra.mxu0 %v550
        %v589 = vpop.f32.mrf.mxu0
        %v590 = vadd.f32 0.0, %v589
        %v591 = vpop.f32.mrf.mxu0
        %v592 = vpop.f32.mrf.mxu0
        %v593 = vadd.f32 0.0, %v592
        %v594 = vpop.f32.mrf.mxu0
        %595 = vdwg.mxu0
        %596 = vrot.lane.b32.xlu0 %v492, 112
        %v597 = vpop.permute.xlu0 %596
        %598 = vrot.lane.b32.xlu0 %v492, 80
        %v599 = vpop.permute.xlu0 %598
        %v601 = vsel %vm497, %v597, 0
        %v604 = vsel %vm497, %v599, 0
        %606 = vmatprep.subr.bf16.mxu0 0
        %607 = vmatpush1.bf16.xpose.msra.mxu0 0
        %608 = vmatprep.subr.bf16.mxu0 0
        %609 = vmatpush1.bf16.xpose.msra.mxu0 0
        %610 = vmatprep.subr.bf16.mxu0 0
        %611 = vmatpush1.bf16.xpose.msra.mxu0 0
        %612 = vmatprep.subr.bf16.mxu0 0
        %613 = vmatpush1.bf16.xpose.msra.mxu0 0
        %614 = vmatprep.subr.bf16.mxu0 0
        %615 = vmatpush1.bf16.xpose.msra.mxu0 0
        %616 = vmatprep.subr.bf16.mxu0 0
        %617 = vmatpush1.bf16.xpose.msra.mxu0 0
        %618 = vmatprep.subr.bf16.mxu0 0
        %619 = vmatpush1.bf16.xpose.msra.mxu0 0
        %620 = vmatprep.subr.bf16.mxu0 0
        %621 = vmatpush1.bf16.xpose.msra.mxu0 %v604
        %622 = vmatprep.subr.bf16.mxu0 0
        %623 = vmatpush2.bf16.xpose.msra.mxu0 0
        %624 = vmatprep.subr.bf16.mxu0 0
        %625 = vmatpush2.bf16.xpose.msra.mxu0 0
        %626 = vmatprep.subr.bf16.mxu0 0
        %627 = vmatpush2.bf16.xpose.msra.mxu0 0
        %628 = vmatprep.subr.bf16.mxu0 0
        %629 = vmatpush2.bf16.xpose.msra.mxu0 0
        %630 = vmatprep.subr.bf16.mxu0 0
        %631 = vmatpush2.bf16.xpose.msra.mxu0 0
        %632 = vmatprep.subr.bf16.mxu0 0
        %633 = vmatpush2.bf16.xpose.msra.mxu0 0
        %634 = vmatprep.subr.bf16.mxu0 0
        %635 = vmatpush2.bf16.xpose.msra.mxu0 0
        %636 = vmatprep.subr.bf16.mxu0 0
        %637 = vmatpush2.bf16.xpose.msra.mxu0 0
        %638 = vmatprep.mubr.bf16.mxu0 0
        %639 = vmatmul.mubr.bf16.gmra.mxu0 %v601
        %v640 = vpop.f32.mrf.mxu0
        %v641 = vadd.f32 0.0, %v640
        %v642 = vpop.f32.mrf.mxu0
        %v643 = vpop.f32.mrf.mxu0
        %v644 = vadd.f32 0.0, %v643
        %v645 = vpop.f32.mrf.mxu0
        %646 = vdwg.mxu0
        %647 = vrot.lane.b32.xlu0 %v492, 104
        %v648 = vpop.permute.xlu0 %647
        %649 = vrot.lane.b32.xlu0 %v492, 72
        %v650 = vpop.permute.xlu0 %649
        %v652 = vsel %vm497, %v648, 0
        %v655 = vsel %vm497, %v650, 0
        %657 = vmatprep.subr.bf16.mxu0 0
        %658 = vmatpush1.bf16.xpose.msra.mxu0 0
        %659 = vmatprep.subr.bf16.mxu0 0
        %660 = vmatpush1.bf16.xpose.msra.mxu0 0
        %661 = vmatprep.subr.bf16.mxu0 0
        %662 = vmatpush1.bf16.xpose.msra.mxu0 0
        %663 = vmatprep.subr.bf16.mxu0 0
        %664 = vmatpush1.bf16.xpose.msra.mxu0 0
        %665 = vmatprep.subr.bf16.mxu0 0
        %666 = vmatpush1.bf16.xpose.msra.mxu0 0
        %667 = vmatprep.subr.bf16.mxu0 0
        %668 = vmatpush1.bf16.xpose.msra.mxu0 0
        %669 = vmatprep.subr.bf16.mxu0 0
        %670 = vmatpush1.bf16.xpose.msra.mxu0 0
        %671 = vmatprep.subr.bf16.mxu0 0
        %672 = vmatpush1.bf16.xpose.msra.mxu0 %v655
        %673 = vmatprep.subr.bf16.mxu0 0
        %674 = vmatpush2.bf16.xpose.msra.mxu0 0
        %675 = vmatprep.subr.bf16.mxu0 0
        %676 = vmatpush2.bf16.xpose.msra.mxu0 0
        %677 = vmatprep.subr.bf16.mxu0 0
        %678 = vmatpush2.bf16.xpose.msra.mxu0 0
        %679 = vmatprep.subr.bf16.mxu0 0
        %680 = vmatpush2.bf16.xpose.msra.mxu0 0
        %681 = vmatprep.subr.bf16.mxu0 0
        %682 = vmatpush2.bf16.xpose.msra.mxu0 0
        %683 = vmatprep.subr.bf16.mxu0 0
        %684 = vmatpush2.bf16.xpose.msra.mxu0 0
        %685 = vmatprep.subr.bf16.mxu0 0
        %686 = vmatpush2.bf16.xpose.msra.mxu0 0
        %687 = vmatprep.subr.bf16.mxu0 0
        %688 = vmatpush2.bf16.xpose.msra.mxu0 0
        %689 = vmatprep.mubr.bf16.mxu0 0
        %690 = vmatmul.mubr.bf16.gmra.mxu0 %v652
        %v691 = vpop.f32.mrf.mxu0
        %v692 = vadd.f32 0.0, %v691
        %v693 = vpop.f32.mrf.mxu0
        %v694 = vpop.f32.mrf.mxu0
        %v695 = vadd.f32 0.0, %v694
        %v696 = vpop.f32.mrf.mxu0
        %697 = vdwg.mxu0
        %699 = vrot.lane.b32.xlu0 %v493, 96
        %v700 = vpop.permute.xlu0 %699
        %v702 = vsel %vm497, %v493, 0
        %v705 = vsel %vm497, %v700, 0
        %707 = vmatprep.subr.bf16.mxu0 0
        %708 = vmatpush1.bf16.xpose.msra.mxu0 0
        %709 = vmatprep.subr.bf16.mxu0 0
        %710 = vmatpush1.bf16.xpose.msra.mxu0 0
        %711 = vmatprep.subr.bf16.mxu0 0
        %712 = vmatpush1.bf16.xpose.msra.mxu0 0
        %713 = vmatprep.subr.bf16.mxu0 0
        %714 = vmatpush1.bf16.xpose.msra.mxu0 0
        %715 = vmatprep.subr.bf16.mxu0 0
        %716 = vmatpush1.bf16.xpose.msra.mxu0 0
        %717 = vmatprep.subr.bf16.mxu0 0
        %718 = vmatpush1.bf16.xpose.msra.mxu0 0
        %719 = vmatprep.subr.bf16.mxu0 0
        %720 = vmatpush1.bf16.xpose.msra.mxu0 0
        %721 = vmatprep.subr.bf16.mxu0 0
        %722 = vmatpush1.bf16.xpose.msra.mxu0 %v705
        %723 = vmatprep.subr.bf16.mxu0 0
        %724 = vmatpush2.bf16.xpose.msra.mxu0 0
        %725 = vmatprep.subr.bf16.mxu0 0
        %726 = vmatpush2.bf16.xpose.msra.mxu0 0
        %727 = vmatprep.subr.bf16.mxu0 0
        %728 = vmatpush2.bf16.xpose.msra.mxu0 0
        %729 = vmatprep.subr.bf16.mxu0 0
        %730 = vmatpush2.bf16.xpose.msra.mxu0 0
        %731 = vmatprep.subr.bf16.mxu0 0
        %732 = vmatpush2.bf16.xpose.msra.mxu0 0
        %733 = vmatprep.subr.bf16.mxu0 0
        %734 = vmatpush2.bf16.xpose.msra.mxu0 0
        %735 = vmatprep.subr.bf16.mxu0 0
        %736 = vmatpush2.bf16.xpose.msra.mxu0 0
        %737 = vmatprep.subr.bf16.mxu0 0
        %738 = vmatpush2.bf16.xpose.msra.mxu0 0
        %739 = vmatprep.mubr.bf16.mxu0 0
        %740 = vmatmul.mubr.bf16.gmra.mxu0 %v702
        %v741 = vpop.f32.mrf.mxu0
        %v742 = vadd.f32 0.0, %v741
        %v743 = vpop.f32.mrf.mxu0
        %v744 = vpop.f32.mrf.mxu0
        %v745 = vadd.f32 0.0, %v744
        %v746 = vpop.f32.mrf.mxu0
        %747 = vdwg.mxu0
        %748 = vrot.lane.b32.xlu0 %v493, 120
        %v749 = vpop.permute.xlu0 %748
        %750 = vrot.lane.b32.xlu0 %v493, 88
        %v751 = vpop.permute.xlu0 %750
        %v753 = vsel %vm497, %v749, 0
        %v756 = vsel %vm497, %v751, 0
        %758 = vmatprep.subr.bf16.mxu0 0
        %759 = vmatpush1.bf16.xpose.msra.mxu0 0
        %760 = vmatprep.subr.bf16.mxu0 0
        %761 = vmatpush1.bf16.xpose.msra.mxu0 0
        %762 = vmatprep.subr.bf16.mxu0 0
        %763 = vmatpush1.bf16.xpose.msra.mxu0 0
        %764 = vmatprep.subr.bf16.mxu0 0
        %765 = vmatpush1.bf16.xpose.msra.mxu0 0
        %766 = vmatprep.subr.bf16.mxu0 0
        %767 = vmatpush1.bf16.xpose.msra.mxu0 0
        %768 = vmatprep.subr.bf16.mxu0 0
        %769 = vmatpush1.bf16.xpose.msra.mxu0 0
        %770 = vmatprep.subr.bf16.mxu0 0
        %771 = vmatpush1.bf16.xpose.msra.mxu0 0
        %772 = vmatprep.subr.bf16.mxu0 0
        %773 = vmatpush1.bf16.xpose.msra.mxu0 %v756
        %774 = vmatprep.subr.bf16.mxu0 0
        %775 = vmatpush2.bf16.xpose.msra.mxu0 0
        %776 = vmatprep.subr.bf16.mxu0 0
        %777 = vmatpush2.bf16.xpose.msra.mxu0 0
        %778 = vmatprep.subr.bf16.mxu0 0
        %779 = vmatpush2.bf16.xpose.msra.mxu0 0
        %780 = vmatprep.subr.bf16.mxu0 0
        %781 = vmatpush2.bf16.xpose.msra.mxu0 0
        %782 = vmatprep.subr.bf16.mxu0 0
        %783 = vmatpush2.bf16.xpose.msra.mxu0 0
        %784 = vmatprep.subr.bf16.mxu0 0
        %785 = vmatpush2.bf16.xpose.msra.mxu0 0
        %786 = vmatprep.subr.bf16.mxu0 0
        %787 = vmatpush2.bf16.xpose.msra.mxu0 0
        %788 = vmatprep.subr.bf16.mxu0 0
        %789 = vmatpush2.bf16.xpose.msra.mxu0 0
        %790 = vmatprep.mubr.bf16.mxu0 0
        %791 = vmatmul.mubr.bf16.gmra.mxu0 %v753
        %v792 = vpop.f32.mrf.mxu0
        %v793 = vadd.f32 0.0, %v792
        %v794 = vpop.f32.mrf.mxu0
        %v795 = vpop.f32.mrf.mxu0
        %v796 = vadd.f32 0.0, %v795
        %v797 = vpop.f32.mrf.mxu0
        %798 = vdwg.mxu0
        %799 = vrot.lane.b32.xlu0 %v493, 112
        %v800 = vpop.permute.xlu0 %799
        %801 = vrot.lane.b32.xlu0 %v493, 80
        %v802 = vpop.permute.xlu0 %801
        %v804 = vsel %vm497, %v800, 0
        %v807 = vsel %vm497, %v802, 0
        %809 = vmatprep.subr.bf16.mxu0 0
        %810 = vmatpush1.bf16.xpose.msra.mxu0 0
        %811 = vmatprep.subr.bf16.mxu0 0
        %812 = vmatpush1.bf16.xpose.msra.mxu0 0
        %813 = vmatprep.subr.bf16.mxu0 0
        %814 = vmatpush1.bf16.xpose.msra.mxu0 0
        %815 = vmatprep.subr.bf16.mxu0 0
        %816 = vmatpush1.bf16.xpose.msra.mxu0 0
        %817 = vmatprep.subr.bf16.mxu0 0
        %818 = vmatpush1.bf16.xpose.msra.mxu0 0
        %819 = vmatprep.subr.bf16.mxu0 0
        %820 = vmatpush1.bf16.xpose.msra.mxu0 0
        %821 = vmatprep.subr.bf16.mxu0 0
        %822 = vmatpush1.bf16.xpose.msra.mxu0 0
        %823 = vmatprep.subr.bf16.mxu0 0
        %824 = vmatpush1.bf16.xpose.msra.mxu0 %v807
        %825 = vmatprep.subr.bf16.mxu0 0
        %826 = vmatpush2.bf16.xpose.msra.mxu0 0
        %827 = vmatprep.subr.bf16.mxu0 0
        %828 = vmatpush2.bf16.xpose.msra.mxu0 0
        %829 = vmatprep.subr.bf16.mxu0 0
        %830 = vmatpush2.bf16.xpose.msra.mxu0 0
        %831 = vmatprep.subr.bf16.mxu0 0
        %832 = vmatpush2.bf16.xpose.msra.mxu0 0
        %833 = vmatprep.subr.bf16.mxu0 0
        %834 = vmatpush2.bf16.xpose.msra.mxu0 0
        %835 = vmatprep.subr.bf16.mxu0 0
        %836 = vmatpush2.bf16.xpose.msra.mxu0 0
        %837 = vmatprep.subr.bf16.mxu0 0
        %838 = vmatpush2.bf16.xpose.msra.mxu0 0
        %839 = vmatprep.subr.bf16.mxu0 0
        %840 = vmatpush2.bf16.xpose.msra.mxu0 0
        %841 = vmatprep.mubr.bf16.mxu0 0
        %842 = vmatmul.mubr.bf16.gmra.mxu0 %v804
        %v843 = vpop.f32.mrf.mxu0
        %v844 = vadd.f32 0.0, %v843
        %v845 = vpop.f32.mrf.mxu0
        %v846 = vpop.f32.mrf.mxu0
        %v847 = vadd.f32 0.0, %v846
        %v848 = vpop.f32.mrf.mxu0
        %849 = vdwg.mxu0
        %850 = vrot.lane.b32.xlu0 %v493, 104
        %v851 = vpop.permute.xlu0 %850
        %852 = vrot.lane.b32.xlu0 %v493, 72
        %v853 = vpop.permute.xlu0 %852
        %v855 = vsel %vm497, %v851, 0
        %v858 = vsel %vm497, %v853, 0
        %860 = vmatprep.subr.bf16.mxu0 0
        %861 = vmatpush1.bf16.xpose.msra.mxu0 0
        %862 = vmatprep.subr.bf16.mxu0 0
        %863 = vmatpush1.bf16.xpose.msra.mxu0 0
        %864 = vmatprep.subr.bf16.mxu0 0
        %865 = vmatpush1.bf16.xpose.msra.mxu0 0
        %866 = vmatprep.subr.bf16.mxu0 0
        %867 = vmatpush1.bf16.xpose.msra.mxu0 0
        %868 = vmatprep.subr.bf16.mxu0 0
        %869 = vmatpush1.bf16.xpose.msra.mxu0 0
        %870 = vmatprep.subr.bf16.mxu0 0
        %871 = vmatpush1.bf16.xpose.msra.mxu0 0
        %872 = vmatprep.subr.bf16.mxu0 0
        %873 = vmatpush1.bf16.xpose.msra.mxu0 0
        %874 = vmatprep.subr.bf16.mxu0 0
        %875 = vmatpush1.bf16.xpose.msra.mxu0 %v858
        %876 = vmatprep.subr.bf16.mxu0 0
        %877 = vmatpush2.bf16.xpose.msra.mxu0 0
        %878 = vmatprep.subr.bf16.mxu0 0
        %879 = vmatpush2.bf16.xpose.msra.mxu0 0
        %880 = vmatprep.subr.bf16.mxu0 0
        %881 = vmatpush2.bf16.xpose.msra.mxu0 0
        %882 = vmatprep.subr.bf16.mxu0 0
        %883 = vmatpush2.bf16.xpose.msra.mxu0 0
        %884 = vmatprep.subr.bf16.mxu0 0
        %885 = vmatpush2.bf16.xpose.msra.mxu0 0
        %886 = vmatprep.subr.bf16.mxu0 0
        %887 = vmatpush2.bf16.xpose.msra.mxu0 0
        %888 = vmatprep.subr.bf16.mxu0 0
        %889 = vmatpush2.bf16.xpose.msra.mxu0 0
        %890 = vmatprep.subr.bf16.mxu0 0
        %891 = vmatpush2.bf16.xpose.msra.mxu0 0
        %892 = vmatprep.mubr.bf16.mxu0 0
        %893 = vmatmul.mubr.bf16.gmra.mxu0 %v855
        %v894 = vpop.f32.mrf.mxu0
        %v895 = vadd.f32 0.0, %v894
        %v896 = vpop.f32.mrf.mxu0
        %v897 = vpop.f32.mrf.mxu0
        %v898 = vadd.f32 0.0, %v897
        %v899 = vpop.f32.mrf.mxu0
        %900 = vdwg.mxu0
        %vm917 = vcmp.lt.s32.totalorder %v539, 0
        %vm918 = vcmp.lt.s32.totalorder %v542, 0
        %vm919 = vcmp.lt.s32.totalorder %v590, 0
        %vm920 = vcmp.lt.s32.totalorder %v593, 0
        %vm921 = vcmp.lt.s32.totalorder %v641, 0
        %vm922 = vcmp.lt.s32.totalorder %v644, 0
        %vm923 = vcmp.lt.s32.totalorder %v692, 0
        %vm924 = vcmp.lt.s32.totalorder %v695, 0
        %vm925 = vcmp.lt.s32.totalorder %v742, 0
        %vm926 = vcmp.lt.s32.totalorder %v745, 0
        %vm927 = vcmp.lt.s32.totalorder %v793, 0
        %vm928 = vcmp.lt.s32.totalorder %v796, 0
        %vm929 = vcmp.lt.s32.totalorder %v844, 0
        %vm930 = vcmp.lt.s32.totalorder %v847, 0
        %vm931 = vcmp.lt.s32.totalorder %v895, 0
        %vm932 = vcmp.lt.s32.totalorder %v898, 0
        %v933 = vsub.s32 2147483648, %v539
        %v934 = vsub.s32 2147483648, %v542
        %v935 = vsub.s32 2147483648, %v590
        %v936 = vsub.s32 2147483648, %v593
        %v937 = vsub.s32 2147483648, %v641
        %v938 = vsub.s32 2147483648, %v644
        %v939 = vsub.s32 2147483648, %v692
        %v940 = vsub.s32 2147483648, %v695
        %v941 = vsub.s32 2147483648, %v742
        %v942 = vsub.s32 2147483648, %v745
        %v943 = vsub.s32 2147483648, %v793
        %v944 = vsub.s32 2147483648, %v796
        %v945 = vsub.s32 2147483648, %v844
        %v946 = vsub.s32 2147483648, %v847
        %v947 = vsub.s32 2147483648, %v895
        %v948 = vsub.s32 2147483648, %v898
        %v949 = vsel %vm917, %v933, %v539
        %v950 = vsel %vm918, %v934, %v542
        %v951 = vsel %vm919, %v935, %v590
        %v952 = vsel %vm920, %v936, %v593
        %v953 = vsel %vm921, %v937, %v641
        %v954 = vsel %vm922, %v938, %v644
        %v955 = vsel %vm923, %v939, %v692
        %v956 = vsel %vm924, %v940, %v695
        %v957 = vsel %vm925, %v941, %v742
        %v958 = vsel %vm926, %v942, %v745
        %v959 = vsel %vm927, %v943, %v793
        %v960 = vsel %vm928, %v944, %v796
        %v961 = vsel %vm929, %v945, %v844
        %v962 = vsel %vm930, %v946, %v847
        %v963 = vsel %vm931, %v947, %v895
        %v964 = vsel %vm932, %v948, %v898
        %vm965 = vcmask 130048
        %v966 = vsel %vm965, %v539, inf
        %967 = vmin.xlane.f32.xlu0 %v966
        %v968 = vpop.xlane.xlu0 %967
        %v969 = vsel %vm965, %v542, inf
        %970 = vmin.xlane.f32.xlu0 %v969
        %v971 = vpop.xlane.xlu0 %970
        %v972 = vsel %vm965, %v590, inf
        %973 = vmin.xlane.f32.xlu0 %v972
        %v974 = vpop.xlane.xlu0 %973
        %v975 = vsel %vm965, %v593, inf
        %976 = vmin.xlane.f32.xlu0 %v975
        %v977 = vpop.xlane.xlu0 %976
        %v978 = vsel %vm965, %v641, inf
        %979 = vmin.xlane.f32.xlu0 %v978
        %v980 = vpop.xlane.xlu0 %979
        %v981 = vsel %vm965, %v644, inf
        %982 = vmin.xlane.f32.xlu0 %v981
        %v983 = vpop.xlane.xlu0 %982
        %v984 = vsel %vm965, %v692, inf
        %985 = vmin.xlane.f32.xlu0 %v984
        %v986 = vpop.xlane.xlu0 %985
        %v987 = vsel %vm965, %v695, inf
        %988 = vmin.xlane.f32.xlu0 %v987
        %v989 = vpop.xlane.xlu0 %988
        %v990 = vsel %vm965, %v742, inf
        %991 = vmin.xlane.f32.xlu0 %v990
        %v992 = vpop.xlane.xlu0 %991
        %v993 = vsel %vm965, %v745, inf
        %994 = vmin.xlane.f32.xlu0 %v993
        %v995 = vpop.xlane.xlu0 %994
        %v996 = vsel %vm965, %v793, inf
        %997 = vmin.xlane.f32.xlu0 %v996
        %v998 = vpop.xlane.xlu0 %997
        %v999 = vsel %vm965, %v796, inf
        %1000 = vmin.xlane.f32.xlu0 %v999
        %v1001 = vpop.xlane.xlu0 %1000
        %v1002 = vsel %vm965, %v844, inf
        %1003 = vmin.xlane.f32.xlu0 %v1002
        %v1004 = vpop.xlane.xlu0 %1003
        %v1005 = vsel %vm965, %v847, inf
        %1006 = vmin.xlane.f32.xlu0 %v1005
        %v1007 = vpop.xlane.xlu0 %1006
        %v1008 = vsel %vm965, %v895, inf
        %1009 = vmin.xlane.f32.xlu0 %v1008
        %v1010 = vpop.xlane.xlu0 %1009
        %v1011 = vsel %vm965, %v898, inf
        %1012 = vmin.xlane.f32.xlu0 %v1011
        %v1013 = vpop.xlane.xlu0 %1012
        %vm1030 = vcmp.lt.s32.totalorder %v968, 0
        %vm1031 = vcmp.lt.s32.totalorder %v971, 0
        %vm1032 = vcmp.lt.s32.totalorder %v974, 0
        %vm1033 = vcmp.lt.s32.totalorder %v977, 0
        %vm1034 = vcmp.lt.s32.totalorder %v980, 0
        %vm1035 = vcmp.lt.s32.totalorder %v983, 0
        %vm1036 = vcmp.lt.s32.totalorder %v986, 0
        %vm1037 = vcmp.lt.s32.totalorder %v989, 0
        %vm1038 = vcmp.lt.s32.totalorder %v992, 0
        %vm1039 = vcmp.lt.s32.totalorder %v995, 0
        %vm1040 = vcmp.lt.s32.totalorder %v998, 0
        %vm1041 = vcmp.lt.s32.totalorder %v1001, 0
        %vm1042 = vcmp.lt.s32.totalorder %v1004, 0
        %vm1043 = vcmp.lt.s32.totalorder %v1007, 0
        %vm1044 = vcmp.lt.s32.totalorder %v1010, 0
        %vm1045 = vcmp.lt.s32.totalorder %v1013, 0
        %v1046 = vsub.s32 2147483648, %v968
        %v1047 = vsub.s32 2147483648, %v971
        %v1048 = vsub.s32 2147483648, %v974
        %v1049 = vsub.s32 2147483648, %v977
        %v1050 = vsub.s32 2147483648, %v980
        %v1051 = vsub.s32 2147483648, %v983
        %v1052 = vsub.s32 2147483648, %v986
        %v1053 = vsub.s32 2147483648, %v989
        %v1054 = vsub.s32 2147483648, %v992
        %v1055 = vsub.s32 2147483648, %v995
        %v1056 = vsub.s32 2147483648, %v998
        %v1057 = vsub.s32 2147483648, %v1001
        %v1058 = vsub.s32 2147483648, %v1004
        %v1059 = vsub.s32 2147483648, %v1007
        %v1060 = vsub.s32 2147483648, %v1010
        %v1061 = vsub.s32 2147483648, %v1013
        %v1062 = vsel %vm1030, %v1046, %v968
        %v1063 = vsel %vm1031, %v1047, %v971
        %v1064 = vsel %vm1032, %v1048, %v974
        %v1065 = vsel %vm1033, %v1049, %v977
        %v1066 = vsel %vm1034, %v1050, %v980
        %v1067 = vsel %vm1035, %v1051, %v983
        %v1068 = vsel %vm1036, %v1052, %v986
        %v1069 = vsel %vm1037, %v1053, %v989
        %v1070 = vsel %vm1038, %v1054, %v992
        %v1071 = vsel %vm1039, %v1055, %v995
        %v1072 = vsel %vm1040, %v1056, %v998
        %v1073 = vsel %vm1041, %v1057, %v1001
        %v1074 = vsel %vm1042, %v1058, %v1004
        %v1075 = vsel %vm1043, %v1059, %v1007
        %v1076 = vsel %vm1044, %v1060, %v1010
        %v1077 = vsel %vm1045, %v1061, %v1013
        %v1078 = vsel %vm965, %v539, -inf
        %1079 = vmax.xlane.f32.xlu0 %v1078
        %v1080 = vpop.xlane.xlu0 %1079
        %v1081 = vsel %vm965, %v542, -inf
        %1082 = vmax.xlane.f32.xlu0 %v1081
        %v1083 = vpop.xlane.xlu0 %1082
        %v1084 = vsel %vm965, %v590, -inf
        %1085 = vmax.xlane.f32.xlu0 %v1084
        %v1086 = vpop.xlane.xlu0 %1085
        %v1087 = vsel %vm965, %v593, -inf
        %1088 = vmax.xlane.f32.xlu0 %v1087
        %v1089 = vpop.xlane.xlu0 %1088
        %v1090 = vsel %vm965, %v641, -inf
        %1091 = vmax.xlane.f32.xlu0 %v1090
        %v1092 = vpop.xlane.xlu0 %1091
        %v1093 = vsel %vm965, %v644, -inf
        %1094 = vmax.xlane.f32.xlu0 %v1093
        %v1095 = vpop.xlane.xlu0 %1094
        %v1096 = vsel %vm965, %v692, -inf
        %1097 = vmax.xlane.f32.xlu0 %v1096
        %v1098 = vpop.xlane.xlu0 %1097
        %v1099 = vsel %vm965, %v695, -inf
        %1100 = vmax.xlane.f32.xlu0 %v1099
        %v1101 = vpop.xlane.xlu0 %1100
        %v1102 = vsel %vm965, %v742, -inf
        %1103 = vmax.xlane.f32.xlu0 %v1102
        %v1104 = vpop.xlane.xlu0 %1103
        %v1105 = vsel %vm965, %v745, -inf
        %1106 = vmax.xlane.f32.xlu0 %v1105
        %v1107 = vpop.xlane.xlu0 %1106
        %v1108 = vsel %vm965, %v793, -inf
        %1109 = vmax.xlane.f32.xlu0 %v1108
        %v1110 = vpop.xlane.xlu0 %1109
        %v1111 = vsel %vm965, %v796, -inf
        %1112 = vmax.xlane.f32.xlu0 %v1111
        %v1113 = vpop.xlane.xlu0 %1112
        %v1114 = vsel %vm965, %v844, -inf
        %1115 = vmax.xlane.f32.xlu0 %v1114
        %v1116 = vpop.xlane.xlu0 %1115
        %v1117 = vsel %vm965, %v847, -inf
        %1118 = vmax.xlane.f32.xlu0 %v1117
        %v1119 = vpop.xlane.xlu0 %1118
        %v1120 = vsel %vm965, %v895, -inf
        %1121 = vmax.xlane.f32.xlu0 %v1120
        %v1122 = vpop.xlane.xlu0 %1121
        %v1123 = vsel %vm965, %v898, -inf
        %1124 = vmax.xlane.f32.xlu0 %v1123
        %v1125 = vpop.xlane.xlu0 %1124
        %vm1142 = vcmp.lt.s32.totalorder %v1080, 0
        %vm1143 = vcmp.lt.s32.totalorder %v1083, 0
        %vm1144 = vcmp.lt.s32.totalorder %v1086, 0
        %vm1145 = vcmp.lt.s32.totalorder %v1089, 0
        %vm1146 = vcmp.lt.s32.totalorder %v1092, 0
        %vm1147 = vcmp.lt.s32.totalorder %v1095, 0
        %vm1148 = vcmp.lt.s32.totalorder %v1098, 0
        %vm1149 = vcmp.lt.s32.totalorder %v1101, 0
        %vm1150 = vcmp.lt.s32.totalorder %v1104, 0
        %vm1151 = vcmp.lt.s32.totalorder %v1107, 0
        %vm1152 = vcmp.lt.s32.totalorder %v1110, 0
        %vm1153 = vcmp.lt.s32.totalorder %v1113, 0
        %vm1154 = vcmp.lt.s32.totalorder %v1116, 0
        %vm1155 = vcmp.lt.s32.totalorder %v1119, 0
        %vm1156 = vcmp.lt.s32.totalorder %v1122, 0
        %vm1157 = vcmp.lt.s32.totalorder %v1125, 0
        %v1158 = vsub.s32 2147483648, %v1080
        %v1159 = vsub.s32 2147483648, %v1083
        %v1160 = vsub.s32 2147483648, %v1086
        %v1161 = vsub.s32 2147483648, %v1089
        %v1162 = vsub.s32 2147483648, %v1092
        %v1163 = vsub.s32 2147483648, %v1095
        %v1164 = vsub.s32 2147483648, %v1098
        %v1165 = vsub.s32 2147483648, %v1101
        %v1166 = vsub.s32 2147483648, %v1104
        %v1167 = vsub.s32 2147483648, %v1107
        %v1168 = vsub.s32 2147483648, %v1110
        %v1169 = vsub.s32 2147483648, %v1113
        %v1170 = vsub.s32 2147483648, %v1116
        %v1171 = vsub.s32 2147483648, %v1119
        %v1172 = vsub.s32 2147483648, %v1122
        %v1173 = vsub.s32 2147483648, %v1125
        %v1174 = vsel %vm1142, %v1158, %v1080
        %v1175 = vsel %vm1143, %v1159, %v1083
        %v1176 = vsel %vm1144, %v1160, %v1086
        %v1177 = vsel %vm1145, %v1161, %v1089
        %v1178 = vsel %vm1146, %v1162, %v1092
        %v1179 = vsel %vm1147, %v1163, %v1095
        %v1180 = vsel %vm1148, %v1164, %v1098
        %v1181 = vsel %vm1149, %v1165, %v1101
        %v1182 = vsel %vm1150, %v1166, %v1104
        %v1183 = vsel %vm1151, %v1167, %v1107
        %v1184 = vsel %vm1152, %v1168, %v1110
        %v1185 = vsel %vm1153, %v1169, %v1113
        %v1186 = vsel %vm1154, %v1170, %v1116
        %v1187 = vsel %vm1155, %v1171, %v1119
        %v1188 = vsel %vm1156, %v1172, %v1122
        %v1189 = vsel %vm1157, %v1173, %v1125
        %v1190 = vadd.s32 %v1174, 1
        %v1191 = vadd.s32 %v1175, 1
        %v1192 = vadd.s32 %v1176, 1
        %v1193 = vadd.s32 %v1177, 1
        %v1194 = vadd.s32 %v1178, 1
        %v1195 = vadd.s32 %v1179, 1
        %v1196 = vadd.s32 %v1180, 1
        %v1197 = vadd.s32 %v1181, 1
        %v1198 = vadd.s32 %v1182, 1
        %v1199 = vadd.s32 %v1183, 1
        %v1200 = vadd.s32 %v1184, 1
        %v1201 = vadd.s32 %v1185, 1
        %v1202 = vadd.s32 %v1186, 1
        %v1203 = vadd.s32 %v1187, 1
        %v1204 = vadd.s32 %v1188, 1
        %v1205 = vadd.s32 %v1189, 1
        loop: start=0, step=1, limit=32
        $region69: #{tpu_custom_call.1} parent=63 // loop_pre_header
          _
        $region70: #{tpu_custom_call.1} parent=63 // loop_header
          %s1207 = sphi 0, %s1211
          %p1208 = scmp.ge.s32.totalorder %s1207, 32
          %v1212 = vphi %v1062, %v1564
          %v1213 = vphi %v1063, %v1565
          %v1214 = vphi %v1064, %v1566
          %v1215 = vphi %v1065, %v1567
          %v1216 = vphi %v1066, %v1568
          %v1217 = vphi %v1067, %v1569
          %v1218 = vphi %v1068, %v1570
          %v1219 = vphi %v1069, %v1571
          %v1220 = vphi %v1070, %v1572
          %v1221 = vphi %v1071, %v1573
          %v1222 = vphi %v1072, %v1574
          %v1223 = vphi %v1073, %v1575
          %v1224 = vphi %v1074, %v1576
          %v1225 = vphi %v1075, %v1577
          %v1226 = vphi %v1076, %v1578
          %v1227 = vphi %v1077, %v1579
          %v1228 = vphi %v1190, %v1580
          %v1229 = vphi %v1191, %v1581
          %v1230 = vphi %v1192, %v1582
          %v1231 = vphi %v1193, %v1583
          %v1232 = vphi %v1194, %v1584
          %v1233 = vphi %v1195, %v1585
          %v1234 = vphi %v1196, %v1586
          %v1235 = vphi %v1197, %v1587
          %v1236 = vphi %v1198, %v1588
          %v1237 = vphi %v1199, %v1589
          %v1238 = vphi %v1200, %v1590
          %v1239 = vphi %v1201, %v1591
          %v1240 = vphi %v1202, %v1592
          %v1241 = vphi %v1203, %v1593
          %v1242 = vphi %v1204, %v1594
          %v1243 = vphi %v1205, %v1595
        $region71: #{tpu_custom_call.1} parent=63 // loop_header_branch
          %1210 = sbr.rel (%p1208) target = $region75
        $region72: #{tpu_custom_call.1} parent=63 // loop_body
          %v1244 = vand.u32 %v1212, %v1228
          %v1245 = vand.u32 %v1213, %v1229
          %v1246 = vand.u32 %v1214, %v1230
          %v1247 = vand.u32 %v1215, %v1231
          %v1248 = vand.u32 %v1216, %v1232
          %v1249 = vand.u32 %v1217, %v1233
          %v1250 = vand.u32 %v1218, %v1234
          %v1251 = vand.u32 %v1219, %v1235
          %v1252 = vand.u32 %v1220, %v1236
          %v1253 = vand.u32 %v1221, %v1237
          %v1254 = vand.u32 %v1222, %v1238
          %v1255 = vand.u32 %v1223, %v1239
          %v1256 = vand.u32 %v1224, %v1240
          %v1257 = vand.u32 %v1225, %v1241
          %v1258 = vand.u32 %v1226, %v1242
          %v1259 = vand.u32 %v1227, %v1243
          %v1260 = vxor.u32 %v1212, %v1228
          %v1261 = vxor.u32 %v1213, %v1229
          %v1262 = vxor.u32 %v1214, %v1230
          %v1263 = vxor.u32 %v1215, %v1231
          %v1264 = vxor.u32 %v1216, %v1232
          %v1265 = vxor.u32 %v1217, %v1233
          %v1266 = vxor.u32 %v1218, %v1234
          %v1267 = vxor.u32 %v1219, %v1235
          %v1268 = vxor.u32 %v1220, %v1236
          %v1269 = vxor.u32 %v1221, %v1237
          %v1270 = vxor.u32 %v1222, %v1238
          %v1271 = vxor.u32 %v1223, %v1239
          %v1272 = vxor.u32 %v1224, %v1240
          %v1273 = vxor.u32 %v1225, %v1241
          %v1274 = vxor.u32 %v1226, %v1242
          %v1275 = vxor.u32 %v1227, %v1243
          %v1276 = vshra.s32 %v1260, 1
          %v1277 = vshra.s32 %v1261, 1
          %v1278 = vshra.s32 %v1262, 1
          %v1279 = vshra.s32 %v1263, 1
          %v1280 = vshra.s32 %v1264, 1
          %v1281 = vshra.s32 %v1265, 1
          %v1282 = vshra.s32 %v1266, 1
          %v1283 = vshra.s32 %v1267, 1
          %v1284 = vshra.s32 %v1268, 1
          %v1285 = vshra.s32 %v1269, 1
          %v1286 = vshra.s32 %v1270, 1
          %v1287 = vshra.s32 %v1271, 1
          %v1288 = vshra.s32 %v1272, 1
          %v1289 = vshra.s32 %v1273, 1
          %v1290 = vshra.s32 %v1274, 1
          %v1291 = vshra.s32 %v1275, 1
          %v1292 = vadd.s32 %v1244, %v1276
          %v1293 = vadd.s32 %v1245, %v1277
          %v1294 = vadd.s32 %v1246, %v1278
          %v1295 = vadd.s32 %v1247, %v1279
          %v1296 = vadd.s32 %v1248, %v1280
          %v1297 = vadd.s32 %v1249, %v1281
          %v1298 = vadd.s32 %v1250, %v1282
          %v1299 = vadd.s32 %v1251, %v1283
          %v1300 = vadd.s32 %v1252, %v1284
          %v1301 = vadd.s32 %v1253, %v1285
          %v1302 = vadd.s32 %v1254, %v1286
          %v1303 = vadd.s32 %v1255, %v1287
          %v1304 = vadd.s32 %v1256, %v1288
          %v1305 = vadd.s32 %v1257, %v1289
          %v1306 = vadd.s32 %v1258, %v1290
          %v1307 = vadd.s32 %v1259, %v1291
          %vm1308 = vcmp.ge.s32.totalorder %v949, %v1292
          %vm1309 = vcmp.ge.s32.totalorder %v950, %v1293
          %vm1310 = vcmp.ge.s32.totalorder %v951, %v1294
          %vm1311 = vcmp.ge.s32.totalorder %v952, %v1295
          %vm1312 = vcmp.ge.s32.totalorder %v953, %v1296
          %vm1313 = vcmp.ge.s32.totalorder %v954, %v1297
          %vm1314 = vcmp.ge.s32.totalorder %v955, %v1298
          %vm1315 = vcmp.ge.s32.totalorder %v956, %v1299
          %vm1316 = vcmp.ge.s32.totalorder %v957, %v1300
          %vm1317 = vcmp.ge.s32.totalorder %v958, %v1301
          %vm1318 = vcmp.ge.s32.totalorder %v959, %v1302
          %vm1319 = vcmp.ge.s32.totalorder %v960, %v1303
          %vm1320 = vcmp.ge.s32.totalorder %v961, %v1304
          %vm1321 = vcmp.ge.s32.totalorder %v962, %v1305
          %vm1322 = vcmp.ge.s32.totalorder %v963, %v1306
          %vm1323 = vcmp.ge.s32.totalorder %v964, %v1307
          %v1324 = vsel %vm1308, 1, 0
          %v1325 = vsel %vm1309, 1, 0
          %v1326 = vsel %vm1310, 1, 0
          %v1327 = vsel %vm1311, 1, 0
          %v1328 = vsel %vm1312, 1, 0
          %v1329 = vsel %vm1313, 1, 0
          %v1330 = vsel %vm1314, 1, 0
          %v1331 = vsel %vm1315, 1, 0
          %v1332 = vsel %vm1316, 1, 0
          %v1333 = vsel %vm1317, 1, 0
          %v1334 = vsel %vm1318, 1, 0
          %v1335 = vsel %vm1319, 1, 0
          %v1336 = vsel %vm1320, 1, 0
          %v1337 = vsel %vm1321, 1, 0
          %v1338 = vsel %vm1322, 1, 0
          %v1339 = vsel %vm1323, 1, 0
          %v1340 = vsel %vm965, %v1324, 0
          %v1341 = vand.u32 %v1340, 65535
          %v1342 = vshrl.u32 %v1340, 16
          %v1343 = vcvt.s32.f32 %v1341
          %v1344 = vcvt.s32.f32 %v1342
          %1345 = vadd.xlane.f32.xlu0 %v1343
          %v1346 = vpop.xlane.xlu0 %1345
          %1347 = vadd.xlane.f32.xlu0 %v1344
          %v1348 = vpop.xlane.xlu0 %1347
          %v1349 = vcvt.f32.s32 %v1346
          %v1350 = vcvt.f32.s32 %v1348
          %v1351 = vshll.u32 %v1350, 16
          %v1352 = vadd.s32 %v1351, %v1349
          %v1353 = vsel %vm965, %v1325, 0
          %v1354 = vand.u32 %v1353, 65535
          %v1355 = vshrl.u32 %v1353, 16
          %v1356 = vcvt.s32.f32 %v1354
          %v1357 = vcvt.s32.f32 %v1355
          %1358 = vadd.xlane.f32.xlu0 %v1356
          %v1359 = vpop.xlane.xlu0 %1358
          %1360 = vadd.xlane.f32.xlu0 %v1357
          %v1361 = vpop.xlane.xlu0 %1360
          %v1362 = vcvt.f32.s32 %v1359
          %v1363 = vcvt.f32.s32 %v1361
          %v1364 = vshll.u32 %v1363, 16
          %v1365 = vadd.s32 %v1364, %v1362
          %v1366 = vsel %vm965, %v1326, 0
          %v1367 = vand.u32 %v1366, 65535
          %v1368 = vshrl.u32 %v1366, 16
          %v1369 = vcvt.s32.f32 %v1367
          %v1370 = vcvt.s32.f32 %v1368
          %1371 = vadd.xlane.f32.xlu0 %v1369
          %v1372 = vpop.xlane.xlu0 %1371
          %1373 = vadd.xlane.f32.xlu0 %v1370
          %v1374 = vpop.xlane.xlu0 %1373
          %v1375 = vcvt.f32.s32 %v1372
          %v1376 = vcvt.f32.s32 %v1374
          %v1377 = vshll.u32 %v1376, 16
          %v1378 = vadd.s32 %v1377, %v1375
          %v1379 = vsel %vm965, %v1327, 0
          %v1380 = vand.u32 %v1379, 65535
          %v1381 = vshrl.u32 %v1379, 16
          %v1382 = vcvt.s32.f32 %v1380
          %v1383 = vcvt.s32.f32 %v1381
          %1384 = vadd.xlane.f32.xlu0 %v1382
          %v1385 = vpop.xlane.xlu0 %1384
          %1386 = vadd.xlane.f32.xlu0 %v1383
          %v1387 = vpop.xlane.xlu0 %1386
          %v1388 = vcvt.f32.s32 %v1385
          %v1389 = vcvt.f32.s32 %v1387
          %v1390 = vshll.u32 %v1389, 16
          %v1391 = vadd.s32 %v1390, %v1388
          %v1392 = vsel %vm965, %v1328, 0
          %v1393 = vand.u32 %v1392, 65535
          %v1394 = vshrl.u32 %v1392, 16
          %v1395 = vcvt.s32.f32 %v1393
          %v1396 = vcvt.s32.f32 %v1394
          %1397 = vadd.xlane.f32.xlu0 %v1395
          %v1398 = vpop.xlane.xlu0 %1397
          %1399 = vadd.xlane.f32.xlu0 %v1396
          %v1400 = vpop.xlane.xlu0 %1399
          %v1401 = vcvt.f32.s32 %v1398
          %v1402 = vcvt.f32.s32 %v1400
          %v1403 = vshll.u32 %v1402, 16
          %v1404 = vadd.s32 %v1403, %v1401
          %v1405 = vsel %vm965, %v1329, 0
          %v1406 = vand.u32 %v1405, 65535
          %v1407 = vshrl.u32 %v1405, 16
          %v1408 = vcvt.s32.f32 %v1406
          %v1409 = vcvt.s32.f32 %v1407
          %1410 = vadd.xlane.f32.xlu0 %v1408
          %v1411 = vpop.xlane.xlu0 %1410
          %1412 = vadd.xlane.f32.xlu0 %v1409
          %v1413 = vpop.xlane.xlu0 %1412
          %v1414 = vcvt.f32.s32 %v1411
          %v1415 = vcvt.f32.s32 %v1413
          %v1416 = vshll.u32 %v1415, 16
          %v1417 = vadd.s32 %v1416, %v1414
          %v1418 = vsel %vm965, %v1330, 0
          %v1419 = vand.u32 %v1418, 65535
          %v1420 = vshrl.u32 %v1418, 16
          %v1421 = vcvt.s32.f32 %v1419
          %v1422 = vcvt.s32.f32 %v1420
          %1423 = vadd.xlane.f32.xlu0 %v1421
          %v1424 = vpop.xlane.xlu0 %1423
          %1425 = vadd.xlane.f32.xlu0 %v1422
          %v1426 = vpop.xlane.xlu0 %1425
          %v1427 = vcvt.f32.s32 %v1424
          %v1428 = vcvt.f32.s32 %v1426
          %v1429 = vshll.u32 %v1428, 16
          %v1430 = vadd.s32 %v1429, %v1427
          %v1431 = vsel %vm965, %v1331, 0
          %v1432 = vand.u32 %v1431, 65535
          %v1433 = vshrl.u32 %v1431, 16
          %v1434 = vcvt.s32.f32 %v1432
          %v1435 = vcvt.s32.f32 %v1433
          %1436 = vadd.xlane.f32.xlu0 %v1434
          %v1437 = vpop.xlane.xlu0 %1436
          %1438 = vadd.xlane.f32.xlu0 %v1435
          %v1439 = vpop.xlane.xlu0 %1438
          %v1440 = vcvt.f32.s32 %v1437
          %v1441 = vcvt.f32.s32 %v1439
          %v1442 = vshll.u32 %v1441, 16
          %v1443 = vadd.s32 %v1442, %v1440
          %v1444 = vsel %vm965, %v1332, 0
          %v1445 = vand.u32 %v1444, 65535
          %v1446 = vshrl.u32 %v1444, 16
          %v1447 = vcvt.s32.f32 %v1445
          %v1448 = vcvt.s32.f32 %v1446
          %1449 = vadd.xlane.f32.xlu0 %v1447
          %v1450 = vpop.xlane.xlu0 %1449
          %1451 = vadd.xlane.f32.xlu0 %v1448
          %v1452 = vpop.xlane.xlu0 %1451
          %v1453 = vcvt.f32.s32 %v1450
          %v1454 = vcvt.f32.s32 %v1452
          %v1455 = vshll.u32 %v1454, 16
          %v1456 = vadd.s32 %v1455, %v1453
          %v1457 = vsel %vm965, %v1333, 0
          %v1458 = vand.u32 %v1457, 65535
          %v1459 = vshrl.u32 %v1457, 16
          %v1460 = vcvt.s32.f32 %v1458
          %v1461 = vcvt.s32.f32 %v1459
          %1462 = vadd.xlane.f32.xlu0 %v1460
          %v1463 = vpop.xlane.xlu0 %1462
          %1464 = vadd.xlane.f32.xlu0 %v1461
          %v1465 = vpop.xlane.xlu0 %1464
          %v1466 = vcvt.f32.s32 %v1463
          %v1467 = vcvt.f32.s32 %v1465
          %v1468 = vshll.u32 %v1467, 16
          %v1469 = vadd.s32 %v1468, %v1466
          %v1470 = vsel %vm965, %v1334, 0
          %v1471 = vand.u32 %v1470, 65535
          %v1472 = vshrl.u32 %v1470, 16
          %v1473 = vcvt.s32.f32 %v1471
          %v1474 = vcvt.s32.f32 %v1472
          %1475 = vadd.xlane.f32.xlu0 %v1473
          %v1476 = vpop.xlane.xlu0 %1475
          %1477 = vadd.xlane.f32.xlu0 %v1474
          %v1478 = vpop.xlane.xlu0 %1477
          %v1479 = vcvt.f32.s32 %v1476
          %v1480 = vcvt.f32.s32 %v1478
          %v1481 = vshll.u32 %v1480, 16
          %v1482 = vadd.s32 %v1481, %v1479
          %v1483 = vsel %vm965, %v1335, 0
          %v1484 = vand.u32 %v1483, 65535
          %v1485 = vshrl.u32 %v1483, 16
          %v1486 = vcvt.s32.f32 %v1484
          %v1487 = vcvt.s32.f32 %v1485
          %1488 = vadd.xlane.f32.xlu0 %v1486
          %v1489 = vpop.xlane.xlu0 %1488
          %1490 = vadd.xlane.f32.xlu0 %v1487
          %v1491 = vpop.xlane.xlu0 %1490
          %v1492 = vcvt.f32.s32 %v1489
          %v1493 = vcvt.f32.s32 %v1491
          %v1494 = vshll.u32 %v1493, 16
          %v1495 = vadd.s32 %v1494, %v1492
          %v1496 = vsel %vm965, %v1336, 0
          %v1497 = vand.u32 %v1496, 65535
          %v1498 = vshrl.u32 %v1496, 16
          %v1499 = vcvt.s32.f32 %v1497
          %v1500 = vcvt.s32.f32 %v1498
          %1501 = vadd.xlane.f32.xlu0 %v1499
          %v1502 = vpop.xlane.xlu0 %1501
          %1503 = vadd.xlane.f32.xlu0 %v1500
          %v1504 = vpop.xlane.xlu0 %1503
          %v1505 = vcvt.f32.s32 %v1502
          %v1506 = vcvt.f32.s32 %v1504
          %v1507 = vshll.u32 %v1506, 16
          %v1508 = vadd.s32 %v1507, %v1505
          %v1509 = vsel %vm965, %v1337, 0
          %v1510 = vand.u32 %v1509, 65535
          %v1511 = vshrl.u32 %v1509, 16
          %v1512 = vcvt.s32.f32 %v1510
          %v1513 = vcvt.s32.f32 %v1511
          %1514 = vadd.xlane.f32.xlu0 %v1512
          %v1515 = vpop.xlane.xlu0 %1514
          %1516 = vadd.xlane.f32.xlu0 %v1513
          %v1517 = vpop.xlane.xlu0 %1516
          %v1518 = vcvt.f32.s32 %v1515
          %v1519 = vcvt.f32.s32 %v1517
          %v1520 = vshll.u32 %v1519, 16
          %v1521 = vadd.s32 %v1520, %v1518
          %v1522 = vsel %vm965, %v1338, 0
          %v1523 = vand.u32 %v1522, 65535
          %v1524 = vshrl.u32 %v1522, 16
          %v1525 = vcvt.s32.f32 %v1523
          %v1526 = vcvt.s32.f32 %v1524
          %1527 = vadd.xlane.f32.xlu0 %v1525
          %v1528 = vpop.xlane.xlu0 %1527
          %1529 = vadd.xlane.f32.xlu0 %v1526
          %v1530 = vpop.xlane.xlu0 %1529
          %v1531 = vcvt.f32.s32 %v1528
          %v1532 = vcvt.f32.s32 %v1530
          %v1533 = vshll.u32 %v1532, 16
          %v1534 = vadd.s32 %v1533, %v1531
          %v1535 = vsel %vm965, %v1339, 0
          %v1536 = vand.u32 %v1535, 65535
          %v1537 = vshrl.u32 %v1535, 16
          %v1538 = vcvt.s32.f32 %v1536
          %v1539 = vcvt.s32.f32 %v1537
          %1540 = vadd.xlane.f32.xlu0 %v1538
          %v1541 = vpop.xlane.xlu0 %1540
          %1542 = vadd.xlane.f32.xlu0 %v1539
          %v1543 = vpop.xlane.xlu0 %1542
          %v1544 = vcvt.f32.s32 %v1541
          %v1545 = vcvt.f32.s32 %v1543
          %v1546 = vshll.u32 %v1545, 16
          %v1547 = vadd.s32 %v1546, %v1544
          %vm1548 = vcmp.ge.s32.totalorder %v1352, 13
          %vm1549 = vcmp.ge.s32.totalorder %v1365, 13
          %vm1550 = vcmp.ge.s32.totalorder %v1378, 13
          %vm1551 = vcmp.ge.s32.totalorder %v1391, 13
          %vm1552 = vcmp.ge.s32.totalorder %v1404, 13
          %vm1553 = vcmp.ge.s32.totalorder %v1417, 13
          %vm1554 = vcmp.ge.s32.totalorder %v1430, 13
          %vm1555 = vcmp.ge.s32.totalorder %v1443, 13
          %vm1556 = vcmp.ge.s32.totalorder %v1456, 13
          %vm1557 = vcmp.ge.s32.totalorder %v1469, 13
          %vm1558 = vcmp.ge.s32.totalorder %v1482, 13
          %vm1559 = vcmp.ge.s32.totalorder %v1495, 13
          %vm1560 = vcmp.ge.s32.totalorder %v1508, 13
          %vm1561 = vcmp.ge.s32.totalorder %v1521, 13
          %vm1562 = vcmp.ge.s32.totalorder %v1534, 13
          %vm1563 = vcmp.ge.s32.totalorder %v1547, 13
          %v1564 = vsel %vm1548, %v1292, %v1212
          %v1565 = vsel %vm1549, %v1293, %v1213
          %v1566 = vsel %vm1550, %v1294, %v1214
          %v1567 = vsel %vm1551, %v1295, %v1215
          %v1568 = vsel %vm1552, %v1296, %v1216
          %v1569 = vsel %vm1553, %v1297, %v1217
          %v1570 = vsel %vm1554, %v1298, %v1218
          %v1571 = vsel %vm1555, %v1299, %v1219
          %v1572 = vsel %vm1556, %v1300, %v1220
          %v1573 = vsel %vm1557, %v1301, %v1221
          %v1574 = vsel %vm1558, %v1302, %v1222
          %v1575 = vsel %vm1559, %v1303, %v1223
          %v1576 = vsel %vm1560, %v1304, %v1224
          %v1577 = vsel %vm1561, %v1305, %v1225
          %v1578 = vsel %vm1562, %v1306, %v1226
          %v1579 = vsel %vm1563, %v1307, %v1227
          %v1580 = vsel %vm1548, %v1228, %v1292
          %v1581 = vsel %vm1549, %v1229, %v1293
          %v1582 = vsel %vm1550, %v1230, %v1294
          %v1583 = vsel %vm1551, %v1231, %v1295
          %v1584 = vsel %vm1552, %v1232, %v1296
          %v1585 = vsel %vm1553, %v1233, %v1297
          %v1586 = vsel %vm1554, %v1234, %v1298
          %v1587 = vsel %vm1555, %v1235, %v1299
          %v1588 = vsel %vm1556, %v1236, %v1300
          %v1589 = vsel %vm1557, %v1237, %v1301
          %v1590 = vsel %vm1558, %v1238, %v1302
          %v1591 = vsel %vm1559, %v1239, %v1303
          %v1592 = vsel %vm1560, %v1240, %v1304
          %v1593 = vsel %vm1561, %v1241, %v1305
          %v1594 = vsel %vm1562, %v1242, %v1306
          %v1595 = vsel %vm1563, %v1243, %v1307
        $region73: #{tpu_custom_call.1} parent=63 // loop_footer
          %s1211 = sadd.s32 1, %s1207
        $region74: #{tpu_custom_call.1} parent=63 // loop_footer_branch
          %1206 = sbr.rel target = $region70
        $region75: #{tpu_custom_call.1} parent=63 // loop_exit
          _
        %vm1596 = vcmp.ge.s32.totalorder %v949, %v1212
        %vm1597 = vcmp.ge.s32.totalorder %v950, %v1213
        %vm1598 = vcmp.ge.s32.totalorder %v951, %v1214
        %vm1599 = vcmp.ge.s32.totalorder %v952, %v1215
        %vm1600 = vcmp.ge.s32.totalorder %v953, %v1216
        %vm1601 = vcmp.ge.s32.totalorder %v954, %v1217
        %vm1602 = vcmp.ge.s32.totalorder %v955, %v1218
        %vm1603 = vcmp.ge.s32.totalorder %v956, %v1219
        %vm1604 = vcmp.ge.s32.totalorder %v957, %v1220
        %vm1605 = vcmp.ge.s32.totalorder %v958, %v1221
        %vm1606 = vcmp.ge.s32.totalorder %v959, %v1222
        %vm1607 = vcmp.ge.s32.totalorder %v960, %v1223
        %vm1608 = vcmp.ge.s32.totalorder %v961, %v1224
        %vm1609 = vcmp.ge.s32.totalorder %v962, %v1225
        %vm1610 = vcmp.ge.s32.totalorder %v963, %v1226
        %vm1611 = vcmp.ge.s32.totalorder %v964, %v1227
        %v1612 = vsel %vm1596, %v539, 0.0
        %v1613 = vsel %vm1597, %v542, 0.0
        %v1614 = vsel %vm1598, %v590, 0.0
        %v1615 = vsel %vm1599, %v593, 0.0
        %v1616 = vsel %vm1600, %v641, 0.0
        %v1617 = vsel %vm1601, %v644, 0.0
        %v1618 = vsel %vm1602, %v692, 0.0
        %v1619 = vsel %vm1603, %v695, 0.0
        %v1620 = vsel %vm1604, %v742, 0.0
        %v1621 = vsel %vm1605, %v745, 0.0
        %v1622 = vsel %vm1606, %v793, 0.0
        %v1623 = vsel %vm1607, %v796, 0.0
        %v1624 = vsel %vm1608, %v844, 0.0
        %v1625 = vsel %vm1609, %v847, 0.0
        %v1626 = vsel %vm1610, %v895, 0.0
        %v1627 = vsel %vm1611, %v898, 0.0
        %v1628 = vsel %vm965, %v1612, -inf
        %1629 = vmax.xlane.f32.xlu0 %v1628
        %v1630 = vpop.xlane.xlu0 %1629
        %v1631 = vsel %vm965, %v1613, -inf
        %1632 = vmax.xlane.f32.xlu0 %v1631
        %v1633 = vpop.xlane.xlu0 %1632
        %v1634 = vsel %vm965, %v1614, -inf
        %1635 = vmax.xlane.f32.xlu0 %v1634
        %v1636 = vpop.xlane.xlu0 %1635
        %v1637 = vsel %vm965, %v1615, -inf
        %1638 = vmax.xlane.f32.xlu0 %v1637
        %v1639 = vpop.xlane.xlu0 %1638
        %v1640 = vsel %vm965, %v1616, -inf
        %1641 = vmax.xlane.f32.xlu0 %v1640
        %v1642 = vpop.xlane.xlu0 %1641
        %v1643 = vsel %vm965, %v1617, -inf
        %1644 = vmax.xlane.f32.xlu0 %v1643
        %v1645 = vpop.xlane.xlu0 %1644
        %v1646 = vsel %vm965, %v1618, -inf
        %1647 = vmax.xlane.f32.xlu0 %v1646
        %v1648 = vpop.xlane.xlu0 %1647
        %v1649 = vsel %vm965, %v1619, -inf
        %1650 = vmax.xlane.f32.xlu0 %v1649
        %v1651 = vpop.xlane.xlu0 %1650
        %v1652 = vsel %vm965, %v1620, -inf
        %1653 = vmax.xlane.f32.xlu0 %v1652
        %v1654 = vpop.xlane.xlu0 %1653
        %v1655 = vsel %vm965, %v1621, -inf
        %1656 = vmax.xlane.f32.xlu0 %v1655
        %v1657 = vpop.xlane.xlu0 %1656
        %v1658 = vsel %vm965, %v1622, -inf
        %1659 = vmax.xlane.f32.xlu0 %v1658
        %v1660 = vpop.xlane.xlu0 %1659
        %v1661 = vsel %vm965, %v1623, -inf
        %1662 = vmax.xlane.f32.xlu0 %v1661
        %v1663 = vpop.xlane.xlu0 %1662
        %v1664 = vsel %vm965, %v1624, -inf
        %1665 = vmax.xlane.f32.xlu0 %v1664
        %v1666 = vpop.xlane.xlu0 %1665
        %v1667 = vsel %vm965, %v1625, -inf
        %1668 = vmax.xlane.f32.xlu0 %v1667
        %v1669 = vpop.xlane.xlu0 %1668
        %v1670 = vsel %vm965, %v1626, -inf
        %1671 = vmax.xlane.f32.xlu0 %v1670
        %v1672 = vpop.xlane.xlu0 %1671
        %v1673 = vsel %vm965, %v1627, -inf
        %1674 = vmax.xlane.f32.xlu0 %v1673
        %v1675 = vpop.xlane.xlu0 %1674
        %v1676 = vsub.f32 %v1612, %v1630
        %v1677 = vsub.f32 %v1613, %v1633
        %v1678 = vsub.f32 %v1614, %v1636
        %v1679 = vsub.f32 %v1615, %v1639
        %v1680 = vsub.f32 %v1616, %v1642
        %v1681 = vsub.f32 %v1617, %v1645
        %v1682 = vsub.f32 %v1618, %v1648
        %v1683 = vsub.f32 %v1619, %v1651
        %v1684 = vsub.f32 %v1620, %v1654
        %v1685 = vsub.f32 %v1621, %v1657
        %v1686 = vsub.f32 %v1622, %v1660
        %v1687 = vsub.f32 %v1623, %v1663
        %v1688 = vsub.f32 %v1624, %v1666
        %v1689 = vsub.f32 %v1625, %v1669
        %v1690 = vsub.f32 %v1626, %v1672
        %v1691 = vsub.f32 %v1627, %v1675
        %v1692 = vmul.f32 %v1676, 1.442695
        %v1693 = vpow.pop %v1692
        %v1694 = vmul.f32 %v1677, 1.442695
        %v1695 = vpow.pop %v1694
        %v1696 = vmul.f32 %v1678, 1.442695
        %v1697 = vpow.pop %v1696
        %v1698 = vmul.f32 %v1679, 1.442695
        %v1699 = vpow.pop %v1698
        %v1700 = vmul.f32 %v1680, 1.442695
        %v1701 = vpow.pop %v1700
        %v1702 = vmul.f32 %v1681, 1.442695
        %v1703 = vpow.pop %v1702
        %v1704 = vmul.f32 %v1682, 1.442695
        %v1705 = vpow.pop %v1704
        %v1706 = vmul.f32 %v1683, 1.442695
        %v1707 = vpow.pop %v1706
        %v1708 = vmul.f32 %v1684, 1.442695
        %v1709 = vpow.pop %v1708
        %v1710 = vmul.f32 %v1685, 1.442695
        %v1711 = vpow.pop %v1710
        %v1712 = vmul.f32 %v1686, 1.442695
        %v1713 = vpow.pop %v1712
        %v1714 = vmul.f32 %v1687, 1.442695
        %v1715 = vpow.pop %v1714
        %v1716 = vmul.f32 %v1688, 1.442695
        %v1717 = vpow.pop %v1716
        %v1718 = vmul.f32 %v1689, 1.442695
        %v1719 = vpow.pop %v1718
        %v1720 = vmul.f32 %v1690, 1.442695
        %v1721 = vpow.pop %v1720
        %v1722 = vmul.f32 %v1691, 1.442695
        %v1723 = vpow.pop %v1722
        %v1724 = vsel %vm965, %v1693, 0.0
        %1725 = vadd.xlane.f32.xlu0 %v1724
        %v1726 = vpop.xlane.xlu0 %1725
        %v1727 = vsel %vm965, %v1695, 0.0
        %1728 = vadd.xlane.f32.xlu0 %v1727
        %v1729 = vpop.xlane.xlu0 %1728
        %v1730 = vsel %vm965, %v1697, 0.0
        %1731 = vadd.xlane.f32.xlu0 %v1730
        %v1732 = vpop.xlane.xlu0 %1731
        %v1733 = vsel %vm965, %v1699, 0.0
        %1734 = vadd.xlane.f32.xlu0 %v1733
        %v1735 = vpop.xlane.xlu0 %1734
        %v1736 = vsel %vm965, %v1701, 0.0
        %1737 = vadd.xlane.f32.xlu0 %v1736
        %v1738 = vpop.xlane.xlu0 %1737
        %v1739 = vsel %vm965, %v1703, 0.0
        %1740 = vadd.xlane.f32.xlu0 %v1739
        %v1741 = vpop.xlane.xlu0 %1740
        %v1742 = vsel %vm965, %v1705, 0.0
        %1743 = vadd.xlane.f32.xlu0 %v1742
        %v1744 = vpop.xlane.xlu0 %1743
        %v1745 = vsel %vm965, %v1707, 0.0
        %1746 = vadd.xlane.f32.xlu0 %v1745
        %v1747 = vpop.xlane.xlu0 %1746
        %v1748 = vsel %vm965, %v1709, 0.0
        %1749 = vadd.xlane.f32.xlu0 %v1748
        %v1750 = vpop.xlane.xlu0 %1749
        %v1751 = vsel %vm965, %v1711, 0.0
        %1752 = vadd.xlane.f32.xlu0 %v1751
        %v1753 = vpop.xlane.xlu0 %1752
        %v1754 = vsel %vm965, %v1713, 0.0
        %1755 = vadd.xlane.f32.xlu0 %v1754
        %v1756 = vpop.xlane.xlu0 %1755
        %v1757 = vsel %vm965, %v1715, 0.0
        %1758 = vadd.xlane.f32.xlu0 %v1757
        %v1759 = vpop.xlane.xlu0 %1758
        %v1760 = vsel %vm965, %v1717, 0.0
        %1761 = vadd.xlane.f32.xlu0 %v1760
        %v1762 = vpop.xlane.xlu0 %1761
        %v1763 = vsel %vm965, %v1719, 0.0
        %1764 = vadd.xlane.f32.xlu0 %v1763
        %v1765 = vpop.xlane.xlu0 %1764
        %v1766 = vsel %vm965, %v1721, 0.0
        %1767 = vadd.xlane.f32.xlu0 %v1766
        %v1768 = vpop.xlane.xlu0 %1767
        %v1769 = vsel %vm965, %v1723, 0.0
        %1770 = vadd.xlane.f32.xlu0 %v1769
        %v1771 = vpop.xlane.xlu0 %1770
        %v1772 = vrcp.pop %v1726
        %v1773 = vmul.f32 1.0, %v1772
        %v1774 = vrcp.pop %v1729
        %v1775 = vmul.f32 1.0, %v1774
        %v1776 = vrcp.pop %v1732
        %v1777 = vmul.f32 1.0, %v1776
        %v1778 = vrcp.pop %v1735
        %v1779 = vmul.f32 1.0, %v1778
        %v1780 = vrcp.pop %v1738
        %v1781 = vmul.f32 1.0, %v1780
        %v1782 = vrcp.pop %v1741
        %v1783 = vmul.f32 1.0, %v1782
        %v1784 = vrcp.pop %v1744
        %v1785 = vmul.f32 1.0, %v1784
        %v1786 = vrcp.pop %v1747
        %v1787 = vmul.f32 1.0, %v1786
        %v1788 = vrcp.pop %v1750
        %v1789 = vmul.f32 1.0, %v1788
        %v1790 = vrcp.pop %v1753
        %v1791 = vmul.f32 1.0, %v1790
        %v1792 = vrcp.pop %v1756
        %v1793 = vmul.f32 1.0, %v1792
        %v1794 = vrcp.pop %v1759
        %v1795 = vmul.f32 1.0, %v1794
        %v1796 = vrcp.pop %v1762
        %v1797 = vmul.f32 1.0, %v1796
        %v1798 = vrcp.pop %v1765
        %v1799 = vmul.f32 1.0, %v1798
        %v1800 = vrcp.pop %v1768
        %v1801 = vmul.f32 1.0, %v1800
        %v1802 = vrcp.pop %v1771
        %v1803 = vmul.f32 1.0, %v1802
        %v1804 = vmul.f32 %v1693, %v1773
        %v1805 = vmul.f32 %v1695, %v1775
        %v1806 = vmul.f32 %v1697, %v1777
        %v1807 = vmul.f32 %v1699, %v1779
        %v1808 = vmul.f32 %v1701, %v1781
        %v1809 = vmul.f32 %v1703, %v1783
        %v1810 = vmul.f32 %v1705, %v1785
        %v1811 = vmul.f32 %v1707, %v1787
        %v1812 = vmul.f32 %v1709, %v1789
        %v1813 = vmul.f32 %v1711, %v1791
        %v1814 = vmul.f32 %v1713, %v1793
        %v1815 = vmul.f32 %v1715, %v1795
        %v1816 = vmul.f32 %v1717, %v1797
        %v1817 = vmul.f32 %v1719, %v1799
        %v1818 = vmul.f32 %v1721, %v1801
        %v1819 = vmul.f32 %v1723, %v1803
        %v1820 = vpack.c.bf16 %v1805, %v1804
        %v1821 = vpack.c.bf16 %v1807, %v1806
        %v1822 = vpack.c.bf16 %v1809, %v1808
        %v1823 = vpack.c.bf16 %v1811, %v1810
        %v1824 = vpack.c.bf16 %v1813, %v1812
        %v1825 = vpack.c.bf16 %v1815, %v1814
        %v1826 = vpack.c.bf16 %v1817, %v1816
        %v1827 = vpack.c.bf16 %v1819, %v1818
        %1828 = vrot.lane.b32.xlu0 %v492, 64
        %v1829 = vpop.permute.xlu0 %1828
        %v1832 = vsel %vm965, %v1820, 0
        %1834 = vmatprep.subr.bf16.mxu0 0
        %1835 = vmatpush1.bf16.msra.mxu0 0
        %1836 = vmatprep.subr.bf16.mxu0 0
        %1837 = vmatpush1.bf16.msra.mxu0 0
        %1838 = vmatprep.subr.bf16.mxu0 0
        %1839 = vmatpush1.bf16.msra.mxu0 0
        %1840 = vmatprep.subr.bf16.mxu0 0
        %1841 = vmatpush1.bf16.msra.mxu0 0
        %1842 = vmatprep.subr.bf16.mxu0 0
        %1843 = vmatpush1.bf16.msra.mxu0 0
        %1844 = vmatprep.subr.bf16.mxu0 0
        %1845 = vmatpush1.bf16.msra.mxu0 0
        %1846 = vmatprep.subr.bf16.mxu0 0
        %1847 = vmatpush1.bf16.msra.mxu0 0
        %1848 = vmatprep.subr.bf16.mxu0 0
        %1849 = vmatpush1.bf16.msra.mxu0 %v1829
        %1850 = vmatprep.subr.bf16.mxu0 0
        %1851 = vmatpush2.bf16.msra.mxu0 0
        %1852 = vmatprep.subr.bf16.mxu0 0
        %1853 = vmatpush2.bf16.msra.mxu0 0
        %1854 = vmatprep.subr.bf16.mxu0 0
        %1855 = vmatpush2.bf16.msra.mxu0 0
        %1856 = vmatprep.subr.bf16.mxu0 0
        %1857 = vmatpush2.bf16.msra.mxu0 0
        %1858 = vmatprep.subr.bf16.mxu0 0
        %1859 = vmatpush2.bf16.msra.mxu0 0
        %1860 = vmatprep.subr.bf16.mxu0 0
        %1861 = vmatpush2.bf16.msra.mxu0 0
        %1862 = vmatprep.subr.bf16.mxu0 0
        %1863 = vmatpush2.bf16.msra.mxu0 0
        %1864 = vmatprep.subr.bf16.mxu0 0
        %1865 = vmatpush2.bf16.msra.mxu0 0
        %1866 = vmatprep.mubr.bf16.mxu0 0
        %1867 = vmatmul.mubr.bf16.gmra.mxu0 %v1832
        %v1868 = vpop.f32.mrf.mxu0
        %v1869 = vadd.f32 0.0, %v1868
        %v1870 = vpop.f32.mrf.mxu0
        %v1871 = vpop.f32.mrf.mxu0
        %v1872 = vadd.f32 0.0, %v1871
        %v1873 = vpop.f32.mrf.mxu0
        %1874 = vdwg.mxu0
        %1875 = vst.msk [vmem:[#allocation2] sm:$0xff] %vm497, %v1869
        %1876 = vst.msk [vmem:[#allocation2 + $0x8] sm:$0xff] %vm497, %v1872
        %1877 = vrot.lane.b32.xlu0 %v492, 56
        %v1878 = vpop.permute.xlu0 %1877
        %v1881 = vsel %vm965, %v1821, 0
        %1883 = vmatprep.subr.bf16.mxu0 0
        %1884 = vmatpush1.bf16.msra.mxu0 0
        %1885 = vmatprep.subr.bf16.mxu0 0
        %1886 = vmatpush1.bf16.msra.mxu0 0
        %1887 = vmatprep.subr.bf16.mxu0 0
        %1888 = vmatpush1.bf16.msra.mxu0 0
        %1889 = vmatprep.subr.bf16.mxu0 0
        %1890 = vmatpush1.bf16.msra.mxu0 0
        %1891 = vmatprep.subr.bf16.mxu0 0
        %1892 = vmatpush1.bf16.msra.mxu0 0
        %1893 = vmatprep.subr.bf16.mxu0 0
        %1894 = vmatpush1.bf16.msra.mxu0 0
        %1895 = vmatprep.subr.bf16.mxu0 0
        %1896 = vmatpush1.bf16.msra.mxu0 0
        %1897 = vmatprep.subr.bf16.mxu0 0
        %1898 = vmatpush1.bf16.msra.mxu0 %v1878
        %1899 = vmatprep.subr.bf16.mxu0 0
        %1900 = vmatpush2.bf16.msra.mxu0 0
        %1901 = vmatprep.subr.bf16.mxu0 0
        %1902 = vmatpush2.bf16.msra.mxu0 0
        %1903 = vmatprep.subr.bf16.mxu0 0
        %1904 = vmatpush2.bf16.msra.mxu0 0
        %1905 = vmatprep.subr.bf16.mxu0 0
        %1906 = vmatpush2.bf16.msra.mxu0 0
        %1907 = vmatprep.subr.bf16.mxu0 0
        %1908 = vmatpush2.bf16.msra.mxu0 0
        %1909 = vmatprep.subr.bf16.mxu0 0
        %1910 = vmatpush2.bf16.msra.mxu0 0
        %1911 = vmatprep.subr.bf16.mxu0 0
        %1912 = vmatpush2.bf16.msra.mxu0 0
        %1913 = vmatprep.subr.bf16.mxu0 0
        %1914 = vmatpush2.bf16.msra.mxu0 0
        %1915 = vmatprep.mubr.bf16.mxu0 0
        %1916 = vmatmul.mubr.bf16.gmra.mxu0 %v1881
        %v1917 = vpop.f32.mrf.mxu0
        %v1918 = vadd.f32 0.0, %v1917
        %v1919 = vpop.f32.mrf.mxu0
        %v1920 = vpop.f32.mrf.mxu0
        %v1921 = vadd.f32 0.0, %v1920
        %v1922 = vpop.f32.mrf.mxu0
        %1923 = vdwg.mxu0
        %1926 = vrot.lane.b32.xlu0 %v1918, 8
        %v1927 = vpop.permute.xlu0 %1926
        %1928 = vrot.lane.b32.xlu0 %v1921, 8
        %v1929 = vpop.permute.xlu0 %1928
        %vm1932 = vcmask 130112
        %1933 = vst.msk [vmem:[#allocation2] sm:$0xff] %vm1932, %v1927
        %1934 = vst.msk [vmem:[#allocation2 + $0x8] sm:$0xff] %vm1932, %v1929
        %1935 = vrot.lane.b32.xlu0 %v492, 48
        %v1936 = vpop.permute.xlu0 %1935
        %v1939 = vsel %vm965, %v1822, 0
        %1941 = vmatprep.subr.bf16.mxu0 0
        %1942 = vmatpush1.bf16.msra.mxu0 0
        %1943 = vmatprep.subr.bf16.mxu0 0
        %1944 = vmatpush1.bf16.msra.mxu0 0
        %1945 = vmatprep.subr.bf16.mxu0 0
        %1946 = vmatpush1.bf16.msra.mxu0 0
        %1947 = vmatprep.subr.bf16.mxu0 0
        %1948 = vmatpush1.bf16.msra.mxu0 0
        %1949 = vmatprep.subr.bf16.mxu0 0
        %1950 = vmatpush1.bf16.msra.mxu0 0
        %1951 = vmatprep.subr.bf16.mxu0 0
        %1952 = vmatpush1.bf16.msra.mxu0 0
        %1953 = vmatprep.subr.bf16.mxu0 0
        %1954 = vmatpush1.bf16.msra.mxu0 0
        %1955 = vmatprep.subr.bf16.mxu0 0
        %1956 = vmatpush1.bf16.msra.mxu0 %v1936
        %1957 = vmatprep.subr.bf16.mxu0 0
        %1958 = vmatpush2.bf16.msra.mxu0 0
        %1959 = vmatprep.subr.bf16.mxu0 0
        %1960 = vmatpush2.bf16.msra.mxu0 0
        %1961 = vmatprep.subr.bf16.mxu0 0
        %1962 = vmatpush2.bf16.msra.mxu0 0
        %1963 = vmatprep.subr.bf16.mxu0 0
        %1964 = vmatpush2.bf16.msra.mxu0 0
        %1965 = vmatprep.subr.bf16.mxu0 0
        %1966 = vmatpush2.bf16.msra.mxu0 0
        %1967 = vmatprep.subr.bf16.mxu0 0
        %1968 = vmatpush2.bf16.msra.mxu0 0
        %1969 = vmatprep.subr.bf16.mxu0 0
        %1970 = vmatpush2.bf16.msra.mxu0 0
        %1971 = vmatprep.subr.bf16.mxu0 0
        %1972 = vmatpush2.bf16.msra.mxu0 0
        %1973 = vmatprep.mubr.bf16.mxu0 0
        %1974 = vmatmul.mubr.bf16.gmra.mxu0 %v1939
        %v1975 = vpop.f32.mrf.mxu0
        %v1976 = vadd.f32 0.0, %v1975
        %v1977 = vpop.f32.mrf.mxu0
        %v1978 = vpop.f32.mrf.mxu0
        %v1979 = vadd.f32 0.0, %v1978
        %v1980 = vpop.f32.mrf.mxu0
        %1981 = vdwg.mxu0
        %1984 = vrot.lane.b32.xlu0 %v1976, 16
        %v1985 = vpop.permute.xlu0 %1984
        %1986 = vrot.lane.b32.xlu0 %v1979, 16
        %v1987 = vpop.permute.xlu0 %1986
        %vm1990 = vcmask 195712
        %1991 = vst.msk [vmem:[#allocation2] sm:$0xff] %vm1990, %v1985
        %1992 = vst.msk [vmem:[#allocation2 + $0x8] sm:$0xff] %vm1990, %v1987
        %1993 = vrot.lane.b32.xlu0 %v492, 40
        %v1994 = vpop.permute.xlu0 %1993
        %v1997 = vsel %vm965, %v1823, 0
        %1999 = vmatprep.subr.bf16.mxu0 0
        %2000 = vmatpush1.bf16.msra.mxu0 0
        %2001 = vmatprep.subr.bf16.mxu0 0
        %2002 = vmatpush1.bf16.msra.mxu0 0
        %2003 = vmatprep.subr.bf16.mxu0 0
        %2004 = vmatpush1.bf16.msra.mxu0 0
        %2005 = vmatprep.subr.bf16.mxu0 0
        %2006 = vmatpush1.bf16.msra.mxu0 0
        %2007 = vmatprep.subr.bf16.mxu0 0
        %2008 = vmatpush1.bf16.msra.mxu0 0
        %2009 = vmatprep.subr.bf16.mxu0 0
        %2010 = vmatpush1.bf16.msra.mxu0 0
        %2011 = vmatprep.subr.bf16.mxu0 0
        %2012 = vmatpush1.bf16.msra.mxu0 0
        %2013 = vmatprep.subr.bf16.mxu0 0
        %2014 = vmatpush1.bf16.msra.mxu0 %v1994
        %2015 = vmatprep.subr.bf16.mxu0 0
        %2016 = vmatpush2.bf16.msra.mxu0 0
        %2017 = vmatprep.subr.bf16.mxu0 0
        %2018 = vmatpush2.bf16.msra.mxu0 0
        %2019 = vmatprep.subr.bf16.mxu0 0
        %2020 = vmatpush2.bf16.msra.mxu0 0
        %2021 = vmatprep.subr.bf16.mxu0 0
        %2022 = vmatpush2.bf16.msra.mxu0 0
        %2023 = vmatprep.subr.bf16.mxu0 0
        %2024 = vmatpush2.bf16.msra.mxu0 0
        %2025 = vmatprep.subr.bf16.mxu0 0
        %2026 = vmatpush2.bf16.msra.mxu0 0
        %2027 = vmatprep.subr.bf16.mxu0 0
        %2028 = vmatpush2.bf16.msra.mxu0 0
        %2029 = vmatprep.subr.bf16.mxu0 0
        %2030 = vmatpush2.bf16.msra.mxu0 0
        %2031 = vmatprep.mubr.bf16.mxu0 0
        %2032 = vmatmul.mubr.bf16.gmra.mxu0 %v1997
        %v2033 = vpop.f32.mrf.mxu0
        %v2034 = vadd.f32 0.0, %v2033
        %v2035 = vpop.f32.mrf.mxu0
        %v2036 = vpop.f32.mrf.mxu0
        %v2037 = vadd.f32 0.0, %v2036
        %v2038 = vpop.f32.mrf.mxu0
        %2039 = vdwg.mxu0
        %2042 = vrot.lane.b32.xlu0 %v2034, 24
        %v2043 = vpop.permute.xlu0 %2042
        %2044 = vrot.lane.b32.xlu0 %v2037, 24
        %v2045 = vpop.permute.xlu0 %2044
        %vm2048 = vcmask 261312
        %2049 = vst.msk [vmem:[#allocation2] sm:$0xff] %vm2048, %v2043
        %2050 = vst.msk [vmem:[#allocation2 + $0x8] sm:$0xff] %vm2048, %v2045
        %2051 = vrot.lane.b32.xlu0 %v493, 64
        %v2052 = vpop.permute.xlu0 %2051
        %v2055 = vsel %vm965, %v1824, 0
        %2057 = vmatprep.subr.bf16.mxu0 0
        %2058 = vmatpush1.bf16.msra.mxu0 0
        %2059 = vmatprep.subr.bf16.mxu0 0
        %2060 = vmatpush1.bf16.msra.mxu0 0
        %2061 = vmatprep.subr.bf16.mxu0 0
        %2062 = vmatpush1.bf16.msra.mxu0 0
        %2063 = vmatprep.subr.bf16.mxu0 0
        %2064 = vmatpush1.bf16.msra.mxu0 0
        %2065 = vmatprep.subr.bf16.mxu0 0
        %2066 = vmatpush1.bf16.msra.mxu0 0
        %2067 = vmatprep.subr.bf16.mxu0 0
        %2068 = vmatpush1.bf16.msra.mxu0 0
        %2069 = vmatprep.subr.bf16.mxu0 0
        %2070 = vmatpush1.bf16.msra.mxu0 0
        %2071 = vmatprep.subr.bf16.mxu0 0
        %2072 = vmatpush1.bf16.msra.mxu0 %v2052
        %2073 = vmatprep.subr.bf16.mxu0 0
        %2074 = vmatpush2.bf16.msra.mxu0 0
        %2075 = vmatprep.subr.bf16.mxu0 0
        %2076 = vmatpush2.bf16.msra.mxu0 0
        %2077 = vmatprep.subr.bf16.mxu0 0
        %2078 = vmatpush2.bf16.msra.mxu0 0
        %2079 = vmatprep.subr.bf16.mxu0 0
        %2080 = vmatpush2.bf16.msra.mxu0 0
        %2081 = vmatprep.subr.bf16.mxu0 0
        %2082 = vmatpush2.bf16.msra.mxu0 0
        %2083 = vmatprep.subr.bf16.mxu0 0
        %2084 = vmatpush2.bf16.msra.mxu0 0
        %2085 = vmatprep.subr.bf16.mxu0 0
        %2086 = vmatpush2.bf16.msra.mxu0 0
        %2087 = vmatprep.subr.bf16.mxu0 0
        %2088 = vmatpush2.bf16.msra.mxu0 0
        %2089 = vmatprep.mubr.bf16.mxu0 0
        %2090 = vmatmul.mubr.bf16.gmra.mxu0 %v2055
        %v2091 = vpop.f32.mrf.mxu0
        %v2092 = vadd.f32 0.0, %v2091
        %v2093 = vpop.f32.mrf.mxu0
        %v2094 = vpop.f32.mrf.mxu0
        %v2095 = vadd.f32 0.0, %v2094
        %v2096 = vpop.f32.mrf.mxu0
        %2097 = vdwg.mxu0
        %2098 = vst.msk [vmem:[#allocation2 + $0x10] sm:$0xff] %vm497, %v2092
        %2099 = vst.msk [vmem:[#allocation2 + $0x18] sm:$0xff] %vm497, %v2095
        %2100 = vrot.lane.b32.xlu0 %v493, 56
        %v2101 = vpop.permute.xlu0 %2100
        %v2104 = vsel %vm965, %v1825, 0
        %2106 = vmatprep.subr.bf16.mxu0 0
        %2107 = vmatpush1.bf16.msra.mxu0 0
        %2108 = vmatprep.subr.bf16.mxu0 0
        %2109 = vmatpush1.bf16.msra.mxu0 0
        %2110 = vmatprep.subr.bf16.mxu0 0
        %2111 = vmatpush1.bf16.msra.mxu0 0
        %2112 = vmatprep.subr.bf16.mxu0 0
        %2113 = vmatpush1.bf16.msra.mxu0 0
        %2114 = vmatprep.subr.bf16.mxu0 0
        %2115 = vmatpush1.bf16.msra.mxu0 0
        %2116 = vmatprep.subr.bf16.mxu0 0
        %2117 = vmatpush1.bf16.msra.mxu0 0
        %2118 = vmatprep.subr.bf16.mxu0 0
        %2119 = vmatpush1.bf16.msra.mxu0 0
        %2120 = vmatprep.subr.bf16.mxu0 0
        %2121 = vmatpush1.bf16.msra.mxu0 %v2101
        %2122 = vmatprep.subr.bf16.mxu0 0
        %2123 = vmatpush2.bf16.msra.mxu0 0
        %2124 = vmatprep.subr.bf16.mxu0 0
        %2125 = vmatpush2.bf16.msra.mxu0 0
        %2126 = vmatprep.subr.bf16.mxu0 0
        %2127 = vmatpush2.bf16.msra.mxu0 0
        %2128 = vmatprep.subr.bf16.mxu0 0
        %2129 = vmatpush2.bf16.msra.mxu0 0
        %2130 = vmatprep.subr.bf16.mxu0 0
        %2131 = vmatpush2.bf16.msra.mxu0 0
        %2132 = vmatprep.subr.bf16.mxu0 0
        %2133 = vmatpush2.bf16.msra.mxu0 0
        %2134 = vmatprep.subr.bf16.mxu0 0
        %2135 = vmatpush2.bf16.msra.mxu0 0
        %2136 = vmatprep.subr.bf16.mxu0 0
        %2137 = vmatpush2.bf16.msra.mxu0 0
        %2138 = vmatprep.mubr.bf16.mxu0 0
        %2139 = vmatmul.mubr.bf16.gmra.mxu0 %v2104
        %v2140 = vpop.f32.mrf.mxu0
        %v2141 = vadd.f32 0.0, %v2140
        %v2142 = vpop.f32.mrf.mxu0
        %v2143 = vpop.f32.mrf.mxu0
        %v2144 = vadd.f32 0.0, %v2143
        %v2145 = vpop.f32.mrf.mxu0
        %2146 = vdwg.mxu0
        %2149 = vrot.lane.b32.xlu0 %v2141, 8
        %v2150 = vpop.permute.xlu0 %2149
        %2151 = vrot.lane.b32.xlu0 %v2144, 8
        %v2152 = vpop.permute.xlu0 %2151
        %2155 = vst.msk [vmem:[#allocation2 + $0x10] sm:$0xff] %vm1932, %v2150
        %2156 = vst.msk [vmem:[#allocation2 + $0x18] sm:$0xff] %vm1932, %v2152
        %2157 = vrot.lane.b32.xlu0 %v493, 48
        %v2158 = vpop.permute.xlu0 %2157
        %v2161 = vsel %vm965, %v1826, 0
        %2163 = vmatprep.subr.bf16.mxu0 0
        %2164 = vmatpush1.bf16.msra.mxu0 0
        %2165 = vmatprep.subr.bf16.mxu0 0
        %2166 = vmatpush1.bf16.msra.mxu0 0
        %2167 = vmatprep.subr.bf16.mxu0 0
        %2168 = vmatpush1.bf16.msra.mxu0 0
        %2169 = vmatprep.subr.bf16.mxu0 0
        %2170 = vmatpush1.bf16.msra.mxu0 0
        %2171 = vmatprep.subr.bf16.mxu0 0
        %2172 = vmatpush1.bf16.msra.mxu0 0
        %2173 = vmatprep.subr.bf16.mxu0 0
        %2174 = vmatpush1.bf16.msra.mxu0 0
        %2175 = vmatprep.subr.bf16.mxu0 0
        %2176 = vmatpush1.bf16.msra.mxu0 0
        %2177 = vmatprep.subr.bf16.mxu0 0
        %2178 = vmatpush1.bf16.msra.mxu0 %v2158
        %2179 = vmatprep.subr.bf16.mxu0 0
        %2180 = vmatpush2.bf16.msra.mxu0 0
        %2181 = vmatprep.subr.bf16.mxu0 0
        %2182 = vmatpush2.bf16.msra.mxu0 0
        %2183 = vmatprep.subr.bf16.mxu0 0
        %2184 = vmatpush2.bf16.msra.mxu0 0
        %2185 = vmatprep.subr.bf16.mxu0 0
        %2186 = vmatpush2.bf16.msra.mxu0 0
        %2187 = vmatprep.subr.bf16.mxu0 0
        %2188 = vmatpush2.bf16.msra.mxu0 0
        %2189 = vmatprep.subr.bf16.mxu0 0
        %2190 = vmatpush2.bf16.msra.mxu0 0
        %2191 = vmatprep.subr.bf16.mxu0 0
        %2192 = vmatpush2.bf16.msra.mxu0 0
        %2193 = vmatprep.subr.bf16.mxu0 0
        %2194 = vmatpush2.bf16.msra.mxu0 0
        %2195 = vmatprep.mubr.bf16.mxu0 0
        %2196 = vmatmul.mubr.bf16.gmra.mxu0 %v2161
        %v2197 = vpop.f32.mrf.mxu0
        %v2198 = vadd.f32 0.0, %v2197
        %v2199 = vpop.f32.mrf.mxu0
        %v2200 = vpop.f32.mrf.mxu0
        %v2201 = vadd.f32 0.0, %v2200
        %v2202 = vpop.f32.mrf.mxu0
        %2203 = vdwg.mxu0
        %2206 = vrot.lane.b32.xlu0 %v2198, 16
        %v2207 = vpop.permute.xlu0 %2206
        %2208 = vrot.lane.b32.xlu0 %v2201, 16
        %v2209 = vpop.permute.xlu0 %2208
        %2212 = vst.msk [vmem:[#allocation2 + $0x10] sm:$0xff] %vm1990, %v2207
        %2213 = vst.msk [vmem:[#allocation2 + $0x18] sm:$0xff] %vm1990, %v2209
        %2214 = vrot.lane.b32.xlu0 %v493, 40
        %v2215 = vpop.permute.xlu0 %2214
        %v2218 = vsel %vm965, %v1827, 0
        %2220 = vmatprep.subr.bf16.mxu0 0
        %2221 = vmatpush1.bf16.msra.mxu0 0
        %2222 = vmatprep.subr.bf16.mxu0 0
        %2223 = vmatpush1.bf16.msra.mxu0 0
        %2224 = vmatprep.subr.bf16.mxu0 0
        %2225 = vmatpush1.bf16.msra.mxu0 0
        %2226 = vmatprep.subr.bf16.mxu0 0
        %2227 = vmatpush1.bf16.msra.mxu0 0
        %2228 = vmatprep.subr.bf16.mxu0 0
        %2229 = vmatpush1.bf16.msra.mxu0 0
        %2230 = vmatprep.subr.bf16.mxu0 0
        %2231 = vmatpush1.bf16.msra.mxu0 0
        %2232 = vmatprep.subr.bf16.mxu0 0
        %2233 = vmatpush1.bf16.msra.mxu0 0
        %2234 = vmatprep.subr.bf16.mxu0 0
        %2235 = vmatpush1.bf16.msra.mxu0 %v2215
        %2236 = vmatprep.subr.bf16.mxu0 0
        %2237 = vmatpush2.bf16.msra.mxu0 0
        %2238 = vmatprep.subr.bf16.mxu0 0
        %2239 = vmatpush2.bf16.msra.mxu0 0
        %2240 = vmatprep.subr.bf16.mxu0 0
        %2241 = vmatpush2.bf16.msra.mxu0 0
        %2242 = vmatprep.subr.bf16.mxu0 0
        %2243 = vmatpush2.bf16.msra.mxu0 0
        %2244 = vmatprep.subr.bf16.mxu0 0
        %2245 = vmatpush2.bf16.msra.mxu0 0
        %2246 = vmatprep.subr.bf16.mxu0 0
        %2247 = vmatpush2.bf16.msra.mxu0 0
        %2248 = vmatprep.subr.bf16.mxu0 0
        %2249 = vmatpush2.bf16.msra.mxu0 0
        %2250 = vmatprep.subr.bf16.mxu0 0
        %2251 = vmatpush2.bf16.msra.mxu0 0
        %2252 = vmatprep.mubr.bf16.mxu0 0
        %2253 = vmatmul.mubr.bf16.gmra.mxu0 %v2218
        %v2254 = vpop.f32.mrf.mxu0
        %v2255 = vadd.f32 0.0, %v2254
        %v2256 = vpop.f32.mrf.mxu0
        %v2257 = vpop.f32.mrf.mxu0
        %v2258 = vadd.f32 0.0, %v2257
        %v2259 = vpop.f32.mrf.mxu0
        %2260 = vdwg.mxu0
        %2263 = vrot.lane.b32.xlu0 %v2255, 24
        %v2264 = vpop.permute.xlu0 %2263
        %2265 = vrot.lane.b32.xlu0 %v2258, 24
        %v2266 = vpop.permute.xlu0 %2265
        %2269 = vst.msk [vmem:[#allocation2 + $0x10] sm:$0xff] %vm2048, %v2264
        %2270 = vst.msk [vmem:[#allocation2 + $0x18] sm:$0xff] %vm2048, %v2266
        %v2271 = vld [vmem:[#allocation2] sm:$0xff]
        %v2272 = vld [vmem:[#allocation2 + $0x8] sm:$0xff]
        %v2273 = vld [vmem:[#allocation2 + $0x10] sm:$0xff]
        %v2274 = vld [vmem:[#allocation2 + $0x18] sm:$0xff]
        %v2275 = vadd.f32 %v407, %v2271
        %v2276 = vadd.f32 %v408, %v2272
        %v2277 = vadd.f32 %v409, %v2273
        %v2278 = vadd.f32 %v410, %v2274
        %v2279 = vld [vmem:[%s7] sm:$0x1]
        %v2280 = vld [vmem:[%s8] sm:$0x1]
        %v2281 = vsel %vm436, %v2275, 0.0
        %2282 = vadd.xlane.f32.xlu0 %v2281
        %v2283 = vpop.xlane.xlu0 %2282
        %v2284 = vsel %vm436, %v2276, 0.0
        %2285 = vadd.xlane.f32.xlu0 %v2284
        %v2286 = vpop.xlane.xlu0 %2285
        %v2287 = vsel %vm436, %v2277, 0.0
        %2288 = vadd.xlane.f32.xlu0 %v2287
        %v2289 = vpop.xlane.xlu0 %2288
        %v2290 = vsel %vm436, %v2278, 0.0
        %2291 = vadd.xlane.f32.xlu0 %v2290
        %v2292 = vpop.xlane.xlu0 %2291
        %v2293 = vrcp.pop 32.0
        %v2294 = vmul.f32 %v2283, %v2293
        %v2295 = vmul.f32 %v2286, %v2293
        %v2296 = vmul.f32 %v2289, %v2293
        %v2297 = vmul.f32 %v2292, %v2293
        %v2298 = vsub.f32 %v2275, %v2294
        %v2299 = vsub.f32 %v2276, %v2295
        %v2300 = vsub.f32 %v2277, %v2296
        %v2301 = vsub.f32 %v2278, %v2297
        %v2302 = vmul.f32 %v2298, %v2298
        %v2303 = vmul.f32 %v2299, %v2299
        %v2304 = vmul.f32 %v2300, %v2300
        %v2305 = vmul.f32 %v2301, %v2301
        %v2306 = vsel %vm436, %v2302, 0.0
        %2307 = vadd.xlane.f32.xlu0 %v2306
        %v2308 = vpop.xlane.xlu0 %2307
        %v2309 = vsel %vm436, %v2303, 0.0
        %2310 = vadd.xlane.f32.xlu0 %v2309
        %v2311 = vpop.xlane.xlu0 %2310
        %v2312 = vsel %vm436, %v2304, 0.0
        %2313 = vadd.xlane.f32.xlu0 %v2312
        %v2314 = vpop.xlane.xlu0 %2313
        %v2315 = vsel %vm436, %v2305, 0.0
        %2316 = vadd.xlane.f32.xlu0 %v2315
        %v2317 = vpop.xlane.xlu0 %2316
        %v2318 = vmul.f32 %v2308, %v2293
        %v2319 = vmul.f32 %v2311, %v2293
        %v2320 = vmul.f32 %v2314, %v2293
        %v2321 = vmul.f32 %v2317, %v2293
        %v2322 = vadd.f32 %v2318, 1e-05
        %v2323 = vadd.f32 %v2319, 1e-05
        %v2324 = vadd.f32 %v2320, 1e-05
        %v2325 = vadd.f32 %v2321, 1e-05
        %v2326 = vrsqrt.pop %v2322
        %v2327 = vrsqrt.pop %v2323
        %v2328 = vrsqrt.pop %v2324
        %v2329 = vrsqrt.pop %v2325
        %v2330 = vmul.f32 %v2298, %v2326
        %v2331 = vmul.f32 %v2299, %v2327
        %v2332 = vmul.f32 %v2300, %v2328
        %v2333 = vmul.f32 %v2301, %v2329
        %v2335 = vlaneseq
        %v2336 = vshrl.u32 %v2335, 7
        %v2337 = vsub.s32 0, %v2336
        %v2338 = vrot.slane %v2279, %v2337
        %v2340 = vmul.f32 %v2330, %v2338
        %v2341 = vmul.f32 %v2331, %v2338
        %v2342 = vmul.f32 %v2332, %v2338
        %v2343 = vmul.f32 %v2333, %v2338
        %v2345 = vlaneseq
        %v2346 = vshrl.u32 %v2345, 7
        %v2347 = vsub.s32 0, %v2346
        %v2348 = vrot.slane %v2280, %v2347
        %v2350 = vadd.f32 %v2340, %v2348
        %v2351 = vadd.f32 %v2341, %v2348
        %v2352 = vadd.f32 %v2342, %v2348
        %v2353 = vadd.f32 %v2343, %v2348
        %v2354 = vpack.c.bf16 %v2351, %v2350
        %v2355 = vpack.c.bf16 %v2353, %v2352
        %v2356 = vld [vmem:[#allocation3] sm:$0xf]
        %v2357 = vld [vmem:[#allocation3 + $0x4] sm:$0xf]
        %v2358 = vld [vmem:[#allocation3 + $0x8] sm:$0xf]
        %v2359 = vld [vmem:[#allocation3 + $0xc] sm:$0xf]
        %v2360 = vld [vmem:[%s4] sm:$0x1]
        %v2362 = vlaneseq
        %v2363 = vshrl.u32 %v2362, 7
        %v2364 = vsub.s32 0, %v2363
        %v2365 = vrot.slane %v2360, %v2364
        %v2371 = vunpack.c.l.b16 %v2356
        %v2372 = vunpack.c.l.b16 %v2357
        %v2373 = vunpack.c.l.b16 %v2358
        %v2374 = vunpack.c.l.b16 %v2359
        %v2375 = vpack.c.b16 %v2372, %v2371
        %v2376 = vpack.c.b16 %v2374, %v2373
        %v2380 = vsel %vm436, %v2354, 0
        %v2383 = vsel %vm436, %v2355, 0
        %2385 = vmatprep.subr.bf16.mxu0 0
        %2386 = vmatpush1.bf16.msra.mxu0 0
        %2387 = vmatprep.subr.bf16.mxu0 0
        %2388 = vmatpush1.bf16.msra.mxu0 0
        %2389 = vmatprep.subr.bf16.mxu0 0
        %2390 = vmatpush1.bf16.msra.mxu0 0
        %2391 = vmatprep.subr.bf16.mxu0 0
        %2392 = vmatpush1.bf16.msra.mxu0 0
        %2393 = vmatprep.subr.bf16.mxu0 0
        %2394 = vmatpush1.bf16.msra.mxu0 0
        %2395 = vmatprep.subr.bf16.mxu0 0
        %2396 = vmatpush1.bf16.msra.mxu0 0
        %2397 = vmatprep.subr.bf16.mxu0 0
        %2398 = vmatpush1.bf16.msra.mxu0 %v2376
        %2399 = vmatprep.subr.bf16.mxu0 0
        %2400 = vmatpush1.bf16.msra.mxu0 %v2375
        %2401 = vmatprep.subr.bf16.mxu0 0
        %2402 = vmatpush2.bf16.msra.mxu0 0
        %2403 = vmatprep.subr.bf16.mxu0 0
        %2404 = vmatpush2.bf16.msra.mxu0 0
        %2405 = vmatprep.subr.bf16.mxu0 0
        %2406 = vmatpush2.bf16.msra.mxu0 0
        %2407 = vmatprep.subr.bf16.mxu0 0
        %2408 = vmatpush2.bf16.msra.mxu0 0
        %2409 = vmatprep.subr.bf16.mxu0 0
        %2410 = vmatpush2.bf16.msra.mxu0 0
        %2411 = vmatprep.subr.bf16.mxu0 0
        %2412 = vmatpush2.bf16.msra.mxu0 0
        %2413 = vmatprep.subr.bf16.mxu0 0
        %2414 = vmatpush2.bf16.msra.mxu0 0
        %2415 = vmatprep.subr.bf16.mxu0 0
        %2416 = vmatpush2.bf16.msra.mxu0 0
        %2417 = vmatprep.mubr.bf16.mxu0 0
        %2418 = vmatmul.mubr.bf16.gmra.mxu0 %v2380
        %v2419 = vpop.f32.mrf.mxu0
        %v2420 = vadd.f32 %v2365, %v2419
        %v2421 = vpop.f32.mrf.mxu0
        %v2422 = vpop.f32.mrf.mxu0
        %v2423 = vadd.f32 %v2365, %v2422
        %v2424 = vpop.f32.mrf.mxu0
        %2425 = vmatprep.mubr.bf16.mxu0 0
        %2426 = vmatmul.mubr.bf16.gmra.mxu0 %v2383
        %v2427 = vpop.f32.mrf.mxu0
        %v2428 = vadd.f32 %v2365, %v2427
        %v2429 = vpop.f32.mrf.mxu0
        %v2430 = vpop.f32.mrf.mxu0
        %v2431 = vadd.f32 %v2365, %v2430
        %v2432 = vpop.f32.mrf.mxu0
        %2433 = vdwg.mxu0
        %v2434 = vmul.f32 %v2420, 0.5
        %v2435 = vmul.f32 %v2423, 0.5
        %v2436 = vmul.f32 %v2428, 0.5
        %v2437 = vmul.f32 %v2431, 0.5
        %v2438 = vmul.f32 %v2420, 0.70710677
        %v2439 = vmul.f32 %v2423, 0.70710677
        %v2440 = vmul.f32 %v2428, 0.70710677
        %v2441 = vmul.f32 %v2431, 0.70710677
        %vm2442 = vcmp.ge.f32.partialorder %v2438, 0.0
        %vm2443 = vcmp.ge.f32.partialorder %v2439, 0.0
        %vm2444 = vcmp.ge.f32.partialorder %v2440, 0.0
        %vm2445 = vcmp.ge.f32.partialorder %v2441, 0.0
        %v2446 = vsel %vm2442, 1.0, -1.0
        %v2447 = vsel %vm2443, 1.0, -1.0
        %v2448 = vsel %vm2444, 1.0, -1.0
        %v2449 = vsel %vm2445, 1.0, -1.0
        %v2450 = vand.u32 2147483647, %v2438
        %v2451 = vand.u32 2147483647, %v2439
        %v2452 = vand.u32 2147483647, %v2440
        %v2453 = vand.u32 2147483647, %v2441
        %v2454 = vmul.f32 %v2450, 0.3275911
        %v2455 = vmul.f32 %v2451, 0.3275911
        %v2456 = vmul.f32 %v2452, 0.3275911
        %v2457 = vmul.f32 %v2453, 0.3275911
        %v2458 = vadd.f32 %v2454, 1.0
        %v2459 = vadd.f32 %v2455, 1.0
        %v2460 = vadd.f32 %v2456, 1.0
        %v2461 = vadd.f32 %v2457, 1.0
        %v2462 = vrcp.pop %v2458
        %v2463 = vmul.f32 1.0, %v2462
        %v2464 = vrcp.pop %v2459
        %v2465 = vmul.f32 1.0, %v2464
        %v2466 = vrcp.pop %v2460
        %v2467 = vmul.f32 1.0, %v2466
        %v2468 = vrcp.pop %v2461
        %v2469 = vmul.f32 1.0, %v2468
        %v2470 = vmul.f32 %v2463, 1.0614054
        %v2471 = vmul.f32 %v2465, 1.0614054
        %v2472 = vmul.f32 %v2467, 1.0614054
        %v2473 = vmul.f32 %v2469, 1.0614054
        %v2474 = vadd.f32 %v2470, -1.4531521
        %v2475 = vadd.f32 %v2471, -1.4531521
        %v2476 = vadd.f32 %v2472, -1.4531521
        %v2477 = vadd.f32 %v2473, -1.4531521
        %v2478 = vmul.f32 %v2474, %v2463
        %v2479 = vmul.f32 %v2475, %v2465
        %v2480 = vmul.f32 %v2476, %v2467
        %v2481 = vmul.f32 %v2477, %v2469
        %v2482 = vadd.f32 %v2478, 1.4214138
        %v2483 = vadd.f32 %v2479, 1.4214138
        %v2484 = vadd.f32 %v2480, 1.4214138
        %v2485 = vadd.f32 %v2481, 1.4214138
        %v2486 = vmul.f32 %v2482, %v2463
        %v2487 = vmul.f32 %v2483, %v2465
        %v2488 = vmul.f32 %v2484, %v2467
        %v2489 = vmul.f32 %v2485, %v2469
        %v2490 = vadd.f32 %v2486, -0.28449672
        %v2491 = vadd.f32 %v2487, -0.28449672
        %v2492 = vadd.f32 %v2488, -0.28449672
        %v2493 = vadd.f32 %v2489, -0.28449672
        %v2494 = vmul.f32 %v2490, %v2463
        %v2495 = vmul.f32 %v2491, %v2465
        %v2496 = vmul.f32 %v2492, %v2467
        %v2497 = vmul.f32 %v2493, %v2469
        %v2498 = vadd.f32 %v2494, 0.2548296
        %v2499 = vadd.f32 %v2495, 0.2548296
        %v2500 = vadd.f32 %v2496, 0.2548296
        %v2501 = vadd.f32 %v2497, 0.2548296
        %v2502 = vmul.f32 %v2498, %v2463
        %v2503 = vmul.f32 %v2499, %v2465
        %v2504 = vmul.f32 %v2500, %v2467
        %v2505 = vmul.f32 %v2501, %v2469
        %v2506 = vsub.f32 0.0, %v2450
        %v2507 = vsub.f32 0.0, %v2451
        %v2508 = vsub.f32 0.0, %v2452
        %v2509 = vsub.f32 0.0, %v2453
        %v2510 = vmul.f32 %v2506, %v2450
        %v2511 = vmul.f32 %v2507, %v2451
        %v2512 = vmul.f32 %v2508, %v2452
        %v2513 = vmul.f32 %v2509, %v2453
        %v2514 = vmul.f32 %v2510, 1.442695
        %v2515 = vpow.pop %v2514
        %v2516 = vmul.f32 %v2511, 1.442695
        %v2517 = vpow.pop %v2516
        %v2518 = vmul.f32 %v2512, 1.442695
        %v2519 = vpow.pop %v2518
        %v2520 = vmul.f32 %v2513, 1.442695
        %v2521 = vpow.pop %v2520
        %v2522 = vmul.f32 %v2502, %v2515
        %v2523 = vmul.f32 %v2503, %v2517
        %v2524 = vmul.f32 %v2504, %v2519
        %v2525 = vmul.f32 %v2505, %v2521
        %v2526 = vsub.f32 1.0, %v2522
        %v2527 = vsub.f32 1.0, %v2523
        %v2528 = vsub.f32 1.0, %v2524
        %v2529 = vsub.f32 1.0, %v2525
        %v2530 = vmul.f32 %v2446, %v2526
        %v2531 = vmul.f32 %v2447, %v2527
        %v2532 = vmul.f32 %v2448, %v2528
        %v2533 = vmul.f32 %v2449, %v2529
        %v2534 = vadd.f32 %v2530, 1.0
        %v2535 = vadd.f32 %v2531, 1.0
        %v2536 = vadd.f32 %v2532, 1.0
        %v2537 = vadd.f32 %v2533, 1.0
        %v2538 = vmul.f32 %v2434, %v2534
        %v2539 = vmul.f32 %v2435, %v2535
        %v2540 = vmul.f32 %v2436, %v2536
        %v2541 = vmul.f32 %v2437, %v2537
        %v2542 = vpack.c.bf16 %v2539, %v2538
        %v2543 = vpack.c.bf16 %v2541, %v2540
        %v2544 = vld [vmem:[%s5] sm:$0xf]
        %v2545 = vld [vmem:[%s5 + $0x4] sm:$0xf]
        %v2546 = vld [vmem:[%s5 + $0x8] sm:$0xf]
        %v2547 = vld [vmem:[%s5 + $0xc] sm:$0xf]
        %v2548 = vld [vmem:[%s5 + $0x10] sm:$0xf]
        %v2549 = vld [vmem:[%s5 + $0x14] sm:$0xf]
        %v2550 = vld [vmem:[%s5 + $0x18] sm:$0xf]
        %v2551 = vld [vmem:[%s5 + $0x1c] sm:$0xf]
        %v2552 = vld [vmem:[%s5 + $0x20] sm:$0xf]
        %v2553 = vld [vmem:[%s5 + $0x24] sm:$0xf]
        %v2554 = vld [vmem:[%s5 + $0x28] sm:$0xf]
        %v2555 = vld [vmem:[%s5 + $0x2c] sm:$0xf]
        %v2556 = vld [vmem:[%s5 + $0x30] sm:$0xf]
        %v2557 = vld [vmem:[%s5 + $0x34] sm:$0xf]
        %v2558 = vld [vmem:[%s5 + $0x38] sm:$0xf]
        %v2559 = vld [vmem:[%s5 + $0x3c] sm:$0xf]
        %v2560 = vld [vmem:[%s6] sm:$0x1]
        %v2562 = vlaneseq
        %v2563 = vshrl.u32 %v2562, 7
        %v2564 = vsub.s32 0, %v2563
        %v2565 = vrot.slane %v2560, %v2564
        %v2583 = vunpack.c.l.b16 %v2544
        %v2584 = vunpack.c.l.b16 %v2545
        %v2585 = vunpack.c.l.b16 %v2546
        %v2586 = vunpack.c.l.b16 %v2547
        %v2587 = vunpack.c.l.b16 %v2548
        %v2588 = vunpack.c.l.b16 %v2549
        %v2589 = vunpack.c.l.b16 %v2550
        %v2590 = vunpack.c.l.b16 %v2551
        %v2591 = vunpack.c.l.b16 %v2552
        %v2592 = vunpack.c.l.b16 %v2553
        %v2593 = vunpack.c.l.b16 %v2554
        %v2594 = vunpack.c.l.b16 %v2555
        %v2595 = vunpack.c.l.b16 %v2556
        %v2596 = vunpack.c.l.b16 %v2557
        %v2597 = vunpack.c.l.b16 %v2558
        %v2598 = vunpack.c.l.b16 %v2559
        %v2599 = vpack.c.b16 %v2584, %v2583
        %v2600 = vpack.c.b16 %v2586, %v2585
        %v2601 = vpack.c.b16 %v2588, %v2587
        %v2602 = vpack.c.b16 %v2590, %v2589
        %v2603 = vpack.c.b16 %v2592, %v2591
        %v2604 = vpack.c.b16 %v2594, %v2593
        %v2605 = vpack.c.b16 %v2596, %v2595
        %v2606 = vpack.c.b16 %v2598, %v2597
        %2615 = vmatprep.subr.bf16.mxu0 0
        %2616 = vmatpush1.bf16.msra.mxu0 %v2606
        %2617 = vmatprep.subr.bf16.mxu0 0
        %2618 = vmatpush1.bf16.msra.mxu0 %v2605
        %2619 = vmatprep.subr.bf16.mxu0 0
        %2620 = vmatpush1.bf16.msra.mxu0 %v2604
        %2621 = vmatprep.subr.bf16.mxu0 0
        %2622 = vmatpush1.bf16.msra.mxu0 %v2603
        %2623 = vmatprep.subr.bf16.mxu0 0
        %2624 = vmatpush1.bf16.msra.mxu0 %v2602
        %2625 = vmatprep.subr.bf16.mxu0 0
        %2626 = vmatpush1.bf16.msra.mxu0 %v2601
        %2627 = vmatprep.subr.bf16.mxu0 0
        %2628 = vmatpush1.bf16.msra.mxu0 %v2600
        %2629 = vmatprep.subr.bf16.mxu0 0
        %2630 = vmatpush1.bf16.msra.mxu0 %v2599
        %2631 = vmatprep.subr.bf16.mxu0 0
        %2632 = vmatpush2.bf16.msra.mxu0 0
        %2633 = vmatprep.subr.bf16.mxu0 0
        %2634 = vmatpush2.bf16.msra.mxu0 0
        %2635 = vmatprep.subr.bf16.mxu0 0
        %2636 = vmatpush2.bf16.msra.mxu0 0
        %2637 = vmatprep.subr.bf16.mxu0 0
        %2638 = vmatpush2.bf16.msra.mxu0 0
        %2639 = vmatprep.subr.bf16.mxu0 0
        %2640 = vmatpush2.bf16.msra.mxu0 0
        %2641 = vmatprep.subr.bf16.mxu0 0
        %2642 = vmatpush2.bf16.msra.mxu0 0
        %2643 = vmatprep.subr.bf16.mxu0 0
        %2644 = vmatpush2.bf16.msra.mxu0 0
        %2645 = vmatprep.subr.bf16.mxu0 0
        %2646 = vmatpush2.bf16.msra.mxu0 0
        %2647 = vmatprep.mubr.bf16.mxu0 0
        %2648 = vmatmul.mubr.bf16.gmra.mxu0 %v2542
        %v2649 = vpop.f32.mrf.mxu0
        %v2650 = vadd.f32 %v2565, %v2649
        %v2651 = vpop.f32.mrf.mxu0
        %v2652 = vpop.f32.mrf.mxu0
        %v2653 = vadd.f32 %v2565, %v2652
        %v2654 = vpop.f32.mrf.mxu0
        %2655 = vmatprep.mubr.bf16.mxu0 0
        %2656 = vmatmul.mubr.bf16.gmra.mxu0 %v2543
        %v2657 = vpop.f32.mrf.mxu0
        %v2658 = vadd.f32 %v2565, %v2657
        %v2659 = vpop.f32.mrf.mxu0
        %v2660 = vpop.f32.mrf.mxu0
        %v2661 = vadd.f32 %v2565, %v2660
        %v2662 = vpop.f32.mrf.mxu0
        %2663 = vdwg.mxu0
        %v2664 = vadd.f32 %v2350, %v2650
        %v2665 = vadd.f32 %v2351, %v2653
        %v2666 = vadd.f32 %v2352, %v2658
        %v2667 = vadd.f32 %v2353, %v2661
        %v2668 = vld [vmem:[%s9] sm:$0x1]
        %v2669 = vld [vmem:[%s10] sm:$0x1]
        %v2670 = vsel %vm436, %v2664, 0.0
        %2671 = vadd.xlane.f32.xlu0 %v2670
        %v2672 = vpop.xlane.xlu0 %2671
        %v2673 = vsel %vm436, %v2665, 0.0
        %2674 = vadd.xlane.f32.xlu0 %v2673
        %v2675 = vpop.xlane.xlu0 %2674
        %v2676 = vsel %vm436, %v2666, 0.0
        %2677 = vadd.xlane.f32.xlu0 %v2676
        %v2678 = vpop.xlane.xlu0 %2677
        %v2679 = vsel %vm436, %v2667, 0.0
        %2680 = vadd.xlane.f32.xlu0 %v2679
        %v2681 = vpop.xlane.xlu0 %2680
        %v2682 = vmul.f32 %v2672, %v2293
        %v2683 = vmul.f32 %v2675, %v2293
        %v2684 = vmul.f32 %v2678, %v2293
        %v2685 = vmul.f32 %v2681, %v2293
        %v2686 = vsub.f32 %v2664, %v2682
        %v2687 = vsub.f32 %v2665, %v2683
        %v2688 = vsub.f32 %v2666, %v2684
        %v2689 = vsub.f32 %v2667, %v2685
        %v2690 = vmul.f32 %v2686, %v2686
        %v2691 = vmul.f32 %v2687, %v2687
        %v2692 = vmul.f32 %v2688, %v2688
        %v2693 = vmul.f32 %v2689, %v2689
        %v2694 = vsel %vm436, %v2690, 0.0
        %2695 = vadd.xlane.f32.xlu0 %v2694
        %v2696 = vpop.xlane.xlu0 %2695
        %v2697 = vsel %vm436, %v2691, 0.0
        %2698 = vadd.xlane.f32.xlu0 %v2697
        %v2699 = vpop.xlane.xlu0 %2698
        %v2700 = vsel %vm436, %v2692, 0.0
        %2701 = vadd.xlane.f32.xlu0 %v2700
        %v2702 = vpop.xlane.xlu0 %2701
        %v2703 = vsel %vm436, %v2693, 0.0
        %2704 = vadd.xlane.f32.xlu0 %v2703
        %v2705 = vpop.xlane.xlu0 %2704
        %v2706 = vmul.f32 %v2696, %v2293
        %v2707 = vmul.f32 %v2699, %v2293
        %v2708 = vmul.f32 %v2702, %v2293
        %v2709 = vmul.f32 %v2705, %v2293
        %v2710 = vadd.f32 %v2706, 1e-05
        %v2711 = vadd.f32 %v2707, 1e-05
        %v2712 = vadd.f32 %v2708, 1e-05
        %v2713 = vadd.f32 %v2709, 1e-05
        %v2714 = vrsqrt.pop %v2710
        %v2715 = vrsqrt.pop %v2711
        %v2716 = vrsqrt.pop %v2712
        %v2717 = vrsqrt.pop %v2713
        %v2718 = vmul.f32 %v2686, %v2714
        %v2719 = vmul.f32 %v2687, %v2715
        %v2720 = vmul.f32 %v2688, %v2716
        %v2721 = vmul.f32 %v2689, %v2717
        %v2723 = vlaneseq
        %v2724 = vshrl.u32 %v2723, 7
        %v2725 = vsub.s32 0, %v2724
        %v2726 = vrot.slane %v2668, %v2725
        %v2728 = vmul.f32 %v2718, %v2726
        %v2729 = vmul.f32 %v2719, %v2726
        %v2730 = vmul.f32 %v2720, %v2726
        %v2731 = vmul.f32 %v2721, %v2726
        %v2733 = vlaneseq
        %v2734 = vshrl.u32 %v2733, 7
        %v2735 = vsub.s32 0, %v2734
        %v2736 = vrot.slane %v2669, %v2735
        %v2738 = vadd.f32 %v2728, %v2736
        %v2739 = vadd.f32 %v2729, %v2736
        %v2740 = vadd.f32 %v2730, %v2736
        %v2741 = vadd.f32 %v2731, %v2736
        %2742 = vst.msk [vmem:[%s397] sm:$0xff] %vm436, %v2738
        %2743 = vst.msk [vmem:[%s397 + $0x8] sm:$0xff] %vm436, %v2739
        %2744 = vst.msk [vmem:[%s397 + $0x10] sm:$0xff] %vm436, %v2740
        %2745 = vst.msk [vmem:[%s397 + $0x18] sm:$0xff] %vm436, %v2741
        %s2746 = sand.u32 %s270, 1
        %s2747 = scalar_lea.sflag [#allocation5], %s2746
        %s2748 = sand.u32 %s270, 1
        %s2749 = smul.addr %s2748, 32
        %s2750 = scalar_lea.vmem [#allocation6], %s2749
        // Predicated region
        $region76: #{tpu_custom_call.1} parent=63 // pred_check
          %p2751 = pneg %p280
        $region77: #{tpu_custom_call.1} parent=63 // pred_check_branch
          %2753 = sbr.rel (%p2751) target = $region79
        $region78: #{tpu_custom_call.1} parent=63 // pred_region
          %s2754 = smul.u32 2, %s26
          %s2756 = ssub.s32 512, 512
          %2757 = vsyncadd %s2747, %s2756
          %s2758 = smul.addr %s2754, 2
          %s2759 = smul.addr %s2758, 128
          %s2760 = scalar_lea.hbm %s11, %s2759
          %s2761 = sshll.u32 %s2750, 4
          %s2762 = int_to_ptr.vmem [resolvable:$true] %s2761
          %2767 = dma.vmem_to_hbm [thread:$0]  %s2762, 512, %s2760, %s2747, 128, 128, 8
        $region79: #{tpu_custom_call.1} parent=63 // pred_fallthru
          _
      $region64: #{tpu_custom_call.1} parent=5 // pred_fallthru
        _
      %p2768 = scmp.le.s32.totalorder 2, %s21
      // Predicated region
      $region80: #{tpu_custom_call.1} parent=5 // pred_check
        %p2769 = pneg %p2768
      $region81: #{tpu_custom_call.1} parent=5 // pred_check_branch
        %2771 = sbr.rel (%p2769) target = $region83
      $region82: #{tpu_custom_call.1} parent=5 // pred_region
        %s2772 = ssub.s32 %s21, 2
        // Predicated region
        $region84: #{tpu_custom_call.1} parent=82 // pred_check
          %p2773 = pneg %p286
        $region85: #{tpu_custom_call.1} parent=82 // pred_check_branch
          %2775 = sbr.rel (%p2773) target = $region87
        $region86: #{tpu_custom_call.1} parent=82 // pred_region
          %s2776 = sand.u32 %s271, 1
          %s2777 = scalar_lea.sflag [#allocation5], %s2776
          %s2778 = sand.u32 %s271, 1
          %s2779 = smul.addr %s2778, 32
          %s2780 = scalar_lea.vmem [#allocation6], %s2779
          %2781 = dma.done %s2777, 512
        $region87: #{tpu_custom_call.1} parent=82 // pred_fallthru
          _
      $region83: #{tpu_custom_call.1} parent=5 // pred_fallthru
        _
    $region6: #{tpu_custom_call.1} parent=1 // loop_footer
      %s25 = sadd.s32 1, %s21
    $region7: #{tpu_custom_call.1} parent=1 // loop_footer_branch
      %20 = sbr.rel target = $region3
    $region8: #{tpu_custom_call.1} parent=1 // loop_exit
      _
    %2782 = vsyncpa [#allocation4], 1
    %s2783 = scalar_lea.sflag [#allocation4], 1
    %2784 = vsyncpa %s2783, 1
    %2785 = vsyncpa [#allocation5], 1
    %s2786 = scalar_lea.sflag [#allocation5], 1
    %2787 = vsyncpa %s2786, 1

// kernel: tpu_custom_call.1
$region0: #{tpu_custom_call.1}
  #allocation0 [shape = 'u32[]', space=smem, size = 0x4, offset = 0x4, fixed_abs, tag = 'smem constant byte address 0x4 - core index']
  #allocation1 [shape = 'u32[144,128]{1,0:T(1,128)}', space=vmem, size = 0x12000, scoped, tag = 'internal scratch']
  #allocation2 [shape = 'f32[32,32]{1,0:T(8,128)}', space=vmem, size = 0x4000, scoped, tag = 'scratch operand']
  %s0 = inlined_call_operand.vmem [shape: f32[4,16,32], index: 0, kind: input, shape index: {}]
  %s1 = inlined_call_operand.vmem [shape: bf16[32,96], index: 1, kind: input, shape index: {}]
  %s2 = inlined_call_operand.vmem [shape: f32[1,96], index: 2, kind: input, shape index: {}]
  %s3 = inlined_call_operand.hbm [shape: bf16[32,128], index: 3, kind: input, shape index: {}]
  %s4 = inlined_call_operand.vmem [shape: f32[1,128], index: 4, kind: input, shape index: {}]
  %s5 = inlined_call_operand.vmem [shape: bf16[128,32], index: 5, kind: input, shape index: {}]
  %s6 = inlined_call_operand.vmem [shape: f32[1,32], index: 6, kind: input, shape index: {}]
  %s7 = inlined_call_operand.vmem [shape: f32[1,32], index: 7, kind: input, shape index: {}]
  %s8 = inlined_call_operand.vmem [shape: f32[1,32], index: 8, kind: input, shape index: {}]
  %s9 = inlined_call_operand.vmem [shape: f32[1,32], index: 9, kind: input, shape index: {}]
  %s10 = inlined_call_operand.vmem [shape: f32[1,32], index: 10, kind: input, shape index: {}]
  %s11 = inlined_call_operand.hbm [shape: f32[4,16,32], index: 11, kind: output, shape index: {}]
  %s12 = sld [smem:[#allocation0]]
  $region88: #{tpu_custom_call.1} parent=0
    _
  %s14 = ssub.s32 1, %s12
  %s15 = scalar_select 0, %s14, %s12
  $region1: #{tpu_custom_call.1} parent=0
    #allocation3 [shape = 'u8[8192]{0}', space=vmem, size = 0x2000, scoped, tag = 'input window, operand 3, single buffered']
    #allocation4 [shape = 's32[2]{0}', space=sflag, size = 0x8, scoped, tag = 'scoped memory for tpu_custom_call.1']
    #allocation5 [shape = 's32[2]{0}', space=sflag, size = 0x8, scoped, tag = 'scoped memory for tpu_custom_call.1']
    #allocation6 [shape = 'u8[32768]{0}', space=vmem, size = 0x8000, scoped, tag = 'output window, operand 0']
    %16 = vsyncpa [#allocation4], 0
    %17 = vsyncpa [#allocation5], 0
    %s18 = scalar_lea.sflag [#allocation5], 1
    %19 = vsyncpa %s18, 0
    loop: start=0, step=1, limit=4
    $region2: #{tpu_custom_call.1} parent=1 // loop_pre_header
      _
    $region3: #{tpu_custom_call.1} parent=1 // loop_header
      %s21 = sphi 0, %s25
      %p22 = scmp.ge.s32.totalorder %s21, 4
      %s31 = sphi 0, %s33
      %s34 = sphi 0, %s31
      %s35 = sphi 0, %s34
      %s51 = sphi 0, %s35
      %s55 = sphi 0, %s55
      %s57 = sphi 0, %s55
      %s58 = sphi 0, %s57
      %s72 = sphi 0, %s58
      %s76 = sphi 0, %s76
      %s78 = sphi 0, %s76
      %s79 = sphi 0, %s78
      %s93 = sphi 0, %s79
      %s97 = sphi 0, %s97
      %s99 = sphi 0, %s97
      %s100 = sphi 0, %s99
      %s114 = sphi 0, %s100
      %s118 = sphi 0, %s118
      %s120 = sphi 0, %s118
      %s121 = sphi 0, %s120
      %s135 = sphi 0, %s121
      %s139 = sphi 0, %s139
      %s141 = sphi 0, %s139
      %s142 = sphi 0, %s141
      %s156 = sphi 0, %s142
      %s160 = sphi 0, %s160
      %s162 = sphi 0, %s160
      %s163 = sphi 0, %s162
      %s177 = sphi 0, %s163
      %s181 = sphi 0, %s181
      %s183 = sphi 0, %s181
      %s184 = sphi 0, %s183
      %s198 = sphi 0, %s184
      %s202 = sphi 0, %s202
      %s204 = sphi 0, %s202
      %s205 = sphi 0, %s204
      %s219 = sphi 0, %s205
      %s223 = sphi 0, %s223
      %s225 = sphi 0, %s223
      %s226 = sphi 0, %s225
      %s240 = sphi 0, %s226
      %s244 = sphi 0, %s244
      %s246 = sphi 0, %s244
      %s247 = sphi 0, %s246
      %s261 = sphi 0, %s247
      %s267 = sphi 0, %s269
      %s270 = sphi 0, %s267
      %s271 = sphi 0, %s270
      %s287 = sphi 0, %s271
    $region4: #{tpu_custom_call.1} parent=1 // loop_header_branch
      %24 = sbr.rel (%p22) target = $region8
    $region5: #{tpu_custom_call.1} parent=1 // loop_body
      %s26 = ssub.s32 %s21, 1
      %s27 = ssub.s32 %s21, 2
      %s28 = sadd.s32 %s21, 1
      %s29 = ssub.s32 %s21, %s28
      %p30 = scmp.eq.s32.totalorder %s29, 0
      %s32 = sadd.s32 %s31, 1
      %s33 = scalar_select %p30, %s31, %s32
      %p36 = pneg %p30
      %p37 = scmp.eq.s32.totalorder %s21, 1
      %p38 = por %p36, %p37
      %p39 = scmp.ne.s32.totalorder %s31, %s34
      %p40 = scmp.eq.s32.totalorder %s21, 0
      %p41 = por %p39, %p40
      %p42 = scmp.ne.s32.totalorder %s31, %s34
      %p43 = scmp.eq.s32.totalorder %s26, 1
      %p44 = por %p42, %p43
      %p45 = scmp.ne.s32.totalorder %s34, %s35
      %p46 = scmp.eq.s32.totalorder %s26, 0
      %p47 = por %p45, %p46
      %p48 = scmp.ne.s32.totalorder %s34, %s35
      %p49 = scmp.eq.s32.totalorder %s27, 1
      %p50 = por %p48, %p49
      %p52 = scmp.ne.s32.totalorder %s35, %s51
      %p53 = scmp.eq.s32.totalorder %s27, 0
      %p54 = por %p52, %p53
      %s56 = sadd.s32 %s55, 1
      %p59 = scmp.eq.s32.totalorder %s21, 1
      %p60 = scmp.ne.s32.totalorder %s55, %s57
      %p61 = scmp.eq.s32.totalorder %s21, 0
      %p62 = por %p60, %p61
      %p63 = scmp.ne.s32.totalorder %s55, %s57
      %p64 = scmp.eq.s32.totalorder %s26, 1
      %p65 = por %p63, %p64
      %p66 = scmp.ne.s32.totalorder %s57, %s58
      %p67 = scmp.eq.s32.totalorder %s26, 0
      %p68 = por %p66, %p67
      %p69 = scmp.ne.s32.totalorder %s57, %s58
      %p70 = scmp.eq.s32.totalorder %s27, 1
      %p71 = por %p69, %p70
      %p73 = scmp.ne.s32.totalorder %s58, %s72
      %p74 = scmp.eq.s32.totalorder %s27, 0
      %p75 = por %p73, %p74
      %s77 = sadd.s32 %s76, 1
      %p80 = scmp.eq.s32.totalorder %s21, 1
      %p81 = scmp.ne.s32.totalorder %s76, %s78
      %p82 = scmp.eq.s32.totalorder %s21, 0
      %p83 = por %p81, %p82
      %p84 = scmp.ne.s32.totalorder %s76, %s78
      %p85 = scmp.eq.s32.totalorder %s26, 1
      %p86 = por %p84, %p85
      %p87 = scmp.ne.s32.totalorder %s78, %s79
      %p88 = scmp.eq.s32.totalorder %s26, 0
      %p89 = por %p87, %p88
      %p90 = scmp.ne.s32.totalorder %s78, %s79
      %p91 = scmp.eq.s32.totalorder %s27, 1
      %p92 = por %p90, %p91
      %p94 = scmp.ne.s32.totalorder %s79, %s93
      %p95 = scmp.eq.s32.totalorder %s27, 0
      %p96 = por %p94, %p95
      %s98 = sadd.s32 %s97, 1
      %p101 = scmp.eq.s32.totalorder %s21, 1
      %p102 = scmp.ne.s32.totalorder %s97, %s99
      %p103 = scmp.eq.s32.totalorder %s21, 0
      %p104 = por %p102, %p103
      %p105 = scmp.ne.s32.totalorder %s97, %s99
      %p106 = scmp.eq.s32.totalorder %s26, 1
      %p107 = por %p105, %p106
      %p108 = scmp.ne.s32.totalorder %s99, %s100
      %p109 = scmp.eq.s32.totalorder %s26, 0
      %p110 = por %p108, %p109
      %p111 = scmp.ne.s32.totalorder %s99, %s100
      %p112 = scmp.eq.s32.totalorder %s27, 1
      %p113 = por %p111, %p112
      %p115 = scmp.ne.s32.totalorder %s100, %s114
      %p116 = scmp.eq.s32.totalorder %s27, 0
      %p117 = por %p115, %p116
      %s119 = sadd.s32 %s118, 1
      %p122 = scmp.eq.s32.totalorder %s21, 1
      %p123 = scmp.ne.s32.totalorder %s118, %s120
      %p124 = scmp.eq.s32.totalorder %s21, 0
      %p125 = por %p123, %p124
      %p126 = scmp.ne.s32.totalorder %s118, %s120
      %p127 = scmp.eq.s32.totalorder %s26, 1
      %p128 = por %p126, %p127
      %p129 = scmp.ne.s32.totalorder %s120, %s121
      %p130 = scmp.eq.s32.totalorder %s26, 0
      %p131 = por %p129, %p130
      %p132 = scmp.ne.s32.totalorder %s120, %s121
      %p133 = scmp.eq.s32.totalorder %s27, 1
      %p134 = por %p132, %p133
      %p136 = scmp.ne.s32.totalorder %s121, %s135
      %p137 = scmp.eq.s32.totalorder %s27, 0
      %p138 = por %p136, %p137
      %s140 = sadd.s32 %s139, 1
      %p143 = scmp.eq.s32.totalorder %s21, 1
      %p144 = scmp.ne.s32.totalorder %s139, %s141
      %p145 = scmp.eq.s32.totalorder %s21, 0
      %p146 = por %p144, %p145
      %p147 = scmp.ne.s32.totalorder %s139, %s141
      %p148 = scmp.eq.s32.totalorder %s26, 1
      %p149 = por %p147, %p148
      %p150 = scmp.ne.s32.totalorder %s141, %s142
      %p151 = scmp.eq.s32.totalorder %s26, 0
      %p152 = por %p150, %p151
      %p153 = scmp.ne.s32.totalorder %s141, %s142
      %p154 = scmp.eq.s32.totalorder %s27, 1
      %p155 = por %p153, %p154
      %p157 = scmp.ne.s32.totalorder %s142, %s156
      %p158 = scmp.eq.s32.totalorder %s27, 0
      %p159 = por %p157, %p158
      %s161 = sadd.s32 %s160, 1
      %p164 = scmp.eq.s32.totalorder %s21, 1
      %p165 = scmp.ne.s32.totalorder %s160, %s162
      %p166 = scmp.eq.s32.totalorder %s21, 0
      %p167 = por %p165, %p166
      %p168 = scmp.ne.s32.totalorder %s160, %s162
      %p169 = scmp.eq.s32.totalorder %s26, 1
      %p170 = por %p168, %p169
      %p171 = scmp.ne.s32.totalorder %s162, %s163
      %p172 = scmp.eq.s32.totalorder %s26, 0
      %p173 = por %p171, %p172
      %p174 = scmp.ne.s32.totalorder %s162, %s163
      %p175 = scmp.eq.s32.totalorder %s27, 1
      %p176 = por %p174, %p175
      %p178 = scmp.ne.s32.totalorder %s163, %s177
      %p179 = scmp.eq.s32.totalorder %s27, 0
      %p180 = por %p178, %p179
      %s182 = sadd.s32 %s181, 1
      %p185 = scmp.eq.s32.totalorder %s21, 1
      %p186 = scmp.ne.s32.totalorder %s181, %s183
      %p187 = scmp.eq.s32.totalorder %s21, 0
      %p188 = por %p186, %p187
      %p189 = scmp.ne.s32.totalorder %s181, %s183
      %p190 = scmp.eq.s32.totalorder %s26, 1
      %p191 = por %p189, %p190
      %p192 = scmp.ne.s32.totalorder %s183, %s184
      %p193 = scmp.eq.s32.totalorder %s26, 0
      %p194 = por %p192, %p193
      %p195 = scmp.ne.s32.totalorder %s183, %s184
      %p196 = scmp.eq.s32.totalorder %s27, 1
      %p197 = por %p195, %p196
      %p199 = scmp.ne.s32.totalorder %s184, %s198
      %p200 = scmp.eq.s32.totalorder %s27, 0
      %p201 = por %p199, %p200
      %s203 = sadd.s32 %s202, 1
      %p206 = scmp.eq.s32.totalorder %s21, 1
      %p207 = scmp.ne.s32.totalorder %s202, %s204
      %p208 = scmp.eq.s32.totalorder %s21, 0
      %p209 = por %p207, %p208
      %p210 = scmp.ne.s32.totalorder %s202, %s204
      %p211 = scmp.eq.s32.totalorder %s26, 1
      %p212 = por %p210, %p211
      %p213 = scmp.ne.s32.totalorder %s204, %s205
      %p214 = scmp.eq.s32.totalorder %s26, 0
      %p215 = por %p213, %p214
      %p216 = scmp.ne.s32.totalorder %s204, %s205
      %p217 = scmp.eq.s32.totalorder %s27, 1
      %p218 = por %p216, %p217
      %p220 = scmp.ne.s32.totalorder %s205, %s219
      %p221 = scmp.eq.s32.totalorder %s27, 0
      %p222 = por %p220, %p221
      %s224 = sadd.s32 %s223, 1
      %p227 = scmp.eq.s32.totalorder %s21, 1
      %p228 = scmp.ne.s32.totalorder %s223, %s225
      %p229 = scmp.eq.s32.totalorder %s21, 0
      %p230 = por %p228, %p229
      %p231 = scmp.ne.s32.totalorder %s223, %s225
      %p232 = scmp.eq.s32.totalorder %s26, 1
      %p233 = por %p231, %p232
      %p234 = scmp.ne.s32.totalorder %s225, %s226
      %p235 = scmp.eq.s32.totalorder %s26, 0
      %p236 = por %p234, %p235
      %p237 = scmp.ne.s32.totalorder %s225, %s226
      %p238 = scmp.eq.s32.totalorder %s27, 1
      %p239 = por %p237, %p238
      %p241 = scmp.ne.s32.totalorder %s226, %s240
      %p242 = scmp.eq.s32.totalorder %s27, 0
      %p243 = por %p241, %p242
      %s245 = sadd.s32 %s244, 1
      %p248 = scmp.eq.s32.totalorder %s21, 1
      %p249 = scmp.ne.s32.totalorder %s244, %s246
      %p250 = scmp.eq.s32.totalorder %s21, 0
      %p251 = por %p249, %p250
      %p252 = scmp.ne.s32.totalorder %s244, %s246
      %p253 = scmp.eq.s32.totalorder %s26, 1
      %p254 = por %p252, %p253
      %p255 = scmp.ne.s32.totalorder %s246, %s247
      %p256 = scmp.eq.s32.totalorder %s26, 0
      %p257 = por %p255, %p256
      %p258 = scmp.ne.s32.totalorder %s246, %s247
      %p259 = scmp.eq.s32.totalorder %s27, 1
      %p260 = por %p258, %p259
      %p262 = scmp.ne.s32.totalorder %s247, %s261
      %p263 = scmp.eq.s32.totalorder %s27, 0
      %p264 = por %p262, %p263
      %s265 = ssub.s32 %s21, %s28
      %p266 = scmp.eq.s32.totalorder %s265, 0
      %s268 = sadd.s32 %s267, 1
      %s269 = scalar_select %p266, %s267, %s268
      %p272 = pneg %p266
      %p273 = scmp.eq.s32.totalorder %s21, 1
      %p274 = por %p272, %p273
      %p275 = scmp.ne.s32.totalorder %s267, %s270
      %p276 = scmp.eq.s32.totalorder %s21, 0
      %p277 = por %p275, %p276
      %p278 = scmp.ne.s32.totalorder %s267, %s270
      %p279 = scmp.eq.s32.totalorder %s26, 1
      %p280 = por %p278, %p279
      %p281 = scmp.ne.s32.totalorder %s270, %s271
      %p282 = scmp.eq.s32.totalorder %s26, 0
      %p283 = por %p281, %p282
      %p284 = scmp.ne.s32.totalorder %s270, %s271
      %p285 = scmp.eq.s32.totalorder %s27, 1
      %p286 = por %p284, %p285
      %p288 = scmp.ne.s32.totalorder %s271, %s287
      %p289 = scmp.eq.s32.totalorder %s27, 0
      %p290 = por %p288, %p289
      %p291 = scmp.le.s32.totalorder 1, %s21
      %p292 = scmp.lt.s32.totalorder %s21, 3
      %p293 = pnand %p291, %p292
      %p294 = pneg %p293
      // Predicated region
      $region9: #{tpu_custom_call.1} parent=5 // pred_check
        _
      $region10: #{tpu_custom_call.1} parent=5 // pred_check_branch
        %296 = sbr.rel (%p293) target = $region12
      $region11: #{tpu_custom_call.1} parent=5 // pred_region
        %s297 = ssub.s32 %s21, 1
        // Predicated region
        $region13: #{tpu_custom_call.1} parent=11 // pred_check
          %p298 = pneg %p68
        $region14: #{tpu_custom_call.1} parent=11 // pred_check_branch
          %300 = sbr.rel (%p298) target = $region16
        $region15: #{tpu_custom_call.1} parent=11 // pred_region
          _
        $region16: #{tpu_custom_call.1} parent=11 // pred_fallthru
          _
        // Predicated region
        $region17: #{tpu_custom_call.1} parent=11 // pred_check
          %p301 = pneg %p89
        $region18: #{tpu_custom_call.1} parent=11 // pred_check_branch
          %303 = sbr.rel (%p301) target = $region20
        $region19: #{tpu_custom_call.1} parent=11 // pred_region
          _
        $region20: #{tpu_custom_call.1} parent=11 // pred_fallthru
          _
        // Predicated region
        $region21: #{tpu_custom_call.1} parent=11 // pred_check
          %p304 = pneg %p110
        $region22: #{tpu_custom_call.1} parent=11 // pred_check_branch
          %306 = sbr.rel (%p304) target = $region24
        $region23: #{tpu_custom_call.1} parent=11 // pred_region
          %s308 = ssub.s32 256, 256
          %309 = vsyncadd [#allocation4], %s308
          %s310 = sshll.u32 [#allocation3], 4
          %s311 = int_to_ptr.vmem [resolvable:$true] %s310
          %316 = dma.hbm_to_vmem [thread:$0]  %s3, 256, %s311, [#allocation4], 64, 64, 4
        $region24: #{tpu_custom_call.1} parent=11 // pred_fallthru
          _
        // Predicated region
        $region25: #{tpu_custom_call.1} parent=11 // pred_check
          %p317 = pneg %p131
        $region26: #{tpu_custom_call.1} parent=11 // pred_check_branch
          %319 = sbr.rel (%p317) target = $region28
        $region27: #{tpu_custom_call.1} parent=11 // pred_region
          _
        $region28: #{tpu_custom_call.1} parent=11 // pred_fallthru
          _
        // Predicated region
        $region29: #{tpu_custom_call.1} parent=11 // pred_check
          %p320 = pneg %p152
        $region30: #{tpu_custom_call.1} parent=11 // pred_check_branch
          %322 = sbr.rel (%p320) target = $region32
        $region31: #{tpu_custom_call.1} parent=11 // pred_region
          _
        $region32: #{tpu_custom_call.1} parent=11 // pred_fallthru
          _
        // Predicated region
        $region33: #{tpu_custom_call.1} parent=11 // pred_check
          %p323 = pneg %p173
        $region34: #{tpu_custom_call.1} parent=11 // pred_check_branch
          %325 = sbr.rel (%p323) target = $region36
        $region35: #{tpu_custom_call.1} parent=11 // pred_region
          _
        $region36: #{tpu_custom_call.1} parent=11 // pred_fallthru
          _
        // Predicated region
        $region37: #{tpu_custom_call.1} parent=11 // pred_check
          %p326 = pneg %p194
        $region38: #{tpu_custom_call.1} parent=11 // pred_check_branch
          %328 = sbr.rel (%p326) target = $region40
        $region39: #{tpu_custom_call.1} parent=11 // pred_region
          _
        $region40: #{tpu_custom_call.1} parent=11 // pred_fallthru
          _
        // Predicated region
        $region41: #{tpu_custom_call.1} parent=11 // pred_check
          %p329 = pneg %p215
        $region42: #{tpu_custom_call.1} parent=11 // pred_check_branch
          %331 = sbr.rel (%p329) target = $region44
        $region43: #{tpu_custom_call.1} parent=11 // pred_region
          _
        $region44: #{tpu_custom_call.1} parent=11 // pred_fallthru
          _
        // Predicated region
        $region45: #{tpu_custom_call.1} parent=11 // pred_check
          %p332 = pneg %p236
        $region46: #{tpu_custom_call.1} parent=11 // pred_check_branch
          %334 = sbr.rel (%p332) target = $region48
        $region47: #{tpu_custom_call.1} parent=11 // pred_region
          _
        $region48: #{tpu_custom_call.1} parent=11 // pred_fallthru
          _
        // Predicated region
        $region49: #{tpu_custom_call.1} parent=11 // pred_check
          %p335 = pneg %p257
        $region50: #{tpu_custom_call.1} parent=11 // pred_check_branch
          %337 = sbr.rel (%p335) target = $region52
        $region51: #{tpu_custom_call.1} parent=11 // pred_region
          _
        $region52: #{tpu_custom_call.1} parent=11 // pred_fallthru
          _
      $region12: #{tpu_custom_call.1} parent=5 // pred_fallthru
        _
      %p338 = scmp.lt.s32.totalorder %s21, 2
      // Predicated region
      $region53: #{tpu_custom_call.1} parent=5 // pred_check
        %p339 = pneg %p338
      $region54: #{tpu_custom_call.1} parent=5 // pred_check_branch
        %341 = sbr.rel (%p339) target = $region56
      $region55: #{tpu_custom_call.1} parent=5 // pred_region
        // Predicated region
        $region57: #{tpu_custom_call.1} parent=55 // pred_check
          %p342 = pneg %p41
        $region58: #{tpu_custom_call.1} parent=55 // pred_check_branch
          %344 = sbr.rel (%p342) target = $region60
        $region59: #{tpu_custom_call.1} parent=55 // pred_region
          %s345 = smul.u32 2, %s21
          %p346 = scmp.lt.s32.totalorder %s345, 3
          %s347 = scalar_select %p346, %s345, 3
          %s348 = smul.addr %s347, 2
          %s349 = smul.addr %s348, 8
          %s350 = scalar_lea.vmem %s0, %s349
          %s351 = smul.u32 2, %s21
        $region60: #{tpu_custom_call.1} parent=55 // pred_fallthru
          _
      $region56: #{tpu_custom_call.1} parent=5 // pred_fallthru
        _
      %p352 = scmp.le.s32.totalorder 1, %s21
      %p353 = scmp.lt.s32.totalorder %s21, 3
      %p354 = pnand %p352, %p353
      %p355 = pneg %p354
      // Predicated region
      $region61: #{tpu_custom_call.1} parent=5 // pred_check
        _
      $region62: #{tpu_custom_call.1} parent=5 // pred_check_branch
        %357 = sbr.rel (%p354) target = $region64
      $region63: #{tpu_custom_call.1} parent=5 // pred_region
        %s358 = ssub.s32 %s21, 1
        // Predicated region
        $region65: #{tpu_custom_call.1} parent=63 // pred_check
          %p359 = pneg %p110
        $region66: #{tpu_custom_call.1} parent=63 // pred_check_branch
          %361 = sbr.rel (%p359) target = $region68
        $region67: #{tpu_custom_call.1} parent=63 // pred_region
          %362 = dma.done [#allocation4], 256
        $region68: #{tpu_custom_call.1} parent=63 // pred_fallthru
          _
        %s363 = smul.u32 2, %s26
        %p364 = scmp.lt.s32.totalorder %s363, 3
        %s365 = scalar_select %p364, %s363, 3
        %s366 = smul.addr %s365, 2
        %s367 = smul.addr %s366, 8
        %s368 = scalar_lea.vmem %s0, %s367
        %p369 = pneg %p47
        %p370 = pneg %p44
        %p371 = pneg %p68
        %p372 = pneg %p65
        %p373 = pneg %p89
        %p374 = pneg %p86
        %p375 = pneg %p110
        %p376 = pneg %p107
        %p377 = pneg %p131
        %p378 = pneg %p128
        %p379 = pneg %p152
        %p380 = pneg %p149
        %p381 = pneg %p173
        %p382 = pneg %p170
        %p383 = pneg %p194
        %p384 = pneg %p191
        %p385 = pneg %p215
        %p386 = pneg %p212
        %p387 = pneg %p236
        %p388 = pneg %p233
        %p389 = pneg %p257
        %p390 = pneg %p254
        %p391 = pneg %p283
        %p392 = pneg %p280
        %s393 = sand.u32 %s270, 1
        %s394 = scalar_lea.sflag [#allocation5], %s393
        %s395 = sand.u32 %s270, 1
        %s396 = smul.addr %s395, 32
        %s397 = scalar_lea.vmem [#allocation6], %s396
        %s398 = smul.u32 2, %s26
        %p399 = scmp.lt.s32.totalorder %s398, 3
        %s400 = scalar_select %p399, %s398, 3
        %s401 = smul.addr %s400, 2
        %s402 = smul.addr %s401, 8
        %s403 = scalar_lea.vmem %s0, %s402
        %s404 = smul.u32 2, %s26
        %s405 = smul.u32 2, %s26
        %v407 = vld [vmem:[%s403] sm:$0xff]
        %v408 = vld [vmem:[%s403 + $0x8] sm:$0xff]
        %v409 = vld [vmem:[%s403 + $0x10] sm:$0xff]
        %v410 = vld [vmem:[%s403 + $0x18] sm:$0xff]
        %v411 = vpack.c.bf16 %v408, %v407
        %v412 = vpack.c.bf16 %v410, %v409
        %v413 = vld [vmem:[%s1] sm:$0xf]
        %v414 = vld [vmem:[%s1 + $0x4] sm:$0xf]
        %v415 = vld [vmem:[%s1 + $0x8] sm:$0xf]
        %v416 = vld [vmem:[%s1 + $0xc] sm:$0xf]
        %v417 = vld [vmem:[%s2] sm:$0x1]
        %v419 = vlaneseq
        %v420 = vshrl.u32 %v419, 7
        %v421 = vsub.s32 0, %v420
        %v422 = vrot.slane %v417, %v421
        %v428 = vunpack.c.l.b16 %v413
        %v429 = vunpack.c.l.b16 %v414
        %v430 = vunpack.c.l.b16 %v415
        %v431 = vunpack.c.l.b16 %v416
        %v432 = vpack.c.b16 %v429, %v428
        %v433 = vpack.c.b16 %v431, %v430
        %vm436 = vcmask 261120
        %v438 = vsel %vm436, %v411, 0
        %v441 = vsel %vm436, %v412, 0
        %443 = vmatprep.subr.bf16.mxu0 0
        %444 = vmatpush1.bf16.msra.mxu0 0
        %445 = vmatprep.subr.bf16.mxu0 0
        %446 = vmatpush1.bf16.msra.mxu0 0
        %447 = vmatprep.subr.bf16.mxu0 0
        %448 = vmatpush1.bf16.msra.mxu0 0
        %449 = vmatprep.subr.bf16.mxu0 0
        %450 = vmatpush1.bf16.msra.mxu0 0
        %451 = vmatprep.subr.bf16.mxu0 0
        %452 = vmatpush1.bf16.msra.mxu0 0
        %453 = vmatprep.subr.bf16.mxu0 0
        %454 = vmatpush1.bf16.msra.mxu0 0
        %455 = vmatprep.subr.bf16.mxu0 0
        %456 = vmatpush1.bf16.msra.mxu0 %v433
        %457 = vmatprep.subr.bf16.mxu0 0
        %458 = vmatpush1.bf16.msra.mxu0 %v432
        %459 = vmatprep.subr.bf16.mxu0 0
        %460 = vmatpush2.bf16.msra.mxu0 0
        %461 = vmatprep.subr.bf16.mxu0 0
        %462 = vmatpush2.bf16.msra.mxu0 0
        %463 = vmatprep.subr.bf16.mxu0 0
        %464 = vmatpush2.bf16.msra.mxu0 0
        %465 = vmatprep.subr.bf16.mxu0 0
        %466 = vmatpush2.bf16.msra.mxu0 0
        %467 = vmatprep.subr.bf16.mxu0 0
        %468 = vmatpush2.bf16.msra.mxu0 0
        %469 = vmatprep.subr.bf16.mxu0 0
        %470 = vmatpush2.bf16.msra.mxu0 0
        %471 = vmatprep.subr.bf16.mxu0 0
        %472 = vmatpush2.bf16.msra.mxu0 0
        %473 = vmatprep.subr.bf16.mxu0 0
        %474 = vmatpush2.bf16.msra.mxu0 0
        %475 = vmatprep.mubr.bf16.mxu0 0
        %476 = vmatmul.mubr.bf16.gmra.mxu0 %v438
        %v477 = vpop.f32.mrf.mxu0
        %v478 = vadd.f32 %v422, %v477
        %v479 = vpop.f32.mrf.mxu0
        %v480 = vpop.f32.mrf.mxu0
        %v481 = vadd.f32 %v422, %v480
        %v482 = vpop.f32.mrf.mxu0
        %483 = vmatprep.mubr.bf16.mxu0 0
        %484 = vmatmul.mubr.bf16.gmra.mxu0 %v441
        %v485 = vpop.f32.mrf.mxu0
        %v486 = vadd.f32 %v422, %v485
        %v487 = vpop.f32.mrf.mxu0
        %v488 = vpop.f32.mrf.mxu0
        %v489 = vadd.f32 %v422, %v488
        %v490 = vpop.f32.mrf.mxu0
        %491 = vdwg.mxu0
        %v492 = vpack.c.bf16 %v481, %v478
        %v493 = vpack.c.bf16 %v489, %v486
        %495 = vrot.lane.b32.xlu0 %v492, 96
        %v496 = vpop.permute.xlu0 %495
        %vm497 = vcmask 64512
        %v499 = vsel %vm497, %v492, 0
        %v502 = vsel %vm497, %v496, 0
        %504 = vmatprep.subr.bf16.mxu0 0
        %505 = vmatpush1.bf16.xpose.msra.mxu0 0
        %506 = vmatprep.subr.bf16.mxu0 0
        %507 = vmatpush1.bf16.xpose.msra.mxu0 0
        %508 = vmatprep.subr.bf16.mxu0 0
        %509 = vmatpush1.bf16.xpose.msra.mxu0 0
        %510 = vmatprep.subr.bf16.mxu0 0
        %511 = vmatpush1.bf16.xpose.msra.mxu0 0
        %512 = vmatprep.subr.bf16.mxu0 0
        %513 = vmatpush1.bf16.xpose.msra.mxu0 0
        %514 = vmatprep.subr.bf16.mxu0 0
        %515 = vmatpush1.bf16.xpose.msra.mxu0 0
        %516 = vmatprep.subr.bf16.mxu0 0
        %517 = vmatpush1.bf16.xpose.msra.mxu0 0
        %518 = vmatprep.subr.bf16.mxu0 0
        %519 = vmatpush1.bf16.xpose.msra.mxu0 %v502
        %520 = vmatprep.subr.bf16.mxu0 0
        %521 = vmatpush2.bf16.xpose.msra.mxu0 0
        %522 = vmatprep.subr.bf16.mxu0 0
        %523 = vmatpush2.bf16.xpose.msra.mxu0 0
        %524 = vmatprep.subr.bf16.mxu0 0
        %525 = vmatpush2.bf16.xpose.msra.mxu0 0
        %526 = vmatprep.subr.bf16.mxu0 0
        %527 = vmatpush2.bf16.xpose.msra.mxu0 0
        %528 = vmatprep.subr.bf16.mxu0 0
        %529 = vmatpush2.bf16.xpose.msra.mxu0 0
        %530 = vmatprep.subr.bf16.mxu0 0
        %531 = vmatpush2.bf16.xpose.msra.mxu0 0
        %532 = vmatprep.subr.bf16.mxu0 0
        %533 = vmatpush2.bf16.xpose.msra.mxu0 0
        %534 = vmatprep.subr.bf16.mxu0 0
        %535 = vmatpush2.bf16.xpose.msra.mxu0 0
        %536 = vmatprep.mubr.bf16.mxu0 0
        %537 = vmatmul.mubr.bf16.gmra.mxu0 %v499
        %v538 = vpop.f32.mrf.mxu0
        %v539 = vadd.f32 0.0, %v538
        %v540 = vpop.f32.mrf.mxu0
        %v541 = vpop.f32.mrf.mxu0
        %v542 = vadd.f32 0.0, %v541
        %v543 = vpop.f32.mrf.mxu0
        %544 = vdwg.mxu0
        %545 = vrot.lane.b32.xlu0 %v492, 120
        %v546 = vpop.permute.xlu0 %545
        %547 = vrot.lane.b32.xlu0 %v492, 88
        %v548 = vpop.permute.xlu0 %547
        %v550 = vsel %vm497, %v546, 0
        %v553 = vsel %vm497, %v548, 0
        %555 = vmatprep.subr.bf16.mxu0 0
        %556 = vmatpush1.bf16.xpose.msra.mxu0 0
        %557 = vmatprep.subr.bf16.mxu0 0
        %558 = vmatpush1.bf16.xpose.msra.mxu0 0
        %559 = vmatprep.subr.bf16.mxu0 0
        %560 = vmatpush1.bf16.xpose.msra.mxu0 0
        %561 = vmatprep.subr.bf16.mxu0 0
        %562 = vmatpush1.bf16.xpose.msra.mxu0 0
        %563 = vmatprep.subr.bf16.mxu0 0
        %564 = vmatpush1.bf16.xpose.msra.mxu0 0
        %565 = vmatprep.subr.bf16.mxu0 0
        %566 = vmatpush1.bf16.xpose.msra.mxu0 0
        %567 = vmatprep.subr.bf16.mxu0 0
        %568 = vmatpush1.bf16.xpose.msra.mxu0 0
        %569 = vmatprep.subr.bf16.mxu0 0
        %570 = vmatpush1.bf16.xpose.msra.mxu0 %v553
        %571 = vmatprep.subr.bf16.mxu0 0
        %572 = vmatpush2.bf16.xpose.msra.mxu0 0
        %573 = vmatprep.subr.bf16.mxu0 0
        %574 = vmatpush2.bf16.xpose.msra.mxu0 0
        %575 = vmatprep.subr.bf16.mxu0 0
        %576 = vmatpush2.bf16.xpose.msra.mxu0 0
        %577 = vmatprep.subr.bf16.mxu0 0
        %578 = vmatpush2.bf16.xpose.msra.mxu0 0
        %579 = vmatprep.subr.bf16.mxu0 0
        %580 = vmatpush2.bf16.xpose.msra.mxu0 0
        %581 = vmatprep.subr.bf16.mxu0 0
        %582 = vmatpush2.bf16.xpose.msra.mxu0 0
        %583 = vmatprep.subr.bf16.mxu0 0
        %584 = vmatpush2.bf16.xpose.msra.mxu0 0
        %585 = vmatprep.subr.bf16.mxu0 0
        %586 = vmatpush2.bf16.xpose.msra.mxu0 0
        %587 = vmatprep.mubr.bf16.mxu0 0
        %588 = vmatmul.mubr.bf16.gmra.mxu0 %v550
        %v589 = vpop.f32.mrf.mxu0
        %v590 = vadd.f32 0.0, %v589
        %v591 = vpop.f32.mrf.mxu0
        %v592 = vpop.f32.mrf.mxu0
        %v593 = vadd.f32 0.0, %v592
        %v594 = vpop.f32.mrf.mxu0
        %595 = vdwg.mxu0
        %596 = vrot.lane.b32.xlu0 %v492, 112
        %v597 = vpop.permute.xlu0 %596
        %598 = vrot.lane.b32.xlu0 %v492, 80
        %v599 = vpop.permute.xlu0 %598
        %v601 = vsel %vm497, %v597, 0
        %v604 = vsel %vm497, %v599, 0
        %606 = vmatprep.subr.bf16.mxu0 0
        %607 = vmatpush1.bf16.xpose.msra.mxu0 0
        %608 = vmatprep.subr.bf16.mxu0 0
        %609 = vmatpush1.bf16.xpose.msra.mxu0 0
        %610 = vmatprep.subr.bf16.mxu0 0
        %611 = vmatpush1.bf16.xpose.msra.mxu0 0
        %612 = vmatprep.subr.bf16.mxu0 0
        %613 = vmatpush1.bf16.xpose.msra.mxu0 0
        %614 = vmatprep.subr.bf16.mxu0 0
        %615 = vmatpush1.bf16.xpose.msra.mxu0 0
        %616 = vmatprep.subr.bf16.mxu0 0
        %617 = vmatpush1.bf16.xpose.msra.mxu0 0
        %618 = vmatprep.subr.bf16.mxu0 0
        %619 = vmatpush1.bf16.xpose.msra.mxu0 0
        %620 = vmatprep.subr.bf16.mxu0 0
        %621 = vmatpush1.bf16.xpose.msra.mxu0 %v604
        %622 = vmatprep.subr.bf16.mxu0 0
        %623 = vmatpush2.bf16.xpose.msra.mxu0 0
        %624 = vmatprep.subr.bf16.mxu0 0
        %625 = vmatpush2.bf16.xpose.msra.mxu0 0
        %626 = vmatprep.subr.bf16.mxu0 0
        %627 = vmatpush2.bf16.xpose.msra.mxu0 0
        %628 = vmatprep.subr.bf16.mxu0 0
        %629 = vmatpush2.bf16.xpose.msra.mxu0 0
        %630 = vmatprep.subr.bf16.mxu0 0
        %631 = vmatpush2.bf16.xpose.msra.mxu0 0
        %632 = vmatprep.subr.bf16.mxu0 0
        %633 = vmatpush2.bf16.xpose.msra.mxu0 0
        %634 = vmatprep.subr.bf16.mxu0 0
        %635 = vmatpush2.bf16.xpose.msra.mxu0 0
        %636 = vmatprep.subr.bf16.mxu0 0
        %637 = vmatpush2.bf16.xpose.msra.mxu0 0
        %638 = vmatprep.mubr.bf16.mxu0 0
        %639 = vmatmul.mubr.bf16.gmra.mxu0 %v601
        %v640 = vpop.f32.mrf.mxu0
        %v641 = vadd.f32 0.0, %v640
        %v642 = vpop.f32.mrf.mxu0
        %v643 = vpop.f32.mrf.mxu0
        %v644 = vadd.f32 0.0, %v643
        %v645 = vpop.f32.mrf.mxu0
        %646 = vdwg.mxu0
        %647 = vrot.lane.b32.xlu0 %v492, 104
        %v648 = vpop.permute.xlu0 %647
        %649 = vrot.lane.b32.xlu0 %v492, 72
        %v650 = vpop.permute.xlu0 %649
        %v652 = vsel %vm497, %v648, 0
        %v655 = vsel %vm497, %v650, 0
        %657 = vmatprep.subr.bf16.mxu0 0
        %658 = vmatpush1.bf16.xpose.msra.mxu0 0
        %659 = vmatprep.subr.bf16.mxu0 0
        %660 = vmatpush1.bf16.xpose.msra.mxu0 0
        %661 = vmatprep.subr.bf16.mxu0 0
        %662 = vmatpush1.bf16.xpose.msra.mxu0 0
        %663 = vmatprep.subr.bf16.mxu0 0
        %664 = vmatpush1.bf16.xpose.msra.mxu0 0
        %665 = vmatprep.subr.bf16.mxu0 0
        %666 = vmatpush1.bf16.xpose.msra.mxu0 0
        %667 = vmatprep.subr.bf16.mxu0 0
        %668 = vmatpush1.bf16.xpose.msra.mxu0 0
        %669 = vmatprep.subr.bf16.mxu0 0
        %670 = vmatpush1.bf16.xpose.msra.mxu0 0
        %671 = vmatprep.subr.bf16.mxu0 0
        %672 = vmatpush1.bf16.xpose.msra.mxu0 %v655
        %673 = vmatprep.subr.bf16.mxu0 0
        %674 = vmatpush2.bf16.xpose.msra.mxu0 0
        %675 = vmatprep.subr.bf16.mxu0 0
        %676 = vmatpush2.bf16.xpose.msra.mxu0 0
        %677 = vmatprep.subr.bf16.mxu0 0
        %678 = vmatpush2.bf16.xpose.msra.mxu0 0
        %679 = vmatprep.subr.bf16.mxu0 0
        %680 = vmatpush2.bf16.xpose.msra.mxu0 0
        %681 = vmatprep.subr.bf16.mxu0 0
        %682 = vmatpush2.bf16.xpose.msra.mxu0 0
        %683 = vmatprep.subr.bf16.mxu0 0
        %684 = vmatpush2.bf16.xpose.msra.mxu0 0
        %685 = vmatprep.subr.bf16.mxu0 0
        %686 = vmatpush2.bf16.xpose.msra.mxu0 0
        %687 = vmatprep.subr.bf16.mxu0 0
        %688 = vmatpush2.bf16.xpose.msra.mxu0 0
        %689 = vmatprep.mubr.bf16.mxu0 0
        %690 = vmatmul.mubr.bf16.gmra.mxu0 %v652
        %v691 = vpop.f32.mrf.mxu0
        %v692 = vadd.f32 0.0, %v691
        %v693 = vpop.f32.mrf.mxu0
        %v694 = vpop.f32.mrf.mxu0
        %v695 = vadd.f32 0.0, %v694
        %v696 = vpop.f32.mrf.mxu0
        %697 = vdwg.mxu0
        %699 = vrot.lane.b32.xlu0 %v493, 96
        %v700 = vpop.permute.xlu0 %699
        %v702 = vsel %vm497, %v493, 0
        %v705 = vsel %vm497, %v700, 0
        %707 = vmatprep.subr.bf16.mxu0 0
        %708 = vmatpush1.bf16.xpose.msra.mxu0 0
        %709 = vmatprep.subr.bf16.mxu0 0
        %710 = vmatpush1.bf16.xpose.msra.mxu0 0
        %711 = vmatprep.subr.bf16.mxu0 0
        %712 = vmatpush1.bf16.xpose.msra.mxu0 0
        %713 = vmatprep.subr.bf16.mxu0 0
        %714 = vmatpush1.bf16.xpose.msra.mxu0 0
        %715 = vmatprep.subr.bf16.mxu0 0
        %716 = vmatpush1.bf16.xpose.msra.mxu0 0
        %717 = vmatprep.subr.bf16.mxu0 0
        %718 = vmatpush1.bf16.xpose.msra.mxu0 0
        %719 = vmatprep.subr.bf16.mxu0 0
        %720 = vmatpush1.bf16.xpose.msra.mxu0 0
        %721 = vmatprep.subr.bf16.mxu0 0
        %722 = vmatpush1.bf16.xpose.msra.mxu0 %v705
        %723 = vmatprep.subr.bf16.mxu0 0
        %724 = vmatpush2.bf16.xpose.msra.mxu0 0
        %725 = vmatprep.subr.bf16.mxu0 0
        %726 = vmatpush2.bf16.xpose.msra.mxu0 0
        %727 = vmatprep.subr.bf16.mxu0 0
        %728 = vmatpush2.bf16.xpose.msra.mxu0 0
        %729 = vmatprep.subr.bf16.mxu0 0
        %730 = vmatpush2.bf16.xpose.msra.mxu0 0
        %731 = vmatprep.subr.bf16.mxu0 0
        %732 = vmatpush2.bf16.xpose.msra.mxu0 0
        %733 = vmatprep.subr.bf16.mxu0 0
        %734 = vmatpush2.bf16.xpose.msra.mxu0 0
        %735 = vmatprep.subr.bf16.mxu0 0
        %736 = vmatpush2.bf16.xpose.msra.mxu0 0
        %737 = vmatprep.subr.bf16.mxu0 0
        %738 = vmatpush2.bf16.xpose.msra.mxu0 0
        %739 = vmatprep.mubr.bf16.mxu0 0
        %740 = vmatmul.mubr.bf16.gmra.mxu0 %v702
        %v741 = vpop.f32.mrf.mxu0
        %v742 = vadd.f32 0.0, %v741
        %v743 = vpop.f32.mrf.mxu0
        %v744 = vpop.f32.mrf.mxu0
        %v745 = vadd.f32 0.0, %v744
        %v746 = vpop.f32.mrf.mxu0
        %747 = vdwg.mxu0
        %748 = vrot.lane.b32.xlu0 %v493, 120
        %v749 = vpop.permute.xlu0 %748
        %750 = vrot.lane.b32.xlu0 %v493, 88
        %v751 = vpop.permute.xlu0 %750
        %v753 = vsel %vm497, %v749, 0
        %v756 = vsel %vm497, %v751, 0
        %758 = vmatprep.subr.bf16.mxu0 0
        %759 = vmatpush1.bf16.xpose.msra.mxu0 0
        %760 = vmatprep.subr.bf16.mxu0 0
        %761 = vmatpush1.bf16.xpose.msra.mxu0 0
        %762 = vmatprep.subr.bf16.mxu0 0
        %763 = vmatpush1.bf16.xpose.msra.mxu0 0
        %764 = vmatprep.subr.bf16.mxu0 0
        %765 = vmatpush1.bf16.xpose.msra.mxu0 0
        %766 = vmatprep.subr.bf16.mxu0 0
        %767 = vmatpush1.bf16.xpose.msra.mxu0 0
        %768 = vmatprep.subr.bf16.mxu0 0
        %769 = vmatpush1.bf16.xpose.msra.mxu0 0
        %770 = vmatprep.subr.bf16.mxu0 0
        %771 = vmatpush1.bf16.xpose.msra.mxu0 0
        %772 = vmatprep.subr.bf16.mxu0 0
        %773 = vmatpush1.bf16.xpose.msra.mxu0 %v756
        %774 = vmatprep.subr.bf16.mxu0 0
        %775 = vmatpush2.bf16.xpose.msra.mxu0 0
        %776 = vmatprep.subr.bf16.mxu0 0
        %777 = vmatpush2.bf16.xpose.msra.mxu0 0
        %778 = vmatprep.subr.bf16.mxu0 0
        %779 = vmatpush2.bf16.xpose.msra.mxu0 0
        %780 = vmatprep.subr.bf16.mxu0 0
        %781 = vmatpush2.bf16.xpose.msra.mxu0 0
        %782 = vmatprep.subr.bf16.mxu0 0
        %783 = vmatpush2.bf16.xpose.msra.mxu0 0
        %784 = vmatprep.subr.bf16.mxu0 0
        %785 = vmatpush2.bf16.xpose.msra.mxu0 0
        %786 = vmatprep.subr.bf16.mxu0 0
        %787 = vmatpush2.bf16.xpose.msra.mxu0 0
        %788 = vmatprep.subr.bf16.mxu0 0
        %789 = vmatpush2.bf16.xpose.msra.mxu0 0
        %790 = vmatprep.mubr.bf16.mxu0 0
        %791 = vmatmul.mubr.bf16.gmra.mxu0 %v753
        %v792 = vpop.f32.mrf.mxu0
        %v793 = vadd.f32 0.0, %v792
        %v794 = vpop.f32.mrf.mxu0
        %v795 = vpop.f32.mrf.mxu0
        %v796 = vadd.f32 0.0, %v795
        %v797 = vpop.f32.mrf.mxu0
        %798 = vdwg.mxu0
        %799 = vrot.lane.b32.xlu0 %v493, 112
        %v800 = vpop.permute.xlu0 %799
        %801 = vrot.lane.b32.xlu0 %v493, 80
        %v802 = vpop.permute.xlu0 %801
        %v804 = vsel %vm497, %v800, 0
        %v807 = vsel %vm497, %v802, 0
        %809 = vmatprep.subr.bf16.mxu0 0
        %810 = vmatpush1.bf16.xpose.msra.mxu0 0
        %811 = vmatprep.subr.bf16.mxu0 0
        %812 = vmatpush1.bf16.xpose.msra.mxu0 0
        %813 = vmatprep.subr.bf16.mxu0 0
        %814 = vmatpush1.bf16.xpose.msra.mxu0 0
        %815 = vmatprep.subr.bf16.mxu0 0
        %816 = vmatpush1.bf16.xpose.msra.mxu0 0
        %817 = vmatprep.subr.bf16.mxu0 0
        %818 = vmatpush1.bf16.xpose.msra.mxu0 0
        %819 = vmatprep.subr.bf16.mxu0 0
        %820 = vmatpush1.bf16.xpose.msra.mxu0 0
        %821 = vmatprep.subr.bf16.mxu0 0
        %822 = vmatpush1.bf16.xpose.msra.mxu0 0
        %823 = vmatprep.subr.bf16.mxu0 0
        %824 = vmatpush1.bf16.xpose.msra.mxu0 %v807
        %825 = vmatprep.subr.bf16.mxu0 0
        %826 = vmatpush2.bf16.xpose.msra.mxu0 0
        %827 = vmatprep.subr.bf16.mxu0 0
        %828 = vmatpush2.bf16.xpose.msra.mxu0 0
        %829 = vmatprep.subr.bf16.mxu0 0
        %830 = vmatpush2.bf16.xpose.msra.mxu0 0
        %831 = vmatprep.subr.bf16.mxu0 0
        %832 = vmatpush2.bf16.xpose.msra.mxu0 0
        %833 = vmatprep.subr.bf16.mxu0 0
        %834 = vmatpush2.bf16.xpose.msra.mxu0 0
        %835 = vmatprep.subr.bf16.mxu0 0
        %836 = vmatpush2.bf16.xpose.msra.mxu0 0
        %837 = vmatprep.subr.bf16.mxu0 0
        %838 = vmatpush2.bf16.xpose.msra.mxu0 0
        %839 = vmatprep.subr.bf16.mxu0 0
        %840 = vmatpush2.bf16.xpose.msra.mxu0 0
        %841 = vmatprep.mubr.bf16.mxu0 0
        %842 = vmatmul.mubr.bf16.gmra.mxu0 %v804
        %v843 = vpop.f32.mrf.mxu0
        %v844 = vadd.f32 0.0, %v843
        %v845 = vpop.f32.mrf.mxu0
        %v846 = vpop.f32.mrf.mxu0
        %v847 = vadd.f32 0.0, %v846
        %v848 = vpop.f32.mrf.mxu0
        %849 = vdwg.mxu0
        %850 = vrot.lane.b32.xlu0 %v493, 104
        %v851 = vpop.permute.xlu0 %850
        %852 = vrot.lane.b32.xlu0 %v493, 72
        %v853 = vpop.permute.xlu0 %852
        %v855 = vsel %vm497, %v851, 0
        %v858 = vsel %vm497, %v853, 0
        %860 = vmatprep.subr.bf16.mxu0 0
        %861 = vmatpush1.bf16.xpose.msra.mxu0 0
        %862 = vmatprep.subr.bf16.mxu0 0
        %863 = vmatpush1.bf16.xpose.msra.mxu0 0
        %864 = vmatprep.subr.bf16.mxu0 0
        %865 = vmatpush1.bf16.xpose.msra.mxu0 0
        %866 = vmatprep.subr.bf16.mxu0 0
        %867 = vmatpush1.bf16.xpose.msra.mxu0 0
        %868 = vmatprep.subr.bf16.mxu0 0
        %869 = vmatpush1.bf16.xpose.msra.mxu0 0
        %870 = vmatprep.subr.bf16.mxu0 0
        %871 = vmatpush1.bf16.xpose.msra.mxu0 0
        %872 = vmatprep.subr.bf16.mxu0 0
        %873 = vmatpush1.bf16.xpose.msra.mxu0 0
        %874 = vmatprep.subr.bf16.mxu0 0
        %875 = vmatpush1.bf16.xpose.msra.mxu0 %v858
        %876 = vmatprep.subr.bf16.mxu0 0
        %877 = vmatpush2.bf16.xpose.msra.mxu0 0
        %878 = vmatprep.subr.bf16.mxu0 0
        %879 = vmatpush2.bf16.xpose.msra.mxu0 0
        %880 = vmatprep.subr.bf16.mxu0 0
        %881 = vmatpush2.bf16.xpose.msra.mxu0 0
        %882 = vmatprep.subr.bf16.mxu0 0
        %883 = vmatpush2.bf16.xpose.msra.mxu0 0
        %884 = vmatprep.subr.bf16.mxu0 0
        %885 = vmatpush2.bf16.xpose.msra.mxu0 0
        %886 = vmatprep.subr.bf16.mxu0 0
        %887 = vmatpush2.bf16.xpose.msra.mxu0 0
        %888 = vmatprep.subr.bf16.mxu0 0
        %889 = vmatpush2.bf16.xpose.msra.mxu0 0
        %890 = vmatprep.subr.bf16.mxu0 0
        %891 = vmatpush2.bf16.xpose.msra.mxu0 0
        %892 = vmatprep.mubr.bf16.mxu0 0
        %893 = vmatmul.mubr.bf16.gmra.mxu0 %v855
        %v894 = vpop.f32.mrf.mxu0
        %v895 = vadd.f32 0.0, %v894
        %v896 = vpop.f32.mrf.mxu0
        %v897 = vpop.f32.mrf.mxu0
        %v898 = vadd.f32 0.0, %v897
        %v899 = vpop.f32.mrf.mxu0
        %900 = vdwg.mxu0
        %vm917 = vcmp.lt.s32.totalorder %v539, 0
        %vm918 = vcmp.lt.s32.totalorder %v542, 0
        %vm919 = vcmp.lt.s32.totalorder %v590, 0
        %vm920 = vcmp.lt.s32.totalorder %v593, 0
        %vm921 = vcmp.lt.s32.totalorder %v641, 0
        %vm922 = vcmp.lt.s32.totalorder %v644, 0
        %vm923 = vcmp.lt.s32.totalorder %v692, 0
        %vm924 = vcmp.lt.s32.totalorder %v695, 0
        %vm925 = vcmp.lt.s32.totalorder %v742, 0
        %vm926 = vcmp.lt.s32.totalorder %v745, 0
        %vm927 = vcmp.lt.s32.totalorder %v793, 0
        %vm928 = vcmp.lt.s32.totalorder %v796, 0
        %vm929 = vcmp.lt.s32.totalorder %v844, 0
        %vm930 = vcmp.lt.s32.totalorder %v847, 0
        %vm931 = vcmp.lt.s32.totalorder %v895, 0
        %vm932 = vcmp.lt.s32.totalorder %v898, 0
        %v933 = vsub.s32 2147483648, %v539
        %v934 = vsub.s32 2147483648, %v542
        %v935 = vsub.s32 2147483648, %v590
        %v936 = vsub.s32 2147483648, %v593
        %v937 = vsub.s32 2147483648, %v641
        %v938 = vsub.s32 2147483648, %v644
        %v939 = vsub.s32 2147483648, %v692
        %v940 = vsub.s32 2147483648, %v695
        %v941 = vsub.s32 2147483648, %v742
        %v942 = vsub.s32 2147483648, %v745
        %v943 = vsub.s32 2147483648, %v793
        %v944 = vsub.s32 2147483648, %v796
        %v945 = vsub.s32 2147483648, %v844
        %v946 = vsub.s32 2147483648, %v847
        %v947 = vsub.s32 2147483648, %v895
        %v948 = vsub.s32 2147483648, %v898
        %v949 = vsel %vm917, %v933, %v539
        %v950 = vsel %vm918, %v934, %v542
        %v951 = vsel %vm919, %v935, %v590
        %v952 = vsel %vm920, %v936, %v593
        %v953 = vsel %vm921, %v937, %v641
        %v954 = vsel %vm922, %v938, %v644
        %v955 = vsel %vm923, %v939, %v692
        %v956 = vsel %vm924, %v940, %v695
        %v957 = vsel %vm925, %v941, %v742
        %v958 = vsel %vm926, %v942, %v745
        %v959 = vsel %vm927, %v943, %v793
        %v960 = vsel %vm928, %v944, %v796
        %v961 = vsel %vm929, %v945, %v844
        %v962 = vsel %vm930, %v946, %v847
        %v963 = vsel %vm931, %v947, %v895
        %v964 = vsel %vm932, %v948, %v898
        %vm965 = vcmask 130048
        %v966 = vsel %vm965, %v539, inf
        %967 = vmin.xlane.f32.xlu0 %v966
        %v968 = vpop.xlane.xlu0 %967
        %v969 = vsel %vm965, %v542, inf
        %970 = vmin.xlane.f32.xlu0 %v969
        %v971 = vpop.xlane.xlu0 %970
        %v972 = vsel %vm965, %v590, inf
        %973 = vmin.xlane.f32.xlu0 %v972
        %v974 = vpop.xlane.xlu0 %973
        %v975 = vsel %vm965, %v593, inf
        %976 = vmin.xlane.f32.xlu0 %v975
        %v977 = vpop.xlane.xlu0 %976
        %v978 = vsel %vm965, %v641, inf
        %979 = vmin.xlane.f32.xlu0 %v978
        %v980 = vpop.xlane.xlu0 %979
        %v981 = vsel %vm965, %v644, inf
        %982 = vmin.xlane.f32.xlu0 %v981
        %v983 = vpop.xlane.xlu0 %982
        %v984 = vsel %vm965, %v692, inf
        %985 = vmin.xlane.f32.xlu0 %v984
        %v986 = vpop.xlane.xlu0 %985
        %v987 = vsel %vm965, %v695, inf
        %988 = vmin.xlane.f32.xlu0 %v987
        %v989 = vpop.xlane.xlu0 %988
        %v990 = vsel %vm965, %v742, inf
        %991 = vmin.xlane.f32.xlu0 %v990
        %v992 = vpop.xlane.xlu0 %991
        %v993 = vsel %vm965, %v745, inf
        %994 = vmin.xlane.f32.xlu0 %v993
        %v995 = vpop.xlane.xlu0 %994
        %v996 = vsel %vm965, %v793, inf
        %997 = vmin.xlane.f32.xlu0 %v996
        %v998 = vpop.xlane.xlu0 %997
        %v999 = vsel %vm965, %v796, inf
        %1000 = vmin.xlane.f32.xlu0 %v999
        %v1001 = vpop.xlane.xlu0 %1000
        %v1002 = vsel %vm965, %v844, inf
        %1003 = vmin.xlane.f32.xlu0 %v1002
        %v1004 = vpop.xlane.xlu0 %1003
        %v1005 = vsel %vm965, %v847, inf
        %1006 = vmin.xlane.f32.xlu0 %v1005
        %v1007 = vpop.xlane.xlu0 %1006
        %v1008 = vsel %vm965, %v895, inf
        %1009 = vmin.xlane.f32.xlu0 %v1008
        %v1010 = vpop.xlane.xlu0 %1009
        %v1011 = vsel %vm965, %v898, inf
        %1012 = vmin.xlane.f32.xlu0 %v1011
        %v1013 = vpop.xlane.xlu0 %1012
        %vm1030 = vcmp.lt.s32.totalorder %v968, 0
        %vm1031 = vcmp.lt.s32.totalorder %v971, 0
        %vm1032 = vcmp.lt.s32.totalorder %v974, 0
        %vm1033 = vcmp.lt.s32.totalorder %v977, 0
        %vm1034 = vcmp.lt.s32.totalorder %v980, 0
        %vm1035 = vcmp.lt.s32.totalorder %v983, 0
        %vm1036 = vcmp.lt.s32.totalorder %v986, 0
        %vm1037 = vcmp.lt.s32.totalorder %v989, 0
        %vm1038 = vcmp.lt.s32.totalorder %v992, 0
        %vm1039 = vcmp.lt.s32.totalorder %v995, 0
        %vm1040 = vcmp.lt.s32.totalorder %v998, 0
        %vm1041 = vcmp.lt.s32.totalorder %v1001, 0
        %vm1042 = vcmp.lt.s32.totalorder %v1004, 0
        %vm1043 = vcmp.lt.s32.totalorder %v1007, 0
        %vm1044 = vcmp.lt.s32.totalorder %v1010, 0
        %vm1045 = vcmp.lt.s32.totalorder %v1013, 0
        %v1046 = vsub.s32 2147483648, %v968
        %v1047 = vsub.s32 2147483648, %v971
        %v1048 = vsub.s32 2147483648, %v974
        %v1049 = vsub.s32 2147483648, %v977
        %v1050 = vsub.s32 2147483648, %v980
        %v1051 = vsub.s32 2147483648, %v983
        %v1052 = vsub.s32 2147483648, %v986
        %v1053 = vsub.s32 2147483648, %v989
        %v1054 = vsub.s32 2147483648, %v992
        %v1055 = vsub.s32 2147483648, %v995
        %v1056 = vsub.s32 2147483648, %v998
        %v1057 = vsub.s32 2147483648, %v1001
        %v1058 = vsub.s32 2147483648, %v1004
        %v1059 = vsub.s32 2147483648, %v1007
        %v1060 = vsub.s32 2147483648, %v1010
        %v1061 = vsub.s32 2147483648, %v1013
        %v1062 = vsel %vm1030, %v1046, %v968
        %v1063 = vsel %vm1031, %v1047, %v971
        %v1064 = vsel %vm1032, %v1048, %v974
        %v1065 = vsel %vm1033, %v1049, %v977
        %v1066 = vsel %vm1034, %v1050, %v980
        %v1067 = vsel %vm1035, %v1051, %v983
        %v1068 = vsel %vm1036, %v1052, %v986
        %v1069 = vsel %vm1037, %v1053, %v989
        %v1070 = vsel %vm1038, %v1054, %v992
        %v1071 = vsel %vm1039, %v1055, %v995
        %v1072 = vsel %vm1040, %v1056, %v998
        %v1073 = vsel %vm1041, %v1057, %v1001
        %v1074 = vsel %vm1042, %v1058, %v1004
        %v1075 = vsel %vm1043, %v1059, %v1007
        %v1076 = vsel %vm1044, %v1060, %v1010
        %v1077 = vsel %vm1045, %v1061, %v1013
        %v1078 = vsel %vm965, %v539, -inf
        %1079 = vmax.xlane.f32.xlu0 %v1078
        %v1080 = vpop.xlane.xlu0 %1079
        %v1081 = vsel %vm965, %v542, -inf
        %1082 = vmax.xlane.f32.xlu0 %v1081
        %v1083 = vpop.xlane.xlu0 %1082
        %v1084 = vsel %vm965, %v590, -inf
        %1085 = vmax.xlane.f32.xlu0 %v1084
        %v1086 = vpop.xlane.xlu0 %1085
        %v1087 = vsel %vm965, %v593, -inf
        %1088 = vmax.xlane.f32.xlu0 %v1087
        %v1089 = vpop.xlane.xlu0 %1088
        %v1090 = vsel %vm965, %v641, -inf
        %1091 = vmax.xlane.f32.xlu0 %v1090
        %v1092 = vpop.xlane.xlu0 %1091
        %v1093 = vsel %vm965, %v644, -inf
        %1094 = vmax.xlane.f32.xlu0 %v1093
        %v1095 = vpop.xlane.xlu0 %1094
        %v1096 = vsel %vm965, %v692, -inf
        %1097 = vmax.xlane.f32.xlu0 %v1096
        %v1098 = vpop.xlane.xlu0 %1097
        %v1099 = vsel %vm965, %v695, -inf
        %1100 = vmax.xlane.f32.xlu0 %v1099
        %v1101 = vpop.xlane.xlu0 %1100
        %v1102 = vsel %vm965, %v742, -inf
        %1103 = vmax.xlane.f32.xlu0 %v1102
        %v1104 = vpop.xlane.xlu0 %1103
        %v1105 = vsel %vm965, %v745, -inf
        %1106 = vmax.xlane.f32.xlu0 %v1105
        %v1107 = vpop.xlane.xlu0 %1106
        %v1108 = vsel %vm965, %v793, -inf
        %1109 = vmax.xlane.f32.xlu0 %v1108
        %v1110 = vpop.xlane.xlu0 %1109
        %v1111 = vsel %vm965, %v796, -inf
        %1112 = vmax.xlane.f32.xlu0 %v1111
        %v1113 = vpop.xlane.xlu0 %1112
        %v1114 = vsel %vm965, %v844, -inf
        %1115 = vmax.xlane.f32.xlu0 %v1114
        %v1116 = vpop.xlane.xlu0 %1115
        %v1117 = vsel %vm965, %v847, -inf
        %1118 = vmax.xlane.f32.xlu0 %v1117
        %v1119 = vpop.xlane.xlu0 %1118
        %v1120 = vsel %vm965, %v895, -inf
        %1121 = vmax.xlane.f32.xlu0 %v1120
        %v1122 = vpop.xlane.xlu0 %1121
        %v1123 = vsel %vm965, %v898, -inf
        %1124 = vmax.xlane.f32.xlu0 %v1123
        %v1125 = vpop.xlane.xlu0 %1124
        %vm1142 = vcmp.lt.s32.totalorder %v1080, 0
        %vm1143 = vcmp.lt.s32.totalorder %v1083, 0
        %vm1144 = vcmp.lt.s32.totalorder %v1086, 0
        %vm1145 = vcmp.lt.s32.totalorder %v1089, 0
        %vm1146 = vcmp.lt.s32.totalorder %v1092, 0
        %vm1147 = vcmp.lt.s32.totalorder %v1095, 0
        %vm1148 = vcmp.lt.s32.totalorder %v1098, 0
        %vm1149 = vcmp.lt.s32.totalorder %v1101, 0
        %vm1150 = vcmp.lt.s32.totalorder %v1104, 0
        %vm1151 = vcmp.lt.s32.totalorder %v1107, 0
        %vm1152 = vcmp.lt.s32.totalorder %v1110, 0
        %vm1153 = vcmp.lt.s32.totalorder %v1113, 0
        %vm1154 = vcmp.lt.s32.totalorder %v1116, 0
        %vm1155 = vcmp.lt.s32.totalorder %v1119, 0
        %vm1156 = vcmp.lt.s32.totalorder %v1122, 0
        %vm1157 = vcmp.lt.s32.totalorder %v1125, 0
        %v1158 = vsub.s32 2147483648, %v1080
        %v1159 = vsub.s32 2147483648, %v1083
        %v1160 = vsub.s32 2147483648, %v1086
        %v1161 = vsub.s32 2147483648, %v1089
        %v1162 = vsub.s32 2147483648, %v1092
        %v1163 = vsub.s32 2147483648, %v1095
        %v1164 = vsub.s32 2147483648, %v1098
        %v1165 = vsub.s32 2147483648, %v1101
        %v1166 = vsub.s32 2147483648, %v1104
        %v1167 = vsub.s32 2147483648, %v1107
        %v1168 = vsub.s32 2147483648, %v1110
        %v1169 = vsub.s32 2147483648, %v1113
        %v1170 = vsub.s32 2147483648, %v1116
        %v1171 = vsub.s32 2147483648, %v1119
        %v1172 = vsub.s32 2147483648, %v1122
        %v1173 = vsub.s32 2147483648, %v1125
        %v1174 = vsel %vm1142, %v1158, %v1080
        %v1175 = vsel %vm1143, %v1159, %v1083
        %v1176 = vsel %vm1144, %v1160, %v1086
        %v1177 = vsel %vm1145, %v1161, %v1089
        %v1178 = vsel %vm1146, %v1162, %v1092
        %v1179 = vsel %vm1147, %v1163, %v1095
        %v1180 = vsel %vm1148, %v1164, %v1098
        %v1181 = vsel %vm1149, %v1165, %v1101
        %v1182 = vsel %vm1150, %v1166, %v1104
        %v1183 = vsel %vm1151, %v1167, %v1107
        %v1184 = vsel %vm1152, %v1168, %v1110
        %v1185 = vsel %vm1153, %v1169, %v1113
        %v1186 = vsel %vm1154, %v1170, %v1116
        %v1187 = vsel %vm1155, %v1171, %v1119
        %v1188 = vsel %vm1156, %v1172, %v1122
        %v1189 = vsel %vm1157, %v1173, %v1125
        %v1190 = vadd.s32 %v1174, 1
        %v1191 = vadd.s32 %v1175, 1
        %v1192 = vadd.s32 %v1176, 1
        %v1193 = vadd.s32 %v1177, 1
        %v1194 = vadd.s32 %v1178, 1
        %v1195 = vadd.s32 %v1179, 1
        %v1196 = vadd.s32 %v1180, 1
        %v1197 = vadd.s32 %v1181, 1
        %v1198 = vadd.s32 %v1182, 1
        %v1199 = vadd.s32 %v1183, 1
        %v1200 = vadd.s32 %v1184, 1
        %v1201 = vadd.s32 %v1185, 1
        %v1202 = vadd.s32 %v1186, 1
        %v1203 = vadd.s32 %v1187, 1
        %v1204 = vadd.s32 %v1188, 1
        %v1205 = vadd.s32 %v1189, 1
        loop: start=0, step=1, limit=32
        $region69: #{tpu_custom_call.1} parent=63 // loop_pre_header
          _
        $region70: #{tpu_custom_call.1} parent=63 // loop_header
          %s1207 = sphi 0, %s1211
          %p1208 = scmp.ge.s32.totalorder %s1207, 32
          %v1212 = vphi %v1062, %v1564
          %v1213 = vphi %v1063, %v1565
          %v1214 = vphi %v1064, %v1566
          %v1215 = vphi %v1065, %v1567
          %v1216 = vphi %v1066, %v1568
          %v1217 = vphi %v1067, %v1569
          %v1218 = vphi %v1068, %v1570
          %v1219 = vphi %v1069, %v1571
          %v1220 = vphi %v1070, %v1572
          %v1221 = vphi %v1071, %v1573
          %v1222 = vphi %v1072, %v1574
          %v1223 = vphi %v1073, %v1575
          %v1224 = vphi %v1074, %v1576
          %v1225 = vphi %v1075, %v1577
          %v1226 = vphi %v1076, %v1578
          %v1227 = vphi %v1077, %v1579
          %v1228 = vphi %v1190, %v1580
          %v1229 = vphi %v1191, %v1581
          %v1230 = vphi %v1192, %v1582
          %v1231 = vphi %v1193, %v1583
          %v1232 = vphi %v1194, %v1584
          %v1233 = vphi %v1195, %v1585
          %v1234 = vphi %v1196, %v1586
          %v1235 = vphi %v1197, %v1587
          %v1236 = vphi %v1198, %v1588
          %v1237 = vphi %v1199, %v1589
          %v1238 = vphi %v1200, %v1590
          %v1239 = vphi %v1201, %v1591
          %v1240 = vphi %v1202, %v1592
          %v1241 = vphi %v1203, %v1593
          %v1242 = vphi %v1204, %v1594
          %v1243 = vphi %v1205, %v1595
        $region71: #{tpu_custom_call.1} parent=63 // loop_header_branch
          %1210 = sbr.rel (%p1208) target = $region75
        $region72: #{tpu_custom_call.1} parent=63 // loop_body
          %v1244 = vand.u32 %v1212, %v1228
          %v1245 = vand.u32 %v1213, %v1229
          %v1246 = vand.u32 %v1214, %v1230
          %v1247 = vand.u32 %v1215, %v1231
          %v1248 = vand.u32 %v1216, %v1232
          %v1249 = vand.u32 %v1217, %v1233
          %v1250 = vand.u32 %v1218, %v1234
          %v1251 = vand.u32 %v1219, %v1235
          %v1252 = vand.u32 %v1220, %v1236
          %v1253 = vand.u32 %v1221, %v1237
          %v1254 = vand.u32 %v1222, %v1238
          %v1255 = vand.u32 %v1223, %v1239
          %v1256 = vand.u32 %v1224, %v1240
          %v1257 = vand.u32 %v1225, %v1241
          %v1258 = vand.u32 %v1226, %v1242
          %v1259 = vand.u32 %v1227, %v1243
          %v1260 = vxor.u32 %v1212, %v1228
          %v1261 = vxor.u32 %v1213, %v1229
          %v1262 = vxor.u32 %v1214, %v1230
          %v1263 = vxor.u32 %v1215, %v1231
          %v1264 = vxor.u32 %v1216, %v1232
          %v1265 = vxor.u32 %v1217, %v1233
          %v1266 = vxor.u32 %v1218, %v1234
          %v1267 = vxor.u32 %v1219, %v1235
          %v1268 = vxor.u32 %v1220, %v1236
          %v1269 = vxor.u32 %v1221, %v1237
          %v1270 = vxor.u32 %v1222, %v1238
          %v1271 = vxor.u32 %v1223, %v1239
          %v1272 = vxor.u32 %v1224, %v1240
          %v1273 = vxor.u32 %v1225, %v1241
          %v1274 = vxor.u32 %v1226, %v1242
          %v1275 = vxor.u32 %v1227, %v1243
          %v1276 = vshra.s32 %v1260, 1
          %v1277 = vshra.s32 %v1261, 1
          %v1278 = vshra.s32 %v1262, 1
          %v1279 = vshra.s32 %v1263, 1
          %v1280 = vshra.s32 %v1264, 1
          %v1281 = vshra.s32 %v1265, 1
          %v1282 = vshra.s32 %v1266, 1
          %v1283 = vshra.s32 %v1267, 1
          %v1284 = vshra.s32 %v1268, 1
          %v1285 = vshra.s32 %v1269, 1
          %v1286 = vshra.s32 %v1270, 1
          %v1287 = vshra.s32 %v1271, 1
          %v1288 = vshra.s32 %v1272, 1
          %v1289 = vshra.s32 %v1273, 1
          %v1290 = vshra.s32 %v1274, 1
          %v1291 = vshra.s32 %v1275, 1
          %v1292 = vadd.s32 %v1244, %v1276
          %v1293 = vadd.s32 %v1245, %v1277
          %v1294 = vadd.s32 %v1246, %v1278
          %v1295 = vadd.s32 %v1247, %v1279
          %v1296 = vadd.s32 %v1248, %v1280
          %v1297 = vadd.s32 %v1249, %v1281
          %v1298 = vadd.s32 %v1250, %v1282
          %v1299 = vadd.s32 %v1251, %v1283
          %v1300 = vadd.s32 %v1252, %v1284
          %v1301 = vadd.s32 %v1253, %v1285
          %v1302 = vadd.s32 %v1254, %v1286
          %v1303 = vadd.s32 %v1255, %v1287
          %v1304 = vadd.s32 %v1256, %v1288
          %v1305 = vadd.s32 %v1257, %v1289
          %v1306 = vadd.s32 %v1258, %v1290
          %v1307 = vadd.s32 %v1259, %v1291
          %vm1308 = vcmp.ge.s32.totalorder %v949, %v1292
          %vm1309 = vcmp.ge.s32.totalorder %v950, %v1293
          %vm1310 = vcmp.ge.s32.totalorder %v951, %v1294
          %vm1311 = vcmp.ge.s32.totalorder %v952, %v1295
          %vm1312 = vcmp.ge.s32.totalorder %v953, %v1296
          %vm1313 = vcmp.ge.s32.totalorder %v954, %v1297
          %vm1314 = vcmp.ge.s32.totalorder %v955, %v1298
          %vm1315 = vcmp.ge.s32.totalorder %v956, %v1299
          %vm1316 = vcmp.ge.s32.totalorder %v957, %v1300
          %vm1317 = vcmp.ge.s32.totalorder %v958, %v1301
          %vm1318 = vcmp.ge.s32.totalorder %v959, %v1302
          %vm1319 = vcmp.ge.s32.totalorder %v960, %v1303
          %vm1320 = vcmp.ge.s32.totalorder %v961, %v1304
          %vm1321 = vcmp.ge.s32.totalorder %v962, %v1305
          %vm1322 = vcmp.ge.s32.totalorder %v963, %v1306
          %vm1323 = vcmp.ge.s32.totalorder %v964, %v1307
          %v1324 = vsel %vm1308, 1, 0
          %v1325 = vsel %vm1309, 1, 0
          %v1326 = vsel %vm1310, 1, 0
          %v1327 = vsel %vm1311, 1, 0
          %v1328 = vsel %vm1312, 1, 0
          %v1329 = vsel %vm1313, 1, 0
          %v1330 = vsel %vm1314, 1, 0
          %v1331 = vsel %vm1315, 1, 0
          %v1332 = vsel %vm1316, 1, 0
          %v1333 = vsel %vm1317, 1, 0
          %v1334 = vsel %vm1318, 1, 0
          %v1335 = vsel %vm1319, 1, 0
          %v1336 = vsel %vm1320, 1, 0
          %v1337 = vsel %vm1321, 1, 0
          %v1338 = vsel %vm1322, 1, 0
          %v1339 = vsel %vm1323, 1, 0
          %v1340 = vsel %vm965, %v1324, 0
          %v1341 = vand.u32 %v1340, 65535
          %v1342 = vshrl.u32 %v1340, 16
          %v1343 = vcvt.s32.f32 %v1341
          %v1344 = vcvt.s32.f32 %v1342
          %1345 = vadd.xlane.f32.xlu0 %v1343
          %v1346 = vpop.xlane.xlu0 %1345
          %1347 = vadd.xlane.f32.xlu0 %v1344
          %v1348 = vpop.xlane.xlu0 %1347
          %v1349 = vcvt.f32.s32 %v1346
          %v1350 = vcvt.f32.s32 %v1348
          %v1351 = vshll.u32 %v1350, 16
          %v1352 = vadd.s32 %v1351, %v1349
          %v1353 = vsel %vm965, %v1325, 0
          %v1354 = vand.u32 %v1353, 65535
          %v1355 = vshrl.u32 %v1353, 16
          %v1356 = vcvt.s32.f32 %v1354
          %v1357 = vcvt.s32.f32 %v1355
          %1358 = vadd.xlane.f32.xlu0 %v1356
          %v1359 = vpop.xlane.xlu0 %1358
          %1360 = vadd.xlane.f32.xlu0 %v1357
          %v1361 = vpop.xlane.xlu0 %1360
          %v1362 = vcvt.f32.s32 %v1359
          %v1363 = vcvt.f32.s32 %v1361
          %v1364 = vshll.u32 %v1363, 16
          %v1365 = vadd.s32 %v1364, %v1362
          %v1366 = vsel %vm965, %v1326, 0
          %v1367 = vand.u32 %v1366, 65535
          %v1368 = vshrl.u32 %v1366, 16
          %v1369 = vcvt.s32.f32 %v1367
          %v1370 = vcvt.s32.f32 %v1368
          %1371 = vadd.xlane.f32.xlu0 %v1369
          %v1372 = vpop.xlane.xlu0 %1371
          %1373 = vadd.xlane.f32.xlu0 %v1370
          %v1374 = vpop.xlane.xlu0 %1373
          %v1375 = vcvt.f32.s32 %v1372
          %v1376 = vcvt.f32.s32 %v1374
          %v1377 = vshll.u32 %v1376, 16
          %v1378 = vadd.s32 %v1377, %v1375
          %v1379 = vsel %vm965, %v1327, 0
          %v1380 = vand.u32 %v1379, 65535
          %v1381 = vshrl.u32 %v1379, 16
          %v1382 = vcvt.s32.f32 %v1380
          %v1383 = vcvt.s32.f32 %v1381
          %1384 = vadd.xlane.f32.xlu0 %v1382
          %v1385 = vpop.xlane.xlu0 %1384
          %1386 = vadd.xlane.f32.xlu0 %v1383
          %v1387 = vpop.xlane.xlu0 %1386
          %v1388 = vcvt.f32.s32 %v1385
          %v1389 = vcvt.f32.s32 %v1387
          %v1390 = vshll.u32 %v1389, 16
          %v1391 = vadd.s32 %v1390, %v1388
          %v1392 = vsel %vm965, %v1328, 0
          %v1393 = vand.u32 %v1392, 65535
          %v1394 = vshrl.u32 %v1392, 16
          %v1395 = vcvt.s32.f32 %v1393
          %v1396 = vcvt.s32.f32 %v1394
          %1397 = vadd.xlane.f32.xlu0 %v1395
          %v1398 = vpop.xlane.xlu0 %1397
          %1399 = vadd.xlane.f32.xlu0 %v1396
          %v1400 = vpop.xlane.xlu0 %1399
          %v1401 = vcvt.f32.s32 %v1398
          %v1402 = vcvt.f32.s32 %v1400
          %v1403 = vshll.u32 %v1402, 16
          %v1404 = vadd.s32 %v1403, %v1401
          %v1405 = vsel %vm965, %v1329, 0
          %v1406 = vand.u32 %v1405, 65535
          %v1407 = vshrl.u32 %v1405, 16
          %v1408 = vcvt.s32.f32 %v1406
          %v1409 = vcvt.s32.f32 %v1407
          %1410 = vadd.xlane.f32.xlu0 %v1408
          %v1411 = vpop.xlane.xlu0 %1410
          %1412 = vadd.xlane.f32.xlu0 %v1409
          %v1413 = vpop.xlane.xlu0 %1412
          %v1414 = vcvt.f32.s32 %v1411
          %v1415 = vcvt.f32.s32 %v1413
          %v1416 = vshll.u32 %v1415, 16
          %v1417 = vadd.s32 %v1416, %v1414
          %v1418 = vsel %vm965, %v1330, 0
          %v1419 = vand.u32 %v1418, 65535
          %v1420 = vshrl.u32 %v1418, 16
          %v1421 = vcvt.s32.f32 %v1419
          %v1422 = vcvt.s32.f32 %v1420
          %1423 = vadd.xlane.f32.xlu0 %v1421
          %v1424 = vpop.xlane.xlu0 %1423
          %1425 = vadd.xlane.f32.xlu0 %v1422
          %v1426 = vpop.xlane.xlu0 %1425
          %v1427 = vcvt.f32.s32 %v1424
          %v1428 = vcvt.f32.s32 %v1426
          %v1429 = vshll.u32 %v1428, 16
          %v1430 = vadd.s32 %v1429, %v1427
          %v1431 = vsel %vm965, %v1331, 0
          %v1432 = vand.u32 %v1431, 65535
          %v1433 = vshrl.u32 %v1431, 16
          %v1434 = vcvt.s32.f32 %v1432
          %v1435 = vcvt.s32.f32 %v1433
          %1436 = vadd.xlane.f32.xlu0 %v1434
          %v1437 = vpop.xlane.xlu0 %1436
          %1438 = vadd.xlane.f32.xlu0 %v1435
          %v1439 = vpop.xlane.xlu0 %1438
          %v1440 = vcvt.f32.s32 %v1437
          %v1441 = vcvt.f32.s32 %v1439
          %v1442 = vshll.u32 %v1441, 16
          %v1443 = vadd.s32 %v1442, %v1440
          %v1444 = vsel %vm965, %v1332, 0
          %v1445 = vand.u32 %v1444, 65535
          %v1446 = vshrl.u32 %v1444, 16
          %v1447 = vcvt.s32.f32 %v1445
          %v1448 = vcvt.s32.f32 %v1446
          %1449 = vadd.xlane.f32.xlu0 %v1447
          %v1450 = vpop.xlane.xlu0 %1449
          %1451 = vadd.xlane.f32.xlu0 %v1448
          %v1452 = vpop.xlane.xlu0 %1451
          %v1453 = vcvt.f32.s32 %v1450
          %v1454 = vcvt.f32.s32 %v1452
          %v1455 = vshll.u32 %v1454, 16
          %v1456 = vadd.s32 %v1455, %v1453
          %v1457 = vsel %vm965, %v1333, 0
          %v1458 = vand.u32 %v1457, 65535
          %v1459 = vshrl.u32 %v1457, 16
          %v1460 = vcvt.s32.f32 %v1458
          %v1461 = vcvt.s32.f32 %v1459
          %1462 = vadd.xlane.f32.xlu0 %v1460
          %v1463 = vpop.xlane.xlu0 %1462
          %1464 = vadd.xlane.f32.xlu0 %v1461
          %v1465 = vpop.xlane.xlu0 %1464
          %v1466 = vcvt.f32.s32 %v1463
          %v1467 = vcvt.f32.s32 %v1465
          %v1468 = vshll.u32 %v1467, 16
          %v1469 = vadd.s32 %v1468, %v1466
          %v1470 = vsel %vm965, %v1334, 0
          %v1471 = vand.u32 %v1470, 65535
          %v1472 = vshrl.u32 %v1470, 16
          %v1473 = vcvt.s32.f32 %v1471
          %v1474 = vcvt.s32.f32 %v1472
          %1475 = vadd.xlane.f32.xlu0 %v1473
          %v1476 = vpop.xlane.xlu0 %1475
          %1477 = vadd.xlane.f32.xlu0 %v1474
          %v1478 = vpop.xlane.xlu0 %1477
          %v1479 = vcvt.f32.s32 %v1476
          %v1480 = vcvt.f32.s32 %v1478
          %v1481 = vshll.u32 %v1480, 16
          %v1482 = vadd.s32 %v1481, %v1479
          %v1483 = vsel %vm965, %v1335, 0
          %v1484 = vand.u32 %v1483, 65535
          %v1485 = vshrl.u32 %v1483, 16
          %v1486 = vcvt.s32.f32 %v1484
          %v1487 = vcvt.s32.f32 %v1485
          %1488 = vadd.xlane.f32.xlu0 %v1486
          %v1489 = vpop.xlane.xlu0 %1488
          %1490 = vadd.xlane.f32.xlu0 %v1487
          %v1491 = vpop.xlane.xlu0 %1490
          %v1492 = vcvt.f32.s32 %v1489
          %v1493 = vcvt.f32.s32 %v1491
          %v1494 = vshll.u32 %v1493, 16
          %v1495 = vadd.s32 %v1494, %v1492
          %v1496 = vsel %vm965, %v1336, 0
          %v1497 = vand.u32 %v1496, 65535
          %v1498 = vshrl.u32 %v1496, 16
          %v1499 = vcvt.s32.f32 %v1497
          %v1500 = vcvt.s32.f32 %v1498
          %1501 = vadd.xlane.f32.xlu0 %v1499
          %v1502 = vpop.xlane.xlu0 %1501
          %1503 = vadd.xlane.f32.xlu0 %v1500
          %v1504 = vpop.xlane.xlu0 %1503
          %v1505 = vcvt.f32.s32 %v1502
          %v1506 = vcvt.f32.s32 %v1504
          %v1507 = vshll.u32 %v1506, 16
          %v1508 = vadd.s32 %v1507, %v1505
          %v1509 = vsel %vm965, %v1337, 0
          %v1510 = vand.u32 %v1509, 65535
          %v1511 = vshrl.u32 %v1509, 16
          %v1512 = vcvt.s32.f32 %v1510
          %v1513 = vcvt.s32.f32 %v1511
          %1514 = vadd.xlane.f32.xlu0 %v1512
          %v1515 = vpop.xlane.xlu0 %1514
          %1516 = vadd.xlane.f32.xlu0 %v1513
          %v1517 = vpop.xlane.xlu0 %1516
          %v1518 = vcvt.f32.s32 %v1515
          %v1519 = vcvt.f32.s32 %v1517
          %v1520 = vshll.u32 %v1519, 16
          %v1521 = vadd.s32 %v1520, %v1518
          %v1522 = vsel %vm965, %v1338, 0
          %v1523 = vand.u32 %v1522, 65535
          %v1524 = vshrl.u32 %v1522, 16
          %v1525 = vcvt.s32.f32 %v1523
          %v1526 = vcvt.s32.f32 %v1524
          %1527 = vadd.xlane.f32.xlu0 %v1525
          %v1528 = vpop.xlane.xlu0 %1527
          %1529 = vadd.xlane.f32.xlu0 %v1526
          %v1530 = vpop.xlane.xlu0 %1529
          %v1531 = vcvt.f32.s32 %v1528
          %v1532 = vcvt.f32.s32 %v1530
          %v1533 = vshll.u32 %v1532, 16
          %v1534 = vadd.s32 %v1533, %v1531
          %v1535 = vsel %vm965, %v1339, 0
          %v1536 = vand.u32 %v1535, 65535
          %v1537 = vshrl.u32 %v1535, 16
          %v1538 = vcvt.s32.f32 %v1536
          %v1539 = vcvt.s32.f32 %v1537
          %1540 = vadd.xlane.f32.xlu0 %v1538
          %v1541 = vpop.xlane.xlu0 %1540
          %1542 = vadd.xlane.f32.xlu0 %v1539
          %v1543 = vpop.xlane.xlu0 %1542
          %v1544 = vcvt.f32.s32 %v1541
          %v1545 = vcvt.f32.s32 %v1543
          %v1546 = vshll.u32 %v1545, 16
          %v1547 = vadd.s32 %v1546, %v1544
          %vm1548 = vcmp.ge.s32.totalorder %v1352, 13
          %vm1549 = vcmp.ge.s32.totalorder %v1365, 13
          %vm1550 = vcmp.ge.s32.totalorder %v1378, 13
          %vm1551 = vcmp.ge.s32.totalorder %v1391, 13
          %vm1552 = vcmp.ge.s32.totalorder %v1404, 13
          %vm1553 = vcmp.ge.s32.totalorder %v1417, 13
          %vm1554 = vcmp.ge.s32.totalorder %v1430, 13
          %vm1555 = vcmp.ge.s32.totalorder %v1443, 13
          %vm1556 = vcmp.ge.s32.totalorder %v1456, 13
          %vm1557 = vcmp.ge.s32.totalorder %v1469, 13
          %vm1558 = vcmp.ge.s32.totalorder %v1482, 13
          %vm1559 = vcmp.ge.s32.totalorder %v1495, 13
          %vm1560 = vcmp.ge.s32.totalorder %v1508, 13
          %vm1561 = vcmp.ge.s32.totalorder %v1521, 13
          %vm1562 = vcmp.ge.s32.totalorder %v1534, 13
          %vm1563 = vcmp.ge.s32.totalorder %v1547, 13
          %v1564 = vsel %vm1548, %v1292, %v1212
          %v1565 = vsel %vm1549, %v1293, %v1213
          %v1566 = vsel %vm1550, %v1294, %v1214
          %v1567 = vsel %vm1551, %v1295, %v1215
          %v1568 = vsel %vm1552, %v1296, %v1216
          %v1569 = vsel %vm1553, %v1297, %v1217
          %v1570 = vsel %vm1554, %v1298, %v1218
          %v1571 = vsel %vm1555, %v1299, %v1219
          %v1572 = vsel %vm1556, %v1300, %v1220
          %v1573 = vsel %vm1557, %v1301, %v1221
          %v1574 = vsel %vm1558, %v1302, %v1222
          %v1575 = vsel %vm1559, %v1303, %v1223
          %v1576 = vsel %vm1560, %v1304, %v1224
          %v1577 = vsel %vm1561, %v1305, %v1225
          %v1578 = vsel %vm1562, %v1306, %v1226
          %v1579 = vsel %vm1563, %v1307, %v1227
          %v1580 = vsel %vm1548, %v1228, %v1292
          %v1581 = vsel %vm1549, %v1229, %v1293
          %v1582 = vsel %vm1550, %v1230, %v1294
          %v1583 = vsel %vm1551, %v1231, %v1295
          %v1584 = vsel %vm1552, %v1232, %v1296
          %v1585 = vsel %vm1553, %v1233, %v1297
          %v1586 = vsel %vm1554, %v1234, %v1298
          %v1587 = vsel %vm1555, %v1235, %v1299
          %v1588 = vsel %vm1556, %v1236, %v1300
          %v1589 = vsel %vm1557, %v1237, %v1301
          %v1590 = vsel %vm1558, %v1238, %v1302
          %v1591 = vsel %vm1559, %v1239, %v1303
          %v1592 = vsel %vm1560, %v1240, %v1304
          %v1593 = vsel %vm1561, %v1241, %v1305
          %v1594 = vsel %vm1562, %v1242, %v1306
          %v1595 = vsel %vm1563, %v1243, %v1307
        $region73: #{tpu_custom_call.1} parent=63 // loop_footer
          %s1211 = sadd.s32 1, %s1207
        $region74: #{tpu_custom_call.1} parent=63 // loop_footer_branch
          %1206 = sbr.rel target = $region70
        $region75: #{tpu_custom_call.1} parent=63 // loop_exit
          _
        %vm1596 = vcmp.ge.s32.totalorder %v949, %v1212
        %vm1597 = vcmp.ge.s32.totalorder %v950, %v1213
        %vm1598 = vcmp.ge.s32.totalorder %v951, %v1214
        %vm1599 = vcmp.ge.s32.totalorder %v952, %v1215
        %vm1600 = vcmp.ge.s32.totalorder %v953, %v1216
        %vm1601 = vcmp.ge.s32.totalorder %v954, %v1217
        %vm1602 = vcmp.ge.s32.totalorder %v955, %v1218
        %vm1603 = vcmp.ge.s32.totalorder %v956, %v1219
        %vm1604 = vcmp.ge.s32.totalorder %v957, %v1220
        %vm1605 = vcmp.ge.s32.totalorder %v958, %v1221
        %vm1606 = vcmp.ge.s32.totalorder %v959, %v1222
        %vm1607 = vcmp.ge.s32.totalorder %v960, %v1223
        %vm1608 = vcmp.ge.s32.totalorder %v961, %v1224
        %vm1609 = vcmp.ge.s32.totalorder %v962, %v1225
        %vm1610 = vcmp.ge.s32.totalorder %v963, %v1226
        %vm1611 = vcmp.ge.s32.totalorder %v964, %v1227
        %v1612 = vsel %vm1596, %v539, 0.0
        %v1613 = vsel %vm1597, %v542, 0.0
        %v1614 = vsel %vm1598, %v590, 0.0
        %v1615 = vsel %vm1599, %v593, 0.0
        %v1616 = vsel %vm1600, %v641, 0.0
        %v1617 = vsel %vm1601, %v644, 0.0
        %v1618 = vsel %vm1602, %v692, 0.0
        %v1619 = vsel %vm1603, %v695, 0.0
        %v1620 = vsel %vm1604, %v742, 0.0
        %v1621 = vsel %vm1605, %v745, 0.0
        %v1622 = vsel %vm1606, %v793, 0.0
        %v1623 = vsel %vm1607, %v796, 0.0
        %v1624 = vsel %vm1608, %v844, 0.0
        %v1625 = vsel %vm1609, %v847, 0.0
        %v1626 = vsel %vm1610, %v895, 0.0
        %v1627 = vsel %vm1611, %v898, 0.0
        %v1628 = vsel %vm965, %v1612, -inf
        %1629 = vmax.xlane.f32.xlu0 %v1628
        %v1630 = vpop.xlane.xlu0 %1629
        %v1631 = vsel %vm965, %v1613, -inf
        %1632 = vmax.xlane.f32.xlu0 %v1631
        %v1633 = vpop.xlane.xlu0 %1632
        %v1634 = vsel %vm965, %v1614, -inf
        %1635 = vmax.xlane.f32.xlu0 %v1634
        %v1636 = vpop.xlane.xlu0 %1635
        %v1637 = vsel %vm965, %v1615, -inf
        %1638 = vmax.xlane.f32.xlu0 %v1637
        %v1639 = vpop.xlane.xlu0 %1638
        %v1640 = vsel %vm965, %v1616, -inf
        %1641 = vmax.xlane.f32.xlu0 %v1640
        %v1642 = vpop.xlane.xlu0 %1641
        %v1643 = vsel %vm965, %v1617, -inf
        %1644 = vmax.xlane.f32.xlu0 %v1643
        %v1645 = vpop.xlane.xlu0 %1644
        %v1646 = vsel %vm965, %v1618, -inf
        %1647 = vmax.xlane.f32.xlu0 %v1646
        %v1648 = vpop.xlane.xlu0 %1647
        %v1649 = vsel %vm965, %v1619, -inf
        %1650 = vmax.xlane.f32.xlu0 %v1649
        %v1651 = vpop.xlane.xlu0 %1650
        %v1652 = vsel %vm965, %v1620, -inf
        %1653 = vmax.xlane.f32.xlu0 %v1652
        %v1654 = vpop.xlane.xlu0 %1653
        %v1655 = vsel %vm965, %v1621, -inf
        %1656 = vmax.xlane.f32.xlu0 %v1655
        %v1657 = vpop.xlane.xlu0 %1656
        %v1658 = vsel %vm965, %v1622, -inf
        %1659 = vmax.xlane.f32.xlu0 %v1658
        %v1660 = vpop.xlane.xlu0 %1659
        %v1661 = vsel %vm965, %v1623, -inf
        %1662 = vmax.xlane.f32.xlu0 %v1661
        %v1663 = vpop.xlane.xlu0 %1662
        %v1664 = vsel %vm965, %v1624, -inf
        %1665 = vmax.xlane.f32.xlu0 %v1664
        %v1666 = vpop.xlane.xlu0 %1665
        %v1667 = vsel %vm965, %v1625, -inf
        %1668 = vmax.xlane.f32.xlu0 %v1667
        %v1669 = vpop.xlane.xlu0 %1668
        %v1670 = vsel %vm965, %v1626, -inf
        %1671 = vmax.xlane.f32.xlu0 %v1670
        %v1672 = vpop.xlane.xlu0 %1671
        %v1673 = vsel %vm965, %v1627, -inf
        %1674 = vmax.xlane.f32.xlu0 %v1673
        %v1675 = vpop.xlane.xlu0 %1674
        %v1676 = vsub.f32 %v1612, %v1630
        %v1677 = vsub.f32 %v1613, %v1633
        %v1678 = vsub.f32 %v1614, %v1636
        %v1679 = vsub.f32 %v1615, %v1639
        %v1680 = vsub.f32 %v1616, %v1642
        %v1681 = vsub.f32 %v1617, %v1645
        %v1682 = vsub.f32 %v1618, %v1648
        %v1683 = vsub.f32 %v1619, %v1651
        %v1684 = vsub.f32 %v1620, %v1654
        %v1685 = vsub.f32 %v1621, %v1657
        %v1686 = vsub.f32 %v1622, %v1660
        %v1687 = vsub.f32 %v1623, %v1663
        %v1688 = vsub.f32 %v1624, %v1666
        %v1689 = vsub.f32 %v1625, %v1669
        %v1690 = vsub.f32 %v1626, %v1672
        %v1691 = vsub.f32 %v1627, %v1675
        %v1692 = vmul.f32 %v1676, 1.442695
        %v1693 = vpow.pop %v1692
        %v1694 = vmul.f32 %v1677, 1.442695
        %v1695 = vpow.pop %v1694
        %v1696 = vmul.f32 %v1678, 1.442695
        %v1697 = vpow.pop %v1696
        %v1698 = vmul.f32 %v1679, 1.442695
        %v1699 = vpow.pop %v1698
        %v1700 = vmul.f32 %v1680, 1.442695
        %v1701 = vpow.pop %v1700
        %v1702 = vmul.f32 %v1681, 1.442695
        %v1703 = vpow.pop %v1702
        %v1704 = vmul.f32 %v1682, 1.442695
        %v1705 = vpow.pop %v1704
        %v1706 = vmul.f32 %v1683, 1.442695
        %v1707 = vpow.pop %v1706
        %v1708 = vmul.f32 %v1684, 1.442695
        %v1709 = vpow.pop %v1708
        %v1710 = vmul.f32 %v1685, 1.442695
        %v1711 = vpow.pop %v1710
        %v1712 = vmul.f32 %v1686, 1.442695
        %v1713 = vpow.pop %v1712
        %v1714 = vmul.f32 %v1687, 1.442695
        %v1715 = vpow.pop %v1714
        %v1716 = vmul.f32 %v1688, 1.442695
        %v1717 = vpow.pop %v1716
        %v1718 = vmul.f32 %v1689, 1.442695
        %v1719 = vpow.pop %v1718
        %v1720 = vmul.f32 %v1690, 1.442695
        %v1721 = vpow.pop %v1720
        %v1722 = vmul.f32 %v1691, 1.442695
        %v1723 = vpow.pop %v1722
        %v1724 = vsel %vm965, %v1693, 0.0
        %1725 = vadd.xlane.f32.xlu0 %v1724
        %v1726 = vpop.xlane.xlu0 %1725
        %v1727 = vsel %vm965, %v1695, 0.0
        %1728 = vadd.xlane.f32.xlu0 %v1727
        %v1729 = vpop.xlane.xlu0 %1728
        %v1730 = vsel %vm965, %v1697, 0.0
        %1731 = vadd.xlane.f32.xlu0 %v1730
        %v1732 = vpop.xlane.xlu0 %1731
        %v1733 = vsel %vm965, %v1699, 0.0
        %1734 = vadd.xlane.f32.xlu0 %v1733
        %v1735 = vpop.xlane.xlu0 %1734
        %v1736 = vsel %vm965, %v1701, 0.0
        %1737 = vadd.xlane.f32.xlu0 %v1736
        %v1738 = vpop.xlane.xlu0 %1737
        %v1739 = vsel %vm965, %v1703, 0.0
        %1740 = vadd.xlane.f32.xlu0 %v1739
        %v1741 = vpop.xlane.xlu0 %1740
        %v1742 = vsel %vm965, %v1705, 0.0
        %1743 = vadd.xlane.f32.xlu0 %v1742
        %v1744 = vpop.xlane.xlu0 %1743
        %v1745 = vsel %vm965, %v1707, 0.0
        %1746 = vadd.xlane.f32.xlu0 %v1745
        %v1747 = vpop.xlane.xlu0 %1746
        %v1748 = vsel %vm965, %v1709, 0.0
        %1749 = vadd.xlane.f32.xlu0 %v1748
        %v1750 = vpop.xlane.xlu0 %1749
        %v1751 = vsel %vm965, %v1711, 0.0
        %1752 = vadd.xlane.f32.xlu0 %v1751
        %v1753 = vpop.xlane.xlu0 %1752
        %v1754 = vsel %vm965, %v1713, 0.0
        %1755 = vadd.xlane.f32.xlu0 %v1754
        %v1756 = vpop.xlane.xlu0 %1755
        %v1757 = vsel %vm965, %v1715, 0.0
        %1758 = vadd.xlane.f32.xlu0 %v1757
        %v1759 = vpop.xlane.xlu0 %1758
        %v1760 = vsel %vm965, %v1717, 0.0
        %1761 = vadd.xlane.f32.xlu0 %v1760
        %v1762 = vpop.xlane.xlu0 %1761
        %v1763 = vsel %vm965, %v1719, 0.0
        %1764 = vadd.xlane.f32.xlu0 %v1763
        %v1765 = vpop.xlane.xlu0 %1764
        %v1766 = vsel %vm965, %v1721, 0.0
        %1767 = vadd.xlane.f32.xlu0 %v1766
        %v1768 = vpop.xlane.xlu0 %1767
        %v1769 = vsel %vm965, %v1723, 0.0
        %1770 = vadd.xlane.f32.xlu0 %v1769
        %v1771 = vpop.xlane.xlu0 %1770
        %v1772 = vrcp.pop %v1726
        %v1773 = vmul.f32 1.0, %v1772
        %v1774 = vrcp.pop %v1729
        %v1775 = vmul.f32 1.0, %v1774
        %v1776 = vrcp.pop %v1732
        %v1777 = vmul.f32 1.0, %v1776
        %v1778 = vrcp.pop %v1735
        %v1779 = vmul.f32 1.0, %v1778
        %v1780 = vrcp.pop %v1738
        %v1781 = vmul.f32 1.0, %v1780
        %v1782 = vrcp.pop %v1741
        %v1783 = vmul.f32 1.0, %v1782
        %v1784 = vrcp.pop %v1744
        %v1785 = vmul.f32 1.0, %v1784
        %v1786 = vrcp.pop %v1747
        %v1787 = vmul.f32 1.0, %v1786
        %v1788 = vrcp.pop %v1750
        %v1789 = vmul.f32 1.0, %v1788
        %v1790 = vrcp.pop %v1753
        %v1791 = vmul.f32 1.0, %v1790
        %v1792 = vrcp.pop %v1756
        %v1793 = vmul.f32 1.0, %v1792
        %v1794 = vrcp.pop %v1759
        %v1795 = vmul.f32 1.0, %v1794
        %v1796 = vrcp.pop %v1762
        %v1797 = vmul.f32 1.0, %v1796
        %v1798 = vrcp.pop %v1765
        %v1799 = vmul.f32 1.0, %v1798
        %v1800 = vrcp.pop %v1768
        %v1801 = vmul.f32 1.0, %v1800
        %v1802 = vrcp.pop %v1771
        %v1803 = vmul.f32 1.0, %v1802
        %v1804 = vmul.f32 %v1693, %v1773
        %v1805 = vmul.f32 %v1695, %v1775
        %v1806 = vmul.f32 %v1697, %v1777
        %v1807 = vmul.f32 %v1699, %v1779
        %v1808 = vmul.f32 %v1701, %v1781
        %v1809 = vmul.f32 %v1703, %v1783
        %v1810 = vmul.f32 %v1705, %v1785
        %v1811 = vmul.f32 %v1707, %v1787
        %v1812 = vmul.f32 %v1709, %v1789
        %v1813 = vmul.f32 %v1711, %v1791
        %v1814 = vmul.f32 %v1713, %v1793
        %v1815 = vmul.f32 %v1715, %v1795
        %v1816 = vmul.f32 %v1717, %v1797
        %v1817 = vmul.f32 %v1719, %v1799
        %v1818 = vmul.f32 %v1721, %v1801
        %v1819 = vmul.f32 %v1723, %v1803
        %v1820 = vpack.c.bf16 %v1805, %v1804
        %v1821 = vpack.c.bf16 %v1807, %v1806
        %v1822 = vpack.c.bf16 %v1809, %v1808
        %v1823 = vpack.c.bf16 %v1811, %v1810
        %v1824 = vpack.c.bf16 %v1813, %v1812
        %v1825 = vpack.c.bf16 %v1815, %v1814
        %v1826 = vpack.c.bf16 %v1817, %v1816
        %v1827 = vpack.c.bf16 %v1819, %v1818
        %1828 = vrot.lane.b32.xlu0 %v492, 64
        %v1829 = vpop.permute.xlu0 %1828
        %v1832 = vsel %vm965, %v1820, 0
        %1834 = vmatprep.subr.bf16.mxu0 0
        %1835 = vmatpush1.bf16.msra.mxu0 0
        %1836 = vmatprep.subr.bf16.mxu0 0
        %1837 = vmatpush1.bf16.msra.mxu0 0
        %1838 = vmatprep.subr.bf16.mxu0 0
        %1839 = vmatpush1.bf16.msra.mxu0 0
        %1840 = vmatprep.subr.bf16.mxu0 0
        %1841 = vmatpush1.bf16.msra.mxu0 0
        %1842 = vmatprep.subr.bf16.mxu0 0
        %1843 = vmatpush1.bf16.msra.mxu0 0
        %1844 = vmatprep.subr.bf16.mxu0 0
        %1845 = vmatpush1.bf16.msra.mxu0 0
        %1846 = vmatprep.subr.bf16.mxu0 0
        %1847 = vmatpush1.bf16.msra.mxu0 0
        %1848 = vmatprep.subr.bf16.mxu0 0
        %1849 = vmatpush1.bf16.msra.mxu0 %v1829
        %1850 = vmatprep.subr.bf16.mxu0 0
        %1851 = vmatpush2.bf16.msra.mxu0 0
        %1852 = vmatprep.subr.bf16.mxu0 0
        %1853 = vmatpush2.bf16.msra.mxu0 0
        %1854 = vmatprep.subr.bf16.mxu0 0
        %1855 = vmatpush2.bf16.msra.mxu0 0
        %1856 = vmatprep.subr.bf16.mxu0 0
        %1857 = vmatpush2.bf16.msra.mxu0 0
        %1858 = vmatprep.subr.bf16.mxu0 0
        %1859 = vmatpush2.bf16.msra.mxu0 0
        %1860 = vmatprep.subr.bf16.mxu0 0
        %1861 = vmatpush2.bf16.msra.mxu0 0
        %1862 = vmatprep.subr.bf16.mxu0 0
        %1863 = vmatpush2.bf16.msra.mxu0 0
        %1864 = vmatprep.subr.bf16.mxu0 0
        %1865 = vmatpush2.bf16.msra.mxu0 0
        %1866 = vmatprep.mubr.bf16.mxu0 0
        %1867 = vmatmul.mubr.bf16.gmra.mxu0 %v1832
        %v1868 = vpop.f32.mrf.mxu0
        %v1869 = vadd.f32 0.0, %v1868
        %v1870 = vpop.f32.mrf.mxu0
        %v1871 = vpop.f32.mrf.mxu0
        %v1872 = vadd.f32 0.0, %v1871
        %v1873 = vpop.f32.mrf.mxu0
        %1874 = vdwg.mxu0
        %1875 = vst.msk [vmem:[#allocation2] sm:$0xff] %vm497, %v1869
        %1876 = vst.msk [vmem:[#allocation2 + $0x8] sm:$0xff] %vm497, %v1872
        %1877 = vrot.lane.b32.xlu0 %v492, 56
        %v1878 = vpop.permute.xlu0 %1877
        %v1881 = vsel %vm965, %v1821, 0
        %1883 = vmatprep.subr.bf16.mxu0 0
        %1884 = vmatpush1.bf16.msra.mxu0 0
        %1885 = vmatprep.subr.bf16.mxu0 0
        %1886 = vmatpush1.bf16.msra.mxu0 0
        %1887 = vmatprep.subr.bf16.mxu0 0
        %1888 = vmatpush1.bf16.msra.mxu0 0
        %1889 = vmatprep.subr.bf16.mxu0 0
        %1890 = vmatpush1.bf16.msra.mxu0 0
        %1891 = vmatprep.subr.bf16.mxu0 0
        %1892 = vmatpush1.bf16.msra.mxu0 0
        %1893 = vmatprep.subr.bf16.mxu0 0
        %1894 = vmatpush1.bf16.msra.mxu0 0
        %1895 = vmatprep.subr.bf16.mxu0 0
        %1896 = vmatpush1.bf16.msra.mxu0 0
        %1897 = vmatprep.subr.bf16.mxu0 0
        %1898 = vmatpush1.bf16.msra.mxu0 %v1878
        %1899 = vmatprep.subr.bf16.mxu0 0
        %1900 = vmatpush2.bf16.msra.mxu0 0
        %1901 = vmatprep.subr.bf16.mxu0 0
        %1902 = vmatpush2.bf16.msra.mxu0 0
        %1903 = vmatprep.subr.bf16.mxu0 0
        %1904 = vmatpush2.bf16.msra.mxu0 0
        %1905 = vmatprep.subr.bf16.mxu0 0
        %1906 = vmatpush2.bf16.msra.mxu0 0
        %1907 = vmatprep.subr.bf16.mxu0 0
        %1908 = vmatpush2.bf16.msra.mxu0 0
        %1909 = vmatprep.subr.bf16.mxu0 0
        %1910 = vmatpush2.bf16.msra.mxu0 0
        %1911 = vmatprep.subr.bf16.mxu0 0
        %1912 = vmatpush2.bf16.msra.mxu0 0
        %1913 = vmatprep.subr.bf16.mxu0 0
        %1914 = vmatpush2.bf16.msra.mxu0 0
        %1915 = vmatprep.mubr.bf16.mxu0 0
        %1916 = vmatmul.mubr.bf16.gmra.mxu0 %v1881
        %v1917 = vpop.f32.mrf.mxu0
        %v1918 = vadd.f32 0.0, %v1917
        %v1919 = vpop.f32.mrf.mxu0
        %v1920 = vpop.f32.mrf.mxu0
        %v1921 = vadd.f32 0.0, %v1920
        %v1922 = vpop.f32.mrf.mxu0
        %1923 = vdwg.mxu0
        %1926 = vrot.lane.b32.xlu0 %v1918, 8
        %v1927 = vpop.permute.xlu0 %1926
        %1928 = vrot.lane.b32.xlu0 %v1921, 8
        %v1929 = vpop.permute.xlu0 %1928
        %vm1932 = vcmask 130112
        %1933 = vst.msk [vmem:[#allocation2] sm:$0xff] %vm1932, %v1927
        %1934 = vst.msk [vmem:[#allocation2 + $0x8] sm:$0xff] %vm1932, %v1929
        %1935 = vrot.lane.b32.xlu0 %v492, 48
        %v1936 = vpop.permute.xlu0 %1935
        %v1939 = vsel %vm965, %v1822, 0
        %1941 = vmatprep.subr.bf16.mxu0 0
        %1942 = vmatpush1.bf16.msra.mxu0 0
        %1943 = vmatprep.subr.bf16.mxu0 0
        %1944 = vmatpush1.bf16.msra.mxu0 0
        %1945 = vmatprep.subr.bf16.mxu0 0
        %1946 = vmatpush1.bf16.msra.mxu0 0
        %1947 = vmatprep.subr.bf16.mxu0 0
        %1948 = vmatpush1.bf16.msra.mxu0 0
        %1949 = vmatprep.subr.bf16.mxu0 0
        %1950 = vmatpush1.bf16.msra.mxu0 0
        %1951 = vmatprep.subr.bf16.mxu0 0
        %1952 = vmatpush1.bf16.msra.mxu0 0
        %1953 = vmatprep.subr.bf16.mxu0 0
        %1954 = vmatpush1.bf16.msra.mxu0 0
        %1955 = vmatprep.subr.bf16.mxu0 0
        %1956 = vmatpush1.bf16.msra.mxu0 %v1936
        %1957 = vmatprep.subr.bf16.mxu0 0
        %1958 = vmatpush2.bf16.msra.mxu0 0
        %1959 = vmatprep.subr.bf16.mxu0 0
        %1960 = vmatpush2.bf16.msra.mxu0 0
        %1961 = vmatprep.subr.bf16.mxu0 0
        %1962 = vmatpush2.bf16.msra.mxu0 0
        %1963 = vmatprep.subr.bf16.mxu0 0
        %1964 = vmatpush2.bf16.msra.mxu0 0
        %1965 = vmatprep.subr.bf16.mxu0 0
        %1966 = vmatpush2.bf16.msra.mxu0 0
        %1967 = vmatprep.subr.bf16.mxu0 0
        %1968 = vmatpush2.bf16.msra.mxu0 0
        %1969 = vmatprep.subr.bf16.mxu0 0
        %1970 = vmatpush2.bf16.msra.mxu0 0
        %1971 = vmatprep.subr.bf16.mxu0 0
        %1972 = vmatpush2.bf16.msra.mxu0 0
        %1973 = vmatprep.mubr.bf16.mxu0 0
        %1974 = vmatmul.mubr.bf16.gmra.mxu0 %v1939
        %v1975 = vpop.f32.mrf.mxu0
        %v1976 = vadd.f32 0.0, %v1975
        %v1977 = vpop.f32.mrf.mxu0
        %v1978 = vpop.f32.mrf.mxu0
        %v1979 = vadd.f32 0.0, %v1978
        %v1980 = vpop.f32.mrf.mxu0
        %1981 = vdwg.mxu0
        %1984 = vrot.lane.b32.xlu0 %v1976, 16
        %v1985 = vpop.permute.xlu0 %1984
        %1986 = vrot.lane.b32.xlu0 %v1979, 16
        %v1987 = vpop.permute.xlu0 %1986
        %vm1990 = vcmask 195712
        %1991 = vst.msk [vmem:[#allocation2] sm:$0xff] %vm1990, %v1985
        %1992 = vst.msk [vmem:[#allocation2 + $0x8] sm:$0xff] %vm1990, %v1987
        %1993 = vrot.lane.b32.xlu0 %v492, 40
        %v1994 = vpop.permute.xlu0 %1993
        %v1997 = vsel %vm965, %v1823, 0
        %1999 = vmatprep.subr.bf16.mxu0 0
        %2000 = vmatpush1.bf16.msra.mxu0 0
        %2001 = vmatprep.subr.bf16.mxu0 0
        %2002 = vmatpush1.bf16.msra.mxu0 0
        %2003 = vmatprep.subr.bf16.mxu0 0
        %2004 = vmatpush1.bf16.msra.mxu0 0
        %2005 = vmatprep.subr.bf16.mxu0 0
        %2006 = vmatpush1.bf16.msra.mxu0 0
        %2007 = vmatprep.subr.bf16.mxu0 0
        %2008 = vmatpush1.bf16.msra.mxu0 0
        %2009 = vmatprep.subr.bf16.mxu0 0
        %2010 = vmatpush1.bf16.msra.mxu0 0
        %2011 = vmatprep.subr.bf16.mxu0 0
        %2012 = vmatpush1.bf16.msra.mxu0 0
        %2013 = vmatprep.subr.bf16.mxu0 0
        %2014 = vmatpush1.bf16.msra.mxu0 %v1994
        %2015 = vmatprep.subr.bf16.mxu0 0
        %2016 = vmatpush2.bf16.msra.mxu0 0
        %2017 = vmatprep.subr.bf16.mxu0 0
        %2018 = vmatpush2.bf16.msra.mxu0 0
        %2019 = vmatprep.subr.bf16.mxu0 0
        %2020 = vmatpush2.bf16.msra.mxu0 0
        %2021 = vmatprep.subr.bf16.mxu0 0
        %2022 = vmatpush2.bf16.msra.mxu0 0
        %2023 = vmatprep.subr.bf16.mxu0 0
        %2024 = vmatpush2.bf16.msra.mxu0 0
        %2025 = vmatprep.subr.bf16.mxu0 0
        %2026 = vmatpush2.bf16.msra.mxu0 0
        %2027 = vmatprep.subr.bf16.mxu0 0
        %2028 = vmatpush2.bf16.msra.mxu0 0
        %2029 = vmatprep.subr.bf16.mxu0 0
        %2030 = vmatpush2.bf16.msra.mxu0 0
        %2031 = vmatprep.mubr.bf16.mxu0 0
        %2032 = vmatmul.mubr.bf16.gmra.mxu0 %v1997
        %v2033 = vpop.f32.mrf.mxu0
        %v2034 = vadd.f32 0.0, %v2033
        %v2035 = vpop.f32.mrf.mxu0
        %v2036 = vpop.f32.mrf.mxu0
        %v2037 = vadd.f32 0.0, %v2036
        %v2038 = vpop.f32.mrf.mxu0
        %2039 = vdwg.mxu0
        %2042 = vrot.lane.b32.xlu0 %v2034, 24
        %v2043 = vpop.permute.xlu0 %2042
        %2044 = vrot.lane.b32.xlu0 %v2037, 24
        %v2045 = vpop.permute.xlu0 %2044
        %vm2048 = vcmask 261312
        %2049 = vst.msk [vmem:[#allocation2] sm:$0xff] %vm2048, %v2043
        %2050 = vst.msk [vmem:[#allocation2 + $0x8] sm:$0xff] %vm2048, %v2045
        %2051 = vrot.lane.b32.xlu0 %v493, 64
        %v2052 = vpop.permute.xlu0 %2051
        %v2055 = vsel %vm965, %v1824, 0
        %2057 = vmatprep.subr.bf16.mxu0 0
        %2058 = vmatpush1.bf16.msra.mxu0 0
        %2059 = vmatprep.subr.bf16.mxu0 0
        %2060 = vmatpush1.bf16.msra.mxu0 0
        %2061 = vmatprep.subr.bf16.mxu0 0
        %2062 = vmatpush1.bf16.msra.mxu0 0
        %2063 = vmatprep.subr.bf16.mxu0 0
        %2064 = vmatpush1.bf16.msra.mxu0 0
        %2065 = vmatprep.subr.bf16.mxu0 0
        %2066 = vmatpush1.bf16.msra.mxu0 0
        %2067 = vmatprep.subr.bf16.mxu0 0
        %2068 = vmatpush1.bf16.msra.mxu0 0
        %2069 = vmatprep.subr.bf16.mxu0 0
        %2070 = vmatpush1.bf16.msra.mxu0 0
        %2071 = vmatprep.subr.bf16.mxu0 0
        %2072 = vmatpush1.bf16.msra.mxu0 %v2052
        %2073 = vmatprep.subr.bf16.mxu0 0
        %2074 = vmatpush2.bf16.msra.mxu0 0
        %2075 = vmatprep.subr.bf16.mxu0 0
        %2076 = vmatpush2.bf16.msra.mxu0 0
        %2077 = vmatprep.subr.bf16.mxu0 0
        %2078 = vmatpush2.bf16.msra.mxu0 0
        %2079 = vmatprep.subr.bf16.mxu0 0
        %2080 = vmatpush2.bf16.msra.mxu0 0
        %2081 = vmatprep.subr.bf16.mxu0 0
        %2082 = vmatpush2.bf16.msra.mxu0 0
        %2083 = vmatprep.subr.bf16.mxu0 0
        %2084 = vmatpush2.bf16.msra.mxu0 0
        %2085 = vmatprep.subr.bf16.mxu0 0
        %2086 = vmatpush2.bf16.msra.mxu0 0
        %2087 = vmatprep.subr.bf16.mxu0 0
        %2088 = vmatpush2.bf16.msra.mxu0 0
        %2089 = vmatprep.mubr.bf16.mxu0 0
        %2090 = vmatmul.mubr.bf16.gmra.mxu0 %v2055
        %v2091 = vpop.f32.mrf.mxu0
        %v2092 = vadd.f32 0.0, %v2091
        %v2093 = vpop.f32.mrf.mxu0
        %v2094 = vpop.f32.mrf.mxu0
        %v2095 = vadd.f32 0.0, %v2094
        %v2096 = vpop.f32.mrf.mxu0
        %2097 = vdwg.mxu0
        %2098 = vst.msk [vmem:[#allocation2 + $0x10] sm:$0xff] %vm497, %v2092
        %2099 = vst.msk [vmem:[#allocation2 + $0x18] sm:$0xff] %vm497, %v2095
        %2100 = vrot.lane.b32.xlu0 %v493, 56
        %v2101 = vpop.permute.xlu0 %2100
        %v2104 = vsel %vm965, %v1825, 0
        %2106 = vmatprep.subr.bf16.mxu0 0
        %2107 = vmatpush1.bf16.msra.mxu0 0
        %2108 = vmatprep.subr.bf16.mxu0 0
        %2109 = vmatpush1.bf16.msra.mxu0 0
        %2110 = vmatprep.subr.bf16.mxu0 0
        %2111 = vmatpush1.bf16.msra.mxu0 0
        %2112 = vmatprep.subr.bf16.mxu0 0
        %2113 = vmatpush1.bf16.msra.mxu0 0
        %2114 = vmatprep.subr.bf16.mxu0 0
        %2115 = vmatpush1.bf16.msra.mxu0 0
        %2116 = vmatprep.subr.bf16.mxu0 0
        %2117 = vmatpush1.bf16.msra.mxu0 0
        %2118 = vmatprep.subr.bf16.mxu0 0
        %2119 = vmatpush1.bf16.msra.mxu0 0
        %2120 = vmatprep.subr.bf16.mxu0 0
        %2121 = vmatpush1.bf16.msra.mxu0 %v2101
        %2122 = vmatprep.subr.bf16.mxu0 0
        %2123 = vmatpush2.bf16.msra.mxu0 0
        %2124 = vmatprep.subr.bf16.mxu0 0
        %2125 = vmatpush2.bf16.msra.mxu0 0
        %2126 = vmatprep.subr.bf16.mxu0 0
        %2127 = vmatpush2.bf16.msra.mxu0 0
        %2128 = vmatprep.subr.bf16.mxu0 0
        %2129 = vmatpush2.bf16.msra.mxu0 0
        %2130 = vmatprep.subr.bf16.mxu0 0
        %2131 = vmatpush2.bf16.msra.mxu0 0
        %2132 = vmatprep.subr.bf16.mxu0 0
        %2133 = vmatpush2.bf16.msra.mxu0 0
        %2134 = vmatprep.subr.bf16.mxu0 0
        %2135 = vmatpush2.bf16.msra.mxu0 0
        %2136 = vmatprep.subr.bf16.mxu0 0
        %2137 = vmatpush2.bf16.msra.mxu0 0
        %2138 = vmatprep.mubr.bf16.mxu0 0
        %2139 = vmatmul.mubr.bf16.gmra.mxu0 %v2104
        %v2140 = vpop.f32.mrf.mxu0
        %v2141 = vadd.f32 0.0, %v2140
        %v2142 = vpop.f32.mrf.mxu0
        %v2143 = vpop.f32.mrf.mxu0
        %v2144 = vadd.f32 0.0, %v2143
        %v2145 = vpop.f32.mrf.mxu0
        %2146 = vdwg.mxu0
        %2149 = vrot.lane.b32.xlu0 %v2141, 8
        %v2150 = vpop.permute.xlu0 %2149
        %2151 = vrot.lane.b32.xlu0 %v2144, 8
        %v2152 = vpop.permute.xlu0 %2151
        %2155 = vst.msk [vmem:[#allocation2 + $0x10] sm:$0xff] %vm1932, %v2150
        %2156 = vst.msk [vmem:[#allocation2 + $0x18] sm:$0xff] %vm1932, %v2152
        %2157 = vrot.lane.b32.xlu0 %v493, 48
        %v2158 = vpop.permute.xlu0 %2157
        %v2161 = vsel %vm965, %v1826, 0
        %2163 = vmatprep.subr.bf16.mxu0 0
        %2164 = vmatpush1.bf16.msra.mxu0 0
        %2165 = vmatprep.subr.bf16.mxu0 0
        %2166 = vmatpush1.bf16.msra.mxu0 0
        %2167 = vmatprep.subr.bf16.mxu0 0
        %2168 = vmatpush1.bf16.msra.mxu0 0
        %2169 = vmatprep.subr.bf16.mxu0 0
        %2170 = vmatpush1.bf16.msra.mxu0 0
        %2171 = vmatprep.subr.bf16.mxu0 0
        %2172 = vmatpush1.bf16.msra.mxu0 0
        %2173 = vmatprep.subr.bf16.mxu0 0
        %2174 = vmatpush1.bf16.msra.mxu0 0
        %2175 = vmatprep.subr.bf16.mxu0 0
        %2176 = vmatpush1.bf16.msra.mxu0 0
        %2177 = vmatprep.subr.bf16.mxu0 0
        %2178 = vmatpush1.bf16.msra.mxu0 %v2158
        %2179 = vmatprep.subr.bf16.mxu0 0
        %2180 = vmatpush2.bf16.msra.mxu0 0
        %2181 = vmatprep.subr.bf16.mxu0 0
        %2182 = vmatpush2.bf16.msra.mxu0 0
        %2183 = vmatprep.subr.bf16.mxu0 0
        %2184 = vmatpush2.bf16.msra.mxu0 0
        %2185 = vmatprep.subr.bf16.mxu0 0
        %2186 = vmatpush2.bf16.msra.mxu0 0
        %2187 = vmatprep.subr.bf16.mxu0 0
        %2188 = vmatpush2.bf16.msra.mxu0 0
        %2189 = vmatprep.subr.bf16.mxu0 0
        %2190 = vmatpush2.bf16.msra.mxu0 0
        %2191 = vmatprep.subr.bf16.mxu0 0
        %2192 = vmatpush2.bf16.msra.mxu0 0
        %2193 = vmatprep.subr.bf16.mxu0 0
        %2194 = vmatpush2.bf16.msra.mxu0 0
        %2195 = vmatprep.mubr.bf16.mxu0 0
        %2196 = vmatmul.mubr.bf16.gmra.mxu0 %v2161
        %v2197 = vpop.f32.mrf.mxu0
        %v2198 = vadd.f32 0.0, %v2197
        %v2199 = vpop.f32.mrf.mxu0
        %v2200 = vpop.f32.mrf.mxu0
        %v2201 = vadd.f32 0.0, %v2200
        %v2202 = vpop.f32.mrf.mxu0
        %2203 = vdwg.mxu0
        %2206 = vrot.lane.b32.xlu0 %v2198, 16
        %v2207 = vpop.permute.xlu0 %2206
        %2208 = vrot.lane.b32.xlu0 %v2201, 16
        %v2209 = vpop.permute.xlu0 %2208
        %2212 = vst.msk [vmem:[#allocation2 + $0x10] sm:$0xff] %vm1990, %v2207
        %2213 = vst.msk [vmem:[#allocation2 + $0x18] sm:$0xff] %vm1990, %v2209
        %2214 = vrot.lane.b32.xlu0 %v493, 40
        %v2215 = vpop.permute.xlu0 %2214
        %v2218 = vsel %vm965, %v1827, 0
        %2220 = vmatprep.subr.bf16.mxu0 0
        %2221 = vmatpush1.bf16.msra.mxu0 0
        %2222 = vmatprep.subr.bf16.mxu0 0
        %2223 = vmatpush1.bf16.msra.mxu0 0
        %2224 = vmatprep.subr.bf16.mxu0 0
        %2225 = vmatpush1.bf16.msra.mxu0 0
        %2226 = vmatprep.subr.bf16.mxu0 0
        %2227 = vmatpush1.bf16.msra.mxu0 0
        %2228 = vmatprep.subr.bf16.mxu0 0
        %2229 = vmatpush1.bf16.msra.mxu0 0
        %2230 = vmatprep.subr.bf16.mxu0 0
        %2231 = vmatpush1.bf16.msra.mxu0 0
        %2232 = vmatprep.subr.bf16.mxu0 0
        %2233 = vmatpush1.bf16.msra.mxu0 0
        %2234 = vmatprep.subr.bf16.mxu0 0
        %2235 = vmatpush1.bf16.msra.mxu0 %v2215
        %2236 = vmatprep.subr.bf16.mxu0 0
        %2237 = vmatpush2.bf16.msra.mxu0 0
        %2238 = vmatprep.subr.bf16.mxu0 0
        %2239 = vmatpush2.bf16.msra.mxu0 0
        %2240 = vmatprep.subr.bf16.mxu0 0
        %2241 = vmatpush2.bf16.msra.mxu0 0
        %2242 = vmatprep.subr.bf16.mxu0 0
        %2243 = vmatpush2.bf16.msra.mxu0 0
        %2244 = vmatprep.subr.bf16.mxu0 0
        %2245 = vmatpush2.bf16.msra.mxu0 0
        %2246 = vmatprep.subr.bf16.mxu0 0
        %2247 = vmatpush2.bf16.msra.mxu0 0
        %2248 = vmatprep.subr.bf16.mxu0 0
        %2249 = vmatpush2.bf16.msra.mxu0 0
        %2250 = vmatprep.subr.bf16.mxu0 0
        %2251 = vmatpush2.bf16.msra.mxu0 0
        %2252 = vmatprep.mubr.bf16.mxu0 0
        %2253 = vmatmul.mubr.bf16.gmra.mxu0 %v2218
        %v2254 = vpop.f32.mrf.mxu0
        %v2255 = vadd.f32 0.0, %v2254
        %v2256 = vpop.f32.mrf.mxu0
        %v2257 = vpop.f32.mrf.mxu0
        %v2258 = vadd.f32 0.0, %v2257
        %v2259 = vpop.f32.mrf.mxu0
        %2260 = vdwg.mxu0
        %2263 = vrot.lane.b32.xlu0 %v2255, 24
        %v2264 = vpop.permute.xlu0 %2263
        %2265 = vrot.lane.b32.xlu0 %v2258, 24
        %v2266 = vpop.permute.xlu0 %2265
        %2269 = vst.msk [vmem:[#allocation2 + $0x10] sm:$0xff] %vm2048, %v2264
        %2270 = vst.msk [vmem:[#allocation2 + $0x18] sm:$0xff] %vm2048, %v2266
        %v2271 = vld [vmem:[#allocation2] sm:$0xff]
        %v2272 = vld [vmem:[#allocation2 + $0x8] sm:$0xff]
        %v2273 = vld [vmem:[#allocation2 + $0x10] sm:$0xff]
        %v2274 = vld [vmem:[#allocation2 + $0x18] sm:$0xff]
        %v2275 = vadd.f32 %v407, %v2271
        %v2276 = vadd.f32 %v408, %v2272
        %v2277 = vadd.f32 %v409, %v2273
        %v2278 = vadd.f32 %v410, %v2274
        %v2279 = vld [vmem:[%s7] sm:$0x1]
        %v2280 = vld [vmem:[%s8] sm:$0x1]
        %v2281 = vsel %vm436, %v2275, 0.0
        %2282 = vadd.xlane.f32.xlu0 %v2281
        %v2283 = vpop.xlane.xlu0 %2282
        %v2284 = vsel %vm436, %v2276, 0.0
        %2285 = vadd.xlane.f32.xlu0 %v2284
        %v2286 = vpop.xlane.xlu0 %2285
        %v2287 = vsel %vm436, %v2277, 0.0
        %2288 = vadd.xlane.f32.xlu0 %v2287
        %v2289 = vpop.xlane.xlu0 %2288
        %v2290 = vsel %vm436, %v2278, 0.0
        %2291 = vadd.xlane.f32.xlu0 %v2290
        %v2292 = vpop.xlane.xlu0 %2291
        %v2293 = vrcp.pop 32.0
        %v2294 = vmul.f32 %v2283, %v2293
        %v2295 = vmul.f32 %v2286, %v2293
        %v2296 = vmul.f32 %v2289, %v2293
        %v2297 = vmul.f32 %v2292, %v2293
        %v2298 = vsub.f32 %v2275, %v2294
        %v2299 = vsub.f32 %v2276, %v2295
        %v2300 = vsub.f32 %v2277, %v2296
        %v2301 = vsub.f32 %v2278, %v2297
        %v2302 = vmul.f32 %v2298, %v2298
        %v2303 = vmul.f32 %v2299, %v2299
        %v2304 = vmul.f32 %v2300, %v2300
        %v2305 = vmul.f32 %v2301, %v2301
        %v2306 = vsel %vm436, %v2302, 0.0
        %2307 = vadd.xlane.f32.xlu0 %v2306
        %v2308 = vpop.xlane.xlu0 %2307
        %v2309 = vsel %vm436, %v2303, 0.0
        %2310 = vadd.xlane.f32.xlu0 %v2309
        %v2311 = vpop.xlane.xlu0 %2310
        %v2312 = vsel %vm436, %v2304, 0.0
        %2313 = vadd.xlane.f32.xlu0 %v2312
        %v2314 = vpop.xlane.xlu0 %2313
        %v2315 = vsel %vm436, %v2305, 0.0
        %2316 = vadd.xlane.f32.xlu0 %v2315
        %v2317 = vpop.xlane.xlu0 %2316
        %v2318 = vmul.f32 %v2308, %v2293
        %v2319 = vmul.f32 %v2311, %v2293
        %v2320 = vmul.f32 %v2314, %v2293
        %v2321 = vmul.f32 %v2317, %v2293
        %v2322 = vadd.f32 %v2318, 1e-05
        %v2323 = vadd.f32 %v2319, 1e-05
        %v2324 = vadd.f32 %v2320, 1e-05
        %v2325 = vadd.f32 %v2321, 1e-05
        %v2326 = vrsqrt.pop %v2322
        %v2327 = vrsqrt.pop %v2323
        %v2328 = vrsqrt.pop %v2324
        %v2329 = vrsqrt.pop %v2325
        %v2330 = vmul.f32 %v2298, %v2326
        %v2331 = vmul.f32 %v2299, %v2327
        %v2332 = vmul.f32 %v2300, %v2328
        %v2333 = vmul.f32 %v2301, %v2329
        %v2335 = vlaneseq
        %v2336 = vshrl.u32 %v2335, 7
        %v2337 = vsub.s32 0, %v2336
        %v2338 = vrot.slane %v2279, %v2337
        %v2340 = vmul.f32 %v2330, %v2338
        %v2341 = vmul.f32 %v2331, %v2338
        %v2342 = vmul.f32 %v2332, %v2338
        %v2343 = vmul.f32 %v2333, %v2338
        %v2345 = vlaneseq
        %v2346 = vshrl.u32 %v2345, 7
        %v2347 = vsub.s32 0, %v2346
        %v2348 = vrot.slane %v2280, %v2347
        %v2350 = vadd.f32 %v2340, %v2348
        %v2351 = vadd.f32 %v2341, %v2348
        %v2352 = vadd.f32 %v2342, %v2348
        %v2353 = vadd.f32 %v2343, %v2348
        %v2354 = vpack.c.bf16 %v2351, %v2350
        %v2355 = vpack.c.bf16 %v2353, %v2352
        %v2356 = vld [vmem:[#allocation3] sm:$0xf]
        %v2357 = vld [vmem:[#allocation3 + $0x4] sm:$0xf]
        %v2358 = vld [vmem:[#allocation3 + $0x8] sm:$0xf]
        %v2359 = vld [vmem:[#allocation3 + $0xc] sm:$0xf]
        %v2360 = vld [vmem:[%s4] sm:$0x1]
        %v2362 = vlaneseq
        %v2363 = vshrl.u32 %v2362, 7
        %v2364 = vsub.s32 0, %v2363
        %v2365 = vrot.slane %v2360, %v2364
        %v2371 = vunpack.c.l.b16 %v2356
        %v2372 = vunpack.c.l.b16 %v2357
        %v2373 = vunpack.c.l.b16 %v2358
        %v2374 = vunpack.c.l.b16 %v2359
        %v2375 = vpack.c.b16 %v2372, %v2371
        %v2376 = vpack.c.b16 %v2374, %v2373
        %v2380 = vsel %vm436, %v2354, 0
        %v2383 = vsel %vm436, %v2355, 0
        %2385 = vmatprep.subr.bf16.mxu0 0
        %2386 = vmatpush1.bf16.msra.mxu0 0
        %2387 = vmatprep.subr.bf16.mxu0 0
        %2388 = vmatpush1.bf16.msra.mxu0 0
        %2389 = vmatprep.subr.bf16.mxu0 0
        %2390 = vmatpush1.bf16.msra.mxu0 0
        %2391 = vmatprep.subr.bf16.mxu0 0
        %2392 = vmatpush1.bf16.msra.mxu0 0
        %2393 = vmatprep.subr.bf16.mxu0 0
        %2394 = vmatpush1.bf16.msra.mxu0 0
        %2395 = vmatprep.subr.bf16.mxu0 0
        %2396 = vmatpush1.bf16.msra.mxu0 0
        %2397 = vmatprep.subr.bf16.mxu0 0
        %2398 = vmatpush1.bf16.msra.mxu0 %v2376
        %2399 = vmatprep.subr.bf16.mxu0 0
        %2400 = vmatpush1.bf16.msra.mxu0 %v2375
        %2401 = vmatprep.subr.bf16.mxu0 0
        %2402 = vmatpush2.bf16.msra.mxu0 0
        %2403 = vmatprep.subr.bf16.mxu0 0
        %2404 = vmatpush2.bf16.msra.mxu0 0
        %2405 = vmatprep.subr.bf16.mxu0 0
        %2406 = vmatpush2.bf16.msra.mxu0 0
        %2407 = vmatprep.subr.bf16.mxu0 0
        %2408 = vmatpush2.bf16.msra.mxu0 0
        %2409 = vmatprep.subr.bf16.mxu0 0
        %2410 = vmatpush2.bf16.msra.mxu0 0
        %2411 = vmatprep.subr.bf16.mxu0 0
        %2412 = vmatpush2.bf16.msra.mxu0 0
        %2413 = vmatprep.subr.bf16.mxu0 0
        %2414 = vmatpush2.bf16.msra.mxu0 0
        %2415 = vmatprep.subr.bf16.mxu0 0
        %2416 = vmatpush2.bf16.msra.mxu0 0
        %2417 = vmatprep.mubr.bf16.mxu0 0
        %2418 = vmatmul.mubr.bf16.gmra.mxu0 %v2380
        %v2419 = vpop.f32.mrf.mxu0
        %v2420 = vadd.f32 %v2365, %v2419
        %v2421 = vpop.f32.mrf.mxu0
        %v2422 = vpop.f32.mrf.mxu0
        %v2423 = vadd.f32 %v2365, %v2422
        %v2424 = vpop.f32.mrf.mxu0
        %2425 = vmatprep.mubr.bf16.mxu0 0
        %2426 = vmatmul.mubr.bf16.gmra.mxu0 %v2383
        %v2427 = vpop.f32.mrf.mxu0
        %v2428 = vadd.f32 %v2365, %v2427
        %v2429 = vpop.f32.mrf.mxu0
        %v2430 = vpop.f32.mrf.mxu0
        %v2431 = vadd.f32 %v2365, %v2430
        %v2432 = vpop.f32.mrf.mxu0
        %2433 = vdwg.mxu0
        %v2434 = vmul.f32 %v2420, 0.5
        %v2435 = vmul.f32 %v2423, 0.5
        %v2436 = vmul.f32 %v2428, 0.5
        %v2437 = vmul.f32 %v2431, 0.5
        %v2438 = vmul.f32 %v2420, 0.70710677
        %v2439 = vmul.f32 %v2423, 0.70710677
        %v2440 = vmul.f32 %v2428, 0.70710677
        %v2441 = vmul.f32 %v2431, 0.70710677
        %vm2442 = vcmp.ge.f32.partialorder %v2438, 0.0
        %vm2443 = vcmp.ge.f32.partialorder %v2439, 0.0
        %vm2444 = vcmp.ge.f32.partialorder %v2440, 0.0
        %vm2445 = vcmp.ge.f32.partialorder %v2441, 0.0
        %v2446 = vsel %vm2442, 1.0, -1.0
        %v2447 = vsel %vm2443, 1.0, -1.0
        %v2448 = vsel %vm2444, 1.0, -1.0
        %v2449 = vsel %vm2445, 1.0, -1.0
        %v2450 = vand.u32 2147483647, %v2438
        %v2451 = vand.u32 2147483647, %v2439
        %v2452 = vand.u32 2147483647, %v2440
        %v2453 = vand.u32 2147483647, %v2441
        %v2454 = vmul.f32 %v2450, 0.3275911
        %v2455 = vmul.f32 %v2451, 0.3275911
        %v2456 = vmul.f32 %v2452, 0.3275911
        %v2457 = vmul.f32 %v2453, 0.3275911
        %v2458 = vadd.f32 %v2454, 1.0
        %v2459 = vadd.f32 %v2455, 1.0
        %v2460 = vadd.f32 %v2456, 1.0
        %v2461 = vadd.f32 %v2457, 1.0
        %v2462 = vrcp.pop %v2458
        %v2463 = vmul.f32 1.0, %v2462
        %v2464 = vrcp.pop %v2459
        %v2465 = vmul.f32 1.0, %v2464
        %v2466 = vrcp.pop %v2460
        %v2467 = vmul.f32 1.0, %v2466
        %v2468 = vrcp.pop %v2461
        %v2469 = vmul.f32 1.0, %v2468
        %v2470 = vmul.f32 %v2463, 1.0614054
        %v2471 = vmul.f32 %v2465, 1.0614054
        %v2472 = vmul.f32 %v2467, 1.0614054
        %v2473 = vmul.f32 %v2469, 1.0614054
        %v2474 = vadd.f32 %v2470, -1.4531521
        %v2475 = vadd.f32 %v2471, -1.4531521
        %v2476 = vadd.f32 %v2472, -1.4531521
        %v2477 = vadd.f32 %v2473, -1.4531521
        %v2478 = vmul.f32 %v2474, %v2463
        %v2479 = vmul.f32 %v2475, %v2465
        %v2480 = vmul.f32 %v2476, %v2467
        %v2481 = vmul.f32 %v2477, %v2469
        %v2482 = vadd.f32 %v2478, 1.4214138
        %v2483 = vadd.f32 %v2479, 1.4214138
        %v2484 = vadd.f32 %v2480, 1.4214138
        %v2485 = vadd.f32 %v2481, 1.4214138
        %v2486 = vmul.f32 %v2482, %v2463
        %v2487 = vmul.f32 %v2483, %v2465
        %v2488 = vmul.f32 %v2484, %v2467
        %v2489 = vmul.f32 %v2485, %v2469
        %v2490 = vadd.f32 %v2486, -0.28449672
        %v2491 = vadd.f32 %v2487, -0.28449672
        %v2492 = vadd.f32 %v2488, -0.28449672
        %v2493 = vadd.f32 %v2489, -0.28449672
        %v2494 = vmul.f32 %v2490, %v2463
        %v2495 = vmul.f32 %v2491, %v2465
        %v2496 = vmul.f32 %v2492, %v2467
        %v2497 = vmul.f32 %v2493, %v2469
        %v2498 = vadd.f32 %v2494, 0.2548296
        %v2499 = vadd.f32 %v2495, 0.2548296
        %v2500 = vadd.f32 %v2496, 0.2548296
        %v2501 = vadd.f32 %v2497, 0.2548296
        %v2502 = vmul.f32 %v2498, %v2463
        %v2503 = vmul.f32 %v2499, %v2465
        %v2504 = vmul.f32 %v2500, %v2467
        %v2505 = vmul.f32 %v2501, %v2469
        %v2506 = vsub.f32 0.0, %v2450
        %v2507 = vsub.f32 0.0, %v2451
        %v2508 = vsub.f32 0.0, %v2452
        %v2509 = vsub.f32 0.0, %v2453
        %v2510 = vmul.f32 %v2506, %v2450
        %v2511 = vmul.f32 %v2507, %v2451
        %v2512 = vmul.f32 %v2508, %v2452
        %v2513 = vmul.f32 %v2509, %v2453
        %v2514 = vmul.f32 %v2510, 1.442695
        %v2515 = vpow.pop %v2514
        %v2516 = vmul.f32 %v2511, 1.442695
        %v2517 = vpow.pop %v2516
        %v2518 = vmul.f32 %v2512, 1.442695
        %v2519 = vpow.pop %v2518
        %v2520 = vmul.f32 %v2513, 1.442695
        %v2521 = vpow.pop %v2520
        %v2522 = vmul.f32 %v2502, %v2515
        %v2523 = vmul.f32 %v2503, %v2517
        %v2524 = vmul.f32 %v2504, %v2519
        %v2525 = vmul.f32 %v2505, %v2521
        %v2526 = vsub.f32 1.0, %v2522
        %v2527 = vsub.f32 1.0, %v2523
        %v2528 = vsub.f32 1.0, %v2524
        %v2529 = vsub.f32 1.0, %v2525
        %v2530 = vmul.f32 %v2446, %v2526
        %v2531 = vmul.f32 %v2447, %v2527
        %v2532 = vmul.f32 %v2448, %v2528
        %v2533 = vmul.f32 %v2449, %v2529
        %v2534 = vadd.f32 %v2530, 1.0
        %v2535 = vadd.f32 %v2531, 1.0
        %v2536 = vadd.f32 %v2532, 1.0
        %v2537 = vadd.f32 %v2533, 1.0
        %v2538 = vmul.f32 %v2434, %v2534
        %v2539 = vmul.f32 %v2435, %v2535
        %v2540 = vmul.f32 %v2436, %v2536
        %v2541 = vmul.f32 %v2437, %v2537
        %v2542 = vpack.c.bf16 %v2539, %v2538
        %v2543 = vpack.c.bf16 %v2541, %v2540
        %v2544 = vld [vmem:[%s5] sm:$0xf]
        %v2545 = vld [vmem:[%s5 + $0x4] sm:$0xf]
        %v2546 = vld [vmem:[%s5 + $0x8] sm:$0xf]
        %v2547 = vld [vmem:[%s5 + $0xc] sm:$0xf]
        %v2548 = vld [vmem:[%s5 + $0x10] sm:$0xf]
        %v2549 = vld [vmem:[%s5 + $0x14] sm:$0xf]
        %v2550 = vld [vmem:[%s5 + $0x18] sm:$0xf]
        %v2551 = vld [vmem:[%s5 + $0x1c] sm:$0xf]
        %v2552 = vld [vmem:[%s5 + $0x20] sm:$0xf]
        %v2553 = vld [vmem:[%s5 + $0x24] sm:$0xf]
        %v2554 = vld [vmem:[%s5 + $0x28] sm:$0xf]
        %v2555 = vld [vmem:[%s5 + $0x2c] sm:$0xf]
        %v2556 = vld [vmem:[%s5 + $0x30] sm:$0xf]
        %v2557 = vld [vmem:[%s5 + $0x34] sm:$0xf]
        %v2558 = vld [vmem:[%s5 + $0x38] sm:$0xf]
        %v2559 = vld [vmem:[%s5 + $0x3c] sm:$0xf]
        %v2560 = vld [vmem:[%s6] sm:$0x1]
        %v2562 = vlaneseq
        %v2563 = vshrl.u32 %v2562, 7
        %v2564 = vsub.s32 0, %v2563
        %v2565 = vrot.slane %v2560, %v2564
        %v2583 = vunpack.c.l.b16 %v2544
        %v2584 = vunpack.c.l.b16 %v2545
        %v2585 = vunpack.c.l.b16 %v2546
        %v2586 = vunpack.c.l.b16 %v2547
        %v2587 = vunpack.c.l.b16 %v2548
        %v2588 = vunpack.c.l.b16 %v2549
        %v2589 = vunpack.c.l.b16 %v2550
        %v2590 = vunpack.c.l.b16 %v2551
        %v2591 = vunpack.c.l.b16 %v2552
        %v2592 = vunpack.c.l.b16 %v2553
        %v2593 = vunpack.c.l.b16 %v2554
        %v2594 = vunpack.c.l.b16 %v2555
        %v2595 = vunpack.c.l.b16 %v2556
        %v2596 = vunpack.c.l.b16 %v2557
        %v2597 = vunpack.c.l.b16 %v2558
        %v2598 = vunpack.c.l.b16 %v2559
        %v2599 = vpack.c.b16 %v2584, %v2583
        %v2600 = vpack.c.b16 %v2586, %v2585
        %v2601 = vpack.c.b16 %v2588, %v2587
        %v2602 = vpack.c.b16 %v2590, %v2589
        %v2603 = vpack.c.b16 %v2592, %v2591
        %v2604 = vpack.c.b16 %v2594, %v2593
        %v2605 = vpack.c.b16 %v2596, %v2595
        %v2606 = vpack.c.b16 %v2598, %v2597
        %2615 = vmatprep.subr.bf16.mxu0 0
        %2616 = vmatpush1.bf16.msra.mxu0 %v2606
        %2617 = vmatprep.subr.bf16.mxu0 0
        %2618 = vmatpush1.bf16.msra.mxu0 %v2605
        %2619 = vmatprep.subr.bf16.mxu0 0
        %2620 = vmatpush1.bf16.msra.mxu0 %v2604
        %2621 = vmatprep.subr.bf16.mxu0 0
        %2622 = vmatpush1.bf16.msra.mxu0 %v2603
        %2623 = vmatprep.subr.bf16.mxu0 0
        %2624 = vmatpush1.bf16.msra.mxu0 %v2602
        %2625 = vmatprep.subr.bf16.mxu0 0
        %2626 = vmatpush1.bf16.msra.mxu0 %v2601
        %2627 = vmatprep.subr.bf16.mxu0 0
        %2628 = vmatpush1.bf16.msra.mxu0 %v2600
        %2629 = vmatprep.subr.bf16.mxu0 0
        %2630 = vmatpush1.bf16.msra.mxu0 %v2599
        %2631 = vmatprep.subr.bf16.mxu0 0
        %2632 = vmatpush2.bf16.msra.mxu0 0
        %2633 = vmatprep.subr.bf16.mxu0 0
        %2634 = vmatpush2.bf16.msra.mxu0 0
        %2635 = vmatprep.subr.bf16.mxu0 0
        %2636 = vmatpush2.bf16.msra.mxu0 0
        %2637 = vmatprep.subr.bf16.mxu0 0
        %2638 = vmatpush2.bf16.msra.mxu0 0
        %2639 = vmatprep.subr.bf16.mxu0 0
        %2640 = vmatpush2.bf16.msra.mxu0 0
        %2641 = vmatprep.subr.bf16.mxu0 0
        %2642 = vmatpush2.bf16.msra.mxu0 0
        %2643 = vmatprep.subr.bf16.mxu0 0
        %2644 = vmatpush2.bf16.msra.mxu0 0
        %2645 = vmatprep.subr.bf16.mxu0 0
        %2646 = vmatpush2.bf16.msra.mxu0 0
        %2647 = vmatprep.mubr.bf16.mxu0 0
        %2648 = vmatmul.mubr.bf16.gmra.mxu0 %v2542
        %v2649 = vpop.f32.mrf.mxu0
        %v2650 = vadd.f32 %v2565, %v2649
        %v2651 = vpop.f32.mrf.mxu0
        %v2652 = vpop.f32.mrf.mxu0
        %v2653 = vadd.f32 %v2565, %v2652
        %v2654 = vpop.f32.mrf.mxu0
        %2655 = vmatprep.mubr.bf16.mxu0 0
        %2656 = vmatmul.mubr.bf16.gmra.mxu0 %v2543
        %v2657 = vpop.f32.mrf.mxu0
        %v2658 = vadd.f32 %v2565, %v2657
        %v2659 = vpop.f32.mrf.mxu0
        %v2660 = vpop.f32.mrf.mxu0
        %v2661 = vadd.f32 %v2565, %v2660
        %v2662 = vpop.f32.mrf.mxu0
        %2663 = vdwg.mxu0
        %v2664 = vadd.f32 %v2350, %v2650
        %v2665 = vadd.f32 %v2351, %v2653
        %v2666 = vadd.f32 %v2352, %v2658
        %v2667 = vadd.f32 %v2353, %v2661
        %v2668 = vld [vmem:[%s9] sm:$0x1]
        %v2669 = vld [vmem:[%s10] sm:$0x1]
        %v2670 = vsel %vm436, %v2664, 0.0
        %2671 = vadd.xlane.f32.xlu0 %v2670
        %v2672 = vpop.xlane.xlu0 %2671
        %v2673 = vsel %vm436, %v2665, 0.0
        %2674 = vadd.xlane.f32.xlu0 %v2673
        %v2675 = vpop.xlane.xlu0 %2674
        %v2676 = vsel %vm436, %v2666, 0.0
        %2677 = vadd.xlane.f32.xlu0 %v2676
        %v2678 = vpop.xlane.xlu0 %2677
        %v2679 = vsel %vm436, %v2667, 0.0
        %2680 = vadd.xlane.f32.xlu0 %v2679
        %v2681 = vpop.xlane.xlu0 %2680
        %v2682 = vmul.f32 %v2672, %v2293
        %v2683 = vmul.f32 %v2675, %v2293
        %v2684 = vmul.f32 %v2678, %v2293
        %v2685 = vmul.f32 %v2681, %v2293
        %v2686 = vsub.f32 %v2664, %v2682
        %v2687 = vsub.f32 %v2665, %v2683
        %v2688 = vsub.f32 %v2666, %v2684
        %v2689 = vsub.f32 %v2667, %v2685
        %v2690 = vmul.f32 %v2686, %v2686
        %v2691 = vmul.f32 %v2687, %v2687
        %v2692 = vmul.f32 %v2688, %v2688
        %v2693 = vmul.f32 %v2689, %v2689
        %v2694 = vsel %vm436, %v2690, 0.0
        %2695 = vadd.xlane.f32.xlu0 %v2694
        %v2696 = vpop.xlane.xlu0 %2695
        %v2697 = vsel %vm436, %v2691, 0.0
        %2698 = vadd.xlane.f32.xlu0 %v2697
        %v2699 = vpop.xlane.xlu0 %2698
        %v2700 = vsel %vm436, %v2692, 0.0
        %2701 = vadd.xlane.f32.xlu0 %v2700
        %v2702 = vpop.xlane.xlu0 %2701
        %v2703 = vsel %vm436, %v2693, 0.0
        %2704 = vadd.xlane.f32.xlu0 %v2703
        %v2705 = vpop.xlane.xlu0 %2704
        %v2706 = vmul.f32 %v2696, %v2293
        %v2707 = vmul.f32 %v2699, %v2293
        %v2708 = vmul.f32 %v2702, %v2293
        %v2709 = vmul.f32 %v2705, %v2293
        %v2710 = vadd.f32 %v2706, 1e-05
        %v2711 = vadd.f32 %v2707, 1e-05
        %v2712 = vadd.f32 %v2708, 1e-05
        %v2713 = vadd.f32 %v2709, 1e-05
        %v2714 = vrsqrt.pop %v2710
        %v2715 = vrsqrt.pop %v2711
        %v2716 = vrsqrt.pop %v2712
        %v2717 = vrsqrt.pop %v2713
        %v2718 = vmul.f32 %v2686, %v2714
        %v2719 = vmul.f32 %v2687, %v2715
        %v2720 = vmul.f32 %v2688, %v2716
        %v2721 = vmul.f32 %v2689, %v2717
        %v2723 = vlaneseq
        %v2724 = vshrl.u32 %v2723, 7
        %v2725 = vsub.s32 0, %v2724
        %v2726 = vrot.slane %v2668, %v2725
        %v2728 = vmul.f32 %v2718, %v2726
        %v2729 = vmul.f32 %v2719, %v2726
        %v2730 = vmul.f32 %v2720, %v2726
        %v2731 = vmul.f32 %v2721, %v2726
        %v2733 = vlaneseq
        %v2734 = vshrl.u32 %v2733, 7
        %v2735 = vsub.s32 0, %v2734
        %v2736 = vrot.slane %v2669, %v2735
        %v2738 = vadd.f32 %v2728, %v2736
        %v2739 = vadd.f32 %v2729, %v2736
        %v2740 = vadd.f32 %v2730, %v2736
        %v2741 = vadd.f32 %v2731, %v2736
        %2742 = vst.msk [vmem:[%s397] sm:$0xff] %vm436, %v2738
        %2743 = vst.msk [vmem:[%s397 + $0x8] sm:$0xff] %vm436, %v2739
        %2744 = vst.msk [vmem:[%s397 + $0x10] sm:$0xff] %vm436, %v2740
        %2745 = vst.msk [vmem:[%s397 + $0x18] sm:$0xff] %vm436, %v2741
        %s2746 = sand.u32 %s270, 1
        %s2747 = scalar_lea.sflag [#allocation5], %s2746
        %s2748 = sand.u32 %s270, 1
        %s2749 = smul.addr %s2748, 32
        %s2750 = scalar_lea.vmem [#allocation6], %s2749
        // Predicated region
        $region76: #{tpu_custom_call.1} parent=63 // pred_check
          %p2751 = pneg %p280
        $region77: #{tpu_custom_call.1} parent=63 // pred_check_branch
          %2753 = sbr.rel (%p2751) target = $region79
        $region78: #{tpu_custom_call.1} parent=63 // pred_region
          %s2754 = smul.u32 2, %s26
          %s2756 = ssub.s32 512, 512
          %2757 = vsyncadd %s2747, %s2756
          %s2758 = smul.addr %s2754, 2
          %s2759 = smul.addr %s2758, 128
          %s2760 = scalar_lea.hbm %s11, %s2759
          %s2761 = sshll.u32 %s2750, 4
          %s2762 = int_to_ptr.vmem [resolvable:$true] %s2761
          %2767 = dma.vmem_to_hbm [thread:$0]  %s2762, 512, %s2760, %s2747, 128, 128, 8
        $region79: #{tpu_custom_call.1} parent=63 // pred_fallthru
          _
      $region64: #{tpu_custom_call.1} parent=5 // pred_fallthru
        _
      %p2768 = scmp.le.s32.totalorder 2, %s21
      // Predicated region
      $region80: #{tpu_custom_call.1} parent=5 // pred_check
        %p2769 = pneg %p2768
      $region81: #{tpu_custom_call.1} parent=5 // pred_check_branch
        %2771 = sbr.rel (%p2769) target = $region83
      $region82: #{tpu_custom_call.1} parent=5 // pred_region
        %s2772 = ssub.s32 %s21, 2
        // Predicated region
        $region84: #{tpu_custom_call.1} parent=82 // pred_check
          %p2773 = pneg %p286
        $region85: #{tpu_custom_call.1} parent=82 // pred_check_branch
          %2775 = sbr.rel (%p2773) target = $region87
        $region86: #{tpu_custom_call.1} parent=82 // pred_region
          %s2776 = sand.u32 %s271, 1
          %s2777 = scalar_lea.sflag [#allocation5], %s2776
          %s2778 = sand.u32 %s271, 1
          %s2779 = smul.addr %s2778, 32
          %s2780 = scalar_lea.vmem [#allocation6], %s2779
          %2781 = dma.done %s2777, 512
        $region87: #{tpu_custom_call.1} parent=82 // pred_fallthru
          _
      $region83: #{tpu_custom_call.1} parent=5 // pred_fallthru
        _
    $region6: #{tpu_custom_call.1} parent=1 // loop_footer
      %s25 = sadd.s32 1, %s21
    $region7: #{tpu_custom_call.1} parent=1 // loop_footer_branch
      %20 = sbr.rel target = $region3
    $region8: #{tpu_custom_call.1} parent=1 // loop_exit
      _
    %2782 = vsyncpa [#allocation4], 1
    %s2783 = scalar_lea.sflag [#allocation4], 1
    %2784 = vsyncpa %s2783, 1
    %2785 = vsyncpa [#allocation5], 1
    %s2786 = scalar_lea.sflag [#allocation5], 1
    %2787 = vsyncpa %s2786, 1

</llo_original>
